<compile_context>
chip_gen: v7x
topology: tpu7x:2x2x1
jax: 0.10.0
libtpu: 0.0.40
codegen_flags: <defaults>
</compile_context>

<pallas_src>
import functools

import jax
import jax.numpy as jnp
from jax.experimental import pallas as pl
from jax.experimental.pallas import tpu as pltpu


_LN_EPS = 1e-5


# --------------------------------------------------------------------------
# In-kernel helpers (trace-time; everything stays in vregs/VMEM)
# --------------------------------------------------------------------------
def _layer_norm(x, gamma, beta, eps):
    # x: (M, C) f32; gamma/beta: (1, C) f32
    m = jnp.mean(x, axis=-1, keepdims=True)
    v = jnp.mean(jnp.square(x - m), axis=-1, keepdims=True)
    return (x - m) * jax.lax.rsqrt(v + eps) * gamma + beta


def _softmax_rows(s):
    s = s - jnp.max(s, axis=-1, keepdims=True)
    p = jnp.exp(s)
    return p * pl.reciprocal(jnp.sum(p, axis=-1, keepdims=True), approx=True)


def _multihead_attention(q_src, kv_src, wq_ref, wk_ref, wv_ref, wo_ref,
                         n_rows_q, n_rows_kv, n_q_blocks):
    """Fused multi-head attention, fully inside a kernel.

    q_src : (n_q_blocks * n_rows_q,  Dq)  f32 (already normalized)
    kv_src: (n_q_blocks * n_rows_kv, Dkv) f32 (already normalized)
    wq/wk/wv: (H, Dq|Dkv, dh) bf16   wo: (H, dh, Dout) bf16
    Returns concat_heads(softmax(q k^T / sqrt(dh)) v) @ Wo  as
    (n_q_blocks * n_rows_q, Dout) f32 (no bias).
    """
    heads = wq_ref.shape[0]
    dh = wq_ref.shape[2]
    d_out = wo_ref.shape[2]
    scale = float(dh) ** -0.5

    q_b = q_src.astype(jnp.bfloat16)
    kv_b = kv_src.astype(jnp.bfloat16)

    out = jnp.zeros((n_q_blocks * n_rows_q, d_out), jnp.float32)
    for h in range(heads):                       # trace-time unroll (small H)
        qh = jnp.dot(q_b, wq_ref[h], preferred_element_type=jnp.float32)
        kh = jnp.dot(kv_b, wk_ref[h], preferred_element_type=jnp.float32)
        vh = jnp.dot(kv_b, wv_ref[h], preferred_element_type=jnp.float32)
        pieces = []
        for g in range(n_q_blocks):              # per-group attention
            qg = qh[g * n_rows_q:(g + 1) * n_rows_q, :]
            kg = kh[g * n_rows_kv:(g + 1) * n_rows_kv, :]
            vg = vh[g * n_rows_kv:(g + 1) * n_rows_kv, :]
            s = jnp.dot(qg, kg.T, preferred_element_type=jnp.float32) * scale
            p = _softmax_rows(s)
            pieces.append(jnp.dot(p, vg, preferred_element_type=jnp.float32))
        oh = jnp.concatenate(pieces, axis=0) if n_q_blocks > 1 else pieces[0]
        out = out + jnp.dot(oh.astype(jnp.bfloat16), wo_ref[h],
                            preferred_element_type=jnp.float32)
    return out


# --------------------------------------------------------------------------
# Fused kernels
# --------------------------------------------------------------------------
def _cross_attn_kernel(x_ref, lat_ref, nxg_ref, nxb_ref, nlg_ref, nlb_ref,
                       wq_ref, wk_ref, wv_ref, wo_ref, bo_ref, o_ref, *, eps):
    # x_ref: (1, gb, Nin, Cin)   lat_ref: (gb, NL, D)   o_ref: (1, gb, NL, D)
    _, gb, n_in, c_in = x_ref.shape
    _, n_lat, d = lat_ref.shape

    x = x_ref[...].reshape(gb * n_in, c_in).astype(jnp.float32)
    lat = lat_ref[...].reshape(gb * n_lat, d).astype(jnp.float32)

    xn = _layer_norm(x, nxg_ref[...], nxb_ref[...], eps)
    ln = _layer_norm(lat, nlg_ref[...], nlb_ref[...], eps)

    attn = _multihead_attention(ln, xn, wq_ref, wk_ref, wv_ref, wo_ref,
                                n_rows_q=n_lat, n_rows_kv=n_in, n_q_blocks=gb)
    out = attn + bo_ref[...] + lat              # residual with original latents
    o_ref[...] = out.reshape(1, gb, n_lat, d).astype(o_ref.dtype)


def _sa_block_kernel(lat_ref, n1g_ref, n1b_ref, wq_ref, wk_ref, wv_ref, wo_ref,
                     bo_ref, n2g_ref, n2b_ref, w1_ref, b1_ref, w2_ref, b2_ref,
                     o_ref, *, eps):
    # lat_ref / o_ref: (1, gb, NL, D)
    _, gb, n_lat, d = lat_ref.shape
    lat = lat_ref[...].reshape(gb * n_lat, d).astype(jnp.float32)

    # --- pre-norm multi-head self-attention + residual ---
    h = _layer_norm(lat, n1g_ref[...], n1b_ref[...], eps)
    attn = _multihead_attention(h, h, wq_ref, wk_ref, wv_ref, wo_ref,
                                n_rows_q=n_lat, n_rows_kv=n_lat, n_q_blocks=gb)
    lat = lat + attn + bo_ref[...]

    # --- pre-norm MLP (D -> 4D -> GELU -> D) + residual ---
    h = _layer_norm(lat, n2g_ref[...], n2b_ref[...], eps)
    h = jnp.dot(h.astype(jnp.bfloat16), w1_ref[...],
                preferred_element_type=jnp.float32) + b1_ref[...]
    h = jax.nn.gelu(h, approximate=True)
    h = jnp.dot(h.astype(jnp.bfloat16), w2_ref[...],
                preferred_element_type=jnp.float32) + b2_ref[...]
    lat = lat + h

    o_ref[...] = lat.reshape(1, gb, n_lat, d).astype(o_ref.dtype)


# --------------------------------------------------------------------------
# pallas_call wrappers
# --------------------------------------------------------------------------
def _largest_divisor_leq(n, cap):
    for d in range(max(1, min(n, cap)), 0, -1):
        if n % d == 0:
            return d
    return 1


def _full_spec(shape):
    nd = len(shape)
    return pl.BlockSpec(shape, lambda *idx, _nd=nd: (0,) * _nd)


def cross_attention(xg, latents, p):
    B, G, Nin, Cin = xg.shape
    _, NL, D = latents.shape
    # Cap per-step rows so the tile stays small vs. v7x's 64 MiB VMEM.
    gb = _largest_divisor_leq(G, max(1, 256 // max(Nin, NL)))
    grid = (B, G // gb)

    return pl.pallas_call(
        functools.partial(_cross_attn_kernel, eps=_LN_EPS),
        out_shape=jax.ShapeDtypeStruct((B, G, NL, D), jnp.float32),
        grid=grid,
        in_specs=[
            pl.BlockSpec((1, gb, Nin, Cin), lambda b, j: (b, j, 0, 0)),
            pl.BlockSpec((gb, NL, D), lambda b, j: (j, 0, 0)),   # batch-invariant
            _full_spec(p["norm_x_g"].shape), _full_spec(p["norm_x_b"].shape),
            _full_spec(p["norm_l_g"].shape), _full_spec(p["norm_l_b"].shape),
            _full_spec(p["wq"].shape), _full_spec(p["wk"].shape),
            _full_spec(p["wv"].shape), _full_spec(p["wo"].shape),
            _full_spec(p["bo"].shape),
        ],
        out_specs=pl.BlockSpec((1, gb, NL, D), lambda b, j: (b, j, 0, 0)),
        compiler_params=pltpu.CompilerParams(
            dimension_semantics=("parallel", "parallel")),
    )(xg, latents, p["norm_x_g"], p["norm_x_b"], p["norm_l_g"], p["norm_l_b"],
      p["wq"], p["wk"], p["wv"], p["wo"], p["bo"])


_SA_KEYS = ("norm1_g", "norm1_b", "wq", "wk", "wv", "wo", "bo",
            "norm2_g", "norm2_b", "w1", "b1", "w2", "b2")


def transformer_block(lat, p):
    B, G, NL, D = lat.shape
    gb = _largest_divisor_leq(G, max(1, 256 // NL))
    grid = (B, G // gb)

    return pl.pallas_call(
        functools.partial(_sa_block_kernel, eps=_LN_EPS),
        out_shape=jax.ShapeDtypeStruct((B, G, NL, D), jnp.float32),
        grid=grid,
        in_specs=[pl.BlockSpec((1, gb, NL, D), lambda b, j: (b, j, 0, 0))]
                 + [_full_spec(p[k].shape) for k in _SA_KEYS],
        out_specs=pl.BlockSpec((1, gb, NL, D), lambda b, j: (b, j, 0, 0)),
        compiler_params=pltpu.CompilerParams(
            dimension_semantics=("parallel", "parallel")),
    )(lat, *(p[k] for k in _SA_KEYS))


# --------------------------------------------------------------------------
# Parameter init (deterministic, synthetic, kernel-ready layout)
# --------------------------------------------------------------------------
def init_params(key, in_dim, latent_dim, latent_heads, groups, n_latents,
                sa_dim_head, sa_heads, sa_layers, weight_dtype=jnp.bfloat16):
    def nrm(k, shape, std=0.02):
        return (std * jax.random.normal(k, shape)).astype(jnp.float32)

    def stack_in(w, heads):      # (K, H*dh) -> (H, K, dh)
        K, N = w.shape
        dh = N // heads
        return jnp.transpose(w.reshape(K, heads, dh), (1, 0, 2)).astype(weight_dtype)

    def stack_out(w, heads):     # (H*dh, N) -> (H, dh, N)
        K, N = w.shape
        dh = K // heads
        return w.reshape(heads, dh, N).astype(weight_dtype)

    def row(v):
        return v.reshape(1, -1).astype(jnp.float32)

    keys = iter(jax.random.split(key, 16 + 8 * sa_layers))
    inner = sa_heads * sa_dim_head
    hidden = 4 * latent_dim

    params = {
        "latents": jax.random.normal(next(keys), (groups, n_latents, latent_dim),
                                     dtype=jnp.float32),
        "cross_attn": {
            "norm_x_g": row(jnp.ones((in_dim,))),
            "norm_x_b": row(jnp.zeros((in_dim,))),
            "norm_l_g": row(jnp.ones((latent_dim,))),
            "norm_l_b": row(jnp.zeros((latent_dim,))),
            "wq": stack_in(nrm(next(keys), (latent_dim, latent_dim)), latent_heads),
            "wk": stack_in(nrm(next(keys), (in_dim, latent_dim)), latent_heads),
            "wv": stack_in(nrm(next(keys), (in_dim, latent_dim)), latent_heads),
            "wo": stack_out(nrm(next(keys), (latent_dim, latent_dim)), latent_heads),
            "bo": row(jnp.zeros((latent_dim,))),
        },
        "blocks": [],
    }
    for _ in range(sa_layers):
        params["blocks"].append({
            "norm1_g": row(jnp.ones((latent_dim,))),
            "norm1_b": row(jnp.zeros((latent_dim,))),
            "wq": stack_in(nrm(next(keys), (latent_dim, inner)), sa_heads),
            "wk": stack_in(nrm(next(keys), (latent_dim, inner)), sa_heads),
            "wv": stack_in(nrm(next(keys), (latent_dim, inner)), sa_heads),
            "wo": stack_out(nrm(next(keys), (inner, latent_dim)), sa_heads),
            "bo": row(jnp.zeros((latent_dim,))),
            "norm2_g": row(jnp.ones((latent_dim,))),
            "norm2_b": row(jnp.zeros((latent_dim,))),
            "w1": nrm(next(keys), (latent_dim, hidden)).astype(weight_dtype),
            "b1": row(jnp.zeros((hidden,))),
            "w2": nrm(next(keys), (hidden, latent_dim)).astype(weight_dtype),
            "b2": row(jnp.zeros((latent_dim,))),
        })
    return params


# --------------------------------------------------------------------------
# HiPBlock forward
# --------------------------------------------------------------------------
def hip_block_forward(x, params, *, groups, latent_heads, sa_heads, sa_dim_head):
    del latent_heads, sa_heads, sa_dim_head  # encoded in the stacked weight shapes
    B, S, Cin = x.shape
    G = groups
    Nin = S // G
    latents = params["latents"]                    # (G, NL, D)
    _, NL, D = latents.shape

    xg = x.reshape(B, G, Nin, Cin)                 # 'b (g n) c -> b g n c' (free)
    lat = cross_attention(xg, latents, params["cross_attn"])
    for blk in params["blocks"]:
        lat = transformer_block(lat, blk)
    return lat.reshape(B, G * NL, D)               # 'b g n c -> b (g n) c' (free)


# --------------------------------------------------------------------------
if __name__ == "__main__":
    # Small, module-consistent config.
    B, in_dim = 2, 16
    groups, n_latents = 2, 8
    latent_dim, latent_heads = 32, 4
    sa_dim_head, sa_heads, sa_layers = 8, 4, 2
    seq = groups * 8                               # S must be divisible by groups

    key = jax.random.PRNGKey(0)
    kx, kp = jax.random.split(key)
    x = jax.random.normal(kx, (B, seq, in_dim), dtype=jnp.float32)
    params = init_params(kp, in_dim, latent_dim, latent_heads, groups, n_latents,
                         sa_dim_head, sa_heads, sa_layers)

    fwd = functools.partial(hip_block_forward, groups=groups,
                            latent_heads=latent_heads, sa_heads=sa_heads,
                            sa_dim_head=sa_dim_head)
    out = jax.jit(fwd)(x, params)
    out = jax.block_until_ready(out)
    assert out.shape == (B, groups * n_latents, latent_dim), out.shape
    assert bool(jnp.all(jnp.isfinite(out)))
    print("KERNEL_OK")
</pallas_src>

<mosaic_0001>
module attributes {stable_mosaic.version = 11 : i64} {
  func.func @_cross_attn_kernel(%arg0: i32, %arg1: i32, %arg2: memref<1x2x8x16xf32, #tpu.memory_space<vmem>>, %arg3: memref<2x8x32xf32, #tpu.memory_space<vmem>>, %arg4: memref<1x16xf32, #tpu.memory_space<vmem>>, %arg5: memref<1x16xf32, #tpu.memory_space<vmem>>, %arg6: memref<1x32xf32, #tpu.memory_space<vmem>>, %arg7: memref<1x32xf32, #tpu.memory_space<vmem>>, %arg8: memref<4x32x8xbf16, #tpu.memory_space<vmem>>, %arg9: memref<4x16x8xbf16, #tpu.memory_space<vmem>>, %arg10: memref<4x16x8xbf16, #tpu.memory_space<vmem>>, %arg11: memref<4x8x32xbf16, #tpu.memory_space<vmem>>, %arg12: memref<1x32xf32, #tpu.memory_space<vmem>>, %arg13: memref<1x2x8x32xf32, #tpu.memory_space<vmem>>) attributes {dimension_semantics = [#tpu.dimension_semantics<parallel>, #tpu.dimension_semantics<parallel>], iteration_bounds = array<i64: 2, 1>, scalar_prefetch = 0 : i64, scratch_operands = 0 : i64, tpu.core_type = #tpu.core_type<tc>, window_params = [{transform_indices = @transform_0, window_bounds = array<i64: 1, 2, 8, 16>}, {transform_indices = @transform_1, window_bounds = array<i64: 2, 8, 32>}, {pipeline_mode = #tpu.pipeline_mode<synchronous>, transform_indices = @transform_2, window_bounds = array<i64: 1, 16>}, {pipeline_mode = #tpu.pipeline_mode<synchronous>, transform_indices = @transform_3, window_bounds = array<i64: 1, 16>}, {pipeline_mode = #tpu.pipeline_mode<synchronous>, transform_indices = @transform_4, window_bounds = array<i64: 1, 32>}, {pipeline_mode = #tpu.pipeline_mode<synchronous>, transform_indices = @transform_5, window_bounds = array<i64: 1, 32>}, {pipeline_mode = #tpu.pipeline_mode<synchronous>, transform_indices = @transform_6, window_bounds = array<i64: 4, 32, 8>}, {pipeline_mode = #tpu.pipeline_mode<synchronous>, transform_indices = @transform_7, window_bounds = array<i64: 4, 16, 8>}, {pipeline_mode = #tpu.pipeline_mode<synchronous>, transform_indices = @transform_8, window_bounds = array<i64: 4, 16, 8>}, {pipeline_mode = #tpu.pipeline_mode<synchronous>, transform_indices = @transform_9, window_bounds = array<i64: 4, 8, 32>}, {pipeline_mode = #tpu.pipeline_mode<synchronous>, transform_indices = @transform_10, window_bounds = array<i64: 1, 32>}, {transform_indices = @transform_11, window_bounds = array<i64: 1, 2, 8, 32>}]} {
    %c0 = arith.constant 0 : index
    %c0_0 = arith.constant 0 : index
    %c0_1 = arith.constant 0 : index
    %c0_2 = arith.constant 0 : index
    %0 = vector.load %arg2[%c0, %c0_0, %c0_1, %c0_2] : memref<1x2x8x16xf32, #tpu.memory_space<vmem>>, vector<1x2x8x16xf32>
    %1 = vector.shape_cast %0 : vector<1x2x8x16xf32> to vector<16x16xf32>
    %c0_3 = arith.constant 0 : index
    %c0_4 = arith.constant 0 : index
    %c0_5 = arith.constant 0 : index
    %2 = vector.load %arg3[%c0_3, %c0_4, %c0_5] : memref<2x8x32xf32, #tpu.memory_space<vmem>>, vector<2x8x32xf32>
    %3 = vector.shape_cast %2 : vector<2x8x32xf32> to vector<16x32xf32>
    %c0_6 = arith.constant 0 : index
    %c0_7 = arith.constant 0 : index
    %4 = vector.load %arg4[%c0_6, %c0_7] : memref<1x16xf32, #tpu.memory_space<vmem>>, vector<1x16xf32>
    %c0_8 = arith.constant 0 : index
    %c0_9 = arith.constant 0 : index
    %5 = vector.load %arg5[%c0_8, %c0_9] : memref<1x16xf32, #tpu.memory_space<vmem>>, vector<1x16xf32>
    %cst = arith.constant dense<0.000000e+00> : vector<16xf32>
    %6 = vector.multi_reduction <add>, %1, %cst [1] : vector<16x16xf32> to vector<16xf32>
    %7 = vector.shape_cast %6 : vector<16xf32> to vector<16x1xf32>
    %cst_10 = arith.constant 1.600000e+01 : f32
    %8 = vector.broadcast %cst_10 : f32 to vector<16x1xf32>
    %9 = arith.divf %7, %8 : vector<16x1xf32>
    %10 = vector.broadcast %9 : vector<16x1xf32> to vector<16x16xf32>
    %11 = arith.subf %1, %10 : vector<16x16xf32>
    %12 = arith.mulf %11, %11 : vector<16x16xf32>
    %cst_11 = arith.constant dense<0.000000e+00> : vector<16xf32>
    %13 = vector.multi_reduction <add>, %12, %cst_11 [1] : vector<16x16xf32> to vector<16xf32>
    %14 = vector.shape_cast %13 : vector<16xf32> to vector<16x1xf32>
    %cst_12 = arith.constant 1.600000e+01 : f32
    %15 = vector.broadcast %cst_12 : f32 to vector<16x1xf32>
    %16 = arith.divf %14, %15 : vector<16x1xf32>
    %17 = vector.broadcast %9 : vector<16x1xf32> to vector<16x16xf32>
    %18 = arith.subf %1, %17 : vector<16x16xf32>
    %cst_13 = arith.constant 9.99999974E-6 : f32
    %19 = vector.broadcast %cst_13 : f32 to vector<16x1xf32>
    %20 = arith.addf %16, %19 : vector<16x1xf32>
    %21 = math.rsqrt %20 : vector<16x1xf32>
    %22 = vector.broadcast %21 : vector<16x1xf32> to vector<16x16xf32>
    %23 = arith.mulf %18, %22 : vector<16x16xf32>
    %24 = vector.broadcast %4 : vector<1x16xf32> to vector<16x16xf32>
    %25 = arith.mulf %23, %24 : vector<16x16xf32>
    %26 = vector.broadcast %5 : vector<1x16xf32> to vector<16x16xf32>
    %27 = arith.addf %25, %26 : vector<16x16xf32>
    %c0_14 = arith.constant 0 : index
    %c0_15 = arith.constant 0 : index
    %28 = vector.load %arg6[%c0_14, %c0_15] : memref<1x32xf32, #tpu.memory_space<vmem>>, vector<1x32xf32>
    %c0_16 = arith.constant 0 : index
    %c0_17 = arith.constant 0 : index
    %29 = vector.load %arg7[%c0_16, %c0_17] : memref<1x32xf32, #tpu.memory_space<vmem>>, vector<1x32xf32>
    %cst_18 = arith.constant dense<0.000000e+00> : vector<16xf32>
    %30 = vector.multi_reduction <add>, %3, %cst_18 [1] : vector<16x32xf32> to vector<16xf32>
    %31 = vector.shape_cast %30 : vector<16xf32> to vector<16x1xf32>
    %cst_19 = arith.constant 3.200000e+01 : f32
    %32 = vector.broadcast %cst_19 : f32 to vector<16x1xf32>
    %33 = arith.divf %31, %32 : vector<16x1xf32>
    %34 = vector.broadcast %33 : vector<16x1xf32> to vector<16x32xf32>
    %35 = arith.subf %3, %34 : vector<16x32xf32>
    %36 = arith.mulf %35, %35 : vector<16x32xf32>
    %cst_20 = arith.constant dense<0.000000e+00> : vector<16xf32>
    %37 = vector.multi_reduction <add>, %36, %cst_20 [1] : vector<16x32xf32> to vector<16xf32>
    %38 = vector.shape_cast %37 : vector<16xf32> to vector<16x1xf32>
    %cst_21 = arith.constant 3.200000e+01 : f32
    %39 = vector.broadcast %cst_21 : f32 to vector<16x1xf32>
    %40 = arith.divf %38, %39 : vector<16x1xf32>
    %41 = vector.broadcast %33 : vector<16x1xf32> to vector<16x32xf32>
    %42 = arith.subf %3, %41 : vector<16x32xf32>
    %cst_22 = arith.constant 9.99999974E-6 : f32
    %43 = vector.broadcast %cst_22 : f32 to vector<16x1xf32>
    %44 = arith.addf %40, %43 : vector<16x1xf32>
    %45 = math.rsqrt %44 : vector<16x1xf32>
    %46 = vector.broadcast %45 : vector<16x1xf32> to vector<16x32xf32>
    %47 = arith.mulf %42, %46 : vector<16x32xf32>
    %48 = vector.broadcast %28 : vector<1x32xf32> to vector<16x32xf32>
    %49 = arith.mulf %47, %48 : vector<16x32xf32>
    %50 = vector.broadcast %29 : vector<1x32xf32> to vector<16x32xf32>
    %51 = arith.addf %49, %50 : vector<16x32xf32>
    %52 = arith.truncf %51 : vector<16x32xf32> to vector<16x32xbf16>
    %53 = arith.truncf %27 : vector<16x16xf32> to vector<16x16xbf16>
    %cst_23 = arith.constant 0.000000e+00 : f32
    %54 = vector.broadcast %cst_23 : f32 to vector<16x32xf32>
    %c0_24 = arith.constant 0 : index
    %c0_25 = arith.constant 0 : index
    %c0_26 = arith.constant 0 : index
    %55 = vector.load %arg8[%c0_24, %c0_25, %c0_26] : memref<4x32x8xbf16, #tpu.memory_space<vmem>>, vector<1x32x8xbf16>
    %56 = vector.shape_cast %55 : vector<1x32x8xbf16> to vector<32x8xbf16>
    %cst_27 = arith.constant dense<0.000000e+00> : vector<16x8xf32>
    %57 = tpu.matmul %52, %56, %cst_27 {dimension_numbers = #tpu.dot_dimension_numbers<[1], [0], [0], [1], [0, 0, 1, 1], [], []>} : vector<16x32xbf16>, vector<32x8xbf16>, vector<16x8xf32> -> vector<16x8xf32>
    %c0_28 = arith.constant 0 : index
    %c0_29 = arith.constant 0 : index
    %c0_30 = arith.constant 0 : index
    %58 = vector.load %arg9[%c0_28, %c0_29, %c0_30] : memref<4x16x8xbf16, #tpu.memory_space<vmem>>, vector<1x16x8xbf16>
    %59 = vector.shape_cast %58 : vector<1x16x8xbf16> to vector<16x8xbf16>
    %cst_31 = arith.constant dense<0.000000e+00> : vector<16x8xf32>
    %60 = tpu.matmul %53, %59, %cst_31 {dimension_numbers = #tpu.dot_dimension_numbers<[1], [0], [0], [1], [0, 0, 1, 1], [], []>} : vector<16x16xbf16>, vector<16x8xbf16>, vector<16x8xf32> -> vector<16x8xf32>
    %c0_32 = arith.constant 0 : index
    %c0_33 = arith.constant 0 : index
    %c0_34 = arith.constant 0 : index
    %61 = vector.load %arg10[%c0_32, %c0_33, %c0_34] : memref<4x16x8xbf16, #tpu.memory_space<vmem>>, vector<1x16x8xbf16>
    %62 = vector.shape_cast %61 : vector<1x16x8xbf16> to vector<16x8xbf16>
    %cst_35 = arith.constant dense<0.000000e+00> : vector<16x8xf32>
    %63 = tpu.matmul %53, %62, %cst_35 {dimension_numbers = #tpu.dot_dimension_numbers<[1], [0], [0], [1], [0, 0, 1, 1], [], []>} : vector<16x16xbf16>, vector<16x8xbf16>, vector<16x8xf32> -> vector<16x8xf32>
    %64 = vector.extract_strided_slice %57 {offsets = [0, 0], sizes = [8, 8], strides = [1, 1]} : vector<16x8xf32> to vector<8x8xf32>
    %65 = vector.extract_strided_slice %60 {offsets = [0, 0], sizes = [8, 8], strides = [1, 1]} : vector<16x8xf32> to vector<8x8xf32>
    %66 = vector.extract_strided_slice %63 {offsets = [0, 0], sizes = [8, 8], strides = [1, 1]} : vector<16x8xf32> to vector<8x8xf32>
    %67 = tpu.transpose %65, [1, 0] : vector<8x8xf32> -> vector<8x8xf32>
    %cst_36 = arith.constant dense<0.000000e+00> : vector<8x8xf32>
    %68 = tpu.matmul %64, %67, %cst_36 {dimension_numbers = #tpu.dot_dimension_numbers<[1], [0], [0], [1], [0, 0, 1, 1], [], []>} : vector<8x8xf32>, vector<8x8xf32>, vector<8x8xf32> -> vector<8x8xf32>
    %cst_37 = arith.constant 0.353553385 : f32
    %69 = vector.broadcast %cst_37 : f32 to vector<8x8xf32>
    %70 = arith.mulf %68, %69 : vector<8x8xf32>
    %cst_38 = arith.constant dense<0xFF800000> : vector<8xf32>
    %71 = vector.multi_reduction <maximumf>, %70, %cst_38 [1] : vector<8x8xf32> to vector<8xf32>
    %72 = vector.shape_cast %71 : vector<8xf32> to vector<8x1xf32>
    %73 = vector.broadcast %72 : vector<8x1xf32> to vector<8x8xf32>
    %74 = arith.subf %70, %73 : vector<8x8xf32>
    %75 = math.exp %74 : vector<8x8xf32>
    %cst_39 = arith.constant dense<0.000000e+00> : vector<8xf32>
    %76 = vector.multi_reduction <add>, %75, %cst_39 [1] : vector<8x8xf32> to vector<8xf32>
    %77 = vector.shape_cast %76 : vector<8xf32> to vector<8x1xf32>
    %78 = tpu.reciprocal %77 {approx = true} : vector<8x1xf32> -> vector<8x1xf32>
    %79 = vector.broadcast %78 : vector<8x1xf32> to vector<8x8xf32>
    %80 = arith.mulf %75, %79 : vector<8x8xf32>
    %cst_40 = arith.constant dense<0.000000e+00> : vector<8x8xf32>
    %81 = tpu.matmul %80, %66, %cst_40 {dimension_numbers = #tpu.dot_dimension_numbers<[1], [0], [0], [1], [0, 0, 1, 1], [], []>} : vector<8x8xf32>, vector<8x8xf32>, vector<8x8xf32> -> vector<8x8xf32>
    %82 = vector.extract_strided_slice %57 {offsets = [8, 0], sizes = [8, 8], strides = [1, 1]} : vector<16x8xf32> to vector<8x8xf32>
    %83 = vector.extract_strided_slice %60 {offsets = [8, 0], sizes = [8, 8], strides = [1, 1]} : vector<16x8xf32> to vector<8x8xf32>
    %84 = vector.extract_strided_slice %63 {offsets = [8, 0], sizes = [8, 8], strides = [1, 1]} : vector<16x8xf32> to vector<8x8xf32>
    %85 = tpu.transpose %83, [1, 0] : vector<8x8xf32> -> vector<8x8xf32>
    %cst_41 = arith.constant dense<0.000000e+00> : vector<8x8xf32>
    %86 = tpu.matmul %82, %85, %cst_41 {dimension_numbers = #tpu.dot_dimension_numbers<[1], [0], [0], [1], [0, 0, 1, 1], [], []>} : vector<8x8xf32>, vector<8x8xf32>, vector<8x8xf32> -> vector<8x8xf32>
    %cst_42 = arith.constant 0.353553385 : f32
    %87 = vector.broadcast %cst_42 : f32 to vector<8x8xf32>
    %88 = arith.mulf %86, %87 : vector<8x8xf32>
    %cst_43 = arith.constant dense<0xFF800000> : vector<8xf32>
    %89 = vector.multi_reduction <maximumf>, %88, %cst_43 [1] : vector<8x8xf32> to vector<8xf32>
    %90 = vector.shape_cast %89 : vector<8xf32> to vector<8x1xf32>
    %91 = vector.broadcast %90 : vector<8x1xf32> to vector<8x8xf32>
    %92 = arith.subf %88, %91 : vector<8x8xf32>
    %93 = math.exp %92 : vector<8x8xf32>
    %cst_44 = arith.constant dense<0.000000e+00> : vector<8xf32>
    %94 = vector.multi_reduction <add>, %93, %cst_44 [1] : vector<8x8xf32> to vector<8xf32>
    %95 = vector.shape_cast %94 : vector<8xf32> to vector<8x1xf32>
    %96 = tpu.reciprocal %95 {approx = true} : vector<8x1xf32> -> vector<8x1xf32>
    %97 = vector.broadcast %96 : vector<8x1xf32> to vector<8x8xf32>
    %98 = arith.mulf %93, %97 : vector<8x8xf32>
    %cst_45 = arith.constant dense<0.000000e+00> : vector<8x8xf32>
    %99 = tpu.matmul %98, %84, %cst_45 {dimension_numbers = #tpu.dot_dimension_numbers<[1], [0], [0], [1], [0, 0, 1, 1], [], []>} : vector<8x8xf32>, vector<8x8xf32>, vector<8x8xf32> -> vector<8x8xf32>
    %100 = tpu.concatenate %81, %99 in 0 : vector<8x8xf32>, vector<8x8xf32> -> vector<16x8xf32>
    %101 = arith.truncf %100 : vector<16x8xf32> to vector<16x8xbf16>
    %c0_46 = arith.constant 0 : index
    %c0_47 = arith.constant 0 : index
    %c0_48 = arith.constant 0 : index
    %102 = vector.load %arg11[%c0_46, %c0_47, %c0_48] : memref<4x8x32xbf16, #tpu.memory_space<vmem>>, vector<1x8x32xbf16>
    %103 = vector.shape_cast %102 : vector<1x8x32xbf16> to vector<8x32xbf16>
    %cst_49 = arith.constant dense<0.000000e+00> : vector<16x32xf32>
    %104 = tpu.matmul %101, %103, %cst_49 {dimension_numbers = #tpu.dot_dimension_numbers<[1], [0], [0], [1], [0, 0, 1, 1], [], []>} : vector<16x8xbf16>, vector<8x32xbf16>, vector<16x32xf32> -> vector<16x32xf32>
    %105 = arith.addf %54, %104 : vector<16x32xf32>
    %c1 = arith.constant 1 : index
    %c0_50 = arith.constant 0 : index
    %c0_51 = arith.constant 0 : index
    %106 = vector.load %arg8[%c1, %c0_50, %c0_51] : memref<4x32x8xbf16, #tpu.memory_space<vmem>>, vector<1x32x8xbf16>
    %107 = vector.shape_cast %106 : vector<1x32x8xbf16> to vector<32x8xbf16>
    %cst_52 = arith.constant dense<0.000000e+00> : vector<16x8xf32>
    %108 = tpu.matmul %52, %107, %cst_52 {dimension_numbers = #tpu.dot_dimension_numbers<[1], [0], [0], [1], [0, 0, 1, 1], [], []>} : vector<16x32xbf16>, vector<32x8xbf16>, vector<16x8xf32> -> vector<16x8xf32>
    %c1_53 = arith.constant 1 : index
    %c0_54 = arith.constant 0 : index
    %c0_55 = arith.constant 0 : index
    %109 = vector.load %arg9[%c1_53, %c0_54, %c0_55] : memref<4x16x8xbf16, #tpu.memory_space<vmem>>, vector<1x16x8xbf16>
    %110 = vector.shape_cast %109 : vector<1x16x8xbf16> to vector<16x8xbf16>
    %cst_56 = arith.constant dense<0.000000e+00> : vector<16x8xf32>
    %111 = tpu.matmul %53, %110, %cst_56 {dimension_numbers = #tpu.dot_dimension_numbers<[1], [0], [0], [1], [0, 0, 1, 1], [], []>} : vector<16x16xbf16>, vector<16x8xbf16>, vector<16x8xf32> -> vector<16x8xf32>
    %c1_57 = arith.constant 1 : index
    %c0_58 = arith.constant 0 : index
    %c0_59 = arith.constant 0 : index
    %112 = vector.load %arg10[%c1_57, %c0_58, %c0_59] : memref<4x16x8xbf16, #tpu.memory_space<vmem>>, vector<1x16x8xbf16>
    %113 = vector.shape_cast %112 : vector<1x16x8xbf16> to vector<16x8xbf16>
    %cst_60 = arith.constant dense<0.000000e+00> : vector<16x8xf32>
    %114 = tpu.matmul %53, %113, %cst_60 {dimension_numbers = #tpu.dot_dimension_numbers<[1], [0], [0], [1], [0, 0, 1, 1], [], []>} : vector<16x16xbf16>, vector<16x8xbf16>, vector<16x8xf32> -> vector<16x8xf32>
    %115 = vector.extract_strided_slice %108 {offsets = [0, 0], sizes = [8, 8], strides = [1, 1]} : vector<16x8xf32> to vector<8x8xf32>
    %116 = vector.extract_strided_slice %111 {offsets = [0, 0], sizes = [8, 8], strides = [1, 1]} : vector<16x8xf32> to vector<8x8xf32>
    %117 = vector.extract_strided_slice %114 {offsets = [0, 0], sizes = [8, 8], strides = [1, 1]} : vector<16x8xf32> to vector<8x8xf32>
    %118 = tpu.transpose %116, [1, 0] : vector<8x8xf32> -> vector<8x8xf32>
    %cst_61 = arith.constant dense<0.000000e+00> : vector<8x8xf32>
    %119 = tpu.matmul %115, %118, %cst_61 {dimension_numbers = #tpu.dot_dimension_numbers<[1], [0], [0], [1], [0, 0, 1, 1], [], []>} : vector<8x8xf32>, vector<8x8xf32>, vector<8x8xf32> -> vector<8x8xf32>
    %cst_62 = arith.constant 0.353553385 : f32
    %120 = vector.broadcast %cst_62 : f32 to vector<8x8xf32>
    %121 = arith.mulf %119, %120 : vector<8x8xf32>
    %cst_63 = arith.constant dense<0xFF800000> : vector<8xf32>
    %122 = vector.multi_reduction <maximumf>, %121, %cst_63 [1] : vector<8x8xf32> to vector<8xf32>
    %123 = vector.shape_cast %122 : vector<8xf32> to vector<8x1xf32>
    %124 = vector.broadcast %123 : vector<8x1xf32> to vector<8x8xf32>
    %125 = arith.subf %121, %124 : vector<8x8xf32>
    %126 = math.exp %125 : vector<8x8xf32>
    %cst_64 = arith.constant dense<0.000000e+00> : vector<8xf32>
    %127 = vector.multi_reduction <add>, %126, %cst_64 [1] : vector<8x8xf32> to vector<8xf32>
    %128 = vector.shape_cast %127 : vector<8xf32> to vector<8x1xf32>
    %129 = tpu.reciprocal %128 {approx = true} : vector<8x1xf32> -> vector<8x1xf32>
    %130 = vector.broadcast %129 : vector<8x1xf32> to vector<8x8xf32>
    %131 = arith.mulf %126, %130 : vector<8x8xf32>
    %cst_65 = arith.constant dense<0.000000e+00> : vector<8x8xf32>
    %132 = tpu.matmul %131, %117, %cst_65 {dimension_numbers = #tpu.dot_dimension_numbers<[1], [0], [0], [1], [0, 0, 1, 1], [], []>} : vector<8x8xf32>, vector<8x8xf32>, vector<8x8xf32> -> vector<8x8xf32>
    %133 = vector.extract_strided_slice %108 {offsets = [8, 0], sizes = [8, 8], strides = [1, 1]} : vector<16x8xf32> to vector<8x8xf32>
    %134 = vector.extract_strided_slice %111 {offsets = [8, 0], sizes = [8, 8], strides = [1, 1]} : vector<16x8xf32> to vector<8x8xf32>
    %135 = vector.extract_strided_slice %114 {offsets = [8, 0], sizes = [8, 8], strides = [1, 1]} : vector<16x8xf32> to vector<8x8xf32>
    %136 = tpu.transpose %134, [1, 0] : vector<8x8xf32> -> vector<8x8xf32>
    %cst_66 = arith.constant dense<0.000000e+00> : vector<8x8xf32>
    %137 = tpu.matmul %133, %136, %cst_66 {dimension_numbers = #tpu.dot_dimension_numbers<[1], [0], [0], [1], [0, 0, 1, 1], [], []>} : vector<8x8xf32>, vector<8x8xf32>, vector<8x8xf32> -> vector<8x8xf32>
    %cst_67 = arith.constant 0.353553385 : f32
    %138 = vector.broadcast %cst_67 : f32 to vector<8x8xf32>
    %139 = arith.mulf %137, %138 : vector<8x8xf32>
    %cst_68 = arith.constant dense<0xFF800000> : vector<8xf32>
    %140 = vector.multi_reduction <maximumf>, %139, %cst_68 [1] : vector<8x8xf32> to vector<8xf32>
    %141 = vector.shape_cast %140 : vector<8xf32> to vector<8x1xf32>
    %142 = vector.broadcast %141 : vector<8x1xf32> to vector<8x8xf32>
    %143 = arith.subf %139, %142 : vector<8x8xf32>
    %144 = math.exp %143 : vector<8x8xf32>
    %cst_69 = arith.constant dense<0.000000e+00> : vector<8xf32>
    %145 = vector.multi_reduction <add>, %144, %cst_69 [1] : vector<8x8xf32> to vector<8xf32>
    %146 = vector.shape_cast %145 : vector<8xf32> to vector<8x1xf32>
    %147 = tpu.reciprocal %146 {approx = true} : vector<8x1xf32> -> vector<8x1xf32>
    %148 = vector.broadcast %147 : vector<8x1xf32> to vector<8x8xf32>
    %149 = arith.mulf %144, %148 : vector<8x8xf32>
    %cst_70 = arith.constant dense<0.000000e+00> : vector<8x8xf32>
    %150 = tpu.matmul %149, %135, %cst_70 {dimension_numbers = #tpu.dot_dimension_numbers<[1], [0], [0], [1], [0, 0, 1, 1], [], []>} : vector<8x8xf32>, vector<8x8xf32>, vector<8x8xf32> -> vector<8x8xf32>
    %151 = tpu.concatenate %132, %150 in 0 : vector<8x8xf32>, vector<8x8xf32> -> vector<16x8xf32>
    %152 = arith.truncf %151 : vector<16x8xf32> to vector<16x8xbf16>
    %c1_71 = arith.constant 1 : index
    %c0_72 = arith.constant 0 : index
    %c0_73 = arith.constant 0 : index
    %153 = vector.load %arg11[%c1_71, %c0_72, %c0_73] : memref<4x8x32xbf16, #tpu.memory_space<vmem>>, vector<1x8x32xbf16>
    %154 = vector.shape_cast %153 : vector<1x8x32xbf16> to vector<8x32xbf16>
    %cst_74 = arith.constant dense<0.000000e+00> : vector<16x32xf32>
    %155 = tpu.matmul %152, %154, %cst_74 {dimension_numbers = #tpu.dot_dimension_numbers<[1], [0], [0], [1], [0, 0, 1, 1], [], []>} : vector<16x8xbf16>, vector<8x32xbf16>, vector<16x32xf32> -> vector<16x32xf32>
    %156 = arith.addf %105, %155 : vector<16x32xf32>
    %c2 = arith.constant 2 : index
    %c0_75 = arith.constant 0 : index
    %c0_76 = arith.constant 0 : index
    %157 = vector.load %arg8[%c2, %c0_75, %c0_76] : memref<4x32x8xbf16, #tpu.memory_space<vmem>>, vector<1x32x8xbf16>
    %158 = vector.shape_cast %157 : vector<1x32x8xbf16> to vector<32x8xbf16>
    %cst_77 = arith.constant dense<0.000000e+00> : vector<16x8xf32>
    %159 = tpu.matmul %52, %158, %cst_77 {dimension_numbers = #tpu.dot_dimension_numbers<[1], [0], [0], [1], [0, 0, 1, 1], [], []>} : vector<16x32xbf16>, vector<32x8xbf16>, vector<16x8xf32> -> vector<16x8xf32>
    %c2_78 = arith.constant 2 : index
    %c0_79 = arith.constant 0 : index
    %c0_80 = arith.constant 0 : index
    %160 = vector.load %arg9[%c2_78, %c0_79, %c0_80] : memref<4x16x8xbf16, #tpu.memory_space<vmem>>, vector<1x16x8xbf16>
    %161 = vector.shape_cast %160 : vector<1x16x8xbf16> to vector<16x8xbf16>
    %cst_81 = arith.constant dense<0.000000e+00> : vector<16x8xf32>
    %162 = tpu.matmul %53, %161, %cst_81 {dimension_numbers = #tpu.dot_dimension_numbers<[1], [0], [0], [1], [0, 0, 1, 1], [], []>} : vector<16x16xbf16>, vector<16x8xbf16>, vector<16x8xf32> -> vector<16x8xf32>
    %c2_82 = arith.constant 2 : index
    %c0_83 = arith.constant 0 : index
    %c0_84 = arith.constant 0 : index
    %163 = vector.load %arg10[%c2_82, %c0_83, %c0_84] : memref<4x16x8xbf16, #tpu.memory_space<vmem>>, vector<1x16x8xbf16>
    %164 = vector.shape_cast %163 : vector<1x16x8xbf16> to vector<16x8xbf16>
    %cst_85 = arith.constant dense<0.000000e+00> : vector<16x8xf32>
    %165 = tpu.matmul %53, %164, %cst_85 {dimension_numbers = #tpu.dot_dimension_numbers<[1], [0], [0], [1], [0, 0, 1, 1], [], []>} : vector<16x16xbf16>, vector<16x8xbf16>, vector<16x8xf32> -> vector<16x8xf32>
    %166 = vector.extract_strided_slice %159 {offsets = [0, 0], sizes = [8, 8], strides = [1, 1]} : vector<16x8xf32> to vector<8x8xf32>
    %167 = vector.extract_strided_slice %162 {offsets = [0, 0], sizes = [8, 8], strides = [1, 1]} : vector<16x8xf32> to vector<8x8xf32>
    %168 = vector.extract_strided_slice %165 {offsets = [0, 0], sizes = [8, 8], strides = [1, 1]} : vector<16x8xf32> to vector<8x8xf32>
    %169 = tpu.transpose %167, [1, 0] : vector<8x8xf32> -> vector<8x8xf32>
    %cst_86 = arith.constant dense<0.000000e+00> : vector<8x8xf32>
    %170 = tpu.matmul %166, %169, %cst_86 {dimension_numbers = #tpu.dot_dimension_numbers<[1], [0], [0], [1], [0, 0, 1, 1], [], []>} : vector<8x8xf32>, vector<8x8xf32>, vector<8x8xf32> -> vector<8x8xf32>
    %cst_87 = arith.constant 0.353553385 : f32
    %171 = vector.broadcast %cst_87 : f32 to vector<8x8xf32>
    %172 = arith.mulf %170, %171 : vector<8x8xf32>
    %cst_88 = arith.constant dense<0xFF800000> : vector<8xf32>
    %173 = vector.multi_reduction <maximumf>, %172, %cst_88 [1] : vector<8x8xf32> to vector<8xf32>
    %174 = vector.shape_cast %173 : vector<8xf32> to vector<8x1xf32>
    %175 = vector.broadcast %174 : vector<8x1xf32> to vector<8x8xf32>
    %176 = arith.subf %172, %175 : vector<8x8xf32>
    %177 = math.exp %176 : vector<8x8xf32>
    %cst_89 = arith.constant dense<0.000000e+00> : vector<8xf32>
    %178 = vector.multi_reduction <add>, %177, %cst_89 [1] : vector<8x8xf32> to vector<8xf32>
    %179 = vector.shape_cast %178 : vector<8xf32> to vector<8x1xf32>
    %180 = tpu.reciprocal %179 {approx = true} : vector<8x1xf32> -> vector<8x1xf32>
    %181 = vector.broadcast %180 : vector<8x1xf32> to vector<8x8xf32>
    %182 = arith.mulf %177, %181 : vector<8x8xf32>
    %cst_90 = arith.constant dense<0.000000e+00> : vector<8x8xf32>
    %183 = tpu.matmul %182, %168, %cst_90 {dimension_numbers = #tpu.dot_dimension_numbers<[1], [0], [0], [1], [0, 0, 1, 1], [], []>} : vector<8x8xf32>, vector<8x8xf32>, vector<8x8xf32> -> vector<8x8xf32>
    %184 = vector.extract_strided_slice %159 {offsets = [8, 0], sizes = [8, 8], strides = [1, 1]} : vector<16x8xf32> to vector<8x8xf32>
    %185 = vector.extract_strided_slice %162 {offsets = [8, 0], sizes = [8, 8], strides = [1, 1]} : vector<16x8xf32> to vector<8x8xf32>
    %186 = vector.extract_strided_slice %165 {offsets = [8, 0], sizes = [8, 8], strides = [1, 1]} : vector<16x8xf32> to vector<8x8xf32>
    %187 = tpu.transpose %185, [1, 0] : vector<8x8xf32> -> vector<8x8xf32>
    %cst_91 = arith.constant dense<0.000000e+00> : vector<8x8xf32>
    %188 = tpu.matmul %184, %187, %cst_91 {dimension_numbers = #tpu.dot_dimension_numbers<[1], [0], [0], [1], [0, 0, 1, 1], [], []>} : vector<8x8xf32>, vector<8x8xf32>, vector<8x8xf32> -> vector<8x8xf32>
    %cst_92 = arith.constant 0.353553385 : f32
    %189 = vector.broadcast %cst_92 : f32 to vector<8x8xf32>
    %190 = arith.mulf %188, %189 : vector<8x8xf32>
    %cst_93 = arith.constant dense<0xFF800000> : vector<8xf32>
    %191 = vector.multi_reduction <maximumf>, %190, %cst_93 [1] : vector<8x8xf32> to vector<8xf32>
    %192 = vector.shape_cast %191 : vector<8xf32> to vector<8x1xf32>
    %193 = vector.broadcast %192 : vector<8x1xf32> to vector<8x8xf32>
    %194 = arith.subf %190, %193 : vector<8x8xf32>
    %195 = math.exp %194 : vector<8x8xf32>
    %cst_94 = arith.constant dense<0.000000e+00> : vector<8xf32>
    %196 = vector.multi_reduction <add>, %195, %cst_94 [1] : vector<8x8xf32> to vector<8xf32>
    %197 = vector.shape_cast %196 : vector<8xf32> to vector<8x1xf32>
    %198 = tpu.reciprocal %197 {approx = true} : vector<8x1xf32> -> vector<8x1xf32>
    %199 = vector.broadcast %198 : vector<8x1xf32> to vector<8x8xf32>
    %200 = arith.mulf %195, %199 : vector<8x8xf32>
    %cst_95 = arith.constant dense<0.000000e+00> : vector<8x8xf32>
    %201 = tpu.matmul %200, %186, %cst_95 {dimension_numbers = #tpu.dot_dimension_numbers<[1], [0], [0], [1], [0, 0, 1, 1], [], []>} : vector<8x8xf32>, vector<8x8xf32>, vector<8x8xf32> -> vector<8x8xf32>
    %202 = tpu.concatenate %183, %201 in 0 : vector<8x8xf32>, vector<8x8xf32> -> vector<16x8xf32>
    %203 = arith.truncf %202 : vector<16x8xf32> to vector<16x8xbf16>
    %c2_96 = arith.constant 2 : index
    %c0_97 = arith.constant 0 : index
    %c0_98 = arith.constant 0 : index
    %204 = vector.load %arg11[%c2_96, %c0_97, %c0_98] : memref<4x8x32xbf16, #tpu.memory_space<vmem>>, vector<1x8x32xbf16>
    %205 = vector.shape_cast %204 : vector<1x8x32xbf16> to vector<8x32xbf16>
    %cst_99 = arith.constant dense<0.000000e+00> : vector<16x32xf32>
    %206 = tpu.matmul %203, %205, %cst_99 {dimension_numbers = #tpu.dot_dimension_numbers<[1], [0], [0], [1], [0, 0, 1, 1], [], []>} : vector<16x8xbf16>, vector<8x32xbf16>, vector<16x32xf32> -> vector<16x32xf32>
    %207 = arith.addf %156, %206 : vector<16x32xf32>
    %c3 = arith.constant 3 : index
    %c0_100 = arith.constant 0 : index
    %c0_101 = arith.constant 0 : index
    %208 = vector.load %arg8[%c3, %c0_100, %c0_101] : memref<4x32x8xbf16, #tpu.memory_space<vmem>>, vector<1x32x8xbf16>
    %209 = vector.shape_cast %208 : vector<1x32x8xbf16> to vector<32x8xbf16>
    %cst_102 = arith.constant dense<0.000000e+00> : vector<16x8xf32>
    %210 = tpu.matmul %52, %209, %cst_102 {dimension_numbers = #tpu.dot_dimension_numbers<[1], [0], [0], [1], [0, 0, 1, 1], [], []>} : vector<16x32xbf16>, vector<32x8xbf16>, vector<16x8xf32> -> vector<16x8xf32>
    %c3_103 = arith.constant 3 : index
    %c0_104 = arith.constant 0 : index
    %c0_105 = arith.constant 0 : index
    %211 = vector.load %arg9[%c3_103, %c0_104, %c0_105] : memref<4x16x8xbf16, #tpu.memory_space<vmem>>, vector<1x16x8xbf16>
    %212 = vector.shape_cast %211 : vector<1x16x8xbf16> to vector<16x8xbf16>
    %cst_106 = arith.constant dense<0.000000e+00> : vector<16x8xf32>
    %213 = tpu.matmul %53, %212, %cst_106 {dimension_numbers = #tpu.dot_dimension_numbers<[1], [0], [0], [1], [0, 0, 1, 1], [], []>} : vector<16x16xbf16>, vector<16x8xbf16>, vector<16x8xf32> -> vector<16x8xf32>
    %c3_107 = arith.constant 3 : index
    %c0_108 = arith.constant 0 : index
    %c0_109 = arith.constant 0 : index
    %214 = vector.load %arg10[%c3_107, %c0_108, %c0_109] : memref<4x16x8xbf16, #tpu.memory_space<vmem>>, vector<1x16x8xbf16>
    %215 = vector.shape_cast %214 : vector<1x16x8xbf16> to vector<16x8xbf16>
    %cst_110 = arith.constant dense<0.000000e+00> : vector<16x8xf32>
    %216 = tpu.matmul %53, %215, %cst_110 {dimension_numbers = #tpu.dot_dimension_numbers<[1], [0], [0], [1], [0, 0, 1, 1], [], []>} : vector<16x16xbf16>, vector<16x8xbf16>, vector<16x8xf32> -> vector<16x8xf32>
    %217 = vector.extract_strided_slice %210 {offsets = [0, 0], sizes = [8, 8], strides = [1, 1]} : vector<16x8xf32> to vector<8x8xf32>
    %218 = vector.extract_strided_slice %213 {offsets = [0, 0], sizes = [8, 8], strides = [1, 1]} : vector<16x8xf32> to vector<8x8xf32>
    %219 = vector.extract_strided_slice %216 {offsets = [0, 0], sizes = [8, 8], strides = [1, 1]} : vector<16x8xf32> to vector<8x8xf32>
    %220 = tpu.transpose %218, [1, 0] : vector<8x8xf32> -> vector<8x8xf32>
    %cst_111 = arith.constant dense<0.000000e+00> : vector<8x8xf32>
    %221 = tpu.matmul %217, %220, %cst_111 {dimension_numbers = #tpu.dot_dimension_numbers<[1], [0], [0], [1], [0, 0, 1, 1], [], []>} : vector<8x8xf32>, vector<8x8xf32>, vector<8x8xf32> -> vector<8x8xf32>
    %cst_112 = arith.constant 0.353553385 : f32
    %222 = vector.broadcast %cst_112 : f32 to vector<8x8xf32>
    %223 = arith.mulf %221, %222 : vector<8x8xf32>
    %cst_113 = arith.constant dense<0xFF800000> : vector<8xf32>
    %224 = vector.multi_reduction <maximumf>, %223, %cst_113 [1] : vector<8x8xf32> to vector<8xf32>
    %225 = vector.shape_cast %224 : vector<8xf32> to vector<8x1xf32>
    %226 = vector.broadcast %225 : vector<8x1xf32> to vector<8x8xf32>
    %227 = arith.subf %223, %226 : vector<8x8xf32>
    %228 = math.exp %227 : vector<8x8xf32>
    %cst_114 = arith.constant dense<0.000000e+00> : vector<8xf32>
    %229 = vector.multi_reduction <add>, %228, %cst_114 [1] : vector<8x8xf32> to vector<8xf32>
    %230 = vector.shape_cast %229 : vector<8xf32> to vector<8x1xf32>
    %231 = tpu.reciprocal %230 {approx = true} : vector<8x1xf32> -> vector<8x1xf32>
    %232 = vector.broadcast %231 : vector<8x1xf32> to vector<8x8xf32>
    %233 = arith.mulf %228, %232 : vector<8x8xf32>
    %cst_115 = arith.constant dense<0.000000e+00> : vector<8x8xf32>
    %234 = tpu.matmul %233, %219, %cst_115 {dimension_numbers = #tpu.dot_dimension_numbers<[1], [0], [0], [1], [0, 0, 1, 1], [], []>} : vector<8x8xf32>, vector<8x8xf32>, vector<8x8xf32> -> vector<8x8xf32>
    %235 = vector.extract_strided_slice %210 {offsets = [8, 0], sizes = [8, 8], strides = [1, 1]} : vector<16x8xf32> to vector<8x8xf32>
    %236 = vector.extract_strided_slice %213 {offsets = [8, 0], sizes = [8, 8], strides = [1, 1]} : vector<16x8xf32> to vector<8x8xf32>
    %237 = vector.extract_strided_slice %216 {offsets = [8, 0], sizes = [8, 8], strides = [1, 1]} : vector<16x8xf32> to vector<8x8xf32>
    %238 = tpu.transpose %236, [1, 0] : vector<8x8xf32> -> vector<8x8xf32>
    %cst_116 = arith.constant dense<0.000000e+00> : vector<8x8xf32>
    %239 = tpu.matmul %235, %238, %cst_116 {dimension_numbers = #tpu.dot_dimension_numbers<[1], [0], [0], [1], [0, 0, 1, 1], [], []>} : vector<8x8xf32>, vector<8x8xf32>, vector<8x8xf32> -> vector<8x8xf32>
    %cst_117 = arith.constant 0.353553385 : f32
    %240 = vector.broadcast %cst_117 : f32 to vector<8x8xf32>
    %241 = arith.mulf %239, %240 : vector<8x8xf32>
    %cst_118 = arith.constant dense<0xFF800000> : vector<8xf32>
    %242 = vector.multi_reduction <maximumf>, %241, %cst_118 [1] : vector<8x8xf32> to vector<8xf32>
    %243 = vector.shape_cast %242 : vector<8xf32> to vector<8x1xf32>
    %244 = vector.broadcast %243 : vector<8x1xf32> to vector<8x8xf32>
    %245 = arith.subf %241, %244 : vector<8x8xf32>
    %246 = math.exp %245 : vector<8x8xf32>
    %cst_119 = arith.constant dense<0.000000e+00> : vector<8xf32>
    %247 = vector.multi_reduction <add>, %246, %cst_119 [1] : vector<8x8xf32> to vector<8xf32>
    %248 = vector.shape_cast %247 : vector<8xf32> to vector<8x1xf32>
    %249 = tpu.reciprocal %248 {approx = true} : vector<8x1xf32> -> vector<8x1xf32>
    %250 = vector.broadcast %249 : vector<8x1xf32> to vector<8x8xf32>
    %251 = arith.mulf %246, %250 : vector<8x8xf32>
    %cst_120 = arith.constant dense<0.000000e+00> : vector<8x8xf32>
    %252 = tpu.matmul %251, %237, %cst_120 {dimension_numbers = #tpu.dot_dimension_numbers<[1], [0], [0], [1], [0, 0, 1, 1], [], []>} : vector<8x8xf32>, vector<8x8xf32>, vector<8x8xf32> -> vector<8x8xf32>
    %253 = tpu.concatenate %234, %252 in 0 : vector<8x8xf32>, vector<8x8xf32> -> vector<16x8xf32>
    %254 = arith.truncf %253 : vector<16x8xf32> to vector<16x8xbf16>
    %c3_121 = arith.constant 3 : index
    %c0_122 = arith.constant 0 : index
    %c0_123 = arith.constant 0 : index
    %255 = vector.load %arg11[%c3_121, %c0_122, %c0_123] : memref<4x8x32xbf16, #tpu.memory_space<vmem>>, vector<1x8x32xbf16>
    %256 = vector.shape_cast %255 : vector<1x8x32xbf16> to vector<8x32xbf16>
    %cst_124 = arith.constant dense<0.000000e+00> : vector<16x32xf32>
    %257 = tpu.matmul %254, %256, %cst_124 {dimension_numbers = #tpu.dot_dimension_numbers<[1], [0], [0], [1], [0, 0, 1, 1], [], []>} : vector<16x8xbf16>, vector<8x32xbf16>, vector<16x32xf32> -> vector<16x32xf32>
    %258 = arith.addf %207, %257 : vector<16x32xf32>
    %c0_125 = arith.constant 0 : index
    %c0_126 = arith.constant 0 : index
    %259 = vector.load %arg12[%c0_125, %c0_126] : memref<1x32xf32, #tpu.memory_space<vmem>>, vector<1x32xf32>
    %260 = vector.broadcast %259 : vector<1x32xf32> to vector<16x32xf32>
    %261 = arith.addf %258, %260 : vector<16x32xf32>
    %262 = arith.addf %261, %3 : vector<16x32xf32>
    %263 = vector.shape_cast %262 : vector<16x32xf32> to vector<1x2x8x32xf32>
    %c0_127 = arith.constant 0 : index
    %c0_128 = arith.constant 0 : index
    %c0_129 = arith.constant 0 : index
    %c0_130 = arith.constant 0 : index
    %264 = vector.load %arg13[%c0_127, %c0_128, %c0_129, %c0_130] : memref<1x2x8x32xf32, #tpu.memory_space<vmem>>, vector<1x2x8x32xf32>
    tpu.vector_store %arg13[%c0_127, %c0_128, %c0_129, %c0_130], %263 {strides = array<i32>} : memref<1x2x8x32xf32, #tpu.memory_space<vmem>>, vector<1x2x8x32xf32>,
    return
  }
  func.func @transform_0(%arg0: i32, %arg1: i32) -> (i32, i32, i32, i32) {
    %c0_i32 = arith.constant 0 : i32
    %c0_i32_0 = arith.constant 0 : i32
    %c0_i32_1 = arith.constant 0 : i32
    return %arg0, %arg1, %c0_i32, %c0_i32_0 : i32, i32, i32, i32
  }
  func.func @transform_1(%arg0: i32, %arg1: i32) -> (i32, i32, i32) {
    %c0_i32 = arith.constant 0 : i32
    %c0_i32_0 = arith.constant 0 : i32
    %c0_i32_1 = arith.constant 0 : i32
    return %arg1, %c0_i32, %c0_i32_0 : i32, i32, i32
  }
  func.func @transform_2(%arg0: i32, %arg1: i32) -> (i32, i32) {
    %c0_i32 = arith.constant 0 : i32
    %c0_i32_0 = arith.constant 0 : i32
    %c0_i32_1 = arith.constant 0 : i32
    return %c0_i32, %c0_i32_0 : i32, i32
  }
  func.func @transform_3(%arg0: i32, %arg1: i32) -> (i32, i32) {
    %c0_i32 = arith.constant 0 : i32
    %c0_i32_0 = arith.constant 0 : i32
    %c0_i32_1 = arith.constant 0 : i32
    return %c0_i32, %c0_i32_0 : i32, i32
  }
  func.func @transform_4(%arg0: i32, %arg1: i32) -> (i32, i32) {
    %c0_i32 = arith.constant 0 : i32
    %c0_i32_0 = arith.constant 0 : i32
    %c0_i32_1 = arith.constant 0 : i32
    return %c0_i32, %c0_i32_0 : i32, i32
  }
  func.func @transform_5(%arg0: i32, %arg1: i32) -> (i32, i32) {
    %c0_i32 = arith.constant 0 : i32
    %c0_i32_0 = arith.constant 0 : i32
    %c0_i32_1 = arith.constant 0 : i32
    return %c0_i32, %c0_i32_0 : i32, i32
  }
  func.func @transform_6(%arg0: i32, %arg1: i32) -> (i32, i32, i32) {
    %c0_i32 = arith.constant 0 : i32
    %c0_i32_0 = arith.constant 0 : i32
    %c0_i32_1 = arith.constant 0 : i32
    %c0_i32_2 = arith.constant 0 : i32
    return %c0_i32, %c0_i32_0, %c0_i32_1 : i32, i32, i32
  }
  func.func @transform_7(%arg0: i32, %arg1: i32) -> (i32, i32, i32) {
    %c0_i32 = arith.constant 0 : i32
    %c0_i32_0 = arith.constant 0 : i32
    %c0_i32_1 = arith.constant 0 : i32
    %c0_i32_2 = arith.constant 0 : i32
    return %c0_i32, %c0_i32_0, %c0_i32_1 : i32, i32, i32
  }
  func.func @transform_8(%arg0: i32, %arg1: i32) -> (i32, i32, i32) {
    %c0_i32 = arith.constant 0 : i32
    %c0_i32_0 = arith.constant 0 : i32
    %c0_i32_1 = arith.constant 0 : i32
    %c0_i32_2 = arith.constant 0 : i32
    return %c0_i32, %c0_i32_0, %c0_i32_1 : i32, i32, i32
  }
  func.func @transform_9(%arg0: i32, %arg1: i32) -> (i32, i32, i32) {
    %c0_i32 = arith.constant 0 : i32
    %c0_i32_0 = arith.constant 0 : i32
    %c0_i32_1 = arith.constant 0 : i32
    %c0_i32_2 = arith.constant 0 : i32
    return %c0_i32, %c0_i32_0, %c0_i32_1 : i32, i32, i32
  }
  func.func @transform_10(%arg0: i32, %arg1: i32) -> (i32, i32) {
    %c0_i32 = arith.constant 0 : i32
    %c0_i32_0 = arith.constant 0 : i32
    %c0_i32_1 = arith.constant 0 : i32
    return %c0_i32, %c0_i32_0 : i32, i32
  }
  func.func @transform_11(%arg0: i32, %arg1: i32) -> (i32, i32, i32, i32) {
    %c0_i32 = arith.constant 0 : i32
    %c0_i32_0 = arith.constant 0 : i32
    %c0_i32_1 = arith.constant 0 : i32
    return %arg0, %arg1, %c0_i32, %c0_i32_0 : i32, i32, i32, i32
  }
}

module attributes {stable_mosaic.version = 11 : i64} {
  func.func @_sa_block_kernel(%arg0: i32, %arg1: i32, %arg2: memref<1x2x8x32xf32, #tpu.memory_space<vmem>>, %arg3: memref<1x32xf32, #tpu.memory_space<vmem>>, %arg4: memref<1x32xf32, #tpu.memory_space<vmem>>, %arg5: memref<4x32x8xbf16, #tpu.memory_space<vmem>>, %arg6: memref<4x32x8xbf16, #tpu.memory_space<vmem>>, %arg7: memref<4x32x8xbf16, #tpu.memory_space<vmem>>, %arg8: memref<4x8x32xbf16, #tpu.memory_space<vmem>>, %arg9: memref<1x32xf32, #tpu.memory_space<vmem>>, %arg10: memref<1x32xf32, #tpu.memory_space<vmem>>, %arg11: memref<1x32xf32, #tpu.memory_space<vmem>>, %arg12: memref<32x128xbf16, #tpu.memory_space<vmem>>, %arg13: memref<1x128xf32, #tpu.memory_space<vmem>>, %arg14: memref<128x32xbf16, #tpu.memory_space<vmem>>, %arg15: memref<1x32xf32, #tpu.memory_space<vmem>>, %arg16: memref<1x2x8x32xf32, #tpu.memory_space<vmem>>) attributes {dimension_semantics = [#tpu.dimension_semantics<parallel>, #tpu.dimension_semantics<parallel>], iteration_bounds = array<i64: 2, 1>, scalar_prefetch = 0 : i64, scratch_operands = 0 : i64, tpu.core_type = #tpu.core_type<tc>, window_params = [{transform_indices = @transform_0, window_bounds = array<i64: 1, 2, 8, 32>}, {pipeline_mode = #tpu.pipeline_mode<synchronous>, transform_indices = @transform_1, window_bounds = array<i64: 1, 32>}, {pipeline_mode = #tpu.pipeline_mode<synchronous>, transform_indices = @transform_2, window_bounds = array<i64: 1, 32>}, {pipeline_mode = #tpu.pipeline_mode<synchronous>, transform_indices = @transform_3, window_bounds = array<i64: 4, 32, 8>}, {pipeline_mode = #tpu.pipeline_mode<synchronous>, transform_indices = @transform_4, window_bounds = array<i64: 4, 32, 8>}, {pipeline_mode = #tpu.pipeline_mode<synchronous>, transform_indices = @transform_5, window_bounds = array<i64: 4, 32, 8>}, {pipeline_mode = #tpu.pipeline_mode<synchronous>, transform_indices = @transform_6, window_bounds = array<i64: 4, 8, 32>}, {pipeline_mode = #tpu.pipeline_mode<synchronous>, transform_indices = @transform_7, window_bounds = array<i64: 1, 32>}, {pipeline_mode = #tpu.pipeline_mode<synchronous>, transform_indices = @transform_8, window_bounds = array<i64: 1, 32>}, {pipeline_mode = #tpu.pipeline_mode<synchronous>, transform_indices = @transform_9, window_bounds = array<i64: 1, 32>}, {pipeline_mode = #tpu.pipeline_mode<synchronous>, transform_indices = @transform_10, window_bounds = array<i64: 32, 128>}, {pipeline_mode = #tpu.pipeline_mode<synchronous>, transform_indices = @transform_11, window_bounds = array<i64: 1, 128>}, {pipeline_mode = #tpu.pipeline_mode<synchronous>, transform_indices = @transform_12, window_bounds = array<i64: 128, 32>}, {pipeline_mode = #tpu.pipeline_mode<synchronous>, transform_indices = @transform_13, window_bounds = array<i64: 1, 32>}, {transform_indices = @transform_14, window_bounds = array<i64: 1, 2, 8, 32>}]} {
    %c0 = arith.constant 0 : index
    %c0_0 = arith.constant 0 : index
    %c0_1 = arith.constant 0 : index
    %c0_2 = arith.constant 0 : index
    %0 = vector.load %arg2[%c0, %c0_0, %c0_1, %c0_2] : memref<1x2x8x32xf32, #tpu.memory_space<vmem>>, vector<1x2x8x32xf32>
    %1 = vector.shape_cast %0 : vector<1x2x8x32xf32> to vector<16x32xf32>
    %c0_3 = arith.constant 0 : index
    %c0_4 = arith.constant 0 : index
    %2 = vector.load %arg3[%c0_3, %c0_4] : memref<1x32xf32, #tpu.memory_space<vmem>>, vector<1x32xf32>
    %c0_5 = arith.constant 0 : index
    %c0_6 = arith.constant 0 : index
    %3 = vector.load %arg4[%c0_5, %c0_6] : memref<1x32xf32, #tpu.memory_space<vmem>>, vector<1x32xf32>
    %cst = arith.constant dense<0.000000e+00> : vector<16xf32>
    %4 = vector.multi_reduction <add>, %1, %cst [1] : vector<16x32xf32> to vector<16xf32>
    %5 = vector.shape_cast %4 : vector<16xf32> to vector<16x1xf32>
    %cst_7 = arith.constant 3.200000e+01 : f32
    %6 = vector.broadcast %cst_7 : f32 to vector<16x1xf32>
    %7 = arith.divf %5, %6 : vector<16x1xf32>
    %8 = vector.broadcast %7 : vector<16x1xf32> to vector<16x32xf32>
    %9 = arith.subf %1, %8 : vector<16x32xf32>
    %10 = arith.mulf %9, %9 : vector<16x32xf32>
    %cst_8 = arith.constant dense<0.000000e+00> : vector<16xf32>
    %11 = vector.multi_reduction <add>, %10, %cst_8 [1] : vector<16x32xf32> to vector<16xf32>
    %12 = vector.shape_cast %11 : vector<16xf32> to vector<16x1xf32>
    %cst_9 = arith.constant 3.200000e+01 : f32
    %13 = vector.broadcast %cst_9 : f32 to vector<16x1xf32>
    %14 = arith.divf %12, %13 : vector<16x1xf32>
    %15 = vector.broadcast %7 : vector<16x1xf32> to vector<16x32xf32>
    %16 = arith.subf %1, %15 : vector<16x32xf32>
    %cst_10 = arith.constant 9.99999974E-6 : f32
    %17 = vector.broadcast %cst_10 : f32 to vector<16x1xf32>
    %18 = arith.addf %14, %17 : vector<16x1xf32>
    %19 = math.rsqrt %18 : vector<16x1xf32>
    %20 = vector.broadcast %19 : vector<16x1xf32> to vector<16x32xf32>
    %21 = arith.mulf %16, %20 : vector<16x32xf32>
    %22 = vector.broadcast %2 : vector<1x32xf32> to vector<16x32xf32>
    %23 = arith.mulf %21, %22 : vector<16x32xf32>
    %24 = vector.broadcast %3 : vector<1x32xf32> to vector<16x32xf32>
    %25 = arith.addf %23, %24 : vector<16x32xf32>
    %26 = arith.truncf %25 : vector<16x32xf32> to vector<16x32xbf16>
    %27 = arith.truncf %25 : vector<16x32xf32> to vector<16x32xbf16>
    %cst_11 = arith.constant 0.000000e+00 : f32
    %28 = vector.broadcast %cst_11 : f32 to vector<16x32xf32>
    %c0_12 = arith.constant 0 : index
    %c0_13 = arith.constant 0 : index
    %c0_14 = arith.constant 0 : index
    %29 = vector.load %arg5[%c0_12, %c0_13, %c0_14] : memref<4x32x8xbf16, #tpu.memory_space<vmem>>, vector<1x32x8xbf16>
    %30 = vector.shape_cast %29 : vector<1x32x8xbf16> to vector<32x8xbf16>
    %cst_15 = arith.constant dense<0.000000e+00> : vector<16x8xf32>
    %31 = tpu.matmul %26, %30, %cst_15 {dimension_numbers = #tpu.dot_dimension_numbers<[1], [0], [0], [1], [0, 0, 1, 1], [], []>} : vector<16x32xbf16>, vector<32x8xbf16>, vector<16x8xf32> -> vector<16x8xf32>
    %c0_16 = arith.constant 0 : index
    %c0_17 = arith.constant 0 : index
    %c0_18 = arith.constant 0 : index
    %32 = vector.load %arg6[%c0_16, %c0_17, %c0_18] : memref<4x32x8xbf16, #tpu.memory_space<vmem>>, vector<1x32x8xbf16>
    %33 = vector.shape_cast %32 : vector<1x32x8xbf16> to vector<32x8xbf16>
    %cst_19 = arith.constant dense<0.000000e+00> : vector<16x8xf32>
    %34 = tpu.matmul %27, %33, %cst_19 {dimension_numbers = #tpu.dot_dimension_numbers<[1], [0], [0], [1], [0, 0, 1, 1], [], []>} : vector<16x32xbf16>, vector<32x8xbf16>, vector<16x8xf32> -> vector<16x8xf32>
    %c0_20 = arith.constant 0 : index
    %c0_21 = arith.constant 0 : index
    %c0_22 = arith.constant 0 : index
    %35 = vector.load %arg7[%c0_20, %c0_21, %c0_22] : memref<4x32x8xbf16, #tpu.memory_space<vmem>>, vector<1x32x8xbf16>
    %36 = vector.shape_cast %35 : vector<1x32x8xbf16> to vector<32x8xbf16>
    %cst_23 = arith.constant dense<0.000000e+00> : vector<16x8xf32>
    %37 = tpu.matmul %27, %36, %cst_23 {dimension_numbers = #tpu.dot_dimension_numbers<[1], [0], [0], [1], [0, 0, 1, 1], [], []>} : vector<16x32xbf16>, vector<32x8xbf16>, vector<16x8xf32> -> vector<16x8xf32>
    %38 = vector.extract_strided_slice %31 {offsets = [0, 0], sizes = [8, 8], strides = [1, 1]} : vector<16x8xf32> to vector<8x8xf32>
    %39 = vector.extract_strided_slice %34 {offsets = [0, 0], sizes = [8, 8], strides = [1, 1]} : vector<16x8xf32> to vector<8x8xf32>
    %40 = vector.extract_strided_slice %37 {offsets = [0, 0], sizes = [8, 8], strides = [1, 1]} : vector<16x8xf32> to vector<8x8xf32>
    %41 = tpu.transpose %39, [1, 0] : vector<8x8xf32> -> vector<8x8xf32>
    %cst_24 = arith.constant dense<0.000000e+00> : vector<8x8xf32>
    %42 = tpu.matmul %38, %41, %cst_24 {dimension_numbers = #tpu.dot_dimension_numbers<[1], [0], [0], [1], [0, 0, 1, 1], [], []>} : vector<8x8xf32>, vector<8x8xf32>, vector<8x8xf32> -> vector<8x8xf32>
    %cst_25 = arith.constant 0.353553385 : f32
    %43 = vector.broadcast %cst_25 : f32 to vector<8x8xf32>
    %44 = arith.mulf %42, %43 : vector<8x8xf32>
    %cst_26 = arith.constant dense<0xFF800000> : vector<8xf32>
    %45 = vector.multi_reduction <maximumf>, %44, %cst_26 [1] : vector<8x8xf32> to vector<8xf32>
    %46 = vector.shape_cast %45 : vector<8xf32> to vector<8x1xf32>
    %47 = vector.broadcast %46 : vector<8x1xf32> to vector<8x8xf32>
    %48 = arith.subf %44, %47 : vector<8x8xf32>
    %49 = math.exp %48 : vector<8x8xf32>
    %cst_27 = arith.constant dense<0.000000e+00> : vector<8xf32>
    %50 = vector.multi_reduction <add>, %49, %cst_27 [1] : vector<8x8xf32> to vector<8xf32>
    %51 = vector.shape_cast %50 : vector<8xf32> to vector<8x1xf32>
    %52 = tpu.reciprocal %51 {approx = true} : vector<8x1xf32> -> vector<8x1xf32>
    %53 = vector.broadcast %52 : vector<8x1xf32> to vector<8x8xf32>
    %54 = arith.mulf %49, %53 : vector<8x8xf32>
    %cst_28 = arith.constant dense<0.000000e+00> : vector<8x8xf32>
    %55 = tpu.matmul %54, %40, %cst_28 {dimension_numbers = #tpu.dot_dimension_numbers<[1], [0], [0], [1], [0, 0, 1, 1], [], []>} : vector<8x8xf32>, vector<8x8xf32>, vector<8x8xf32> -> vector<8x8xf32>
    %56 = vector.extract_strided_slice %31 {offsets = [8, 0], sizes = [8, 8], strides = [1, 1]} : vector<16x8xf32> to vector<8x8xf32>
    %57 = vector.extract_strided_slice %34 {offsets = [8, 0], sizes = [8, 8], strides = [1, 1]} : vector<16x8xf32> to vector<8x8xf32>
    %58 = vector.extract_strided_slice %37 {offsets = [8, 0], sizes = [8, 8], strides = [1, 1]} : vector<16x8xf32> to vector<8x8xf32>
    %59 = tpu.transpose %57, [1, 0] : vector<8x8xf32> -> vector<8x8xf32>
    %cst_29 = arith.constant dense<0.000000e+00> : vector<8x8xf32>
    %60 = tpu.matmul %56, %59, %cst_29 {dimension_numbers = #tpu.dot_dimension_numbers<[1], [0], [0], [1], [0, 0, 1, 1], [], []>} : vector<8x8xf32>, vector<8x8xf32>, vector<8x8xf32> -> vector<8x8xf32>
    %cst_30 = arith.constant 0.353553385 : f32
    %61 = vector.broadcast %cst_30 : f32 to vector<8x8xf32>
    %62 = arith.mulf %60, %61 : vector<8x8xf32>
    %cst_31 = arith.constant dense<0xFF800000> : vector<8xf32>
    %63 = vector.multi_reduction <maximumf>, %62, %cst_31 [1] : vector<8x8xf32> to vector<8xf32>
    %64 = vector.shape_cast %63 : vector<8xf32> to vector<8x1xf32>
    %65 = vector.broadcast %64 : vector<8x1xf32> to vector<8x8xf32>
    %66 = arith.subf %62, %65 : vector<8x8xf32>
    %67 = math.exp %66 : vector<8x8xf32>
    %cst_32 = arith.constant dense<0.000000e+00> : vector<8xf32>
    %68 = vector.multi_reduction <add>, %67, %cst_32 [1] : vector<8x8xf32> to vector<8xf32>
    %69 = vector.shape_cast %68 : vector<8xf32> to vector<8x1xf32>
    %70 = tpu.reciprocal %69 {approx = true} : vector<8x1xf32> -> vector<8x1xf32>
    %71 = vector.broadcast %70 : vector<8x1xf32> to vector<8x8xf32>
    %72 = arith.mulf %67, %71 : vector<8x8xf32>
    %cst_33 = arith.constant dense<0.000000e+00> : vector<8x8xf32>
    %73 = tpu.matmul %72, %58, %cst_33 {dimension_numbers = #tpu.dot_dimension_numbers<[1], [0], [0], [1], [0, 0, 1, 1], [], []>} : vector<8x8xf32>, vector<8x8xf32>, vector<8x8xf32> -> vector<8x8xf32>
    %74 = tpu.concatenate %55, %73 in 0 : vector<8x8xf32>, vector<8x8xf32> -> vector<16x8xf32>
    %75 = arith.truncf %74 : vector<16x8xf32> to vector<16x8xbf16>
    %c0_34 = arith.constant 0 : index
    %c0_35 = arith.constant 0 : index
    %c0_36 = arith.constant 0 : index
    %76 = vector.load %arg8[%c0_34, %c0_35, %c0_36] : memref<4x8x32xbf16, #tpu.memory_space<vmem>>, vector<1x8x32xbf16>
    %77 = vector.shape_cast %76 : vector<1x8x32xbf16> to vector<8x32xbf16>
    %cst_37 = arith.constant dense<0.000000e+00> : vector<16x32xf32>
    %78 = tpu.matmul %75, %77, %cst_37 {dimension_numbers = #tpu.dot_dimension_numbers<[1], [0], [0], [1], [0, 0, 1, 1], [], []>} : vector<16x8xbf16>, vector<8x32xbf16>, vector<16x32xf32> -> vector<16x32xf32>
    %79 = arith.addf %28, %78 : vector<16x32xf32>
    %c1 = arith.constant 1 : index
    %c0_38 = arith.constant 0 : index
    %c0_39 = arith.constant 0 : index
    %80 = vector.load %arg5[%c1, %c0_38, %c0_39] : memref<4x32x8xbf16, #tpu.memory_space<vmem>>, vector<1x32x8xbf16>
    %81 = vector.shape_cast %80 : vector<1x32x8xbf16> to vector<32x8xbf16>
    %cst_40 = arith.constant dense<0.000000e+00> : vector<16x8xf32>
    %82 = tpu.matmul %26, %81, %cst_40 {dimension_numbers = #tpu.dot_dimension_numbers<[1], [0], [0], [1], [0, 0, 1, 1], [], []>} : vector<16x32xbf16>, vector<32x8xbf16>, vector<16x8xf32> -> vector<16x8xf32>
    %c1_41 = arith.constant 1 : index
    %c0_42 = arith.constant 0 : index
    %c0_43 = arith.constant 0 : index
    %83 = vector.load %arg6[%c1_41, %c0_42, %c0_43] : memref<4x32x8xbf16, #tpu.memory_space<vmem>>, vector<1x32x8xbf16>
    %84 = vector.shape_cast %83 : vector<1x32x8xbf16> to vector<32x8xbf16>
    %cst_44 = arith.constant dense<0.000000e+00> : vector<16x8xf32>
    %85 = tpu.matmul %27, %84, %cst_44 {dimension_numbers = #tpu.dot_dimension_numbers<[1], [0], [0], [1], [0, 0, 1, 1], [], []>} : vector<16x32xbf16>, vector<32x8xbf16>, vector<16x8xf32> -> vector<16x8xf32>
    %c1_45 = arith.constant 1 : index
    %c0_46 = arith.constant 0 : index
    %c0_47 = arith.constant 0 : index
    %86 = vector.load %arg7[%c1_45, %c0_46, %c0_47] : memref<4x32x8xbf16, #tpu.memory_space<vmem>>, vector<1x32x8xbf16>
    %87 = vector.shape_cast %86 : vector<1x32x8xbf16> to vector<32x8xbf16>
    %cst_48 = arith.constant dense<0.000000e+00> : vector<16x8xf32>
    %88 = tpu.matmul %27, %87, %cst_48 {dimension_numbers = #tpu.dot_dimension_numbers<[1], [0], [0], [1], [0, 0, 1, 1], [], []>} : vector<16x32xbf16>, vector<32x8xbf16>, vector<16x8xf32> -> vector<16x8xf32>
    %89 = vector.extract_strided_slice %82 {offsets = [0, 0], sizes = [8, 8], strides = [1, 1]} : vector<16x8xf32> to vector<8x8xf32>
    %90 = vector.extract_strided_slice %85 {offsets = [0, 0], sizes = [8, 8], strides = [1, 1]} : vector<16x8xf32> to vector<8x8xf32>
    %91 = vector.extract_strided_slice %88 {offsets = [0, 0], sizes = [8, 8], strides = [1, 1]} : vector<16x8xf32> to vector<8x8xf32>
    %92 = tpu.transpose %90, [1, 0] : vector<8x8xf32> -> vector<8x8xf32>
    %cst_49 = arith.constant dense<0.000000e+00> : vector<8x8xf32>
    %93 = tpu.matmul %89, %92, %cst_49 {dimension_numbers = #tpu.dot_dimension_numbers<[1], [0], [0], [1], [0, 0, 1, 1], [], []>} : vector<8x8xf32>, vector<8x8xf32>, vector<8x8xf32> -> vector<8x8xf32>
    %cst_50 = arith.constant 0.353553385 : f32
    %94 = vector.broadcast %cst_50 : f32 to vector<8x8xf32>
    %95 = arith.mulf %93, %94 : vector<8x8xf32>
    %cst_51 = arith.constant dense<0xFF800000> : vector<8xf32>
    %96 = vector.multi_reduction <maximumf>, %95, %cst_51 [1] : vector<8x8xf32> to vector<8xf32>
    %97 = vector.shape_cast %96 : vector<8xf32> to vector<8x1xf32>
    %98 = vector.broadcast %97 : vector<8x1xf32> to vector<8x8xf32>
    %99 = arith.subf %95, %98 : vector<8x8xf32>
    %100 = math.exp %99 : vector<8x8xf32>
    %cst_52 = arith.constant dense<0.000000e+00> : vector<8xf32>
    %101 = vector.multi_reduction <add>, %100, %cst_52 [1] : vector<8x8xf32> to vector<8xf32>
    %102 = vector.shape_cast %101 : vector<8xf32> to vector<8x1xf32>
    %103 = tpu.reciprocal %102 {approx = true} : vector<8x1xf32> -> vector<8x1xf32>
    %104 = vector.broadcast %103 : vector<8x1xf32> to vector<8x8xf32>
    %105 = arith.mulf %100, %104 : vector<8x8xf32>
    %cst_53 = arith.constant dense<0.000000e+00> : vector<8x8xf32>
    %106 = tpu.matmul %105, %91, %cst_53 {dimension_numbers = #tpu.dot_dimension_numbers<[1], [0], [0], [1], [0, 0, 1, 1], [], []>} : vector<8x8xf32>, vector<8x8xf32>, vector<8x8xf32> -> vector<8x8xf32>
    %107 = vector.extract_strided_slice %82 {offsets = [8, 0], sizes = [8, 8], strides = [1, 1]} : vector<16x8xf32> to vector<8x8xf32>
    %108 = vector.extract_strided_slice %85 {offsets = [8, 0], sizes = [8, 8], strides = [1, 1]} : vector<16x8xf32> to vector<8x8xf32>
    %109 = vector.extract_strided_slice %88 {offsets = [8, 0], sizes = [8, 8], strides = [1, 1]} : vector<16x8xf32> to vector<8x8xf32>
    %110 = tpu.transpose %108, [1, 0] : vector<8x8xf32> -> vector<8x8xf32>
    %cst_54 = arith.constant dense<0.000000e+00> : vector<8x8xf32>
    %111 = tpu.matmul %107, %110, %cst_54 {dimension_numbers = #tpu.dot_dimension_numbers<[1], [0], [0], [1], [0, 0, 1, 1], [], []>} : vector<8x8xf32>, vector<8x8xf32>, vector<8x8xf32> -> vector<8x8xf32>
    %cst_55 = arith.constant 0.353553385 : f32
    %112 = vector.broadcast %cst_55 : f32 to vector<8x8xf32>
    %113 = arith.mulf %111, %112 : vector<8x8xf32>
    %cst_56 = arith.constant dense<0xFF800000> : vector<8xf32>
    %114 = vector.multi_reduction <maximumf>, %113, %cst_56 [1] : vector<8x8xf32> to vector<8xf32>
    %115 = vector.shape_cast %114 : vector<8xf32> to vector<8x1xf32>
    %116 = vector.broadcast %115 : vector<8x1xf32> to vector<8x8xf32>
    %117 = arith.subf %113, %116 : vector<8x8xf32>
    %118 = math.exp %117 : vector<8x8xf32>
    %cst_57 = arith.constant dense<0.000000e+00> : vector<8xf32>
    %119 = vector.multi_reduction <add>, %118, %cst_57 [1] : vector<8x8xf32> to vector<8xf32>
    %120 = vector.shape_cast %119 : vector<8xf32> to vector<8x1xf32>
    %121 = tpu.reciprocal %120 {approx = true} : vector<8x1xf32> -> vector<8x1xf32>
    %122 = vector.broadcast %121 : vector<8x1xf32> to vector<8x8xf32>
    %123 = arith.mulf %118, %122 : vector<8x8xf32>
    %cst_58 = arith.constant dense<0.000000e+00> : vector<8x8xf32>
    %124 = tpu.matmul %123, %109, %cst_58 {dimension_numbers = #tpu.dot_dimension_numbers<[1], [0], [0], [1], [0, 0, 1, 1], [], []>} : vector<8x8xf32>, vector<8x8xf32>, vector<8x8xf32> -> vector<8x8xf32>
    %125 = tpu.concatenate %106, %124 in 0 : vector<8x8xf32>, vector<8x8xf32> -> vector<16x8xf32>
    %126 = arith.truncf %125 : vector<16x8xf32> to vector<16x8xbf16>
    %c1_59 = arith.constant 1 : index
    %c0_60 = arith.constant 0 : index
    %c0_61 = arith.constant 0 : index
    %127 = vector.load %arg8[%c1_59, %c0_60, %c0_61] : memref<4x8x32xbf16, #tpu.memory_space<vmem>>, vector<1x8x32xbf16>
    %128 = vector.shape_cast %127 : vector<1x8x32xbf16> to vector<8x32xbf16>
    %cst_62 = arith.constant dense<0.000000e+00> : vector<16x32xf32>
    %129 = tpu.matmul %126, %128, %cst_62 {dimension_numbers = #tpu.dot_dimension_numbers<[1], [0], [0], [1], [0, 0, 1, 1], [], []>} : vector<16x8xbf16>, vector<8x32xbf16>, vector<16x32xf32> -> vector<16x32xf32>
    %130 = arith.addf %79, %129 : vector<16x32xf32>
    %c2 = arith.constant 2 : index
    %c0_63 = arith.constant 0 : index
    %c0_64 = arith.constant 0 : index
    %131 = vector.load %arg5[%c2, %c0_63, %c0_64] : memref<4x32x8xbf16, #tpu.memory_space<vmem>>, vector<1x32x8xbf16>
    %132 = vector.shape_cast %131 : vector<1x32x8xbf16> to vector<32x8xbf16>
    %cst_65 = arith.constant dense<0.000000e+00> : vector<16x8xf32>
    %133 = tpu.matmul %26, %132, %cst_65 {dimension_numbers = #tpu.dot_dimension_numbers<[1], [0], [0], [1], [0, 0, 1, 1], [], []>} : vector<16x32xbf16>, vector<32x8xbf16>, vector<16x8xf32> -> vector<16x8xf32>
    %c2_66 = arith.constant 2 : index
    %c0_67 = arith.constant 0 : index
    %c0_68 = arith.constant 0 : index
    %134 = vector.load %arg6[%c2_66, %c0_67, %c0_68] : memref<4x32x8xbf16, #tpu.memory_space<vmem>>, vector<1x32x8xbf16>
    %135 = vector.shape_cast %134 : vector<1x32x8xbf16> to vector<32x8xbf16>
    %cst_69 = arith.constant dense<0.000000e+00> : vector<16x8xf32>
    %136 = tpu.matmul %27, %135, %cst_69 {dimension_numbers = #tpu.dot_dimension_numbers<[1], [0], [0], [1], [0, 0, 1, 1], [], []>} : vector<16x32xbf16>, vector<32x8xbf16>, vector<16x8xf32> -> vector<16x8xf32>
    %c2_70 = arith.constant 2 : index
    %c0_71 = arith.constant 0 : index
    %c0_72 = arith.constant 0 : index
    %137 = vector.load %arg7[%c2_70, %c0_71, %c0_72] : memref<4x32x8xbf16, #tpu.memory_space<vmem>>, vector<1x32x8xbf16>
    %138 = vector.shape_cast %137 : vector<1x32x8xbf16> to vector<32x8xbf16>
    %cst_73 = arith.constant dense<0.000000e+00> : vector<16x8xf32>
    %139 = tpu.matmul %27, %138, %cst_73 {dimension_numbers = #tpu.dot_dimension_numbers<[1], [0], [0], [1], [0, 0, 1, 1], [], []>} : vector<16x32xbf16>, vector<32x8xbf16>, vector<16x8xf32> -> vector<16x8xf32>
    %140 = vector.extract_strided_slice %133 {offsets = [0, 0], sizes = [8, 8], strides = [1, 1]} : vector<16x8xf32> to vector<8x8xf32>
    %141 = vector.extract_strided_slice %136 {offsets = [0, 0], sizes = [8, 8], strides = [1, 1]} : vector<16x8xf32> to vector<8x8xf32>
    %142 = vector.extract_strided_slice %139 {offsets = [0, 0], sizes = [8, 8], strides = [1, 1]} : vector<16x8xf32> to vector<8x8xf32>
    %143 = tpu.transpose %141, [1, 0] : vector<8x8xf32> -> vector<8x8xf32>
    %cst_74 = arith.constant dense<0.000000e+00> : vector<8x8xf32>
    %144 = tpu.matmul %140, %143, %cst_74 {dimension_numbers = #tpu.dot_dimension_numbers<[1], [0], [0], [1], [0, 0, 1, 1], [], []>} : vector<8x8xf32>, vector<8x8xf32>, vector<8x8xf32> -> vector<8x8xf32>
    %cst_75 = arith.constant 0.353553385 : f32
    %145 = vector.broadcast %cst_75 : f32 to vector<8x8xf32>
    %146 = arith.mulf %144, %145 : vector<8x8xf32>
    %cst_76 = arith.constant dense<0xFF800000> : vector<8xf32>
    %147 = vector.multi_reduction <maximumf>, %146, %cst_76 [1] : vector<8x8xf32> to vector<8xf32>
    %148 = vector.shape_cast %147 : vector<8xf32> to vector<8x1xf32>
    %149 = vector.broadcast %148 : vector<8x1xf32> to vector<8x8xf32>
    %150 = arith.subf %146, %149 : vector<8x8xf32>
    %151 = math.exp %150 : vector<8x8xf32>
    %cst_77 = arith.constant dense<0.000000e+00> : vector<8xf32>
    %152 = vector.multi_reduction <add>, %151, %cst_77 [1] : vector<8x8xf32> to vector<8xf32>
    %153 = vector.shape_cast %152 : vector<8xf32> to vector<8x1xf32>
    %154 = tpu.reciprocal %153 {approx = true} : vector<8x1xf32> -> vector<8x1xf32>
    %155 = vector.broadcast %154 : vector<8x1xf32> to vector<8x8xf32>
    %156 = arith.mulf %151, %155 : vector<8x8xf32>
    %cst_78 = arith.constant dense<0.000000e+00> : vector<8x8xf32>
    %157 = tpu.matmul %156, %142, %cst_78 {dimension_numbers = #tpu.dot_dimension_numbers<[1], [0], [0], [1], [0, 0, 1, 1], [], []>} : vector<8x8xf32>, vector<8x8xf32>, vector<8x8xf32> -> vector<8x8xf32>
    %158 = vector.extract_strided_slice %133 {offsets = [8, 0], sizes = [8, 8], strides = [1, 1]} : vector<16x8xf32> to vector<8x8xf32>
    %159 = vector.extract_strided_slice %136 {offsets = [8, 0], sizes = [8, 8], strides = [1, 1]} : vector<16x8xf32> to vector<8x8xf32>
    %160 = vector.extract_strided_slice %139 {offsets = [8, 0], sizes = [8, 8], strides = [1, 1]} : vector<16x8xf32> to vector<8x8xf32>
    %161 = tpu.transpose %159, [1, 0] : vector<8x8xf32> -> vector<8x8xf32>
    %cst_79 = arith.constant dense<0.000000e+00> : vector<8x8xf32>
    %162 = tpu.matmul %158, %161, %cst_79 {dimension_numbers = #tpu.dot_dimension_numbers<[1], [0], [0], [1], [0, 0, 1, 1], [], []>} : vector<8x8xf32>, vector<8x8xf32>, vector<8x8xf32> -> vector<8x8xf32>
    %cst_80 = arith.constant 0.353553385 : f32
    %163 = vector.broadcast %cst_80 : f32 to vector<8x8xf32>
    %164 = arith.mulf %162, %163 : vector<8x8xf32>
    %cst_81 = arith.constant dense<0xFF800000> : vector<8xf32>
    %165 = vector.multi_reduction <maximumf>, %164, %cst_81 [1] : vector<8x8xf32> to vector<8xf32>
    %166 = vector.shape_cast %165 : vector<8xf32> to vector<8x1xf32>
    %167 = vector.broadcast %166 : vector<8x1xf32> to vector<8x8xf32>
    %168 = arith.subf %164, %167 : vector<8x8xf32>
    %169 = math.exp %168 : vector<8x8xf32>
    %cst_82 = arith.constant dense<0.000000e+00> : vector<8xf32>
    %170 = vector.multi_reduction <add>, %169, %cst_82 [1] : vector<8x8xf32> to vector<8xf32>
    %171 = vector.shape_cast %170 : vector<8xf32> to vector<8x1xf32>
    %172 = tpu.reciprocal %171 {approx = true} : vector<8x1xf32> -> vector<8x1xf32>
    %173 = vector.broadcast %172 : vector<8x1xf32> to vector<8x8xf32>
    %174 = arith.mulf %169, %173 : vector<8x8xf32>
    %cst_83 = arith.constant dense<0.000000e+00> : vector<8x8xf32>
    %175 = tpu.matmul %174, %160, %cst_83 {dimension_numbers = #tpu.dot_dimension_numbers<[1], [0], [0], [1], [0, 0, 1, 1], [], []>} : vector<8x8xf32>, vector<8x8xf32>, vector<8x8xf32> -> vector<8x8xf32>
    %176 = tpu.concatenate %157, %175 in 0 : vector<8x8xf32>, vector<8x8xf32> -> vector<16x8xf32>
    %177 = arith.truncf %176 : vector<16x8xf32> to vector<16x8xbf16>
    %c2_84 = arith.constant 2 : index
    %c0_85 = arith.constant 0 : index
    %c0_86 = arith.constant 0 : index
    %178 = vector.load %arg8[%c2_84, %c0_85, %c0_86] : memref<4x8x32xbf16, #tpu.memory_space<vmem>>, vector<1x8x32xbf16>
    %179 = vector.shape_cast %178 : vector<1x8x32xbf16> to vector<8x32xbf16>
    %cst_87 = arith.constant dense<0.000000e+00> : vector<16x32xf32>
    %180 = tpu.matmul %177, %179, %cst_87 {dimension_numbers = #tpu.dot_dimension_numbers<[1], [0], [0], [1], [0, 0, 1, 1], [], []>} : vector<16x8xbf16>, vector<8x32xbf16>, vector<16x32xf32> -> vector<16x32xf32>
    %181 = arith.addf %130, %180 : vector<16x32xf32>
    %c3 = arith.constant 3 : index
    %c0_88 = arith.constant 0 : index
    %c0_89 = arith.constant 0 : index
    %182 = vector.load %arg5[%c3, %c0_88, %c0_89] : memref<4x32x8xbf16, #tpu.memory_space<vmem>>, vector<1x32x8xbf16>
    %183 = vector.shape_cast %182 : vector<1x32x8xbf16> to vector<32x8xbf16>
    %cst_90 = arith.constant dense<0.000000e+00> : vector<16x8xf32>
    %184 = tpu.matmul %26, %183, %cst_90 {dimension_numbers = #tpu.dot_dimension_numbers<[1], [0], [0], [1], [0, 0, 1, 1], [], []>} : vector<16x32xbf16>, vector<32x8xbf16>, vector<16x8xf32> -> vector<16x8xf32>
    %c3_91 = arith.constant 3 : index
    %c0_92 = arith.constant 0 : index
    %c0_93 = arith.constant 0 : index
    %185 = vector.load %arg6[%c3_91, %c0_92, %c0_93] : memref<4x32x8xbf16, #tpu.memory_space<vmem>>, vector<1x32x8xbf16>
    %186 = vector.shape_cast %185 : vector<1x32x8xbf16> to vector<32x8xbf16>
    %cst_94 = arith.constant dense<0.000000e+00> : vector<16x8xf32>
    %187 = tpu.matmul %27, %186, %cst_94 {dimension_numbers = #tpu.dot_dimension_numbers<[1], [0], [0], [1], [0, 0, 1, 1], [], []>} : vector<16x32xbf16>, vector<32x8xbf16>, vector<16x8xf32> -> vector<16x8xf32>
    %c3_95 = arith.constant 3 : index
    %c0_96 = arith.constant 0 : index
    %c0_97 = arith.constant 0 : index
    %188 = vector.load %arg7[%c3_95, %c0_96, %c0_97] : memref<4x32x8xbf16, #tpu.memory_space<vmem>>, vector<1x32x8xbf16>
    %189 = vector.shape_cast %188 : vector<1x32x8xbf16> to vector<32x8xbf16>
    %cst_98 = arith.constant dense<0.000000e+00> : vector<16x8xf32>
    %190 = tpu.matmul %27, %189, %cst_98 {dimension_numbers = #tpu.dot_dimension_numbers<[1], [0], [0], [1], [0, 0, 1, 1], [], []>} : vector<16x32xbf16>, vector<32x8xbf16>, vector<16x8xf32> -> vector<16x8xf32>
    %191 = vector.extract_strided_slice %184 {offsets = [0, 0], sizes = [8, 8], strides = [1, 1]} : vector<16x8xf32> to vector<8x8xf32>
    %192 = vector.extract_strided_slice %187 {offsets = [0, 0], sizes = [8, 8], strides = [1, 1]} : vector<16x8xf32> to vector<8x8xf32>
    %193 = vector.extract_strided_slice %190 {offsets = [0, 0], sizes = [8, 8], strides = [1, 1]} : vector<16x8xf32> to vector<8x8xf32>
    %194 = tpu.transpose %192, [1, 0] : vector<8x8xf32> -> vector<8x8xf32>
    %cst_99 = arith.constant dense<0.000000e+00> : vector<8x8xf32>
    %195 = tpu.matmul %191, %194, %cst_99 {dimension_numbers = #tpu.dot_dimension_numbers<[1], [0], [0], [1], [0, 0, 1, 1], [], []>} : vector<8x8xf32>, vector<8x8xf32>, vector<8x8xf32> -> vector<8x8xf32>
    %cst_100 = arith.constant 0.353553385 : f32
    %196 = vector.broadcast %cst_100 : f32 to vector<8x8xf32>
    %197 = arith.mulf %195, %196 : vector<8x8xf32>
    %cst_101 = arith.constant dense<0xFF800000> : vector<8xf32>
    %198 = vector.multi_reduction <maximumf>, %197, %cst_101 [1] : vector<8x8xf32> to vector<8xf32>
    %199 = vector.shape_cast %198 : vector<8xf32> to vector<8x1xf32>
    %200 = vector.broadcast %199 : vector<8x1xf32> to vector<8x8xf32>
    %201 = arith.subf %197, %200 : vector<8x8xf32>
    %202 = math.exp %201 : vector<8x8xf32>
    %cst_102 = arith.constant dense<0.000000e+00> : vector<8xf32>
    %203 = vector.multi_reduction <add>, %202, %cst_102 [1] : vector<8x8xf32> to vector<8xf32>
    %204 = vector.shape_cast %203 : vector<8xf32> to vector<8x1xf32>
    %205 = tpu.reciprocal %204 {approx = true} : vector<8x1xf32> -> vector<8x1xf32>
    %206 = vector.broadcast %205 : vector<8x1xf32> to vector<8x8xf32>
    %207 = arith.mulf %202, %206 : vector<8x8xf32>
    %cst_103 = arith.constant dense<0.000000e+00> : vector<8x8xf32>
    %208 = tpu.matmul %207, %193, %cst_103 {dimension_numbers = #tpu.dot_dimension_numbers<[1], [0], [0], [1], [0, 0, 1, 1], [], []>} : vector<8x8xf32>, vector<8x8xf32>, vector<8x8xf32> -> vector<8x8xf32>
    %209 = vector.extract_strided_slice %184 {offsets = [8, 0], sizes = [8, 8], strides = [1, 1]} : vector<16x8xf32> to vector<8x8xf32>
    %210 = vector.extract_strided_slice %187 {offsets = [8, 0], sizes = [8, 8], strides = [1, 1]} : vector<16x8xf32> to vector<8x8xf32>
    %211 = vector.extract_strided_slice %190 {offsets = [8, 0], sizes = [8, 8], strides = [1, 1]} : vector<16x8xf32> to vector<8x8xf32>
    %212 = tpu.transpose %210, [1, 0] : vector<8x8xf32> -> vector<8x8xf32>
    %cst_104 = arith.constant dense<0.000000e+00> : vector<8x8xf32>
    %213 = tpu.matmul %209, %212, %cst_104 {dimension_numbers = #tpu.dot_dimension_numbers<[1], [0], [0], [1], [0, 0, 1, 1], [], []>} : vector<8x8xf32>, vector<8x8xf32>, vector<8x8xf32> -> vector<8x8xf32>
    %cst_105 = arith.constant 0.353553385 : f32
    %214 = vector.broadcast %cst_105 : f32 to vector<8x8xf32>
    %215 = arith.mulf %213, %214 : vector<8x8xf32>
    %cst_106 = arith.constant dense<0xFF800000> : vector<8xf32>
    %216 = vector.multi_reduction <maximumf>, %215, %cst_106 [1] : vector<8x8xf32> to vector<8xf32>
    %217 = vector.shape_cast %216 : vector<8xf32> to vector<8x1xf32>
    %218 = vector.broadcast %217 : vector<8x1xf32> to vector<8x8xf32>
    %219 = arith.subf %215, %218 : vector<8x8xf32>
    %220 = math.exp %219 : vector<8x8xf32>
    %cst_107 = arith.constant dense<0.000000e+00> : vector<8xf32>
    %221 = vector.multi_reduction <add>, %220, %cst_107 [1] : vector<8x8xf32> to vector<8xf32>
    %222 = vector.shape_cast %221 : vector<8xf32> to vector<8x1xf32>
    %223 = tpu.reciprocal %222 {approx = true} : vector<8x1xf32> -> vector<8x1xf32>
    %224 = vector.broadcast %223 : vector<8x1xf32> to vector<8x8xf32>
    %225 = arith.mulf %220, %224 : vector<8x8xf32>
    %cst_108 = arith.constant dense<0.000000e+00> : vector<8x8xf32>
    %226 = tpu.matmul %225, %211, %cst_108 {dimension_numbers = #tpu.dot_dimension_numbers<[1], [0], [0], [1], [0, 0, 1, 1], [], []>} : vector<8x8xf32>, vector<8x8xf32>, vector<8x8xf32> -> vector<8x8xf32>
    %227 = tpu.concatenate %208, %226 in 0 : vector<8x8xf32>, vector<8x8xf32> -> vector<16x8xf32>
    %228 = arith.truncf %227 : vector<16x8xf32> to vector<16x8xbf16>
    %c3_109 = arith.constant 3 : index
    %c0_110 = arith.constant 0 : index
    %c0_111 = arith.constant 0 : index
    %229 = vector.load %arg8[%c3_109, %c0_110, %c0_111] : memref<4x8x32xbf16, #tpu.memory_space<vmem>>, vector<1x8x32xbf16>
    %230 = vector.shape_cast %229 : vector<1x8x32xbf16> to vector<8x32xbf16>
    %cst_112 = arith.constant dense<0.000000e+00> : vector<16x32xf32>
    %231 = tpu.matmul %228, %230, %cst_112 {dimension_numbers = #tpu.dot_dimension_numbers<[1], [0], [0], [1], [0, 0, 1, 1], [], []>} : vector<16x8xbf16>, vector<8x32xbf16>, vector<16x32xf32> -> vector<16x32xf32>
    %232 = arith.addf %181, %231 : vector<16x32xf32>
    %233 = arith.addf %1, %232 : vector<16x32xf32>
    %c0_113 = arith.constant 0 : index
    %c0_114 = arith.constant 0 : index
    %234 = vector.load %arg9[%c0_113, %c0_114] : memref<1x32xf32, #tpu.memory_space<vmem>>, vector<1x32xf32>
    %235 = vector.broadcast %234 : vector<1x32xf32> to vector<16x32xf32>
    %236 = arith.addf %233, %235 : vector<16x32xf32>
    %c0_115 = arith.constant 0 : index
    %c0_116 = arith.constant 0 : index
    %237 = vector.load %arg10[%c0_115, %c0_116] : memref<1x32xf32, #tpu.memory_space<vmem>>, vector<1x32xf32>
    %c0_117 = arith.constant 0 : index
    %c0_118 = arith.constant 0 : index
    %238 = vector.load %arg11[%c0_117, %c0_118] : memref<1x32xf32, #tpu.memory_space<vmem>>, vector<1x32xf32>
    %cst_119 = arith.constant dense<0.000000e+00> : vector<16xf32>
    %239 = vector.multi_reduction <add>, %236, %cst_119 [1] : vector<16x32xf32> to vector<16xf32>
    %240 = vector.shape_cast %239 : vector<16xf32> to vector<16x1xf32>
    %cst_120 = arith.constant 3.200000e+01 : f32
    %241 = vector.broadcast %cst_120 : f32 to vector<16x1xf32>
    %242 = arith.divf %240, %241 : vector<16x1xf32>
    %243 = vector.broadcast %242 : vector<16x1xf32> to vector<16x32xf32>
    %244 = arith.subf %236, %243 : vector<16x32xf32>
    %245 = arith.mulf %244, %244 : vector<16x32xf32>
    %cst_121 = arith.constant dense<0.000000e+00> : vector<16xf32>
    %246 = vector.multi_reduction <add>, %245, %cst_121 [1] : vector<16x32xf32> to vector<16xf32>
    %247 = vector.shape_cast %246 : vector<16xf32> to vector<16x1xf32>
    %cst_122 = arith.constant 3.200000e+01 : f32
    %248 = vector.broadcast %cst_122 : f32 to vector<16x1xf32>
    %249 = arith.divf %247, %248 : vector<16x1xf32>
    %250 = vector.broadcast %242 : vector<16x1xf32> to vector<16x32xf32>
    %251 = arith.subf %236, %250 : vector<16x32xf32>
    %cst_123 = arith.constant 9.99999974E-6 : f32
    %252 = vector.broadcast %cst_123 : f32 to vector<16x1xf32>
    %253 = arith.addf %249, %252 : vector<16x1xf32>
    %254 = math.rsqrt %253 : vector<16x1xf32>
    %255 = vector.broadcast %254 : vector<16x1xf32> to vector<16x32xf32>
    %256 = arith.mulf %251, %255 : vector<16x32xf32>
    %257 = vector.broadcast %237 : vector<1x32xf32> to vector<16x32xf32>
    %258 = arith.mulf %256, %257 : vector<16x32xf32>
    %259 = vector.broadcast %238 : vector<1x32xf32> to vector<16x32xf32>
    %260 = arith.addf %258, %259 : vector<16x32xf32>
    %261 = arith.truncf %260 : vector<16x32xf32> to vector<16x32xbf16>
    %c0_124 = arith.constant 0 : index
    %c0_125 = arith.constant 0 : index
    %262 = vector.load %arg12[%c0_124, %c0_125] : memref<32x128xbf16, #tpu.memory_space<vmem>>, vector<32x128xbf16>
    %cst_126 = arith.constant dense<0.000000e+00> : vector<16x128xf32>
    %263 = tpu.matmul %261, %262, %cst_126 {dimension_numbers = #tpu.dot_dimension_numbers<[1], [0], [0], [1], [0, 0, 1, 1], [], []>} : vector<16x32xbf16>, vector<32x128xbf16>, vector<16x128xf32> -> vector<16x128xf32>
    %c0_127 = arith.constant 0 : index
    %c0_128 = arith.constant 0 : index
    %264 = vector.load %arg13[%c0_127, %c0_128] : memref<1x128xf32, #tpu.memory_space<vmem>>, vector<1x128xf32>
    %265 = vector.broadcast %264 : vector<1x128xf32> to vector<16x128xf32>
    %266 = arith.addf %263, %265 : vector<16x128xf32>
    %267 = arith.mulf %266, %266 : vector<16x128xf32>
    %268 = arith.mulf %266, %267 : vector<16x128xf32>
    %cst_129 = arith.constant 4.471500e-02 : f32
    %269 = vector.broadcast %cst_129 : f32 to vector<16x128xf32>
    %270 = arith.mulf %269, %268 : vector<16x128xf32>
    %271 = arith.addf %266, %270 : vector<16x128xf32>
    %cst_130 = arith.constant 0.797884583 : f32
    %272 = vector.broadcast %cst_130 : f32 to vector<16x128xf32>
    %273 = arith.mulf %272, %271 : vector<16x128xf32>
    %274 = math.tanh %273 : vector<16x128xf32>
    %cst_131 = arith.constant 1.000000e+00 : f32
    %275 = vector.broadcast %cst_131 : f32 to vector<16x128xf32>
    %276 = arith.addf %275, %274 : vector<16x128xf32>
    %cst_132 = arith.constant 5.000000e-01 : f32
    %277 = vector.broadcast %cst_132 : f32 to vector<16x128xf32>
    %278 = arith.mulf %277, %276 : vector<16x128xf32>
    %279 = arith.mulf %266, %278 : vector<16x128xf32>
    %280 = arith.truncf %279 : vector<16x128xf32> to vector<16x128xbf16>
    %c0_133 = arith.constant 0 : index
    %c0_134 = arith.constant 0 : index
    %281 = vector.load %arg14[%c0_133, %c0_134] : memref<128x32xbf16, #tpu.memory_space<vmem>>, vector<128x32xbf16>
    %cst_135 = arith.constant dense<0.000000e+00> : vector<16x32xf32>
    %282 = tpu.matmul %280, %281, %cst_135 {dimension_numbers = #tpu.dot_dimension_numbers<[1], [0], [0], [1], [0, 0, 1, 1], [], []>} : vector<16x128xbf16>, vector<128x32xbf16>, vector<16x32xf32> -> vector<16x32xf32>
    %c0_136 = arith.constant 0 : index
    %c0_137 = arith.constant 0 : index
    %283 = vector.load %arg15[%c0_136, %c0_137] : memref<1x32xf32, #tpu.memory_space<vmem>>, vector<1x32xf32>
    %284 = vector.broadcast %283 : vector<1x32xf32> to vector<16x32xf32>
    %285 = arith.addf %282, %284 : vector<16x32xf32>
    %286 = arith.addf %236, %285 : vector<16x32xf32>
    %287 = vector.shape_cast %286 : vector<16x32xf32> to vector<1x2x8x32xf32>
    %c0_138 = arith.constant 0 : index
    %c0_139 = arith.constant 0 : index
    %c0_140 = arith.constant 0 : index
    %c0_141 = arith.constant 0 : index
    %288 = vector.load %arg16[%c0_138, %c0_139, %c0_140, %c0_141] : memref<1x2x8x32xf32, #tpu.memory_space<vmem>>, vector<1x2x8x32xf32>
    tpu.vector_store %arg16[%c0_138, %c0_139, %c0_140, %c0_141], %287 {strides = array<i32>} : memref<1x2x8x32xf32, #tpu.memory_space<vmem>>, vector<1x2x8x32xf32>,
    return
  }
  func.func @transform_0(%arg0: i32, %arg1: i32) -> (i32, i32, i32, i32) {
    %c0_i32 = arith.constant 0 : i32
    %c0_i32_0 = arith.constant 0 : i32
    %c0_i32_1 = arith.constant 0 : i32
    return %arg0, %arg1, %c0_i32, %c0_i32_0 : i32, i32, i32, i32
  }
  func.func @transform_1(%arg0: i32, %arg1: i32) -> (i32, i32) {
    %c0_i32 = arith.constant 0 : i32
    %c0_i32_0 = arith.constant 0 : i32
    %c0_i32_1 = arith.constant 0 : i32
    return %c0_i32, %c0_i32_0 : i32, i32
  }
  func.func @transform_2(%arg0: i32, %arg1: i32) -> (i32, i32) {
    %c0_i32 = arith.constant 0 : i32
    %c0_i32_0 = arith.constant 0 : i32
    %c0_i32_1 = arith.constant 0 : i32
    return %c0_i32, %c0_i32_0 : i32, i32
  }
  func.func @transform_3(%arg0: i32, %arg1: i32) -> (i32, i32, i32) {
    %c0_i32 = arith.constant 0 : i32
    %c0_i32_0 = arith.constant 0 : i32
    %c0_i32_1 = arith.constant 0 : i32
    %c0_i32_2 = arith.constant 0 : i32
    return %c0_i32, %c0_i32_0, %c0_i32_1 : i32, i32, i32
  }
  func.func @transform_4(%arg0: i32, %arg1: i32) -> (i32, i32, i32) {
    %c0_i32 = arith.constant 0 : i32
    %c0_i32_0 = arith.constant 0 : i32
    %c0_i32_1 = arith.constant 0 : i32
    %c0_i32_2 = arith.constant 0 : i32
    return %c0_i32, %c0_i32_0, %c0_i32_1 : i32, i32, i32
  }
  func.func @transform_5(%arg0: i32, %arg1: i32) -> (i32, i32, i32) {
    %c0_i32 = arith.constant 0 : i32
    %c0_i32_0 = arith.constant 0 : i32
    %c0_i32_1 = arith.constant 0 : i32
    %c0_i32_2 = arith.constant 0 : i32
    return %c0_i32, %c0_i32_0, %c0_i32_1 : i32, i32, i32
  }
  func.func @transform_6(%arg0: i32, %arg1: i32) -> (i32, i32, i32) {
    %c0_i32 = arith.constant 0 : i32
    %c0_i32_0 = arith.constant 0 : i32
    %c0_i32_1 = arith.constant 0 : i32
    %c0_i32_2 = arith.constant 0 : i32
    return %c0_i32, %c0_i32_0, %c0_i32_1 : i32, i32, i32
  }
  func.func @transform_7(%arg0: i32, %arg1: i32) -> (i32, i32) {
    %c0_i32 = arith.constant 0 : i32
    %c0_i32_0 = arith.constant 0 : i32
    %c0_i32_1 = arith.constant 0 : i32
    return %c0_i32, %c0_i32_0 : i32, i32
  }
  func.func @transform_8(%arg0: i32, %arg1: i32) -> (i32, i32) {
    %c0_i32 = arith.constant 0 : i32
    %c0_i32_0 = arith.constant 0 : i32
    %c0_i32_1 = arith.constant 0 : i32
    return %c0_i32, %c0_i32_0 : i32, i32
  }
  func.func @transform_9(%arg0: i32, %arg1: i32) -> (i32, i32) {
    %c0_i32 = arith.constant 0 : i32
    %c0_i32_0 = arith.constant 0 : i32
    %c0_i32_1 = arith.constant 0 : i32
    return %c0_i32, %c0_i32_0 : i32, i32
  }
  func.func @transform_10(%arg0: i32, %arg1: i32) -> (i32, i32) {
    %c0_i32 = arith.constant 0 : i32
    %c0_i32_0 = arith.constant 0 : i32
    %c0_i32_1 = arith.constant 0 : i32
    return %c0_i32, %c0_i32_0 : i32, i32
  }
  func.func @transform_11(%arg0: i32, %arg1: i32) -> (i32, i32) {
    %c0_i32 = arith.constant 0 : i32
    %c0_i32_0 = arith.constant 0 : i32
    %c0_i32_1 = arith.constant 0 : i32
    return %c0_i32, %c0_i32_0 : i32, i32
  }
  func.func @transform_12(%arg0: i32, %arg1: i32) -> (i32, i32) {
    %c0_i32 = arith.constant 0 : i32
    %c0_i32_0 = arith.constant 0 : i32
    %c0_i32_1 = arith.constant 0 : i32
    return %c0_i32, %c0_i32_0 : i32, i32
  }
  func.func @transform_13(%arg0: i32, %arg1: i32) -> (i32, i32) {
    %c0_i32 = arith.constant 0 : i32
    %c0_i32_0 = arith.constant 0 : i32
    %c0_i32_1 = arith.constant 0 : i32
    return %c0_i32, %c0_i32_0 : i32, i32
  }
  func.func @transform_14(%arg0: i32, %arg1: i32) -> (i32, i32, i32, i32) {
    %c0_i32 = arith.constant 0 : i32
    %c0_i32_0 = arith.constant 0 : i32
    %c0_i32_1 = arith.constant 0 : i32
    return %arg0, %arg1, %c0_i32, %c0_i32_0 : i32, i32, i32, i32
  }
}

module attributes {stable_mosaic.version = 11 : i64} {
  func.func @_sa_block_kernel(%arg0: i32, %arg1: i32, %arg2: memref<1x2x8x32xf32, #tpu.memory_space<vmem>>, %arg3: memref<1x32xf32, #tpu.memory_space<vmem>>, %arg4: memref<1x32xf32, #tpu.memory_space<vmem>>, %arg5: memref<4x32x8xbf16, #tpu.memory_space<vmem>>, %arg6: memref<4x32x8xbf16, #tpu.memory_space<vmem>>, %arg7: memref<4x32x8xbf16, #tpu.memory_space<vmem>>, %arg8: memref<4x8x32xbf16, #tpu.memory_space<vmem>>, %arg9: memref<1x32xf32, #tpu.memory_space<vmem>>, %arg10: memref<1x32xf32, #tpu.memory_space<vmem>>, %arg11: memref<1x32xf32, #tpu.memory_space<vmem>>, %arg12: memref<32x128xbf16, #tpu.memory_space<vmem>>, %arg13: memref<1x128xf32, #tpu.memory_space<vmem>>, %arg14: memref<128x32xbf16, #tpu.memory_space<vmem>>, %arg15: memref<1x32xf32, #tpu.memory_space<vmem>>, %arg16: memref<1x2x8x32xf32, #tpu.memory_space<vmem>>) attributes {dimension_semantics = [#tpu.dimension_semantics<parallel>, #tpu.dimension_semantics<parallel>], iteration_bounds = array<i64: 2, 1>, scalar_prefetch = 0 : i64, scratch_operands = 0 : i64, tpu.core_type = #tpu.core_type<tc>, window_params = [{transform_indices = @transform_0, window_bounds = array<i64: 1, 2, 8, 32>}, {pipeline_mode = #tpu.pipeline_mode<synchronous>, transform_indices = @transform_1, window_bounds = array<i64: 1, 32>}, {pipeline_mode = #tpu.pipeline_mode<synchronous>, transform_indices = @transform_2, window_bounds = array<i64: 1, 32>}, {pipeline_mode = #tpu.pipeline_mode<synchronous>, transform_indices = @transform_3, window_bounds = array<i64: 4, 32, 8>}, {pipeline_mode = #tpu.pipeline_mode<synchronous>, transform_indices = @transform_4, window_bounds = array<i64: 4, 32, 8>}, {pipeline_mode = #tpu.pipeline_mode<synchronous>, transform_indices = @transform_5, window_bounds = array<i64: 4, 32, 8>}, {pipeline_mode = #tpu.pipeline_mode<synchronous>, transform_indices = @transform_6, window_bounds = array<i64: 4, 8, 32>}, {pipeline_mode = #tpu.pipeline_mode<synchronous>, transform_indices = @transform_7, window_bounds = array<i64: 1, 32>}, {pipeline_mode = #tpu.pipeline_mode<synchronous>, transform_indices = @transform_8, window_bounds = array<i64: 1, 32>}, {pipeline_mode = #tpu.pipeline_mode<synchronous>, transform_indices = @transform_9, window_bounds = array<i64: 1, 32>}, {pipeline_mode = #tpu.pipeline_mode<synchronous>, transform_indices = @transform_10, window_bounds = array<i64: 32, 128>}, {pipeline_mode = #tpu.pipeline_mode<synchronous>, transform_indices = @transform_11, window_bounds = array<i64: 1, 128>}, {pipeline_mode = #tpu.pipeline_mode<synchronous>, transform_indices = @transform_12, window_bounds = array<i64: 128, 32>}, {pipeline_mode = #tpu.pipeline_mode<synchronous>, transform_indices = @transform_13, window_bounds = array<i64: 1, 32>}, {transform_indices = @transform_14, window_bounds = array<i64: 1, 2, 8, 32>}]} {
    %c0 = arith.constant 0 : index
    %c0_0 = arith.constant 0 : index
    %c0_1 = arith.constant 0 : index
    %c0_2 = arith.constant 0 : index
    %0 = vector.load %arg2[%c0, %c0_0, %c0_1, %c0_2] : memref<1x2x8x32xf32, #tpu.memory_space<vmem>>, vector<1x2x8x32xf32>
    %1 = vector.shape_cast %0 : vector<1x2x8x32xf32> to vector<16x32xf32>
    %c0_3 = arith.constant 0 : index
    %c0_4 = arith.constant 0 : index
    %2 = vector.load %arg3[%c0_3, %c0_4] : memref<1x32xf32, #tpu.memory_space<vmem>>, vector<1x32xf32>
    %c0_5 = arith.constant 0 : index
    %c0_6 = arith.constant 0 : index
    %3 = vector.load %arg4[%c0_5, %c0_6] : memref<1x32xf32, #tpu.memory_space<vmem>>, vector<1x32xf32>
    %cst = arith.constant dense<0.000000e+00> : vector<16xf32>
    %4 = vector.multi_reduction <add>, %1, %cst [1] : vector<16x32xf32> to vector<16xf32>
    %5 = vector.shape_cast %4 : vector<16xf32> to vector<16x1xf32>
    %cst_7 = arith.constant 3.200000e+01 : f32
    %6 = vector.broadcast %cst_7 : f32 to vector<16x1xf32>
    %7 = arith.divf %5, %6 : vector<16x1xf32>
    %8 = vector.broadcast %7 : vector<16x1xf32> to vector<16x32xf32>
    %9 = arith.subf %1, %8 : vector<16x32xf32>
    %10 = arith.mulf %9, %9 : vector<16x32xf32>
    %cst_8 = arith.constant dense<0.000000e+00> : vector<16xf32>
    %11 = vector.multi_reduction <add>, %10, %cst_8 [1] : vector<16x32xf32> to vector<16xf32>
    %12 = vector.shape_cast %11 : vector<16xf32> to vector<16x1xf32>
    %cst_9 = arith.constant 3.200000e+01 : f32
    %13 = vector.broadcast %cst_9 : f32 to vector<16x1xf32>
    %14 = arith.divf %12, %13 : vector<16x1xf32>
    %15 = vector.broadcast %7 : vector<16x1xf32> to vector<16x32xf32>
    %16 = arith.subf %1, %15 : vector<16x32xf32>
    %cst_10 = arith.constant 9.99999974E-6 : f32
    %17 = vector.broadcast %cst_10 : f32 to vector<16x1xf32>
    %18 = arith.addf %14, %17 : vector<16x1xf32>
    %19 = math.rsqrt %18 : vector<16x1xf32>
    %20 = vector.broadcast %19 : vector<16x1xf32> to vector<16x32xf32>
    %21 = arith.mulf %16, %20 : vector<16x32xf32>
    %22 = vector.broadcast %2 : vector<1x32xf32> to vector<16x32xf32>
    %23 = arith.mulf %21, %22 : vector<16x32xf32>
    %24 = vector.broadcast %3 : vector<1x32xf32> to vector<16x32xf32>
    %25 = arith.addf %23, %24 : vector<16x32xf32>
    %26 = arith.truncf %25 : vector<16x32xf32> to vector<16x32xbf16>
    %27 = arith.truncf %25 : vector<16x32xf32> to vector<16x32xbf16>
    %cst_11 = arith.constant 0.000000e+00 : f32
    %28 = vector.broadcast %cst_11 : f32 to vector<16x32xf32>
    %c0_12 = arith.constant 0 : index
    %c0_13 = arith.constant 0 : index
    %c0_14 = arith.constant 0 : index
    %29 = vector.load %arg5[%c0_12, %c0_13, %c0_14] : memref<4x32x8xbf16, #tpu.memory_space<vmem>>, vector<1x32x8xbf16>
    %30 = vector.shape_cast %29 : vector<1x32x8xbf16> to vector<32x8xbf16>
    %cst_15 = arith.constant dense<0.000000e+00> : vector<16x8xf32>
    %31 = tpu.matmul %26, %30, %cst_15 {dimension_numbers = #tpu.dot_dimension_numbers<[1], [0], [0], [1], [0, 0, 1, 1], [], []>} : vector<16x32xbf16>, vector<32x8xbf16>, vector<16x8xf32> -> vector<16x8xf32>
    %c0_16 = arith.constant 0 : index
    %c0_17 = arith.constant 0 : index
    %c0_18 = arith.constant 0 : index
    %32 = vector.load %arg6[%c0_16, %c0_17, %c0_18] : memref<4x32x8xbf16, #tpu.memory_space<vmem>>, vector<1x32x8xbf16>
    %33 = vector.shape_cast %32 : vector<1x32x8xbf16> to vector<32x8xbf16>
    %cst_19 = arith.constant dense<0.000000e+00> : vector<16x8xf32>
    %34 = tpu.matmul %27, %33, %cst_19 {dimension_numbers = #tpu.dot_dimension_numbers<[1], [0], [0], [1], [0, 0, 1, 1], [], []>} : vector<16x32xbf16>, vector<32x8xbf16>, vector<16x8xf32> -> vector<16x8xf32>
    %c0_20 = arith.constant 0 : index
    %c0_21 = arith.constant 0 : index
    %c0_22 = arith.constant 0 : index
    %35 = vector.load %arg7[%c0_20, %c0_21, %c0_22] : memref<4x32x8xbf16, #tpu.memory_space<vmem>>, vector<1x32x8xbf16>
    %36 = vector.shape_cast %35 : vector<1x32x8xbf16> to vector<32x8xbf16>
    %cst_23 = arith.constant dense<0.000000e+00> : vector<16x8xf32>
    %37 = tpu.matmul %27, %36, %cst_23 {dimension_numbers = #tpu.dot_dimension_numbers<[1], [0], [0], [1], [0, 0, 1, 1], [], []>} : vector<16x32xbf16>, vector<32x8xbf16>, vector<16x8xf32> -> vector<16x8xf32>
    %38 = vector.extract_strided_slice %31 {offsets = [0, 0], sizes = [8, 8], strides = [1, 1]} : vector<16x8xf32> to vector<8x8xf32>
    %39 = vector.extract_strided_slice %34 {offsets = [0, 0], sizes = [8, 8], strides = [1, 1]} : vector<16x8xf32> to vector<8x8xf32>
    %40 = vector.extract_strided_slice %37 {offsets = [0, 0], sizes = [8, 8], strides = [1, 1]} : vector<16x8xf32> to vector<8x8xf32>
    %41 = tpu.transpose %39, [1, 0] : vector<8x8xf32> -> vector<8x8xf32>
    %cst_24 = arith.constant dense<0.000000e+00> : vector<8x8xf32>
    %42 = tpu.matmul %38, %41, %cst_24 {dimension_numbers = #tpu.dot_dimension_numbers<[1], [0], [0], [1], [0, 0, 1, 1], [], []>} : vector<8x8xf32>, vector<8x8xf32>, vector<8x8xf32> -> vector<8x8xf32>
    %cst_25 = arith.constant 0.353553385 : f32
    %43 = vector.broadcast %cst_25 : f32 to vector<8x8xf32>
    %44 = arith.mulf %42, %43 : vector<8x8xf32>
    %cst_26 = arith.constant dense<0xFF800000> : vector<8xf32>
    %45 = vector.multi_reduction <maximumf>, %44, %cst_26 [1] : vector<8x8xf32> to vector<8xf32>
    %46 = vector.shape_cast %45 : vector<8xf32> to vector<8x1xf32>
    %47 = vector.broadcast %46 : vector<8x1xf32> to vector<8x8xf32>
    %48 = arith.subf %44, %47 : vector<8x8xf32>
    %49 = math.exp %48 : vector<8x8xf32>
    %cst_27 = arith.constant dense<0.000000e+00> : vector<8xf32>
    %50 = vector.multi_reduction <add>, %49, %cst_27 [1] : vector<8x8xf32> to vector<8xf32>
    %51 = vector.shape_cast %50 : vector<8xf32> to vector<8x1xf32>
    %52 = tpu.reciprocal %51 {approx = true} : vector<8x1xf32> -> vector<8x1xf32>
    %53 = vector.broadcast %52 : vector<8x1xf32> to vector<8x8xf32>
    %54 = arith.mulf %49, %53 : vector<8x8xf32>
    %cst_28 = arith.constant dense<0.000000e+00> : vector<8x8xf32>
    %55 = tpu.matmul %54, %40, %cst_28 {dimension_numbers = #tpu.dot_dimension_numbers<[1], [0], [0], [1], [0, 0, 1, 1], [], []>} : vector<8x8xf32>, vector<8x8xf32>, vector<8x8xf32> -> vector<8x8xf32>
    %56 = vector.extract_strided_slice %31 {offsets = [8, 0], sizes = [8, 8], strides = [1, 1]} : vector<16x8xf32> to vector<8x8xf32>
    %57 = vector.extract_strided_slice %34 {offsets = [8, 0], sizes = [8, 8], strides = [1, 1]} : vector<16x8xf32> to vector<8x8xf32>
    %58 = vector.extract_strided_slice %37 {offsets = [8, 0], sizes = [8, 8], strides = [1, 1]} : vector<16x8xf32> to vector<8x8xf32>
    %59 = tpu.transpose %57, [1, 0] : vector<8x8xf32> -> vector<8x8xf32>
    %cst_29 = arith.constant dense<0.000000e+00> : vector<8x8xf32>
    %60 = tpu.matmul %56, %59, %cst_29 {dimension_numbers = #tpu.dot_dimension_numbers<[1], [0], [0], [1], [0, 0, 1, 1], [], []>} : vector<8x8xf32>, vector<8x8xf32>, vector<8x8xf32> -> vector<8x8xf32>
    %cst_30 = arith.constant 0.353553385 : f32
    %61 = vector.broadcast %cst_30 : f32 to vector<8x8xf32>
    %62 = arith.mulf %60, %61 : vector<8x8xf32>
    %cst_31 = arith.constant dense<0xFF800000> : vector<8xf32>
    %63 = vector.multi_reduction <maximumf>, %62, %cst_31 [1] : vector<8x8xf32> to vector<8xf32>
    %64 = vector.shape_cast %63 : vector<8xf32> to vector<8x1xf32>
    %65 = vector.broadcast %64 : vector<8x1xf32> to vector<8x8xf32>
    %66 = arith.subf %62, %65 : vector<8x8xf32>
    %67 = math.exp %66 : vector<8x8xf32>
    %cst_32 = arith.constant dense<0.000000e+00> : vector<8xf32>
    %68 = vector.multi_reduction <add>, %67, %cst_32 [1] : vector<8x8xf32> to vector<8xf32>
    %69 = vector.shape_cast %68 : vector<8xf32> to vector<8x1xf32>
    %70 = tpu.reciprocal %69 {approx = true} : vector<8x1xf32> -> vector<8x1xf32>
    %71 = vector.broadcast %70 : vector<8x1xf32> to vector<8x8xf32>
    %72 = arith.mulf %67, %71 : vector<8x8xf32>
    %cst_33 = arith.constant dense<0.000000e+00> : vector<8x8xf32>
    %73 = tpu.matmul %72, %58, %cst_33 {dimension_numbers = #tpu.dot_dimension_numbers<[1], [0], [0], [1], [0, 0, 1, 1], [], []>} : vector<8x8xf32>, vector<8x8xf32>, vector<8x8xf32> -> vector<8x8xf32>
    %74 = tpu.concatenate %55, %73 in 0 : vector<8x8xf32>, vector<8x8xf32> -> vector<16x8xf32>
    %75 = arith.truncf %74 : vector<16x8xf32> to vector<16x8xbf16>
    %c0_34 = arith.constant 0 : index
    %c0_35 = arith.constant 0 : index
    %c0_36 = arith.constant 0 : index
    %76 = vector.load %arg8[%c0_34, %c0_35, %c0_36] : memref<4x8x32xbf16, #tpu.memory_space<vmem>>, vector<1x8x32xbf16>
    %77 = vector.shape_cast %76 : vector<1x8x32xbf16> to vector<8x32xbf16>
    %cst_37 = arith.constant dense<0.000000e+00> : vector<16x32xf32>
    %78 = tpu.matmul %75, %77, %cst_37 {dimension_numbers = #tpu.dot_dimension_numbers<[1], [0], [0], [1], [0, 0, 1, 1], [], []>} : vector<16x8xbf16>, vector<8x32xbf16>, vector<16x32xf32> -> vector<16x32xf32>
    %79 = arith.addf %28, %78 : vector<16x32xf32>
    %c1 = arith.constant 1 : index
    %c0_38 = arith.constant 0 : index
    %c0_39 = arith.constant 0 : index
    %80 = vector.load %arg5[%c1, %c0_38, %c0_39] : memref<4x32x8xbf16, #tpu.memory_space<vmem>>, vector<1x32x8xbf16>
    %81 = vector.shape_cast %80 : vector<1x32x8xbf16> to vector<32x8xbf16>
    %cst_40 = arith.constant dense<0.000000e+00> : vector<16x8xf32>
    %82 = tpu.matmul %26, %81, %cst_40 {dimension_numbers = #tpu.dot_dimension_numbers<[1], [0], [0], [1], [0, 0, 1, 1], [], []>} : vector<16x32xbf16>, vector<32x8xbf16>, vector<16x8xf32> -> vector<16x8xf32>
    %c1_41 = arith.constant 1 : index
    %c0_42 = arith.constant 0 : index
    %c0_43 = arith.constant 0 : index
    %83 = vector.load %arg6[%c1_41, %c0_42, %c0_43] : memref<4x32x8xbf16, #tpu.memory_space<vmem>>, vector<1x32x8xbf16>
    %84 = vector.shape_cast %83 : vector<1x32x8xbf16> to vector<32x8xbf16>
    %cst_44 = arith.constant dense<0.000000e+00> : vector<16x8xf32>
    %85 = tpu.matmul %27, %84, %cst_44 {dimension_numbers = #tpu.dot_dimension_numbers<[1], [0], [0], [1], [0, 0, 1, 1], [], []>} : vector<16x32xbf16>, vector<32x8xbf16>, vector<16x8xf32> -> vector<16x8xf32>
    %c1_45 = arith.constant 1 : index
    %c0_46 = arith.constant 0 : index
    %c0_47 = arith.constant 0 : index
    %86 = vector.load %arg7[%c1_45, %c0_46, %c0_47] : memref<4x32x8xbf16, #tpu.memory_space<vmem>>, vector<1x32x8xbf16>
    %87 = vector.shape_cast %86 : vector<1x32x8xbf16> to vector<32x8xbf16>
    %cst_48 = arith.constant dense<0.000000e+00> : vector<16x8xf32>
    %88 = tpu.matmul %27, %87, %cst_48 {dimension_numbers = #tpu.dot_dimension_numbers<[1], [0], [0], [1], [0, 0, 1, 1], [], []>} : vector<16x32xbf16>, vector<32x8xbf16>, vector<16x8xf32> -> vector<16x8xf32>
    %89 = vector.extract_strided_slice %82 {offsets = [0, 0], sizes = [8, 8], strides = [1, 1]} : vector<16x8xf32> to vector<8x8xf32>
    %90 = vector.extract_strided_slice %85 {offsets = [0, 0], sizes = [8, 8], strides = [1, 1]} : vector<16x8xf32> to vector<8x8xf32>
    %91 = vector.extract_strided_slice %88 {offsets = [0, 0], sizes = [8, 8], strides = [1, 1]} : vector<16x8xf32> to vector<8x8xf32>
    %92 = tpu.transpose %90, [1, 0] : vector<8x8xf32> -> vector<8x8xf32>
    %cst_49 = arith.constant dense<0.000000e+00> : vector<8x8xf32>
    %93 = tpu.matmul %89, %92, %cst_49 {dimension_numbers = #tpu.dot_dimension_numbers<[1], [0], [0], [1], [0, 0, 1, 1], [], []>} : vector<8x8xf32>, vector<8x8xf32>, vector<8x8xf32> -> vector<8x8xf32>
    %cst_50 = arith.constant 0.353553385 : f32
    %94 = vector.broadcast %cst_50 : f32 to vector<8x8xf32>
    %95 = arith.mulf %93, %94 : vector<8x8xf32>
    %cst_51 = arith.constant dense<0xFF800000> : vector<8xf32>
    %96 = vector.multi_reduction <maximumf>, %95, %cst_51 [1] : vector<8x8xf32> to vector<8xf32>
    %97 = vector.shape_cast %96 : vector<8xf32> to vector<8x1xf32>
    %98 = vector.broadcast %97 : vector<8x1xf32> to vector<8x8xf32>
    %99 = arith.subf %95, %98 : vector<8x8xf32>
    %100 = math.exp %99 : vector<8x8xf32>
    %cst_52 = arith.constant dense<0.000000e+00> : vector<8xf32>
    %101 = vector.multi_reduction <add>, %100, %cst_52 [1] : vector<8x8xf32> to vector<8xf32>
    %102 = vector.shape_cast %101 : vector<8xf32> to vector<8x1xf32>
    %103 = tpu.reciprocal %102 {approx = true} : vector<8x1xf32> -> vector<8x1xf32>
    %104 = vector.broadcast %103 : vector<8x1xf32> to vector<8x8xf32>
    %105 = arith.mulf %100, %104 : vector<8x8xf32>
    %cst_53 = arith.constant dense<0.000000e+00> : vector<8x8xf32>
    %106 = tpu.matmul %105, %91, %cst_53 {dimension_numbers = #tpu.dot_dimension_numbers<[1], [0], [0], [1], [0, 0, 1, 1], [], []>} : vector<8x8xf32>, vector<8x8xf32>, vector<8x8xf32> -> vector<8x8xf32>
    %107 = vector.extract_strided_slice %82 {offsets = [8, 0], sizes = [8, 8], strides = [1, 1]} : vector<16x8xf32> to vector<8x8xf32>
    %108 = vector.extract_strided_slice %85 {offsets = [8, 0], sizes = [8, 8], strides = [1, 1]} : vector<16x8xf32> to vector<8x8xf32>
    %109 = vector.extract_strided_slice %88 {offsets = [8, 0], sizes = [8, 8], strides = [1, 1]} : vector<16x8xf32> to vector<8x8xf32>
    %110 = tpu.transpose %108, [1, 0] : vector<8x8xf32> -> vector<8x8xf32>
    %cst_54 = arith.constant dense<0.000000e+00> : vector<8x8xf32>
    %111 = tpu.matmul %107, %110, %cst_54 {dimension_numbers = #tpu.dot_dimension_numbers<[1], [0], [0], [1], [0, 0, 1, 1], [], []>} : vector<8x8xf32>, vector<8x8xf32>, vector<8x8xf32> -> vector<8x8xf32>
    %cst_55 = arith.constant 0.353553385 : f32
    %112 = vector.broadcast %cst_55 : f32 to vector<8x8xf32>
    %113 = arith.mulf %111, %112 : vector<8x8xf32>
    %cst_56 = arith.constant dense<0xFF800000> : vector<8xf32>
    %114 = vector.multi_reduction <maximumf>, %113, %cst_56 [1] : vector<8x8xf32> to vector<8xf32>
    %115 = vector.shape_cast %114 : vector<8xf32> to vector<8x1xf32>
    %116 = vector.broadcast %115 : vector<8x1xf32> to vector<8x8xf32>
    %117 = arith.subf %113, %116 : vector<8x8xf32>
    %118 = math.exp %117 : vector<8x8xf32>
    %cst_57 = arith.constant dense<0.000000e+00> : vector<8xf32>
    %119 = vector.multi_reduction <add>, %118, %cst_57 [1] : vector<8x8xf32> to vector<8xf32>
    %120 = vector.shape_cast %119 : vector<8xf32> to vector<8x1xf32>
    %121 = tpu.reciprocal %120 {approx = true} : vector<8x1xf32> -> vector<8x1xf32>
    %122 = vector.broadcast %121 : vector<8x1xf32> to vector<8x8xf32>
    %123 = arith.mulf %118, %122 : vector<8x8xf32>
    %cst_58 = arith.constant dense<0.000000e+00> : vector<8x8xf32>
    %124 = tpu.matmul %123, %109, %cst_58 {dimension_numbers = #tpu.dot_dimension_numbers<[1], [0], [0], [1], [0, 0, 1, 1], [], []>} : vector<8x8xf32>, vector<8x8xf32>, vector<8x8xf32> -> vector<8x8xf32>
    %125 = tpu.concatenate %106, %124 in 0 : vector<8x8xf32>, vector<8x8xf32> -> vector<16x8xf32>
    %126 = arith.truncf %125 : vector<16x8xf32> to vector<16x8xbf16>
    %c1_59 = arith.constant 1 : index
    %c0_60 = arith.constant 0 : index
    %c0_61 = arith.constant 0 : index
    %127 = vector.load %arg8[%c1_59, %c0_60, %c0_61] : memref<4x8x32xbf16, #tpu.memory_space<vmem>>, vector<1x8x32xbf16>
    %128 = vector.shape_cast %127 : vector<1x8x32xbf16> to vector<8x32xbf16>
    %cst_62 = arith.constant dense<0.000000e+00> : vector<16x32xf32>
    %129 = tpu.matmul %126, %128, %cst_62 {dimension_numbers = #tpu.dot_dimension_numbers<[1], [0], [0], [1], [0, 0, 1, 1], [], []>} : vector<16x8xbf16>, vector<8x32xbf16>, vector<16x32xf32> -> vector<16x32xf32>
    %130 = arith.addf %79, %129 : vector<16x32xf32>
    %c2 = arith.constant 2 : index
    %c0_63 = arith.constant 0 : index
    %c0_64 = arith.constant 0 : index
    %131 = vector.load %arg5[%c2, %c0_63, %c0_64] : memref<4x32x8xbf16, #tpu.memory_space<vmem>>, vector<1x32x8xbf16>
    %132 = vector.shape_cast %131 : vector<1x32x8xbf16> to vector<32x8xbf16>
    %cst_65 = arith.constant dense<0.000000e+00> : vector<16x8xf32>
    %133 = tpu.matmul %26, %132, %cst_65 {dimension_numbers = #tpu.dot_dimension_numbers<[1], [0], [0], [1], [0, 0, 1, 1], [], []>} : vector<16x32xbf16>, vector<32x8xbf16>, vector<16x8xf32> -> vector<16x8xf32>
    %c2_66 = arith.constant 2 : index
    %c0_67 = arith.constant 0 : index
    %c0_68 = arith.constant 0 : index
    %134 = vector.load %arg6[%c2_66, %c0_67, %c0_68] : memref<4x32x8xbf16, #tpu.memory_space<vmem>>, vector<1x32x8xbf16>
    %135 = vector.shape_cast %134 : vector<1x32x8xbf16> to vector<32x8xbf16>
    %cst_69 = arith.constant dense<0.000000e+00> : vector<16x8xf32>
    %136 = tpu.matmul %27, %135, %cst_69 {dimension_numbers = #tpu.dot_dimension_numbers<[1], [0], [0], [1], [0, 0, 1, 1], [], []>} : vector<16x32xbf16>, vector<32x8xbf16>, vector<16x8xf32> -> vector<16x8xf32>
    %c2_70 = arith.constant 2 : index
    %c0_71 = arith.constant 0 : index
    %c0_72 = arith.constant 0 : index
    %137 = vector.load %arg7[%c2_70, %c0_71, %c0_72] : memref<4x32x8xbf16, #tpu.memory_space<vmem>>, vector<1x32x8xbf16>
    %138 = vector.shape_cast %137 : vector<1x32x8xbf16> to vector<32x8xbf16>
    %cst_73 = arith.constant dense<0.000000e+00> : vector<16x8xf32>
    %139 = tpu.matmul %27, %138, %cst_73 {dimension_numbers = #tpu.dot_dimension_numbers<[1], [0], [0], [1], [0, 0, 1, 1], [], []>} : vector<16x32xbf16>, vector<32x8xbf16>, vector<16x8xf32> -> vector<16x8xf32>
    %140 = vector.extract_strided_slice %133 {offsets = [0, 0], sizes = [8, 8], strides = [1, 1]} : vector<16x8xf32> to vector<8x8xf32>
    %141 = vector.extract_strided_slice %136 {offsets = [0, 0], sizes = [8, 8], strides = [1, 1]} : vector<16x8xf32> to vector<8x8xf32>
    %142 = vector.extract_strided_slice %139 {offsets = [0, 0], sizes = [8, 8], strides = [1, 1]} : vector<16x8xf32> to vector<8x8xf32>
    %143 = tpu.transpose %141, [1, 0] : vector<8x8xf32> -> vector<8x8xf32>
    %cst_74 = arith.constant dense<0.000000e+00> : vector<8x8xf32>
    %144 = tpu.matmul %140, %143, %cst_74 {dimension_numbers = #tpu.dot_dimension_numbers<[1], [0], [0], [1], [0, 0, 1, 1], [], []>} : vector<8x8xf32>, vector<8x8xf32>, vector<8x8xf32> -> vector<8x8xf32>
    %cst_75 = arith.constant 0.353553385 : f32
    %145 = vector.broadcast %cst_75 : f32 to vector<8x8xf32>
    %146 = arith.mulf %144, %145 : vector<8x8xf32>
    %cst_76 = arith.constant dense<0xFF800000> : vector<8xf32>
    %147 = vector.multi_reduction <maximumf>, %146, %cst_76 [1] : vector<8x8xf32> to vector<8xf32>
    %148 = vector.shape_cast %147 : vector<8xf32> to vector<8x1xf32>
    %149 = vector.broadcast %148 : vector<8x1xf32> to vector<8x8xf32>
    %150 = arith.subf %146, %149 : vector<8x8xf32>
    %151 = math.exp %150 : vector<8x8xf32>
    %cst_77 = arith.constant dense<0.000000e+00> : vector<8xf32>
    %152 = vector.multi_reduction <add>, %151, %cst_77 [1] : vector<8x8xf32> to vector<8xf32>
    %153 = vector.shape_cast %152 : vector<8xf32> to vector<8x1xf32>
    %154 = tpu.reciprocal %153 {approx = true} : vector<8x1xf32> -> vector<8x1xf32>
    %155 = vector.broadcast %154 : vector<8x1xf32> to vector<8x8xf32>
    %156 = arith.mulf %151, %155 : vector<8x8xf32>
    %cst_78 = arith.constant dense<0.000000e+00> : vector<8x8xf32>
    %157 = tpu.matmul %156, %142, %cst_78 {dimension_numbers = #tpu.dot_dimension_numbers<[1], [0], [0], [1], [0, 0, 1, 1], [], []>} : vector<8x8xf32>, vector<8x8xf32>, vector<8x8xf32> -> vector<8x8xf32>
    %158 = vector.extract_strided_slice %133 {offsets = [8, 0], sizes = [8, 8], strides = [1, 1]} : vector<16x8xf32> to vector<8x8xf32>
    %159 = vector.extract_strided_slice %136 {offsets = [8, 0], sizes = [8, 8], strides = [1, 1]} : vector<16x8xf32> to vector<8x8xf32>
    %160 = vector.extract_strided_slice %139 {offsets = [8, 0], sizes = [8, 8], strides = [1, 1]} : vector<16x8xf32> to vector<8x8xf32>
    %161 = tpu.transpose %159, [1, 0] : vector<8x8xf32> -> vector<8x8xf32>
    %cst_79 = arith.constant dense<0.000000e+00> : vector<8x8xf32>
    %162 = tpu.matmul %158, %161, %cst_79 {dimension_numbers = #tpu.dot_dimension_numbers<[1], [0], [0], [1], [0, 0, 1, 1], [], []>} : vector<8x8xf32>, vector<8x8xf32>, vector<8x8xf32> -> vector<8x8xf32>
    %cst_80 = arith.constant 0.353553385 : f32
    %163 = vector.broadcast %cst_80 : f32 to vector<8x8xf32>
    %164 = arith.mulf %162, %163 : vector<8x8xf32>
    %cst_81 = arith.constant dense<0xFF800000> : vector<8xf32>
    %165 = vector.multi_reduction <maximumf>, %164, %cst_81 [1] : vector<8x8xf32> to vector<8xf32>
    %166 = vector.shape_cast %165 : vector<8xf32> to vector<8x1xf32>
    %167 = vector.broadcast %166 : vector<8x1xf32> to vector<8x8xf32>
    %168 = arith.subf %164, %167 : vector<8x8xf32>
    %169 = math.exp %168 : vector<8x8xf32>
    %cst_82 = arith.constant dense<0.000000e+00> : vector<8xf32>
    %170 = vector.multi_reduction <add>, %169, %cst_82 [1] : vector<8x8xf32> to vector<8xf32>
    %171 = vector.shape_cast %170 : vector<8xf32> to vector<8x1xf32>
    %172 = tpu.reciprocal %171 {approx = true} : vector<8x1xf32> -> vector<8x1xf32>
    %173 = vector.broadcast %172 : vector<8x1xf32> to vector<8x8xf32>
    %174 = arith.mulf %169, %173 : vector<8x8xf32>
    %cst_83 = arith.constant dense<0.000000e+00> : vector<8x8xf32>
    %175 = tpu.matmul %174, %160, %cst_83 {dimension_numbers = #tpu.dot_dimension_numbers<[1], [0], [0], [1], [0, 0, 1, 1], [], []>} : vector<8x8xf32>, vector<8x8xf32>, vector<8x8xf32> -> vector<8x8xf32>
    %176 = tpu.concatenate %157, %175 in 0 : vector<8x8xf32>, vector<8x8xf32> -> vector<16x8xf32>
    %177 = arith.truncf %176 : vector<16x8xf32> to vector<16x8xbf16>
    %c2_84 = arith.constant 2 : index
    %c0_85 = arith.constant 0 : index
    %c0_86 = arith.constant 0 : index
    %178 = vector.load %arg8[%c2_84, %c0_85, %c0_86] : memref<4x8x32xbf16, #tpu.memory_space<vmem>>, vector<1x8x32xbf16>
    %179 = vector.shape_cast %178 : vector<1x8x32xbf16> to vector<8x32xbf16>
    %cst_87 = arith.constant dense<0.000000e+00> : vector<16x32xf32>
    %180 = tpu.matmul %177, %179, %cst_87 {dimension_numbers = #tpu.dot_dimension_numbers<[1], [0], [0], [1], [0, 0, 1, 1], [], []>} : vector<16x8xbf16>, vector<8x32xbf16>, vector<16x32xf32> -> vector<16x32xf32>
    %181 = arith.addf %130, %180 : vector<16x32xf32>
    %c3 = arith.constant 3 : index
    %c0_88 = arith.constant 0 : index
    %c0_89 = arith.constant 0 : index
    %182 = vector.load %arg5[%c3, %c0_88, %c0_89] : memref<4x32x8xbf16, #tpu.memory_space<vmem>>, vector<1x32x8xbf16>
    %183 = vector.shape_cast %182 : vector<1x32x8xbf16> to vector<32x8xbf16>
    %cst_90 = arith.constant dense<0.000000e+00> : vector<16x8xf32>
    %184 = tpu.matmul %26, %183, %cst_90 {dimension_numbers = #tpu.dot_dimension_numbers<[1], [0], [0], [1], [0, 0, 1, 1], [], []>} : vector<16x32xbf16>, vector<32x8xbf16>, vector<16x8xf32> -> vector<16x8xf32>
    %c3_91 = arith.constant 3 : index
    %c0_92 = arith.constant 0 : index
    %c0_93 = arith.constant 0 : index
    %185 = vector.load %arg6[%c3_91, %c0_92, %c0_93] : memref<4x32x8xbf16, #tpu.memory_space<vmem>>, vector<1x32x8xbf16>
    %186 = vector.shape_cast %185 : vector<1x32x8xbf16> to vector<32x8xbf16>
    %cst_94 = arith.constant dense<0.000000e+00> : vector<16x8xf32>
    %187 = tpu.matmul %27, %186, %cst_94 {dimension_numbers = #tpu.dot_dimension_numbers<[1], [0], [0], [1], [0, 0, 1, 1], [], []>} : vector<16x32xbf16>, vector<32x8xbf16>, vector<16x8xf32> -> vector<16x8xf32>
    %c3_95 = arith.constant 3 : index
    %c0_96 = arith.constant 0 : index
    %c0_97 = arith.constant 0 : index
    %188 = vector.load %arg7[%c3_95, %c0_96, %c0_97] : memref<4x32x8xbf16, #tpu.memory_space<vmem>>, vector<1x32x8xbf16>
    %189 = vector.shape_cast %188 : vector<1x32x8xbf16> to vector<32x8xbf16>
    %cst_98 = arith.constant dense<0.000000e+00> : vector<16x8xf32>
    %190 = tpu.matmul %27, %189, %cst_98 {dimension_numbers = #tpu.dot_dimension_numbers<[1], [0], [0], [1], [0, 0, 1, 1], [], []>} : vector<16x32xbf16>, vector<32x8xbf16>, vector<16x8xf32> -> vector<16x8xf32>
    %191 = vector.extract_strided_slice %184 {offsets = [0, 0], sizes = [8, 8], strides = [1, 1]} : vector<16x8xf32> to vector<8x8xf32>
    %192 = vector.extract_strided_slice %187 {offsets = [0, 0], sizes = [8, 8], strides = [1, 1]} : vector<16x8xf32> to vector<8x8xf32>
    %193 = vector.extract_strided_slice %190 {offsets = [0, 0], sizes = [8, 8], strides = [1, 1]} : vector<16x8xf32> to vector<8x8xf32>
    %194 = tpu.transpose %192, [1, 0] : vector<8x8xf32> -> vector<8x8xf32>
    %cst_99 = arith.constant dense<0.000000e+00> : vector<8x8xf32>
    %195 = tpu.matmul %191, %194, %cst_99 {dimension_numbers = #tpu.dot_dimension_numbers<[1], [0], [0], [1], [0, 0, 1, 1], [], []>} : vector<8x8xf32>, vector<8x8xf32>, vector<8x8xf32> -> vector<8x8xf32>
    %cst_100 = arith.constant 0.353553385 : f32
    %196 = vector.broadcast %cst_100 : f32 to vector<8x8xf32>
    %197 = arith.mulf %195, %196 : vector<8x8xf32>
    %cst_101 = arith.constant dense<0xFF800000> : vector<8xf32>
    %198 = vector.multi_reduction <maximumf>, %197, %cst_101 [1] : vector<8x8xf32> to vector<8xf32>
    %199 = vector.shape_cast %198 : vector<8xf32> to vector<8x1xf32>
    %200 = vector.broadcast %199 : vector<8x1xf32> to vector<8x8xf32>
    %201 = arith.subf %197, %200 : vector<8x8xf32>
    %202 = math.exp %201 : vector<8x8xf32>
    %cst_102 = arith.constant dense<0.000000e+00> : vector<8xf32>
    %203 = vector.multi_reduction <add>, %202, %cst_102 [1] : vector<8x8xf32> to vector<8xf32>
    %204 = vector.shape_cast %203 : vector<8xf32> to vector<8x1xf32>
    %205 = tpu.reciprocal %204 {approx = true} : vector<8x1xf32> -> vector<8x1xf32>
    %206 = vector.broadcast %205 : vector<8x1xf32> to vector<8x8xf32>
    %207 = arith.mulf %202, %206 : vector<8x8xf32>
    %cst_103 = arith.constant dense<0.000000e+00> : vector<8x8xf32>
    %208 = tpu.matmul %207, %193, %cst_103 {dimension_numbers = #tpu.dot_dimension_numbers<[1], [0], [0], [1], [0, 0, 1, 1], [], []>} : vector<8x8xf32>, vector<8x8xf32>, vector<8x8xf32> -> vector<8x8xf32>
    %209 = vector.extract_strided_slice %184 {offsets = [8, 0], sizes = [8, 8], strides = [1, 1]} : vector<16x8xf32> to vector<8x8xf32>
    %210 = vector.extract_strided_slice %187 {offsets = [8, 0], sizes = [8, 8], strides = [1, 1]} : vector<16x8xf32> to vector<8x8xf32>
    %211 = vector.extract_strided_slice %190 {offsets = [8, 0], sizes = [8, 8], strides = [1, 1]} : vector<16x8xf32> to vector<8x8xf32>
    %212 = tpu.transpose %210, [1, 0] : vector<8x8xf32> -> vector<8x8xf32>
    %cst_104 = arith.constant dense<0.000000e+00> : vector<8x8xf32>
    %213 = tpu.matmul %209, %212, %cst_104 {dimension_numbers = #tpu.dot_dimension_numbers<[1], [0], [0], [1], [0, 0, 1, 1], [], []>} : vector<8x8xf32>, vector<8x8xf32>, vector<8x8xf32> -> vector<8x8xf32>
    %cst_105 = arith.constant 0.353553385 : f32
    %214 = vector.broadcast %cst_105 : f32 to vector<8x8xf32>
    %215 = arith.mulf %213, %214 : vector<8x8xf32>
    %cst_106 = arith.constant dense<0xFF800000> : vector<8xf32>
    %216 = vector.multi_reduction <maximumf>, %215, %cst_106 [1] : vector<8x8xf32> to vector<8xf32>
    %217 = vector.shape_cast %216 : vector<8xf32> to vector<8x1xf32>
    %218 = vector.broadcast %217 : vector<8x1xf32> to vector<8x8xf32>
    %219 = arith.subf %215, %218 : vector<8x8xf32>
    %220 = math.exp %219 : vector<8x8xf32>
    %cst_107 = arith.constant dense<0.000000e+00> : vector<8xf32>
    %221 = vector.multi_reduction <add>, %220, %cst_107 [1] : vector<8x8xf32> to vector<8xf32>
    %222 = vector.shape_cast %221 : vector<8xf32> to vector<8x1xf32>
    %223 = tpu.reciprocal %222 {approx = true} : vector<8x1xf32> -> vector<8x1xf32>
    %224 = vector.broadcast %223 : vector<8x1xf32> to vector<8x8xf32>
    %225 = arith.mulf %220, %224 : vector<8x8xf32>
    %cst_108 = arith.constant dense<0.000000e+00> : vector<8x8xf32>
    %226 = tpu.matmul %225, %211, %cst_108 {dimension_numbers = #tpu.dot_dimension_numbers<[1], [0], [0], [1], [0, 0, 1, 1], [], []>} : vector<8x8xf32>, vector<8x8xf32>, vector<8x8xf32> -> vector<8x8xf32>
    %227 = tpu.concatenate %208, %226 in 0 : vector<8x8xf32>, vector<8x8xf32> -> vector<16x8xf32>
    %228 = arith.truncf %227 : vector<16x8xf32> to vector<16x8xbf16>
    %c3_109 = arith.constant 3 : index
    %c0_110 = arith.constant 0 : index
    %c0_111 = arith.constant 0 : index
    %229 = vector.load %arg8[%c3_109, %c0_110, %c0_111] : memref<4x8x32xbf16, #tpu.memory_space<vmem>>, vector<1x8x32xbf16>
    %230 = vector.shape_cast %229 : vector<1x8x32xbf16> to vector<8x32xbf16>
    %cst_112 = arith.constant dense<0.000000e+00> : vector<16x32xf32>
    %231 = tpu.matmul %228, %230, %cst_112 {dimension_numbers = #tpu.dot_dimension_numbers<[1], [0], [0], [1], [0, 0, 1, 1], [], []>} : vector<16x8xbf16>, vector<8x32xbf16>, vector<16x32xf32> -> vector<16x32xf32>
    %232 = arith.addf %181, %231 : vector<16x32xf32>
    %233 = arith.addf %1, %232 : vector<16x32xf32>
    %c0_113 = arith.constant 0 : index
    %c0_114 = arith.constant 0 : index
    %234 = vector.load %arg9[%c0_113, %c0_114] : memref<1x32xf32, #tpu.memory_space<vmem>>, vector<1x32xf32>
    %235 = vector.broadcast %234 : vector<1x32xf32> to vector<16x32xf32>
    %236 = arith.addf %233, %235 : vector<16x32xf32>
    %c0_115 = arith.constant 0 : index
    %c0_116 = arith.constant 0 : index
    %237 = vector.load %arg10[%c0_115, %c0_116] : memref<1x32xf32, #tpu.memory_space<vmem>>, vector<1x32xf32>
    %c0_117 = arith.constant 0 : index
    %c0_118 = arith.constant 0 : index
    %238 = vector.load %arg11[%c0_117, %c0_118] : memref<1x32xf32, #tpu.memory_space<vmem>>, vector<1x32xf32>
    %cst_119 = arith.constant dense<0.000000e+00> : vector<16xf32>
    %239 = vector.multi_reduction <add>, %236, %cst_119 [1] : vector<16x32xf32> to vector<16xf32>
    %240 = vector.shape_cast %239 : vector<16xf32> to vector<16x1xf32>
    %cst_120 = arith.constant 3.200000e+01 : f32
    %241 = vector.broadcast %cst_120 : f32 to vector<16x1xf32>
    %242 = arith.divf %240, %241 : vector<16x1xf32>
    %243 = vector.broadcast %242 : vector<16x1xf32> to vector<16x32xf32>
    %244 = arith.subf %236, %243 : vector<16x32xf32>
    %245 = arith.mulf %244, %244 : vector<16x32xf32>
    %cst_121 = arith.constant dense<0.000000e+00> : vector<16xf32>
    %246 = vector.multi_reduction <add>, %245, %cst_121 [1] : vector<16x32xf32> to vector<16xf32>
    %247 = vector.shape_cast %246 : vector<16xf32> to vector<16x1xf32>
    %cst_122 = arith.constant 3.200000e+01 : f32
    %248 = vector.broadcast %cst_122 : f32 to vector<16x1xf32>
    %249 = arith.divf %247, %248 : vector<16x1xf32>
    %250 = vector.broadcast %242 : vector<16x1xf32> to vector<16x32xf32>
    %251 = arith.subf %236, %250 : vector<16x32xf32>
    %cst_123 = arith.constant 9.99999974E-6 : f32
    %252 = vector.broadcast %cst_123 : f32 to vector<16x1xf32>
    %253 = arith.addf %249, %252 : vector<16x1xf32>
    %254 = math.rsqrt %253 : vector<16x1xf32>
    %255 = vector.broadcast %254 : vector<16x1xf32> to vector<16x32xf32>
    %256 = arith.mulf %251, %255 : vector<16x32xf32>
    %257 = vector.broadcast %237 : vector<1x32xf32> to vector<16x32xf32>
    %258 = arith.mulf %256, %257 : vector<16x32xf32>
    %259 = vector.broadcast %238 : vector<1x32xf32> to vector<16x32xf32>
    %260 = arith.addf %258, %259 : vector<16x32xf32>
    %261 = arith.truncf %260 : vector<16x32xf32> to vector<16x32xbf16>
    %c0_124 = arith.constant 0 : index
    %c0_125 = arith.constant 0 : index
    %262 = vector.load %arg12[%c0_124, %c0_125] : memref<32x128xbf16, #tpu.memory_space<vmem>>, vector<32x128xbf16>
    %cst_126 = arith.constant dense<0.000000e+00> : vector<16x128xf32>
    %263 = tpu.matmul %261, %262, %cst_126 {dimension_numbers = #tpu.dot_dimension_numbers<[1], [0], [0], [1], [0, 0, 1, 1], [], []>} : vector<16x32xbf16>, vector<32x128xbf16>, vector<16x128xf32> -> vector<16x128xf32>
    %c0_127 = arith.constant 0 : index
    %c0_128 = arith.constant 0 : index
    %264 = vector.load %arg13[%c0_127, %c0_128] : memref<1x128xf32, #tpu.memory_space<vmem>>, vector<1x128xf32>
    %265 = vector.broadcast %264 : vector<1x128xf32> to vector<16x128xf32>
    %266 = arith.addf %263, %265 : vector<16x128xf32>
    %267 = arith.mulf %266, %266 : vector<16x128xf32>
    %268 = arith.mulf %266, %267 : vector<16x128xf32>
    %cst_129 = arith.constant 4.471500e-02 : f32
    %269 = vector.broadcast %cst_129 : f32 to vector<16x128xf32>
    %270 = arith.mulf %269, %268 : vector<16x128xf32>
    %271 = arith.addf %266, %270 : vector<16x128xf32>
    %cst_130 = arith.constant 0.797884583 : f32
    %272 = vector.broadcast %cst_130 : f32 to vector<16x128xf32>
    %273 = arith.mulf %272, %271 : vector<16x128xf32>
    %274 = math.tanh %273 : vector<16x128xf32>
    %cst_131 = arith.constant 1.000000e+00 : f32
    %275 = vector.broadcast %cst_131 : f32 to vector<16x128xf32>
    %276 = arith.addf %275, %274 : vector<16x128xf32>
    %cst_132 = arith.constant 5.000000e-01 : f32
    %277 = vector.broadcast %cst_132 : f32 to vector<16x128xf32>
    %278 = arith.mulf %277, %276 : vector<16x128xf32>
    %279 = arith.mulf %266, %278 : vector<16x128xf32>
    %280 = arith.truncf %279 : vector<16x128xf32> to vector<16x128xbf16>
    %c0_133 = arith.constant 0 : index
    %c0_134 = arith.constant 0 : index
    %281 = vector.load %arg14[%c0_133, %c0_134] : memref<128x32xbf16, #tpu.memory_space<vmem>>, vector<128x32xbf16>
    %cst_135 = arith.constant dense<0.000000e+00> : vector<16x32xf32>
    %282 = tpu.matmul %280, %281, %cst_135 {dimension_numbers = #tpu.dot_dimension_numbers<[1], [0], [0], [1], [0, 0, 1, 1], [], []>} : vector<16x128xbf16>, vector<128x32xbf16>, vector<16x32xf32> -> vector<16x32xf32>
    %c0_136 = arith.constant 0 : index
    %c0_137 = arith.constant 0 : index
    %283 = vector.load %arg15[%c0_136, %c0_137] : memref<1x32xf32, #tpu.memory_space<vmem>>, vector<1x32xf32>
    %284 = vector.broadcast %283 : vector<1x32xf32> to vector<16x32xf32>
    %285 = arith.addf %282, %284 : vector<16x32xf32>
    %286 = arith.addf %236, %285 : vector<16x32xf32>
    %287 = vector.shape_cast %286 : vector<16x32xf32> to vector<1x2x8x32xf32>
    %c0_138 = arith.constant 0 : index
    %c0_139 = arith.constant 0 : index
    %c0_140 = arith.constant 0 : index
    %c0_141 = arith.constant 0 : index
    %288 = vector.load %arg16[%c0_138, %c0_139, %c0_140, %c0_141] : memref<1x2x8x32xf32, #tpu.memory_space<vmem>>, vector<1x2x8x32xf32>
    tpu.vector_store %arg16[%c0_138, %c0_139, %c0_140, %c0_141], %287 {strides = array<i32>} : memref<1x2x8x32xf32, #tpu.memory_space<vmem>>, vector<1x2x8x32xf32>,
    return
  }
  func.func @transform_0(%arg0: i32, %arg1: i32) -> (i32, i32, i32, i32) {
    %c0_i32 = arith.constant 0 : i32
    %c0_i32_0 = arith.constant 0 : i32
    %c0_i32_1 = arith.constant 0 : i32
    return %arg0, %arg1, %c0_i32, %c0_i32_0 : i32, i32, i32, i32
  }
  func.func @transform_1(%arg0: i32, %arg1: i32) -> (i32, i32) {
    %c0_i32 = arith.constant 0 : i32
    %c0_i32_0 = arith.constant 0 : i32
    %c0_i32_1 = arith.constant 0 : i32
    return %c0_i32, %c0_i32_0 : i32, i32
  }
  func.func @transform_2(%arg0: i32, %arg1: i32) -> (i32, i32) {
    %c0_i32 = arith.constant 0 : i32
    %c0_i32_0 = arith.constant 0 : i32
    %c0_i32_1 = arith.constant 0 : i32
    return %c0_i32, %c0_i32_0 : i32, i32
  }
  func.func @transform_3(%arg0: i32, %arg1: i32) -> (i32, i32, i32) {
    %c0_i32 = arith.constant 0 : i32
    %c0_i32_0 = arith.constant 0 : i32
    %c0_i32_1 = arith.constant 0 : i32
    %c0_i32_2 = arith.constant 0 : i32
    return %c0_i32, %c0_i32_0, %c0_i32_1 : i32, i32, i32
  }
  func.func @transform_4(%arg0: i32, %arg1: i32) -> (i32, i32, i32) {
    %c0_i32 = arith.constant 0 : i32
    %c0_i32_0 = arith.constant 0 : i32
    %c0_i32_1 = arith.constant 0 : i32
    %c0_i32_2 = arith.constant 0 : i32
    return %c0_i32, %c0_i32_0, %c0_i32_1 : i32, i32, i32
  }
  func.func @transform_5(%arg0: i32, %arg1: i32) -> (i32, i32, i32) {
    %c0_i32 = arith.constant 0 : i32
    %c0_i32_0 = arith.constant 0 : i32
    %c0_i32_1 = arith.constant 0 : i32
    %c0_i32_2 = arith.constant 0 : i32
    return %c0_i32, %c0_i32_0, %c0_i32_1 : i32, i32, i32
  }
  func.func @transform_6(%arg0: i32, %arg1: i32) -> (i32, i32, i32) {
    %c0_i32 = arith.constant 0 : i32
    %c0_i32_0 = arith.constant 0 : i32
    %c0_i32_1 = arith.constant 0 : i32
    %c0_i32_2 = arith.constant 0 : i32
    return %c0_i32, %c0_i32_0, %c0_i32_1 : i32, i32, i32
  }
  func.func @transform_7(%arg0: i32, %arg1: i32) -> (i32, i32) {
    %c0_i32 = arith.constant 0 : i32
    %c0_i32_0 = arith.constant 0 : i32
    %c0_i32_1 = arith.constant 0 : i32
    return %c0_i32, %c0_i32_0 : i32, i32
  }
  func.func @transform_8(%arg0: i32, %arg1: i32) -> (i32, i32) {
    %c0_i32 = arith.constant 0 : i32
    %c0_i32_0 = arith.constant 0 : i32
    %c0_i32_1 = arith.constant 0 : i32
    return %c0_i32, %c0_i32_0 : i32, i32
  }
  func.func @transform_9(%arg0: i32, %arg1: i32) -> (i32, i32) {
    %c0_i32 = arith.constant 0 : i32
    %c0_i32_0 = arith.constant 0 : i32
    %c0_i32_1 = arith.constant 0 : i32
    return %c0_i32, %c0_i32_0 : i32, i32
  }
  func.func @transform_10(%arg0: i32, %arg1: i32) -> (i32, i32) {
    %c0_i32 = arith.constant 0 : i32
    %c0_i32_0 = arith.constant 0 : i32
    %c0_i32_1 = arith.constant 0 : i32
    return %c0_i32, %c0_i32_0 : i32, i32
  }
  func.func @transform_11(%arg0: i32, %arg1: i32) -> (i32, i32) {
    %c0_i32 = arith.constant 0 : i32
    %c0_i32_0 = arith.constant 0 : i32
    %c0_i32_1 = arith.constant 0 : i32
    return %c0_i32, %c0_i32_0 : i32, i32
  }
  func.func @transform_12(%arg0: i32, %arg1: i32) -> (i32, i32) {
    %c0_i32 = arith.constant 0 : i32
    %c0_i32_0 = arith.constant 0 : i32
    %c0_i32_1 = arith.constant 0 : i32
    return %c0_i32, %c0_i32_0 : i32, i32
  }
  func.func @transform_13(%arg0: i32, %arg1: i32) -> (i32, i32) {
    %c0_i32 = arith.constant 0 : i32
    %c0_i32_0 = arith.constant 0 : i32
    %c0_i32_1 = arith.constant 0 : i32
    return %c0_i32, %c0_i32_0 : i32, i32
  }
  func.func @transform_14(%arg0: i32, %arg1: i32) -> (i32, i32, i32, i32) {
    %c0_i32 = arith.constant 0 : i32
    %c0_i32_0 = arith.constant 0 : i32
    %c0_i32_1 = arith.constant 0 : i32
    return %arg0, %arg1, %c0_i32, %c0_i32_0 : i32, i32, i32, i32
  }
}

</mosaic_0001>

<llo_original>
// kernel: hip_block_forward.4
$region0: #{hip_block_forward.4}
  #allocation0 [shape = 'u32[]', space=smem, size = 0x4, offset = 0x4, fixed_abs, tag = 'smem constant byte address 0x4 - core index']
  #allocation1 [shape = 'u32[144,128]{1,0:T(1,128)}', space=vmem, size = 0x12000, scoped, tag = 'internal scratch']
  %s0 = inlined_call_operand.vmem [shape: f32[2,2,8,32], index: 0, kind: input, shape index: {}]
  %s1 = inlined_call_operand.vmem [shape: f32[1,32], index: 1, kind: input, shape index: {}]
  %s2 = inlined_call_operand.vmem [shape: f32[1,32], index: 2, kind: input, shape index: {}]
  %s3 = inlined_call_operand.vmem [shape: bf16[4,32,8], index: 3, kind: input, shape index: {}]
  %s4 = inlined_call_operand.vmem [shape: bf16[4,32,8], index: 4, kind: input, shape index: {}]
  %s5 = inlined_call_operand.vmem [shape: bf16[4,32,8], index: 5, kind: input, shape index: {}]
  %s6 = inlined_call_operand.vmem [shape: bf16[4,8,32], index: 6, kind: input, shape index: {}]
  %s7 = inlined_call_operand.vmem [shape: f32[1,32], index: 7, kind: input, shape index: {}]
  %s8 = inlined_call_operand.vmem [shape: f32[1,32], index: 8, kind: input, shape index: {}]
  %s9 = inlined_call_operand.vmem [shape: f32[1,32], index: 9, kind: input, shape index: {}]
  %s10 = inlined_call_operand.vmem [shape: bf16[32,128], index: 10, kind: input, shape index: {}]
  %s11 = inlined_call_operand.vmem [shape: f32[1,128], index: 11, kind: input, shape index: {}]
  %s12 = inlined_call_operand.vmem [shape: bf16[128,32], index: 12, kind: input, shape index: {}]
  %s13 = inlined_call_operand.vmem [shape: f32[1,32], index: 13, kind: input, shape index: {}]
  %s14 = inlined_call_operand.vmem [shape: f32[2,2,8,32], index: 14, kind: output, shape index: {}]
  %s15 = sld [smem:[#allocation0]]
  $region89: #{hip_block_forward.4} parent=0
    _
  %s17 = ssub.s32 1, %s15
  %s18 = scalar_select 0, %s17, %s15
  loop: start=0, step=1, limit=4
  $region2: #{hip_block_forward.4} parent=0 // loop_pre_header
    _
  $region3: #{hip_block_forward.4} parent=0 // loop_header
    %s20 = sphi 0, %s24
    %p21 = scmp.ge.s32.totalorder %s20, 4
    %s27 = sphi 0, %s39
    %s28 = sphi 0, %s35
    %s29 = sphi 0, %s27
    %s30 = sphi 0, %s28
    %s31 = sphi 0, %s29
    %s32 = sphi 0, %s30
    %s44 = sphi 0, %s46
    %s47 = sphi 0, %s44
    %s48 = sphi 0, %s47
    %s64 = sphi 0, %s48
    %s68 = sphi 0, %s68
    %s70 = sphi 0, %s68
    %s71 = sphi 0, %s70
    %s85 = sphi 0, %s71
    %s89 = sphi 0, %s89
    %s91 = sphi 0, %s89
    %s92 = sphi 0, %s91
    %s106 = sphi 0, %s92
    %s110 = sphi 0, %s110
    %s112 = sphi 0, %s110
    %s113 = sphi 0, %s112
    %s127 = sphi 0, %s113
    %s131 = sphi 0, %s131
    %s133 = sphi 0, %s131
    %s134 = sphi 0, %s133
    %s148 = sphi 0, %s134
    %s152 = sphi 0, %s152
    %s154 = sphi 0, %s152
    %s155 = sphi 0, %s154
    %s169 = sphi 0, %s155
    %s173 = sphi 0, %s173
    %s175 = sphi 0, %s173
    %s176 = sphi 0, %s175
    %s190 = sphi 0, %s176
    %s194 = sphi 0, %s194
    %s196 = sphi 0, %s194
    %s197 = sphi 0, %s196
    %s211 = sphi 0, %s197
    %s215 = sphi 0, %s215
    %s217 = sphi 0, %s215
    %s218 = sphi 0, %s217
    %s232 = sphi 0, %s218
    %s236 = sphi 0, %s236
    %s238 = sphi 0, %s236
    %s239 = sphi 0, %s238
    %s253 = sphi 0, %s239
    %s257 = sphi 0, %s257
    %s259 = sphi 0, %s257
    %s260 = sphi 0, %s259
    %s274 = sphi 0, %s260
    %s278 = sphi 0, %s278
    %s280 = sphi 0, %s278
    %s281 = sphi 0, %s280
    %s295 = sphi 0, %s281
    %s299 = sphi 0, %s299
    %s301 = sphi 0, %s299
    %s302 = sphi 0, %s301
    %s316 = sphi 0, %s302
    %s320 = sphi 0, %s320
    %s322 = sphi 0, %s320
    %s323 = sphi 0, %s322
    %s337 = sphi 0, %s323
    %s345 = sphi 0, %s347
    %s348 = sphi 0, %s345
    %s349 = sphi 0, %s348
    %s365 = sphi 0, %s349
  $region4: #{hip_block_forward.4} parent=0 // loop_header_branch
    %23 = sbr.rel (%p21) target = $region8
  $region5: #{hip_block_forward.4} parent=0 // loop_body
    %s25 = ssub.s32 %s20, 1
    %s26 = ssub.s32 %s20, 2
    %s33 = sadd.s32 1, %s28
    %p34 = scmp.ge.s32.totalorder %s33, 1
    %s35 = scalar_select %p34, 0, %s33
    %s36 = sadd.s32 1, %s27
    %s37 = scalar_select %p34, %s36, %s27
    %p38 = scmp.ge.s32.totalorder %s37, 2
    %s39 = scalar_select %p38, 0, %s37
    %s40 = ssub.s32 %s27, %s39
    %s41 = ssub.s32 %s28, %s35
    %s42 = sor.u32 %s40, %s41
    %p43 = scmp.eq.s32.totalorder %s42, 0
    %s45 = sadd.s32 %s44, 1
    %s46 = scalar_select %p43, %s44, %s45
    %p49 = pneg %p43
    %p50 = scmp.eq.s32.totalorder %s20, 1
    %p51 = por %p49, %p50
    %p52 = scmp.ne.s32.totalorder %s44, %s47
    %p53 = scmp.eq.s32.totalorder %s20, 0
    %p54 = por %p52, %p53
    %p55 = scmp.ne.s32.totalorder %s44, %s47
    %p56 = scmp.eq.s32.totalorder %s25, 1
    %p57 = por %p55, %p56
    %p58 = scmp.ne.s32.totalorder %s47, %s48
    %p59 = scmp.eq.s32.totalorder %s25, 0
    %p60 = por %p58, %p59
    %p61 = scmp.ne.s32.totalorder %s47, %s48
    %p62 = scmp.eq.s32.totalorder %s26, 1
    %p63 = por %p61, %p62
    %p65 = scmp.ne.s32.totalorder %s48, %s64
    %p66 = scmp.eq.s32.totalorder %s26, 0
    %p67 = por %p65, %p66
    %s69 = sadd.s32 %s68, 1
    %p72 = scmp.eq.s32.totalorder %s20, 1
    %p73 = scmp.ne.s32.totalorder %s68, %s70
    %p74 = scmp.eq.s32.totalorder %s20, 0
    %p75 = por %p73, %p74
    %p76 = scmp.ne.s32.totalorder %s68, %s70
    %p77 = scmp.eq.s32.totalorder %s25, 1
    %p78 = por %p76, %p77
    %p79 = scmp.ne.s32.totalorder %s70, %s71
    %p80 = scmp.eq.s32.totalorder %s25, 0
    %p81 = por %p79, %p80
    %p82 = scmp.ne.s32.totalorder %s70, %s71
    %p83 = scmp.eq.s32.totalorder %s26, 1
    %p84 = por %p82, %p83
    %p86 = scmp.ne.s32.totalorder %s71, %s85
    %p87 = scmp.eq.s32.totalorder %s26, 0
    %p88 = por %p86, %p87
    %s90 = sadd.s32 %s89, 1
    %p93 = scmp.eq.s32.totalorder %s20, 1
    %p94 = scmp.ne.s32.totalorder %s89, %s91
    %p95 = scmp.eq.s32.totalorder %s20, 0
    %p96 = por %p94, %p95
    %p97 = scmp.ne.s32.totalorder %s89, %s91
    %p98 = scmp.eq.s32.totalorder %s25, 1
    %p99 = por %p97, %p98
    %p100 = scmp.ne.s32.totalorder %s91, %s92
    %p101 = scmp.eq.s32.totalorder %s25, 0
    %p102 = por %p100, %p101
    %p103 = scmp.ne.s32.totalorder %s91, %s92
    %p104 = scmp.eq.s32.totalorder %s26, 1
    %p105 = por %p103, %p104
    %p107 = scmp.ne.s32.totalorder %s92, %s106
    %p108 = scmp.eq.s32.totalorder %s26, 0
    %p109 = por %p107, %p108
    %s111 = sadd.s32 %s110, 1
    %p114 = scmp.eq.s32.totalorder %s20, 1
    %p115 = scmp.ne.s32.totalorder %s110, %s112
    %p116 = scmp.eq.s32.totalorder %s20, 0
    %p117 = por %p115, %p116
    %p118 = scmp.ne.s32.totalorder %s110, %s112
    %p119 = scmp.eq.s32.totalorder %s25, 1
    %p120 = por %p118, %p119
    %p121 = scmp.ne.s32.totalorder %s112, %s113
    %p122 = scmp.eq.s32.totalorder %s25, 0
    %p123 = por %p121, %p122
    %p124 = scmp.ne.s32.totalorder %s112, %s113
    %p125 = scmp.eq.s32.totalorder %s26, 1
    %p126 = por %p124, %p125
    %p128 = scmp.ne.s32.totalorder %s113, %s127
    %p129 = scmp.eq.s32.totalorder %s26, 0
    %p130 = por %p128, %p129
    %s132 = sadd.s32 %s131, 1
    %p135 = scmp.eq.s32.totalorder %s20, 1
    %p136 = scmp.ne.s32.totalorder %s131, %s133
    %p137 = scmp.eq.s32.totalorder %s20, 0
    %p138 = por %p136, %p137
    %p139 = scmp.ne.s32.totalorder %s131, %s133
    %p140 = scmp.eq.s32.totalorder %s25, 1
    %p141 = por %p139, %p140
    %p142 = scmp.ne.s32.totalorder %s133, %s134
    %p143 = scmp.eq.s32.totalorder %s25, 0
    %p144 = por %p142, %p143
    %p145 = scmp.ne.s32.totalorder %s133, %s134
    %p146 = scmp.eq.s32.totalorder %s26, 1
    %p147 = por %p145, %p146
    %p149 = scmp.ne.s32.totalorder %s134, %s148
    %p150 = scmp.eq.s32.totalorder %s26, 0
    %p151 = por %p149, %p150
    %s153 = sadd.s32 %s152, 1
    %p156 = scmp.eq.s32.totalorder %s20, 1
    %p157 = scmp.ne.s32.totalorder %s152, %s154
    %p158 = scmp.eq.s32.totalorder %s20, 0
    %p159 = por %p157, %p158
    %p160 = scmp.ne.s32.totalorder %s152, %s154
    %p161 = scmp.eq.s32.totalorder %s25, 1
    %p162 = por %p160, %p161
    %p163 = scmp.ne.s32.totalorder %s154, %s155
    %p164 = scmp.eq.s32.totalorder %s25, 0
    %p165 = por %p163, %p164
    %p166 = scmp.ne.s32.totalorder %s154, %s155
    %p167 = scmp.eq.s32.totalorder %s26, 1
    %p168 = por %p166, %p167
    %p170 = scmp.ne.s32.totalorder %s155, %s169
    %p171 = scmp.eq.s32.totalorder %s26, 0
    %p172 = por %p170, %p171
    %s174 = sadd.s32 %s173, 1
    %p177 = scmp.eq.s32.totalorder %s20, 1
    %p178 = scmp.ne.s32.totalorder %s173, %s175
    %p179 = scmp.eq.s32.totalorder %s20, 0
    %p180 = por %p178, %p179
    %p181 = scmp.ne.s32.totalorder %s173, %s175
    %p182 = scmp.eq.s32.totalorder %s25, 1
    %p183 = por %p181, %p182
    %p184 = scmp.ne.s32.totalorder %s175, %s176
    %p185 = scmp.eq.s32.totalorder %s25, 0
    %p186 = por %p184, %p185
    %p187 = scmp.ne.s32.totalorder %s175, %s176
    %p188 = scmp.eq.s32.totalorder %s26, 1
    %p189 = por %p187, %p188
    %p191 = scmp.ne.s32.totalorder %s176, %s190
    %p192 = scmp.eq.s32.totalorder %s26, 0
    %p193 = por %p191, %p192
    %s195 = sadd.s32 %s194, 1
    %p198 = scmp.eq.s32.totalorder %s20, 1
    %p199 = scmp.ne.s32.totalorder %s194, %s196
    %p200 = scmp.eq.s32.totalorder %s20, 0
    %p201 = por %p199, %p200
    %p202 = scmp.ne.s32.totalorder %s194, %s196
    %p203 = scmp.eq.s32.totalorder %s25, 1
    %p204 = por %p202, %p203
    %p205 = scmp.ne.s32.totalorder %s196, %s197
    %p206 = scmp.eq.s32.totalorder %s25, 0
    %p207 = por %p205, %p206
    %p208 = scmp.ne.s32.totalorder %s196, %s197
    %p209 = scmp.eq.s32.totalorder %s26, 1
    %p210 = por %p208, %p209
    %p212 = scmp.ne.s32.totalorder %s197, %s211
    %p213 = scmp.eq.s32.totalorder %s26, 0
    %p214 = por %p212, %p213
    %s216 = sadd.s32 %s215, 1
    %p219 = scmp.eq.s32.totalorder %s20, 1
    %p220 = scmp.ne.s32.totalorder %s215, %s217
    %p221 = scmp.eq.s32.totalorder %s20, 0
    %p222 = por %p220, %p221
    %p223 = scmp.ne.s32.totalorder %s215, %s217
    %p224 = scmp.eq.s32.totalorder %s25, 1
    %p225 = por %p223, %p224
    %p226 = scmp.ne.s32.totalorder %s217, %s218
    %p227 = scmp.eq.s32.totalorder %s25, 0
    %p228 = por %p226, %p227
    %p229 = scmp.ne.s32.totalorder %s217, %s218
    %p230 = scmp.eq.s32.totalorder %s26, 1
    %p231 = por %p229, %p230
    %p233 = scmp.ne.s32.totalorder %s218, %s232
    %p234 = scmp.eq.s32.totalorder %s26, 0
    %p235 = por %p233, %p234
    %s237 = sadd.s32 %s236, 1
    %p240 = scmp.eq.s32.totalorder %s20, 1
    %p241 = scmp.ne.s32.totalorder %s236, %s238
    %p242 = scmp.eq.s32.totalorder %s20, 0
    %p243 = por %p241, %p242
    %p244 = scmp.ne.s32.totalorder %s236, %s238
    %p245 = scmp.eq.s32.totalorder %s25, 1
    %p246 = por %p244, %p245
    %p247 = scmp.ne.s32.totalorder %s238, %s239
    %p248 = scmp.eq.s32.totalorder %s25, 0
    %p249 = por %p247, %p248
    %p250 = scmp.ne.s32.totalorder %s238, %s239
    %p251 = scmp.eq.s32.totalorder %s26, 1
    %p252 = por %p250, %p251
    %p254 = scmp.ne.s32.totalorder %s239, %s253
    %p255 = scmp.eq.s32.totalorder %s26, 0
    %p256 = por %p254, %p255
    %s258 = sadd.s32 %s257, 1
    %p261 = scmp.eq.s32.totalorder %s20, 1
    %p262 = scmp.ne.s32.totalorder %s257, %s259
    %p263 = scmp.eq.s32.totalorder %s20, 0
    %p264 = por %p262, %p263
    %p265 = scmp.ne.s32.totalorder %s257, %s259
    %p266 = scmp.eq.s32.totalorder %s25, 1
    %p267 = por %p265, %p266
    %p268 = scmp.ne.s32.totalorder %s259, %s260
    %p269 = scmp.eq.s32.totalorder %s25, 0
    %p270 = por %p268, %p269
    %p271 = scmp.ne.s32.totalorder %s259, %s260
    %p272 = scmp.eq.s32.totalorder %s26, 1
    %p273 = por %p271, %p272
    %p275 = scmp.ne.s32.totalorder %s260, %s274
    %p276 = scmp.eq.s32.totalorder %s26, 0
    %p277 = por %p275, %p276
    %s279 = sadd.s32 %s278, 1
    %p282 = scmp.eq.s32.totalorder %s20, 1
    %p283 = scmp.ne.s32.totalorder %s278, %s280
    %p284 = scmp.eq.s32.totalorder %s20, 0
    %p285 = por %p283, %p284
    %p286 = scmp.ne.s32.totalorder %s278, %s280
    %p287 = scmp.eq.s32.totalorder %s25, 1
    %p288 = por %p286, %p287
    %p289 = scmp.ne.s32.totalorder %s280, %s281
    %p290 = scmp.eq.s32.totalorder %s25, 0
    %p291 = por %p289, %p290
    %p292 = scmp.ne.s32.totalorder %s280, %s281
    %p293 = scmp.eq.s32.totalorder %s26, 1
    %p294 = por %p292, %p293
    %p296 = scmp.ne.s32.totalorder %s281, %s295
    %p297 = scmp.eq.s32.totalorder %s26, 0
    %p298 = por %p296, %p297
    %s300 = sadd.s32 %s299, 1
    %p303 = scmp.eq.s32.totalorder %s20, 1
    %p304 = scmp.ne.s32.totalorder %s299, %s301
    %p305 = scmp.eq.s32.totalorder %s20, 0
    %p306 = por %p304, %p305
    %p307 = scmp.ne.s32.totalorder %s299, %s301
    %p308 = scmp.eq.s32.totalorder %s25, 1
    %p309 = por %p307, %p308
    %p310 = scmp.ne.s32.totalorder %s301, %s302
    %p311 = scmp.eq.s32.totalorder %s25, 0
    %p312 = por %p310, %p311
    %p313 = scmp.ne.s32.totalorder %s301, %s302
    %p314 = scmp.eq.s32.totalorder %s26, 1
    %p315 = por %p313, %p314
    %p317 = scmp.ne.s32.totalorder %s302, %s316
    %p318 = scmp.eq.s32.totalorder %s26, 0
    %p319 = por %p317, %p318
    %s321 = sadd.s32 %s320, 1
    %p324 = scmp.eq.s32.totalorder %s20, 1
    %p325 = scmp.ne.s32.totalorder %s320, %s322
    %p326 = scmp.eq.s32.totalorder %s20, 0
    %p327 = por %p325, %p326
    %p328 = scmp.ne.s32.totalorder %s320, %s322
    %p329 = scmp.eq.s32.totalorder %s25, 1
    %p330 = por %p328, %p329
    %p331 = scmp.ne.s32.totalorder %s322, %s323
    %p332 = scmp.eq.s32.totalorder %s25, 0
    %p333 = por %p331, %p332
    %p334 = scmp.ne.s32.totalorder %s322, %s323
    %p335 = scmp.eq.s32.totalorder %s26, 1
    %p336 = por %p334, %p335
    %p338 = scmp.ne.s32.totalorder %s323, %s337
    %p339 = scmp.eq.s32.totalorder %s26, 0
    %p340 = por %p338, %p339
    %s341 = ssub.s32 %s27, %s39
    %s342 = ssub.s32 %s28, %s35
    %s343 = sor.u32 %s341, %s342
    %p344 = scmp.eq.s32.totalorder %s343, 0
    %s346 = sadd.s32 %s345, 1
    %s347 = scalar_select %p344, %s345, %s346
    %p350 = pneg %p344
    %p351 = scmp.eq.s32.totalorder %s20, 1
    %p352 = por %p350, %p351
    %p353 = scmp.ne.s32.totalorder %s345, %s348
    %p354 = scmp.eq.s32.totalorder %s20, 0
    %p355 = por %p353, %p354
    %p356 = scmp.ne.s32.totalorder %s345, %s348
    %p357 = scmp.eq.s32.totalorder %s25, 1
    %p358 = por %p356, %p357
    %p359 = scmp.ne.s32.totalorder %s348, %s349
    %p360 = scmp.eq.s32.totalorder %s25, 0
    %p361 = por %p359, %p360
    %p362 = scmp.ne.s32.totalorder %s348, %s349
    %p363 = scmp.eq.s32.totalorder %s26, 1
    %p364 = por %p362, %p363
    %p366 = scmp.ne.s32.totalorder %s349, %s365
    %p367 = scmp.eq.s32.totalorder %s26, 0
    %p368 = por %p366, %p367
    %p369 = scmp.le.s32.totalorder 1, %s20
    %p370 = scmp.lt.s32.totalorder %s20, 3
    %p371 = pnand %p369, %p370
    %p372 = pneg %p371
    // Predicated region
    $region9: #{hip_block_forward.4} parent=5 // pred_check
      _
    $region10: #{hip_block_forward.4} parent=5 // pred_check_branch
      %374 = sbr.rel (%p371) target = $region12
    $region11: #{hip_block_forward.4} parent=5 // pred_region
      %s375 = ssub.s32 %s20, 1
      // Predicated region
      $region13: #{hip_block_forward.4} parent=11 // pred_check
        %p376 = pneg %p81
      $region14: #{hip_block_forward.4} parent=11 // pred_check_branch
        %378 = sbr.rel (%p376) target = $region16
      $region15: #{hip_block_forward.4} parent=11 // pred_region
        _
      $region16: #{hip_block_forward.4} parent=11 // pred_fallthru
        _
      // Predicated region
      $region17: #{hip_block_forward.4} parent=11 // pred_check
        %p379 = pneg %p102
      $region18: #{hip_block_forward.4} parent=11 // pred_check_branch
        %381 = sbr.rel (%p379) target = $region20
      $region19: #{hip_block_forward.4} parent=11 // pred_region
        _
      $region20: #{hip_block_forward.4} parent=11 // pred_fallthru
        _
      // Predicated region
      $region21: #{hip_block_forward.4} parent=11 // pred_check
        %p382 = pneg %p123
      $region22: #{hip_block_forward.4} parent=11 // pred_check_branch
        %384 = sbr.rel (%p382) target = $region24
      $region23: #{hip_block_forward.4} parent=11 // pred_region
        _
      $region24: #{hip_block_forward.4} parent=11 // pred_fallthru
        _
      // Predicated region
      $region25: #{hip_block_forward.4} parent=11 // pred_check
        %p385 = pneg %p144
      $region26: #{hip_block_forward.4} parent=11 // pred_check_branch
        %387 = sbr.rel (%p385) target = $region28
      $region27: #{hip_block_forward.4} parent=11 // pred_region
        _
      $region28: #{hip_block_forward.4} parent=11 // pred_fallthru
        _
      // Predicated region
      $region29: #{hip_block_forward.4} parent=11 // pred_check
        %p388 = pneg %p165
      $region30: #{hip_block_forward.4} parent=11 // pred_check_branch
        %390 = sbr.rel (%p388) target = $region32
      $region31: #{hip_block_forward.4} parent=11 // pred_region
        _
      $region32: #{hip_block_forward.4} parent=11 // pred_fallthru
        _
      // Predicated region
      $region33: #{hip_block_forward.4} parent=11 // pred_check
        %p391 = pneg %p186
      $region34: #{hip_block_forward.4} parent=11 // pred_check_branch
        %393 = sbr.rel (%p391) target = $region36
      $region35: #{hip_block_forward.4} parent=11 // pred_region
        _
      $region36: #{hip_block_forward.4} parent=11 // pred_fallthru
        _
      // Predicated region
      $region37: #{hip_block_forward.4} parent=11 // pred_check
        %p394 = pneg %p207
      $region38: #{hip_block_forward.4} parent=11 // pred_check_branch
        %396 = sbr.rel (%p394) target = $region40
      $region39: #{hip_block_forward.4} parent=11 // pred_region
        _
      $region40: #{hip_block_forward.4} parent=11 // pred_fallthru
        _
      // Predicated region
      $region41: #{hip_block_forward.4} parent=11 // pred_check
        %p397 = pneg %p228
      $region42: #{hip_block_forward.4} parent=11 // pred_check_branch
        %399 = sbr.rel (%p397) target = $region44
      $region43: #{hip_block_forward.4} parent=11 // pred_region
        _
      $region44: #{hip_block_forward.4} parent=11 // pred_fallthru
        _
      // Predicated region
      $region45: #{hip_block_forward.4} parent=11 // pred_check
        %p400 = pneg %p249
      $region46: #{hip_block_forward.4} parent=11 // pred_check_branch
        %402 = sbr.rel (%p400) target = $region48
      $region47: #{hip_block_forward.4} parent=11 // pred_region
        _
      $region48: #{hip_block_forward.4} parent=11 // pred_fallthru
        _
      // Predicated region
      $region49: #{hip_block_forward.4} parent=11 // pred_check
        %p403 = pneg %p270
      $region50: #{hip_block_forward.4} parent=11 // pred_check_branch
        %405 = sbr.rel (%p403) target = $region52
      $region51: #{hip_block_forward.4} parent=11 // pred_region
        _
      $region52: #{hip_block_forward.4} parent=11 // pred_fallthru
        _
      // Predicated region
      $region53: #{hip_block_forward.4} parent=11 // pred_check
        %p406 = pneg %p291
      $region54: #{hip_block_forward.4} parent=11 // pred_check_branch
        %408 = sbr.rel (%p406) target = $region56
      $region55: #{hip_block_forward.4} parent=11 // pred_region
        _
      $region56: #{hip_block_forward.4} parent=11 // pred_fallthru
        _
      // Predicated region
      $region57: #{hip_block_forward.4} parent=11 // pred_check
        %p409 = pneg %p312
      $region58: #{hip_block_forward.4} parent=11 // pred_check_branch
        %411 = sbr.rel (%p409) target = $region60
      $region59: #{hip_block_forward.4} parent=11 // pred_region
        _
      $region60: #{hip_block_forward.4} parent=11 // pred_fallthru
        _
      // Predicated region
      $region61: #{hip_block_forward.4} parent=11 // pred_check
        %p412 = pneg %p333
      $region62: #{hip_block_forward.4} parent=11 // pred_check_branch
        %414 = sbr.rel (%p412) target = $region64
      $region63: #{hip_block_forward.4} parent=11 // pred_region
        _
      $region64: #{hip_block_forward.4} parent=11 // pred_fallthru
        _
    $region12: #{hip_block_forward.4} parent=5 // pred_fallthru
      _
    %p415 = scmp.lt.s32.totalorder %s20, 2
    // Predicated region
    $region65: #{hip_block_forward.4} parent=5 // pred_check
      %p416 = pneg %p415
    $region66: #{hip_block_forward.4} parent=5 // pred_check_branch
      %418 = sbr.rel (%p416) target = $region68
    $region67: #{hip_block_forward.4} parent=5 // pred_region
      // Predicated region
      $region69: #{hip_block_forward.4} parent=67 // pred_check
        %p419 = pneg %p54
      $region70: #{hip_block_forward.4} parent=67 // pred_check_branch
        %421 = sbr.rel (%p419) target = $region72
      $region71: #{hip_block_forward.4} parent=67 // pred_region
        %s422 = smul.u32 2, %s28
        %p423 = scmp.lt.s32.totalorder %s27, 1
        %s424 = scalar_select %p423, %s27, 1
        %p425 = scmp.lt.s32.totalorder %s422, 1
        %s426 = scalar_select %p425, %s422, 1
        %s427 = smul.addr %s424, 2
        %s428 = sadd.s32 %s426, %s427
        %s429 = smul.addr %s428, 8
        %s430 = scalar_lea.vmem %s0, %s429
        %s431 = smul.u32 2, %s28
      $region72: #{hip_block_forward.4} parent=67 // pred_fallthru
        _
    $region68: #{hip_block_forward.4} parent=5 // pred_fallthru
      _
    %p432 = scmp.le.s32.totalorder 1, %s20
    %p433 = scmp.lt.s32.totalorder %s20, 3
    %p434 = pnand %p432, %p433
    %p435 = pneg %p434
    // Predicated region
    $region73: #{hip_block_forward.4} parent=5 // pred_check
      _
    $region74: #{hip_block_forward.4} parent=5 // pred_check_branch
      %437 = sbr.rel (%p434) target = $region76
    $region75: #{hip_block_forward.4} parent=5 // pred_region
      %s438 = ssub.s32 %s20, 1
      %s439 = smul.u32 2, %s30
      %p440 = scmp.lt.s32.totalorder %s29, 1
      %s441 = scalar_select %p440, %s29, 1
      %p442 = scmp.lt.s32.totalorder %s439, 1
      %s443 = scalar_select %p442, %s439, 1
      %s444 = smul.addr %s441, 2
      %s445 = sadd.s32 %s443, %s444
      %s446 = smul.addr %s445, 8
      %s447 = scalar_lea.vmem %s0, %s446
      %p448 = pneg %p60
      %p449 = pneg %p57
      %p450 = pneg %p81
      %p451 = pneg %p78
      %p452 = pneg %p102
      %p453 = pneg %p99
      %p454 = pneg %p123
      %p455 = pneg %p120
      %p456 = pneg %p144
      %p457 = pneg %p141
      %p458 = pneg %p165
      %p459 = pneg %p162
      %p460 = pneg %p186
      %p461 = pneg %p183
      %p462 = pneg %p207
      %p463 = pneg %p204
      %p464 = pneg %p228
      %p465 = pneg %p225
      %p466 = pneg %p249
      %p467 = pneg %p246
      %p468 = pneg %p270
      %p469 = pneg %p267
      %p470 = pneg %p291
      %p471 = pneg %p288
      %p472 = pneg %p312
      %p473 = pneg %p309
      %p474 = pneg %p333
      %p475 = pneg %p330
      %p476 = pneg %p361
      %p477 = pneg %p358
      %s478 = smul.u32 2, %s30
      %p479 = scmp.lt.s32.totalorder %s29, 1
      %s480 = scalar_select %p479, %s29, 1
      %p481 = scmp.lt.s32.totalorder %s478, 1
      %s482 = scalar_select %p481, %s478, 1
      %s483 = smul.addr %s480, 2
      %s484 = sadd.s32 %s482, %s483
      %s485 = smul.addr %s484, 8
      %s486 = scalar_lea.vmem %s14, %s485
      %s487 = smul.u32 2, %s30
      %p488 = scmp.lt.s32.totalorder %s29, 1
      %s489 = scalar_select %p488, %s29, 1
      %p490 = scmp.lt.s32.totalorder %s487, 1
      %s491 = scalar_select %p490, %s487, 1
      %s492 = smul.addr %s489, 2
      %s493 = sadd.s32 %s491, %s492
      %s494 = smul.addr %s493, 8
      %s495 = scalar_lea.vmem %s0, %s494
      %s496 = smul.u32 2, %s30
      %s497 = smul.u32 2, %s30
      %p498 = scmp.lt.s32.totalorder %s29, 1
      %s499 = scalar_select %p498, %s29, 1
      %p500 = scmp.lt.s32.totalorder %s497, 1
      %s501 = scalar_select %p500, %s497, 1
      %s502 = smul.addr %s499, 2
      %s503 = sadd.s32 %s501, %s502
      %s504 = smul.addr %s503, 8
      %s505 = scalar_lea.vmem %s14, %s504
      %s506 = smul.u32 2, %s30
      %v508 = vld [vmem:[%s495] sm:$0xff]
      %v509 = vld [vmem:[%s495 + $0x8] sm:$0xff]
      %v510 = vld [vmem:[%s1] sm:$0x1]
      %v511 = vld [vmem:[%s2] sm:$0x1]
      %vm512 = vcmask 261120
      %v513 = vsel %vm512, %v508, 0.0
      %514 = vadd.xlane.f32.xlu0 %v513
      %v515 = vpop.xlane.xlu0 %514
      %v516 = vsel %vm512, %v509, 0.0
      %517 = vadd.xlane.f32.xlu0 %v516
      %v518 = vpop.xlane.xlu0 %517
      %v519 = vrcp.pop 32.0
      %v520 = vmul.f32 %v515, %v519
      %v521 = vmul.f32 %v518, %v519
      %v522 = vsub.f32 %v508, %v520
      %v523 = vsub.f32 %v509, %v521
      %v524 = vmul.f32 %v522, %v522
      %v525 = vmul.f32 %v523, %v523
      %v526 = vsel %vm512, %v524, 0.0
      %527 = vadd.xlane.f32.xlu0 %v526
      %v528 = vpop.xlane.xlu0 %527
      %v529 = vsel %vm512, %v525, 0.0
      %530 = vadd.xlane.f32.xlu0 %v529
      %v531 = vpop.xlane.xlu0 %530
      %v532 = vmul.f32 %v528, %v519
      %v533 = vmul.f32 %v531, %v519
      %v534 = vadd.f32 %v532, 1e-05
      %v535 = vadd.f32 %v533, 1e-05
      %v536 = vrsqrt.pop %v534
      %v537 = vrsqrt.pop %v535
      %v538 = vmul.f32 %v522, %v536
      %v539 = vmul.f32 %v523, %v537
      %v541 = vlaneseq
      %v542 = vshrl.u32 %v541, 7
      %v543 = vsub.s32 0, %v542
      %v544 = vrot.slane %v510, %v543
      %v546 = vmul.f32 %v538, %v544
      %v547 = vmul.f32 %v539, %v544
      %v549 = vlaneseq
      %v550 = vshrl.u32 %v549, 7
      %v551 = vsub.s32 0, %v550
      %v552 = vrot.slane %v511, %v551
      %v554 = vadd.f32 %v546, %v552
      %v555 = vadd.f32 %v547, %v552
      %v556 = vpack.c.bf16 %v555, %v554
      %v557 = vld [vmem:[%s3] sm:$0xf]
      %v558 = vld [vmem:[%s3 + $0x4] sm:$0xf]
      %v559 = vld [vmem:[%s3 + $0x8] sm:$0xf]
      %v560 = vld [vmem:[%s3 + $0xc] sm:$0xf]
      %v565 = vunpack.c.l.b16 %v557
      %v566 = vunpack.c.l.b16 %v558
      %v567 = vunpack.c.l.b16 %v559
      %v568 = vunpack.c.l.b16 %v560
      %v569 = vpack.c.b16 %v566, %v565
      %v570 = vpack.c.b16 %v568, %v567
      %v574 = vsel %vm512, %v556, 0
      %576 = vmatprep.subr.bf16.mxu0 0
      %577 = vmatpush1.bf16.msra.mxu0 %v569
      %578 = vmatprep.subr.bf16.mxu0 0
      %579 = vmatpush1.bf16.msra.mxu0 %v570
      %580 = vmatprep.subr.bf16.mxu0 0
      %581 = vmatpush1.bf16.msra.mxu0 0
      %582 = vmatprep.subr.bf16.mxu0 0
      %583 = vmatpush1.bf16.msra.mxu0 0
      %584 = vmatprep.subr.bf16.mxu0 0
      %585 = vmatpush1.bf16.msra.mxu0 0
      %586 = vmatprep.subr.bf16.mxu0 0
      %587 = vmatpush1.bf16.msra.mxu0 0
      %588 = vmatprep.subr.bf16.mxu0 0
      %589 = vmatpush1.bf16.msra.mxu0 0
      %590 = vmatprep.subr.bf16.mxu0 0
      %591 = vmatpush1.bf16.msra.mxu0 0
      %592 = vmatprep.subr.bf16.mxu0 0
      %593 = vmatpush1.bf16.msra.mxu0 0
      %594 = vmatprep.subr.bf16.mxu0 0
      %595 = vmatpush1.bf16.msra.mxu0 0
      %596 = vmatprep.subr.bf16.mxu0 0
      %597 = vmatpush1.bf16.msra.mxu0 0
      %598 = vmatprep.subr.bf16.mxu0 0
      %599 = vmatpush1.bf16.msra.mxu0 0
      %600 = vmatprep.subr.bf16.mxu0 0
      %601 = vmatpush1.bf16.msra.mxu0 0
      %602 = vmatprep.subr.bf16.mxu0 0
      %603 = vmatpush1.bf16.msra.mxu0 0
      %604 = vmatprep.subr.bf16.mxu0 0
      %605 = vmatpush1.bf16.msra.mxu0 0
      %606 = vmatprep.subr.bf16.mxu0 0
      %607 = vmatpush1.bf16.msra.mxu0 0
      %608 = vmatprep.mubr.bf16.mxu0 0
      %609 = vmatmul.mubr.bf16.gmra.mrb[0].mxu0 %v574
      %v610 = vpop.f32.mrb[0].mxu0
      %v611 = vadd.f32 0.0, %v610
      %v612 = vpop.f32.mrb[0].mxu0
      %v613 = vpop.f32.mrb[0].mxu0
      %v614 = vadd.f32 0.0, %v613
      %v615 = vpop.f32.mrb[0].mxu0
      %616 = vdwg.mxu0
      %v617 = vld [vmem:[%s4] sm:$0xf]
      %v618 = vld [vmem:[%s4 + $0x4] sm:$0xf]
      %v619 = vld [vmem:[%s4 + $0x8] sm:$0xf]
      %v620 = vld [vmem:[%s4 + $0xc] sm:$0xf]
      %v625 = vunpack.c.l.b16 %v617
      %v626 = vunpack.c.l.b16 %v618
      %v627 = vunpack.c.l.b16 %v619
      %v628 = vunpack.c.l.b16 %v620
      %v629 = vpack.c.b16 %v626, %v625
      %v630 = vpack.c.b16 %v628, %v627
      %633 = vmatprep.subr.bf16.mxu0 0
      %634 = vmatpush1.bf16.msra.mxu0 %v629
      %635 = vmatprep.subr.bf16.mxu0 0
      %636 = vmatpush1.bf16.msra.mxu0 %v630
      %637 = vmatprep.subr.bf16.mxu0 0
      %638 = vmatpush1.bf16.msra.mxu0 0
      %639 = vmatprep.subr.bf16.mxu0 0
      %640 = vmatpush1.bf16.msra.mxu0 0
      %641 = vmatprep.subr.bf16.mxu0 0
      %642 = vmatpush1.bf16.msra.mxu0 0
      %643 = vmatprep.subr.bf16.mxu0 0
      %644 = vmatpush1.bf16.msra.mxu0 0
      %645 = vmatprep.subr.bf16.mxu0 0
      %646 = vmatpush1.bf16.msra.mxu0 0
      %647 = vmatprep.subr.bf16.mxu0 0
      %648 = vmatpush1.bf16.msra.mxu0 0
      %649 = vmatprep.subr.bf16.mxu0 0
      %650 = vmatpush1.bf16.msra.mxu0 0
      %651 = vmatprep.subr.bf16.mxu0 0
      %652 = vmatpush1.bf16.msra.mxu0 0
      %653 = vmatprep.subr.bf16.mxu0 0
      %654 = vmatpush1.bf16.msra.mxu0 0
      %655 = vmatprep.subr.bf16.mxu0 0
      %656 = vmatpush1.bf16.msra.mxu0 0
      %657 = vmatprep.subr.bf16.mxu0 0
      %658 = vmatpush1.bf16.msra.mxu0 0
      %659 = vmatprep.subr.bf16.mxu0 0
      %660 = vmatpush1.bf16.msra.mxu0 0
      %661 = vmatprep.subr.bf16.mxu0 0
      %662 = vmatpush1.bf16.msra.mxu0 0
      %663 = vmatprep.subr.bf16.mxu0 0
      %664 = vmatpush1.bf16.msra.mxu0 0
      %665 = vmatprep.mubr.bf16.mxu0 0
      %666 = vmatmul.mubr.bf16.gmra.mrb[0].mxu0 %v574
      %v667 = vpop.f32.mrb[0].mxu0
      %v668 = vadd.f32 0.0, %v667
      %v669 = vpop.f32.mrb[0].mxu0
      %v670 = vpop.f32.mrb[0].mxu0
      %v671 = vadd.f32 0.0, %v670
      %v672 = vpop.f32.mrb[0].mxu0
      %673 = vdwg.mxu0
      %v674 = vld [vmem:[%s5] sm:$0xf]
      %v675 = vld [vmem:[%s5 + $0x4] sm:$0xf]
      %v676 = vld [vmem:[%s5 + $0x8] sm:$0xf]
      %v677 = vld [vmem:[%s5 + $0xc] sm:$0xf]
      %v682 = vunpack.c.l.b16 %v674
      %v683 = vunpack.c.l.b16 %v675
      %v684 = vunpack.c.l.b16 %v676
      %v685 = vunpack.c.l.b16 %v677
      %v686 = vpack.c.b16 %v683, %v682
      %v687 = vpack.c.b16 %v685, %v684
      %690 = vmatprep.subr.bf16.mxu0 0
      %691 = vmatpush1.bf16.msra.mxu0 %v686
      %692 = vmatprep.subr.bf16.mxu0 0
      %693 = vmatpush1.bf16.msra.mxu0 %v687
      %694 = vmatprep.subr.bf16.mxu0 0
      %695 = vmatpush1.bf16.msra.mxu0 0
      %696 = vmatprep.subr.bf16.mxu0 0
      %697 = vmatpush1.bf16.msra.mxu0 0
      %698 = vmatprep.subr.bf16.mxu0 0
      %699 = vmatpush1.bf16.msra.mxu0 0
      %700 = vmatprep.subr.bf16.mxu0 0
      %701 = vmatpush1.bf16.msra.mxu0 0
      %702 = vmatprep.subr.bf16.mxu0 0
      %703 = vmatpush1.bf16.msra.mxu0 0
      %704 = vmatprep.subr.bf16.mxu0 0
      %705 = vmatpush1.bf16.msra.mxu0 0
      %706 = vmatprep.subr.bf16.mxu0 0
      %707 = vmatpush1.bf16.msra.mxu0 0
      %708 = vmatprep.subr.bf16.mxu0 0
      %709 = vmatpush1.bf16.msra.mxu0 0
      %710 = vmatprep.subr.bf16.mxu0 0
      %711 = vmatpush1.bf16.msra.mxu0 0
      %712 = vmatprep.subr.bf16.mxu0 0
      %713 = vmatpush1.bf16.msra.mxu0 0
      %714 = vmatprep.subr.bf16.mxu0 0
      %715 = vmatpush1.bf16.msra.mxu0 0
      %716 = vmatprep.subr.bf16.mxu0 0
      %717 = vmatpush1.bf16.msra.mxu0 0
      %718 = vmatprep.subr.bf16.mxu0 0
      %719 = vmatpush1.bf16.msra.mxu0 0
      %720 = vmatprep.subr.bf16.mxu0 0
      %721 = vmatpush1.bf16.msra.mxu0 0
      %722 = vmatprep.mubr.bf16.mxu0 0
      %723 = vmatmul.mubr.bf16.gmra.mrb[0].mxu0 %v574
      %v724 = vpop.f32.mrb[0].mxu0
      %v725 = vadd.f32 0.0, %v724
      %v726 = vpop.f32.mrb[0].mxu0
      %v727 = vpop.f32.mrb[0].mxu0
      %v728 = vadd.f32 0.0, %v727
      %v729 = vpop.f32.mrb[0].mxu0
      %730 = vdwg.mxu0
      %vm731 = vcmask 64512
      %v733 = vsel %vm731, %v611, 0
      %v736 = vsel %vm731, %v668, 0
      %738 = vmatprep.subr.mxu0 0.0
      %739 = vmatpush1.xpose.msra.mxu0 %v736
      %740 = vmatprep.subr.mxu0 0.0
      %741 = vmatpush1.xpose.msra.mxu0 0.0
      %742 = vmatprep.subr.mxu0 0.0
      %743 = vmatpush1.xpose.msra.mxu0 0.0
      %744 = vmatprep.subr.mxu0 0.0
      %745 = vmatpush1.xpose.msra.mxu0 0.0
      %746 = vmatprep.subr.mxu0 0.0
      %747 = vmatpush1.xpose.msra.mxu0 0.0
      %748 = vmatprep.subr.mxu0 0.0
      %749 = vmatpush1.xpose.msra.mxu0 0.0
      %750 = vmatprep.subr.mxu0 0.0
      %751 = vmatpush1.xpose.msra.mxu0 0.0
      %752 = vmatprep.subr.mxu0 0.0
      %753 = vmatpush1.xpose.msra.mxu0 0.0
      %754 = vmatprep.subr.mxu0 0.0
      %755 = vmatpush1.xpose.msra.mxu0 0.0
      %756 = vmatprep.subr.mxu0 0.0
      %757 = vmatpush1.xpose.msra.mxu0 0.0
      %758 = vmatprep.subr.mxu0 0.0
      %759 = vmatpush1.xpose.msra.mxu0 0.0
      %760 = vmatprep.subr.mxu0 0.0
      %761 = vmatpush1.xpose.msra.mxu0 0.0
      %762 = vmatprep.subr.mxu0 0.0
      %763 = vmatpush1.xpose.msra.mxu0 0.0
      %764 = vmatprep.subr.mxu0 0.0
      %765 = vmatpush1.xpose.msra.mxu0 0.0
      %766 = vmatprep.subr.mxu0 0.0
      %767 = vmatpush1.xpose.msra.mxu0 0.0
      %768 = vmatprep.subr.mxu0 0.0
      %769 = vmatpush1.xpose.msra.mxu0 0.0
      %770 = vmatprep.subr.mxu0 0.0
      %771 = vmatpush1.xpose.msra.mxu0 0.0
      %772 = vmatprep.subr.mxu0 0.0
      %773 = vmatpush1.xpose.msra.mxu0 0.0
      %774 = vmatprep.subr.mxu0 0.0
      %775 = vmatpush1.xpose.msra.mxu0 0.0
      %776 = vmatprep.subr.mxu0 0.0
      %777 = vmatpush1.xpose.msra.mxu0 0.0
      %778 = vmatprep.subr.mxu0 0.0
      %779 = vmatpush1.xpose.msra.mxu0 0.0
      %780 = vmatprep.subr.mxu0 0.0
      %781 = vmatpush1.xpose.msra.mxu0 0.0
      %782 = vmatprep.subr.mxu0 0.0
      %783 = vmatpush1.xpose.msra.mxu0 0.0
      %784 = vmatprep.subr.mxu0 0.0
      %785 = vmatpush1.xpose.msra.mxu0 0.0
      %786 = vmatprep.subr.mxu0 0.0
      %787 = vmatpush1.xpose.msra.mxu0 0.0
      %788 = vmatprep.subr.mxu0 0.0
      %789 = vmatpush1.xpose.msra.mxu0 0.0
      %790 = vmatprep.subr.mxu0 0.0
      %791 = vmatpush1.xpose.msra.mxu0 0.0
      %792 = vmatprep.subr.mxu0 0.0
      %793 = vmatpush1.xpose.msra.mxu0 0.0
      %794 = vmatprep.subr.mxu0 0.0
      %795 = vmatpush1.xpose.msra.mxu0 0.0
      %796 = vmatprep.subr.mxu0 0.0
      %797 = vmatpush1.xpose.msra.mxu0 0.0
      %798 = vmatprep.subr.mxu0 0.0
      %799 = vmatpush1.xpose.msra.mxu0 0.0
      %800 = vmatprep.subr.mxu0 0.0
      %801 = vmatpush1.xpose.msra.mxu0 0.0
      %802 = vmatprep.mubr.f32.mxu0 0.0
      %803 = vmatmul.mubr.f32.gmra.mrb[0].mxu0 %v733
      %v804 = vpop.f32.mrb[0].mxu0
      %v805 = vadd.f32 0.0, %v804
      %v806 = vpop.f32.mrb[0].mxu0
      %807 = vdwg.mxu0
      %v808 = vmul.f32 %v805, 0.35355338
      %v809 = vsel %vm731, %v808, -inf
      %810 = vmax.xlane.f32.xlu0 %v809
      %v811 = vpop.xlane.xlu0 %810
      %v812 = vsub.f32 %v808, %v811
      %v813 = vmul.f32 %v812, 1.442695
      %v814 = vpow.pop %v813
      %v815 = vsel %vm731, %v814, 0.0
      %816 = vadd.xlane.f32.xlu0 %v815
      %v817 = vpop.xlane.xlu0 %816
      %v818 = vrcp.pop %v817
      %v819 = vmul.f32 %v814, %v818
      %v821 = vsel %vm731, %v819, 0
      %823 = vmatprep.subr.mxu0 0.0
      %824 = vmatpush1.msra.mxu0 %v725
      %825 = vmatprep.subr.mxu0 0.0
      %826 = vmatpush1.msra.mxu0 0.0
      %827 = vmatprep.subr.mxu0 0.0
      %828 = vmatpush1.msra.mxu0 0.0
      %829 = vmatprep.subr.mxu0 0.0
      %830 = vmatpush1.msra.mxu0 0.0
      %831 = vmatprep.subr.mxu0 0.0
      %832 = vmatpush1.msra.mxu0 0.0
      %833 = vmatprep.subr.mxu0 0.0
      %834 = vmatpush1.msra.mxu0 0.0
      %835 = vmatprep.subr.mxu0 0.0
      %836 = vmatpush1.msra.mxu0 0.0
      %837 = vmatprep.subr.mxu0 0.0
      %838 = vmatpush1.msra.mxu0 0.0
      %839 = vmatprep.subr.mxu0 0.0
      %840 = vmatpush1.msra.mxu0 0.0
      %841 = vmatprep.subr.mxu0 0.0
      %842 = vmatpush1.msra.mxu0 0.0
      %843 = vmatprep.subr.mxu0 0.0
      %844 = vmatpush1.msra.mxu0 0.0
      %845 = vmatprep.subr.mxu0 0.0
      %846 = vmatpush1.msra.mxu0 0.0
      %847 = vmatprep.subr.mxu0 0.0
      %848 = vmatpush1.msra.mxu0 0.0
      %849 = vmatprep.subr.mxu0 0.0
      %850 = vmatpush1.msra.mxu0 0.0
      %851 = vmatprep.subr.mxu0 0.0
      %852 = vmatpush1.msra.mxu0 0.0
      %853 = vmatprep.subr.mxu0 0.0
      %854 = vmatpush1.msra.mxu0 0.0
      %855 = vmatprep.subr.mxu0 0.0
      %856 = vmatpush1.msra.mxu0 0.0
      %857 = vmatprep.subr.mxu0 0.0
      %858 = vmatpush1.msra.mxu0 0.0
      %859 = vmatprep.subr.mxu0 0.0
      %860 = vmatpush1.msra.mxu0 0.0
      %861 = vmatprep.subr.mxu0 0.0
      %862 = vmatpush1.msra.mxu0 0.0
      %863 = vmatprep.subr.mxu0 0.0
      %864 = vmatpush1.msra.mxu0 0.0
      %865 = vmatprep.subr.mxu0 0.0
      %866 = vmatpush1.msra.mxu0 0.0
      %867 = vmatprep.subr.mxu0 0.0
      %868 = vmatpush1.msra.mxu0 0.0
      %869 = vmatprep.subr.mxu0 0.0
      %870 = vmatpush1.msra.mxu0 0.0
      %871 = vmatprep.subr.mxu0 0.0
      %872 = vmatpush1.msra.mxu0 0.0
      %873 = vmatprep.subr.mxu0 0.0
      %874 = vmatpush1.msra.mxu0 0.0
      %875 = vmatprep.subr.mxu0 0.0
      %876 = vmatpush1.msra.mxu0 0.0
      %877 = vmatprep.subr.mxu0 0.0
      %878 = vmatpush1.msra.mxu0 0.0
      %879 = vmatprep.subr.mxu0 0.0
      %880 = vmatpush1.msra.mxu0 0.0
      %881 = vmatprep.subr.mxu0 0.0
      %882 = vmatpush1.msra.mxu0 0.0
      %883 = vmatprep.subr.mxu0 0.0
      %884 = vmatpush1.msra.mxu0 0.0
      %885 = vmatprep.subr.mxu0 0.0
      %886 = vmatpush1.msra.mxu0 0.0
      %887 = vmatprep.mubr.f32.mxu0 0.0
      %888 = vmatmul.mubr.f32.gmra.mrb[0].mxu0 %v821
      %v889 = vpop.f32.mrb[0].mxu0
      %v890 = vadd.f32 0.0, %v889
      %v891 = vpop.f32.mrb[0].mxu0
      %892 = vdwg.mxu0
      %v894 = vsel %vm731, %v614, 0
      %v897 = vsel %vm731, %v671, 0
      %899 = vmatprep.subr.mxu0 0.0
      %900 = vmatpush1.xpose.msra.mxu0 %v897
      %901 = vmatprep.subr.mxu0 0.0
      %902 = vmatpush1.xpose.msra.mxu0 0.0
      %903 = vmatprep.subr.mxu0 0.0
      %904 = vmatpush1.xpose.msra.mxu0 0.0
      %905 = vmatprep.subr.mxu0 0.0
      %906 = vmatpush1.xpose.msra.mxu0 0.0
      %907 = vmatprep.subr.mxu0 0.0
      %908 = vmatpush1.xpose.msra.mxu0 0.0
      %909 = vmatprep.subr.mxu0 0.0
      %910 = vmatpush1.xpose.msra.mxu0 0.0
      %911 = vmatprep.subr.mxu0 0.0
      %912 = vmatpush1.xpose.msra.mxu0 0.0
      %913 = vmatprep.subr.mxu0 0.0
      %914 = vmatpush1.xpose.msra.mxu0 0.0
      %915 = vmatprep.subr.mxu0 0.0
      %916 = vmatpush1.xpose.msra.mxu0 0.0
      %917 = vmatprep.subr.mxu0 0.0
      %918 = vmatpush1.xpose.msra.mxu0 0.0
      %919 = vmatprep.subr.mxu0 0.0
      %920 = vmatpush1.xpose.msra.mxu0 0.0
      %921 = vmatprep.subr.mxu0 0.0
      %922 = vmatpush1.xpose.msra.mxu0 0.0
      %923 = vmatprep.subr.mxu0 0.0
      %924 = vmatpush1.xpose.msra.mxu0 0.0
      %925 = vmatprep.subr.mxu0 0.0
      %926 = vmatpush1.xpose.msra.mxu0 0.0
      %927 = vmatprep.subr.mxu0 0.0
      %928 = vmatpush1.xpose.msra.mxu0 0.0
      %929 = vmatprep.subr.mxu0 0.0
      %930 = vmatpush1.xpose.msra.mxu0 0.0
      %931 = vmatprep.subr.mxu0 0.0
      %932 = vmatpush1.xpose.msra.mxu0 0.0
      %933 = vmatprep.subr.mxu0 0.0
      %934 = vmatpush1.xpose.msra.mxu0 0.0
      %935 = vmatprep.subr.mxu0 0.0
      %936 = vmatpush1.xpose.msra.mxu0 0.0
      %937 = vmatprep.subr.mxu0 0.0
      %938 = vmatpush1.xpose.msra.mxu0 0.0
      %939 = vmatprep.subr.mxu0 0.0
      %940 = vmatpush1.xpose.msra.mxu0 0.0
      %941 = vmatprep.subr.mxu0 0.0
      %942 = vmatpush1.xpose.msra.mxu0 0.0
      %943 = vmatprep.subr.mxu0 0.0
      %944 = vmatpush1.xpose.msra.mxu0 0.0
      %945 = vmatprep.subr.mxu0 0.0
      %946 = vmatpush1.xpose.msra.mxu0 0.0
      %947 = vmatprep.subr.mxu0 0.0
      %948 = vmatpush1.xpose.msra.mxu0 0.0
      %949 = vmatprep.subr.mxu0 0.0
      %950 = vmatpush1.xpose.msra.mxu0 0.0
      %951 = vmatprep.subr.mxu0 0.0
      %952 = vmatpush1.xpose.msra.mxu0 0.0
      %953 = vmatprep.subr.mxu0 0.0
      %954 = vmatpush1.xpose.msra.mxu0 0.0
      %955 = vmatprep.subr.mxu0 0.0
      %956 = vmatpush1.xpose.msra.mxu0 0.0
      %957 = vmatprep.subr.mxu0 0.0
      %958 = vmatpush1.xpose.msra.mxu0 0.0
      %959 = vmatprep.subr.mxu0 0.0
      %960 = vmatpush1.xpose.msra.mxu0 0.0
      %961 = vmatprep.subr.mxu0 0.0
      %962 = vmatpush1.xpose.msra.mxu0 0.0
      %963 = vmatprep.mubr.f32.mxu0 0.0
      %964 = vmatmul.mubr.f32.gmra.mrb[0].mxu0 %v894
      %v965 = vpop.f32.mrb[0].mxu0
      %v966 = vadd.f32 0.0, %v965
      %v967 = vpop.f32.mrb[0].mxu0
      %968 = vdwg.mxu0
      %v969 = vmul.f32 %v966, 0.35355338
      %v970 = vsel %vm731, %v969, -inf
      %971 = vmax.xlane.f32.xlu0 %v970
      %v972 = vpop.xlane.xlu0 %971
      %v973 = vsub.f32 %v969, %v972
      %v974 = vmul.f32 %v973, 1.442695
      %v975 = vpow.pop %v974
      %v976 = vsel %vm731, %v975, 0.0
      %977 = vadd.xlane.f32.xlu0 %v976
      %v978 = vpop.xlane.xlu0 %977
      %v979 = vrcp.pop %v978
      %v980 = vmul.f32 %v975, %v979
      %v982 = vsel %vm731, %v980, 0
      %984 = vmatprep.subr.mxu0 0.0
      %985 = vmatpush1.msra.mxu0 %v728
      %986 = vmatprep.subr.mxu0 0.0
      %987 = vmatpush1.msra.mxu0 0.0
      %988 = vmatprep.subr.mxu0 0.0
      %989 = vmatpush1.msra.mxu0 0.0
      %990 = vmatprep.subr.mxu0 0.0
      %991 = vmatpush1.msra.mxu0 0.0
      %992 = vmatprep.subr.mxu0 0.0
      %993 = vmatpush1.msra.mxu0 0.0
      %994 = vmatprep.subr.mxu0 0.0
      %995 = vmatpush1.msra.mxu0 0.0
      %996 = vmatprep.subr.mxu0 0.0
      %997 = vmatpush1.msra.mxu0 0.0
      %998 = vmatprep.subr.mxu0 0.0
      %999 = vmatpush1.msra.mxu0 0.0
      %1000 = vmatprep.subr.mxu0 0.0
      %1001 = vmatpush1.msra.mxu0 0.0
      %1002 = vmatprep.subr.mxu0 0.0
      %1003 = vmatpush1.msra.mxu0 0.0
      %1004 = vmatprep.subr.mxu0 0.0
      %1005 = vmatpush1.msra.mxu0 0.0
      %1006 = vmatprep.subr.mxu0 0.0
      %1007 = vmatpush1.msra.mxu0 0.0
      %1008 = vmatprep.subr.mxu0 0.0
      %1009 = vmatpush1.msra.mxu0 0.0
      %1010 = vmatprep.subr.mxu0 0.0
      %1011 = vmatpush1.msra.mxu0 0.0
      %1012 = vmatprep.subr.mxu0 0.0
      %1013 = vmatpush1.msra.mxu0 0.0
      %1014 = vmatprep.subr.mxu0 0.0
      %1015 = vmatpush1.msra.mxu0 0.0
      %1016 = vmatprep.subr.mxu0 0.0
      %1017 = vmatpush1.msra.mxu0 0.0
      %1018 = vmatprep.subr.mxu0 0.0
      %1019 = vmatpush1.msra.mxu0 0.0
      %1020 = vmatprep.subr.mxu0 0.0
      %1021 = vmatpush1.msra.mxu0 0.0
      %1022 = vmatprep.subr.mxu0 0.0
      %1023 = vmatpush1.msra.mxu0 0.0
      %1024 = vmatprep.subr.mxu0 0.0
      %1025 = vmatpush1.msra.mxu0 0.0
      %1026 = vmatprep.subr.mxu0 0.0
      %1027 = vmatpush1.msra.mxu0 0.0
      %1028 = vmatprep.subr.mxu0 0.0
      %1029 = vmatpush1.msra.mxu0 0.0
      %1030 = vmatprep.subr.mxu0 0.0
      %1031 = vmatpush1.msra.mxu0 0.0
      %1032 = vmatprep.subr.mxu0 0.0
      %1033 = vmatpush1.msra.mxu0 0.0
      %1034 = vmatprep.subr.mxu0 0.0
      %1035 = vmatpush1.msra.mxu0 0.0
      %1036 = vmatprep.subr.mxu0 0.0
      %1037 = vmatpush1.msra.mxu0 0.0
      %1038 = vmatprep.subr.mxu0 0.0
      %1039 = vmatpush1.msra.mxu0 0.0
      %1040 = vmatprep.subr.mxu0 0.0
      %1041 = vmatpush1.msra.mxu0 0.0
      %1042 = vmatprep.subr.mxu0 0.0
      %1043 = vmatpush1.msra.mxu0 0.0
      %1044 = vmatprep.subr.mxu0 0.0
      %1045 = vmatpush1.msra.mxu0 0.0
      %1046 = vmatprep.subr.mxu0 0.0
      %1047 = vmatpush1.msra.mxu0 0.0
      %1048 = vmatprep.mubr.f32.mxu0 0.0
      %1049 = vmatmul.mubr.f32.gmra.mrb[0].mxu0 %v982
      %v1050 = vpop.f32.mrb[0].mxu0
      %v1051 = vadd.f32 0.0, %v1050
      %v1052 = vpop.f32.mrb[0].mxu0
      %1053 = vdwg.mxu0
      %v1054 = vpack.c.bf16 %v1051, %v890
      %v1055 = vld [vmem:[%s6] sm:$0xf]
      %s1056 = scalar_lea.vmem %s3, 16
      %v1057 = vld [vmem:[%s1056] sm:$0xf]
      %v1058 = vld [vmem:[%s1056 + $0x4] sm:$0xf]
      %v1059 = vld [vmem:[%s1056 + $0x8] sm:$0xf]
      %v1060 = vld [vmem:[%s1056 + $0xc] sm:$0xf]
      %v1065 = vunpack.c.l.b16 %v1057
      %v1066 = vunpack.c.l.b16 %v1058
      %v1067 = vunpack.c.l.b16 %v1059
      %v1068 = vunpack.c.l.b16 %v1060
      %v1069 = vpack.c.b16 %v1066, %v1065
      %v1070 = vpack.c.b16 %v1068, %v1067
      %1073 = vmatprep.subr.bf16.mxu0 0
      %1074 = vmatpush1.bf16.msra.mxu0 %v1069
      %1075 = vmatprep.subr.bf16.mxu0 0
      %1076 = vmatpush1.bf16.msra.mxu0 %v1070
      %1077 = vmatprep.subr.bf16.mxu0 0
      %1078 = vmatpush1.bf16.msra.mxu0 0
      %1079 = vmatprep.subr.bf16.mxu0 0
      %1080 = vmatpush1.bf16.msra.mxu0 0
      %1081 = vmatprep.subr.bf16.mxu0 0
      %1082 = vmatpush1.bf16.msra.mxu0 0
      %1083 = vmatprep.subr.bf16.mxu0 0
      %1084 = vmatpush1.bf16.msra.mxu0 0
      %1085 = vmatprep.subr.bf16.mxu0 0
      %1086 = vmatpush1.bf16.msra.mxu0 0
      %1087 = vmatprep.subr.bf16.mxu0 0
      %1088 = vmatpush1.bf16.msra.mxu0 0
      %1089 = vmatprep.subr.bf16.mxu0 0
      %1090 = vmatpush1.bf16.msra.mxu0 0
      %1091 = vmatprep.subr.bf16.mxu0 0
      %1092 = vmatpush1.bf16.msra.mxu0 0
      %1093 = vmatprep.subr.bf16.mxu0 0
      %1094 = vmatpush1.bf16.msra.mxu0 0
      %1095 = vmatprep.subr.bf16.mxu0 0
      %1096 = vmatpush1.bf16.msra.mxu0 0
      %1097 = vmatprep.subr.bf16.mxu0 0
      %1098 = vmatpush1.bf16.msra.mxu0 0
      %1099 = vmatprep.subr.bf16.mxu0 0
      %1100 = vmatpush1.bf16.msra.mxu0 0
      %1101 = vmatprep.subr.bf16.mxu0 0
      %1102 = vmatpush1.bf16.msra.mxu0 0
      %1103 = vmatprep.subr.bf16.mxu0 0
      %1104 = vmatpush1.bf16.msra.mxu0 0
      %1105 = vmatprep.mubr.bf16.mxu0 0
      %1106 = vmatmul.mubr.bf16.gmra.mrb[0].mxu0 %v574
      %v1107 = vpop.f32.mrb[0].mxu0
      %v1108 = vadd.f32 0.0, %v1107
      %v1109 = vpop.f32.mrb[0].mxu0
      %v1110 = vpop.f32.mrb[0].mxu0
      %v1111 = vadd.f32 0.0, %v1110
      %v1112 = vpop.f32.mrb[0].mxu0
      %1113 = vdwg.mxu0
      %s1114 = scalar_lea.vmem %s4, 16
      %v1115 = vld [vmem:[%s1114] sm:$0xf]
      %v1116 = vld [vmem:[%s1114 + $0x4] sm:$0xf]
      %v1117 = vld [vmem:[%s1114 + $0x8] sm:$0xf]
      %v1118 = vld [vmem:[%s1114 + $0xc] sm:$0xf]
      %v1123 = vunpack.c.l.b16 %v1115
      %v1124 = vunpack.c.l.b16 %v1116
      %v1125 = vunpack.c.l.b16 %v1117
      %v1126 = vunpack.c.l.b16 %v1118
      %v1127 = vpack.c.b16 %v1124, %v1123
      %v1128 = vpack.c.b16 %v1126, %v1125
      %1131 = vmatprep.subr.bf16.mxu0 0
      %1132 = vmatpush1.bf16.msra.mxu0 %v1127
      %1133 = vmatprep.subr.bf16.mxu0 0
      %1134 = vmatpush1.bf16.msra.mxu0 %v1128
      %1135 = vmatprep.subr.bf16.mxu0 0
      %1136 = vmatpush1.bf16.msra.mxu0 0
      %1137 = vmatprep.subr.bf16.mxu0 0
      %1138 = vmatpush1.bf16.msra.mxu0 0
      %1139 = vmatprep.subr.bf16.mxu0 0
      %1140 = vmatpush1.bf16.msra.mxu0 0
      %1141 = vmatprep.subr.bf16.mxu0 0
      %1142 = vmatpush1.bf16.msra.mxu0 0
      %1143 = vmatprep.subr.bf16.mxu0 0
      %1144 = vmatpush1.bf16.msra.mxu0 0
      %1145 = vmatprep.subr.bf16.mxu0 0
      %1146 = vmatpush1.bf16.msra.mxu0 0
      %1147 = vmatprep.subr.bf16.mxu0 0
      %1148 = vmatpush1.bf16.msra.mxu0 0
      %1149 = vmatprep.subr.bf16.mxu0 0
      %1150 = vmatpush1.bf16.msra.mxu0 0
      %1151 = vmatprep.subr.bf16.mxu0 0
      %1152 = vmatpush1.bf16.msra.mxu0 0
      %1153 = vmatprep.subr.bf16.mxu0 0
      %1154 = vmatpush1.bf16.msra.mxu0 0
      %1155 = vmatprep.subr.bf16.mxu0 0
      %1156 = vmatpush1.bf16.msra.mxu0 0
      %1157 = vmatprep.subr.bf16.mxu0 0
      %1158 = vmatpush1.bf16.msra.mxu0 0
      %1159 = vmatprep.subr.bf16.mxu0 0
      %1160 = vmatpush1.bf16.msra.mxu0 0
      %1161 = vmatprep.subr.bf16.mxu0 0
      %1162 = vmatpush1.bf16.msra.mxu0 0
      %1163 = vmatprep.mubr.bf16.mxu0 0
      %1164 = vmatmul.mubr.bf16.gmra.mrb[0].mxu0 %v574
      %v1165 = vpop.f32.mrb[0].mxu0
      %v1166 = vadd.f32 0.0, %v1165
      %v1167 = vpop.f32.mrb[0].mxu0
      %v1168 = vpop.f32.mrb[0].mxu0
      %v1169 = vadd.f32 0.0, %v1168
      %v1170 = vpop.f32.mrb[0].mxu0
      %1171 = vdwg.mxu0
      %s1172 = scalar_lea.vmem %s5, 16
      %v1173 = vld [vmem:[%s1172] sm:$0xf]
      %v1174 = vld [vmem:[%s1172 + $0x4] sm:$0xf]
      %v1175 = vld [vmem:[%s1172 + $0x8] sm:$0xf]
      %v1176 = vld [vmem:[%s1172 + $0xc] sm:$0xf]
      %v1181 = vunpack.c.l.b16 %v1173
      %v1182 = vunpack.c.l.b16 %v1174
      %v1183 = vunpack.c.l.b16 %v1175
      %v1184 = vunpack.c.l.b16 %v1176
      %v1185 = vpack.c.b16 %v1182, %v1181
      %v1186 = vpack.c.b16 %v1184, %v1183
      %1189 = vmatprep.subr.bf16.mxu0 0
      %1190 = vmatpush1.bf16.msra.mxu0 %v1185
      %1191 = vmatprep.subr.bf16.mxu0 0
      %1192 = vmatpush1.bf16.msra.mxu0 %v1186
      %1193 = vmatprep.subr.bf16.mxu0 0
      %1194 = vmatpush1.bf16.msra.mxu0 0
      %1195 = vmatprep.subr.bf16.mxu0 0
      %1196 = vmatpush1.bf16.msra.mxu0 0
      %1197 = vmatprep.subr.bf16.mxu0 0
      %1198 = vmatpush1.bf16.msra.mxu0 0
      %1199 = vmatprep.subr.bf16.mxu0 0
      %1200 = vmatpush1.bf16.msra.mxu0 0
      %1201 = vmatprep.subr.bf16.mxu0 0
      %1202 = vmatpush1.bf16.msra.mxu0 0
      %1203 = vmatprep.subr.bf16.mxu0 0
      %1204 = vmatpush1.bf16.msra.mxu0 0
      %1205 = vmatprep.subr.bf16.mxu0 0
      %1206 = vmatpush1.bf16.msra.mxu0 0
      %1207 = vmatprep.subr.bf16.mxu0 0
      %1208 = vmatpush1.bf16.msra.mxu0 0
      %1209 = vmatprep.subr.bf16.mxu0 0
      %1210 = vmatpush1.bf16.msra.mxu0 0
      %1211 = vmatprep.subr.bf16.mxu0 0
      %1212 = vmatpush1.bf16.msra.mxu0 0
      %1213 = vmatprep.subr.bf16.mxu0 0
      %1214 = vmatpush1.bf16.msra.mxu0 0
      %1215 = vmatprep.subr.bf16.mxu0 0
      %1216 = vmatpush1.bf16.msra.mxu0 0
      %1217 = vmatprep.subr.bf16.mxu0 0
      %1218 = vmatpush1.bf16.msra.mxu0 0
      %1219 = vmatprep.subr.bf16.mxu0 0
      %1220 = vmatpush1.bf16.msra.mxu0 0
      %1221 = vmatprep.mubr.bf16.mxu0 0
      %1222 = vmatmul.mubr.bf16.gmra.mrb[0].mxu0 %v574
      %v1223 = vpop.f32.mrb[0].mxu0
      %v1224 = vadd.f32 0.0, %v1223
      %v1225 = vpop.f32.mrb[0].mxu0
      %v1226 = vpop.f32.mrb[0].mxu0
      %v1227 = vadd.f32 0.0, %v1226
      %v1228 = vpop.f32.mrb[0].mxu0
      %1229 = vdwg.mxu0
      %v1231 = vsel %vm731, %v1108, 0
      %v1234 = vsel %vm731, %v1166, 0
      %1236 = vmatprep.subr.mxu0 0.0
      %1237 = vmatpush1.xpose.msra.mxu0 %v1234
      %1238 = vmatprep.subr.mxu0 0.0
      %1239 = vmatpush1.xpose.msra.mxu0 0.0
      %1240 = vmatprep.subr.mxu0 0.0
      %1241 = vmatpush1.xpose.msra.mxu0 0.0
      %1242 = vmatprep.subr.mxu0 0.0
      %1243 = vmatpush1.xpose.msra.mxu0 0.0
      %1244 = vmatprep.subr.mxu0 0.0
      %1245 = vmatpush1.xpose.msra.mxu0 0.0
      %1246 = vmatprep.subr.mxu0 0.0
      %1247 = vmatpush1.xpose.msra.mxu0 0.0
      %1248 = vmatprep.subr.mxu0 0.0
      %1249 = vmatpush1.xpose.msra.mxu0 0.0
      %1250 = vmatprep.subr.mxu0 0.0
      %1251 = vmatpush1.xpose.msra.mxu0 0.0
      %1252 = vmatprep.subr.mxu0 0.0
      %1253 = vmatpush1.xpose.msra.mxu0 0.0
      %1254 = vmatprep.subr.mxu0 0.0
      %1255 = vmatpush1.xpose.msra.mxu0 0.0
      %1256 = vmatprep.subr.mxu0 0.0
      %1257 = vmatpush1.xpose.msra.mxu0 0.0
      %1258 = vmatprep.subr.mxu0 0.0
      %1259 = vmatpush1.xpose.msra.mxu0 0.0
      %1260 = vmatprep.subr.mxu0 0.0
      %1261 = vmatpush1.xpose.msra.mxu0 0.0
      %1262 = vmatprep.subr.mxu0 0.0
      %1263 = vmatpush1.xpose.msra.mxu0 0.0
      %1264 = vmatprep.subr.mxu0 0.0
      %1265 = vmatpush1.xpose.msra.mxu0 0.0
      %1266 = vmatprep.subr.mxu0 0.0
      %1267 = vmatpush1.xpose.msra.mxu0 0.0
      %1268 = vmatprep.subr.mxu0 0.0
      %1269 = vmatpush1.xpose.msra.mxu0 0.0
      %1270 = vmatprep.subr.mxu0 0.0
      %1271 = vmatpush1.xpose.msra.mxu0 0.0
      %1272 = vmatprep.subr.mxu0 0.0
      %1273 = vmatpush1.xpose.msra.mxu0 0.0
      %1274 = vmatprep.subr.mxu0 0.0
      %1275 = vmatpush1.xpose.msra.mxu0 0.0
      %1276 = vmatprep.subr.mxu0 0.0
      %1277 = vmatpush1.xpose.msra.mxu0 0.0
      %1278 = vmatprep.subr.mxu0 0.0
      %1279 = vmatpush1.xpose.msra.mxu0 0.0
      %1280 = vmatprep.subr.mxu0 0.0
      %1281 = vmatpush1.xpose.msra.mxu0 0.0
      %1282 = vmatprep.subr.mxu0 0.0
      %1283 = vmatpush1.xpose.msra.mxu0 0.0
      %1284 = vmatprep.subr.mxu0 0.0
      %1285 = vmatpush1.xpose.msra.mxu0 0.0
      %1286 = vmatprep.subr.mxu0 0.0
      %1287 = vmatpush1.xpose.msra.mxu0 0.0
      %1288 = vmatprep.subr.mxu0 0.0
      %1289 = vmatpush1.xpose.msra.mxu0 0.0
      %1290 = vmatprep.subr.mxu0 0.0
      %1291 = vmatpush1.xpose.msra.mxu0 0.0
      %1292 = vmatprep.subr.mxu0 0.0
      %1293 = vmatpush1.xpose.msra.mxu0 0.0
      %1294 = vmatprep.subr.mxu0 0.0
      %1295 = vmatpush1.xpose.msra.mxu0 0.0
      %1296 = vmatprep.subr.mxu0 0.0
      %1297 = vmatpush1.xpose.msra.mxu0 0.0
      %1298 = vmatprep.subr.mxu0 0.0
      %1299 = vmatpush1.xpose.msra.mxu0 0.0
      %1300 = vmatprep.mubr.f32.mxu0 0.0
      %1301 = vmatmul.mubr.f32.gmra.mrb[0].mxu0 %v1231
      %v1302 = vpop.f32.mrb[0].mxu0
      %v1303 = vadd.f32 0.0, %v1302
      %v1304 = vpop.f32.mrb[0].mxu0
      %1305 = vdwg.mxu0
      %v1306 = vmul.f32 %v1303, 0.35355338
      %v1307 = vsel %vm731, %v1306, -inf
      %1308 = vmax.xlane.f32.xlu0 %v1307
      %v1309 = vpop.xlane.xlu0 %1308
      %v1310 = vsub.f32 %v1306, %v1309
      %v1311 = vmul.f32 %v1310, 1.442695
      %v1312 = vpow.pop %v1311
      %v1313 = vsel %vm731, %v1312, 0.0
      %1314 = vadd.xlane.f32.xlu0 %v1313
      %v1315 = vpop.xlane.xlu0 %1314
      %v1316 = vrcp.pop %v1315
      %v1317 = vmul.f32 %v1312, %v1316
      %v1319 = vsel %vm731, %v1317, 0
      %1321 = vmatprep.subr.mxu0 0.0
      %1322 = vmatpush1.msra.mxu0 %v1224
      %1323 = vmatprep.subr.mxu0 0.0
      %1324 = vmatpush1.msra.mxu0 0.0
      %1325 = vmatprep.subr.mxu0 0.0
      %1326 = vmatpush1.msra.mxu0 0.0
      %1327 = vmatprep.subr.mxu0 0.0
      %1328 = vmatpush1.msra.mxu0 0.0
      %1329 = vmatprep.subr.mxu0 0.0
      %1330 = vmatpush1.msra.mxu0 0.0
      %1331 = vmatprep.subr.mxu0 0.0
      %1332 = vmatpush1.msra.mxu0 0.0
      %1333 = vmatprep.subr.mxu0 0.0
      %1334 = vmatpush1.msra.mxu0 0.0
      %1335 = vmatprep.subr.mxu0 0.0
      %1336 = vmatpush1.msra.mxu0 0.0
      %1337 = vmatprep.subr.mxu0 0.0
      %1338 = vmatpush1.msra.mxu0 0.0
      %1339 = vmatprep.subr.mxu0 0.0
      %1340 = vmatpush1.msra.mxu0 0.0
      %1341 = vmatprep.subr.mxu0 0.0
      %1342 = vmatpush1.msra.mxu0 0.0
      %1343 = vmatprep.subr.mxu0 0.0
      %1344 = vmatpush1.msra.mxu0 0.0
      %1345 = vmatprep.subr.mxu0 0.0
      %1346 = vmatpush1.msra.mxu0 0.0
      %1347 = vmatprep.subr.mxu0 0.0
      %1348 = vmatpush1.msra.mxu0 0.0
      %1349 = vmatprep.subr.mxu0 0.0
      %1350 = vmatpush1.msra.mxu0 0.0
      %1351 = vmatprep.subr.mxu0 0.0
      %1352 = vmatpush1.msra.mxu0 0.0
      %1353 = vmatprep.subr.mxu0 0.0
      %1354 = vmatpush1.msra.mxu0 0.0
      %1355 = vmatprep.subr.mxu0 0.0
      %1356 = vmatpush1.msra.mxu0 0.0
      %1357 = vmatprep.subr.mxu0 0.0
      %1358 = vmatpush1.msra.mxu0 0.0
      %1359 = vmatprep.subr.mxu0 0.0
      %1360 = vmatpush1.msra.mxu0 0.0
      %1361 = vmatprep.subr.mxu0 0.0
      %1362 = vmatpush1.msra.mxu0 0.0
      %1363 = vmatprep.subr.mxu0 0.0
      %1364 = vmatpush1.msra.mxu0 0.0
      %1365 = vmatprep.subr.mxu0 0.0
      %1366 = vmatpush1.msra.mxu0 0.0
      %1367 = vmatprep.subr.mxu0 0.0
      %1368 = vmatpush1.msra.mxu0 0.0
      %1369 = vmatprep.subr.mxu0 0.0
      %1370 = vmatpush1.msra.mxu0 0.0
      %1371 = vmatprep.subr.mxu0 0.0
      %1372 = vmatpush1.msra.mxu0 0.0
      %1373 = vmatprep.subr.mxu0 0.0
      %1374 = vmatpush1.msra.mxu0 0.0
      %1375 = vmatprep.subr.mxu0 0.0
      %1376 = vmatpush1.msra.mxu0 0.0
      %1377 = vmatprep.subr.mxu0 0.0
      %1378 = vmatpush1.msra.mxu0 0.0
      %1379 = vmatprep.subr.mxu0 0.0
      %1380 = vmatpush1.msra.mxu0 0.0
      %1381 = vmatprep.subr.mxu0 0.0
      %1382 = vmatpush1.msra.mxu0 0.0
      %1383 = vmatprep.subr.mxu0 0.0
      %1384 = vmatpush1.msra.mxu0 0.0
      %1385 = vmatprep.mubr.f32.mxu0 0.0
      %1386 = vmatmul.mubr.f32.gmra.mrb[0].mxu0 %v1319
      %v1387 = vpop.f32.mrb[0].mxu0
      %v1388 = vadd.f32 0.0, %v1387
      %v1389 = vpop.f32.mrb[0].mxu0
      %1390 = vdwg.mxu0
      %v1392 = vsel %vm731, %v1111, 0
      %v1395 = vsel %vm731, %v1169, 0
      %1397 = vmatprep.subr.mxu0 0.0
      %1398 = vmatpush1.xpose.msra.mxu0 %v1395
      %1399 = vmatprep.subr.mxu0 0.0
      %1400 = vmatpush1.xpose.msra.mxu0 0.0
      %1401 = vmatprep.subr.mxu0 0.0
      %1402 = vmatpush1.xpose.msra.mxu0 0.0
      %1403 = vmatprep.subr.mxu0 0.0
      %1404 = vmatpush1.xpose.msra.mxu0 0.0
      %1405 = vmatprep.subr.mxu0 0.0
      %1406 = vmatpush1.xpose.msra.mxu0 0.0
      %1407 = vmatprep.subr.mxu0 0.0
      %1408 = vmatpush1.xpose.msra.mxu0 0.0
      %1409 = vmatprep.subr.mxu0 0.0
      %1410 = vmatpush1.xpose.msra.mxu0 0.0
      %1411 = vmatprep.subr.mxu0 0.0
      %1412 = vmatpush1.xpose.msra.mxu0 0.0
      %1413 = vmatprep.subr.mxu0 0.0
      %1414 = vmatpush1.xpose.msra.mxu0 0.0
      %1415 = vmatprep.subr.mxu0 0.0
      %1416 = vmatpush1.xpose.msra.mxu0 0.0
      %1417 = vmatprep.subr.mxu0 0.0
      %1418 = vmatpush1.xpose.msra.mxu0 0.0
      %1419 = vmatprep.subr.mxu0 0.0
      %1420 = vmatpush1.xpose.msra.mxu0 0.0
      %1421 = vmatprep.subr.mxu0 0.0
      %1422 = vmatpush1.xpose.msra.mxu0 0.0
      %1423 = vmatprep.subr.mxu0 0.0
      %1424 = vmatpush1.xpose.msra.mxu0 0.0
      %1425 = vmatprep.subr.mxu0 0.0
      %1426 = vmatpush1.xpose.msra.mxu0 0.0
      %1427 = vmatprep.subr.mxu0 0.0
      %1428 = vmatpush1.xpose.msra.mxu0 0.0
      %1429 = vmatprep.subr.mxu0 0.0
      %1430 = vmatpush1.xpose.msra.mxu0 0.0
      %1431 = vmatprep.subr.mxu0 0.0
      %1432 = vmatpush1.xpose.msra.mxu0 0.0
      %1433 = vmatprep.subr.mxu0 0.0
      %1434 = vmatpush1.xpose.msra.mxu0 0.0
      %1435 = vmatprep.subr.mxu0 0.0
      %1436 = vmatpush1.xpose.msra.mxu0 0.0
      %1437 = vmatprep.subr.mxu0 0.0
      %1438 = vmatpush1.xpose.msra.mxu0 0.0
      %1439 = vmatprep.subr.mxu0 0.0
      %1440 = vmatpush1.xpose.msra.mxu0 0.0
      %1441 = vmatprep.subr.mxu0 0.0
      %1442 = vmatpush1.xpose.msra.mxu0 0.0
      %1443 = vmatprep.subr.mxu0 0.0
      %1444 = vmatpush1.xpose.msra.mxu0 0.0
      %1445 = vmatprep.subr.mxu0 0.0
      %1446 = vmatpush1.xpose.msra.mxu0 0.0
      %1447 = vmatprep.subr.mxu0 0.0
      %1448 = vmatpush1.xpose.msra.mxu0 0.0
      %1449 = vmatprep.subr.mxu0 0.0
      %1450 = vmatpush1.xpose.msra.mxu0 0.0
      %1451 = vmatprep.subr.mxu0 0.0
      %1452 = vmatpush1.xpose.msra.mxu0 0.0
      %1453 = vmatprep.subr.mxu0 0.0
      %1454 = vmatpush1.xpose.msra.mxu0 0.0
      %1455 = vmatprep.subr.mxu0 0.0
      %1456 = vmatpush1.xpose.msra.mxu0 0.0
      %1457 = vmatprep.subr.mxu0 0.0
      %1458 = vmatpush1.xpose.msra.mxu0 0.0
      %1459 = vmatprep.subr.mxu0 0.0
      %1460 = vmatpush1.xpose.msra.mxu0 0.0
      %1461 = vmatprep.mubr.f32.mxu0 0.0
      %1462 = vmatmul.mubr.f32.gmra.mrb[0].mxu0 %v1392
      %v1463 = vpop.f32.mrb[0].mxu0
      %v1464 = vadd.f32 0.0, %v1463
      %v1465 = vpop.f32.mrb[0].mxu0
      %1466 = vdwg.mxu0
      %v1467 = vmul.f32 %v1464, 0.35355338
      %v1468 = vsel %vm731, %v1467, -inf
      %1469 = vmax.xlane.f32.xlu0 %v1468
      %v1470 = vpop.xlane.xlu0 %1469
      %v1471 = vsub.f32 %v1467, %v1470
      %v1472 = vmul.f32 %v1471, 1.442695
      %v1473 = vpow.pop %v1472
      %v1474 = vsel %vm731, %v1473, 0.0
      %1475 = vadd.xlane.f32.xlu0 %v1474
      %v1476 = vpop.xlane.xlu0 %1475
      %v1477 = vrcp.pop %v1476
      %v1478 = vmul.f32 %v1473, %v1477
      %v1480 = vsel %vm731, %v1478, 0
      %1482 = vmatprep.subr.mxu0 0.0
      %1483 = vmatpush1.msra.mxu0 %v1227
      %1484 = vmatprep.subr.mxu0 0.0
      %1485 = vmatpush1.msra.mxu0 0.0
      %1486 = vmatprep.subr.mxu0 0.0
      %1487 = vmatpush1.msra.mxu0 0.0
      %1488 = vmatprep.subr.mxu0 0.0
      %1489 = vmatpush1.msra.mxu0 0.0
      %1490 = vmatprep.subr.mxu0 0.0
      %1491 = vmatpush1.msra.mxu0 0.0
      %1492 = vmatprep.subr.mxu0 0.0
      %1493 = vmatpush1.msra.mxu0 0.0
      %1494 = vmatprep.subr.mxu0 0.0
      %1495 = vmatpush1.msra.mxu0 0.0
      %1496 = vmatprep.subr.mxu0 0.0
      %1497 = vmatpush1.msra.mxu0 0.0
      %1498 = vmatprep.subr.mxu0 0.0
      %1499 = vmatpush1.msra.mxu0 0.0
      %1500 = vmatprep.subr.mxu0 0.0
      %1501 = vmatpush1.msra.mxu0 0.0
      %1502 = vmatprep.subr.mxu0 0.0
      %1503 = vmatpush1.msra.mxu0 0.0
      %1504 = vmatprep.subr.mxu0 0.0
      %1505 = vmatpush1.msra.mxu0 0.0
      %1506 = vmatprep.subr.mxu0 0.0
      %1507 = vmatpush1.msra.mxu0 0.0
      %1508 = vmatprep.subr.mxu0 0.0
      %1509 = vmatpush1.msra.mxu0 0.0
      %1510 = vmatprep.subr.mxu0 0.0
      %1511 = vmatpush1.msra.mxu0 0.0
      %1512 = vmatprep.subr.mxu0 0.0
      %1513 = vmatpush1.msra.mxu0 0.0
      %1514 = vmatprep.subr.mxu0 0.0
      %1515 = vmatpush1.msra.mxu0 0.0
      %1516 = vmatprep.subr.mxu0 0.0
      %1517 = vmatpush1.msra.mxu0 0.0
      %1518 = vmatprep.subr.mxu0 0.0
      %1519 = vmatpush1.msra.mxu0 0.0
      %1520 = vmatprep.subr.mxu0 0.0
      %1521 = vmatpush1.msra.mxu0 0.0
      %1522 = vmatprep.subr.mxu0 0.0
      %1523 = vmatpush1.msra.mxu0 0.0
      %1524 = vmatprep.subr.mxu0 0.0
      %1525 = vmatpush1.msra.mxu0 0.0
      %1526 = vmatprep.subr.mxu0 0.0
      %1527 = vmatpush1.msra.mxu0 0.0
      %1528 = vmatprep.subr.mxu0 0.0
      %1529 = vmatpush1.msra.mxu0 0.0
      %1530 = vmatprep.subr.mxu0 0.0
      %1531 = vmatpush1.msra.mxu0 0.0
      %1532 = vmatprep.subr.mxu0 0.0
      %1533 = vmatpush1.msra.mxu0 0.0
      %1534 = vmatprep.subr.mxu0 0.0
      %1535 = vmatpush1.msra.mxu0 0.0
      %1536 = vmatprep.subr.mxu0 0.0
      %1537 = vmatpush1.msra.mxu0 0.0
      %1538 = vmatprep.subr.mxu0 0.0
      %1539 = vmatpush1.msra.mxu0 0.0
      %1540 = vmatprep.subr.mxu0 0.0
      %1541 = vmatpush1.msra.mxu0 0.0
      %1542 = vmatprep.subr.mxu0 0.0
      %1543 = vmatpush1.msra.mxu0 0.0
      %1544 = vmatprep.subr.mxu0 0.0
      %1545 = vmatpush1.msra.mxu0 0.0
      %1546 = vmatprep.mubr.f32.mxu0 0.0
      %1547 = vmatmul.mubr.f32.gmra.mrb[0].mxu0 %v1480
      %v1548 = vpop.f32.mrb[0].mxu0
      %v1549 = vadd.f32 0.0, %v1548
      %v1550 = vpop.f32.mrb[0].mxu0
      %1551 = vdwg.mxu0
      %v1552 = vpack.c.bf16 %v1549, %v1388
      %s1553 = scalar_lea.vmem %s6, 4
      %v1554 = vld [vmem:[%s1553] sm:$0xf]
      %v1556 = vsel %vm731, %v1552, 0
      %vm1558 = vcmask 1043456
      %v1560 = vsel %vm1558, %v1554, 0
      %1562 = vmatprep.subr.bf16.mxu0 0
      %1563 = vmatpush1.bf16.msra.mxu0 %v1560
      %1564 = vmatprep.subr.bf16.mxu0 0
      %1565 = vmatpush1.bf16.msra.mxu0 0
      %1566 = vmatprep.subr.bf16.mxu0 0
      %1567 = vmatpush1.bf16.msra.mxu0 0
      %1568 = vmatprep.subr.bf16.mxu0 0
      %1569 = vmatpush1.bf16.msra.mxu0 0
      %1570 = vmatprep.subr.bf16.mxu0 0
      %1571 = vmatpush1.bf16.msra.mxu0 0
      %1572 = vmatprep.subr.bf16.mxu0 0
      %1573 = vmatpush1.bf16.msra.mxu0 0
      %1574 = vmatprep.subr.bf16.mxu0 0
      %1575 = vmatpush1.bf16.msra.mxu0 0
      %1576 = vmatprep.subr.bf16.mxu0 0
      %1577 = vmatpush1.bf16.msra.mxu0 0
      %1578 = vmatprep.subr.bf16.mxu0 0
      %1579 = vmatpush1.bf16.msra.mxu0 0
      %1580 = vmatprep.subr.bf16.mxu0 0
      %1581 = vmatpush1.bf16.msra.mxu0 0
      %1582 = vmatprep.subr.bf16.mxu0 0
      %1583 = vmatpush1.bf16.msra.mxu0 0
      %1584 = vmatprep.subr.bf16.mxu0 0
      %1585 = vmatpush1.bf16.msra.mxu0 0
      %1586 = vmatprep.subr.bf16.mxu0 0
      %1587 = vmatpush1.bf16.msra.mxu0 0
      %1588 = vmatprep.subr.bf16.mxu0 0
      %1589 = vmatpush1.bf16.msra.mxu0 0
      %1590 = vmatprep.subr.bf16.mxu0 0
      %1591 = vmatpush1.bf16.msra.mxu0 0
      %1592 = vmatprep.subr.bf16.mxu0 0
      %1593 = vmatpush1.bf16.msra.mxu0 0
      %1594 = vmatprep.mubr.bf16.mxu0 0
      %1595 = vmatmul.mubr.bf16.gmra.mrb[0].mxu0 %v1556
      %v1596 = vpop.f32.mrb[0].mxu0
      %v1597 = vadd.f32 0.0, %v1596
      %v1598 = vpop.f32.mrb[0].mxu0
      %v1599 = vpop.f32.mrb[0].mxu0
      %v1600 = vadd.f32 0.0, %v1599
      %v1601 = vpop.f32.mrb[0].mxu0
      %1602 = vdwg.mxu0
      %v1604 = vsel %vm731, %v1054, 0
      %v1607 = vsel %vm1558, %v1055, 0
      %1609 = vmatprep.subr.bf16.mxu0 0
      %1610 = vmatpush1.bf16.msra.mxu0 %v1607
      %1611 = vmatprep.subr.bf16.mxu0 0
      %1612 = vmatpush1.bf16.msra.mxu0 0
      %1613 = vmatprep.subr.bf16.mxu0 0
      %1614 = vmatpush1.bf16.msra.mxu0 0
      %1615 = vmatprep.subr.bf16.mxu0 0
      %1616 = vmatpush1.bf16.msra.mxu0 0
      %1617 = vmatprep.subr.bf16.mxu0 0
      %1618 = vmatpush1.bf16.msra.mxu0 0
      %1619 = vmatprep.subr.bf16.mxu0 0
      %1620 = vmatpush1.bf16.msra.mxu0 0
      %1621 = vmatprep.subr.bf16.mxu0 0
      %1622 = vmatpush1.bf16.msra.mxu0 0
      %1623 = vmatprep.subr.bf16.mxu0 0
      %1624 = vmatpush1.bf16.msra.mxu0 0
      %1625 = vmatprep.subr.bf16.mxu0 0
      %1626 = vmatpush1.bf16.msra.mxu0 0
      %1627 = vmatprep.subr.bf16.mxu0 0
      %1628 = vmatpush1.bf16.msra.mxu0 0
      %1629 = vmatprep.subr.bf16.mxu0 0
      %1630 = vmatpush1.bf16.msra.mxu0 0
      %1631 = vmatprep.subr.bf16.mxu0 0
      %1632 = vmatpush1.bf16.msra.mxu0 0
      %1633 = vmatprep.subr.bf16.mxu0 0
      %1634 = vmatpush1.bf16.msra.mxu0 0
      %1635 = vmatprep.subr.bf16.mxu0 0
      %1636 = vmatpush1.bf16.msra.mxu0 0
      %1637 = vmatprep.subr.bf16.mxu0 0
      %1638 = vmatpush1.bf16.msra.mxu0 0
      %1639 = vmatprep.subr.bf16.mxu0 0
      %1640 = vmatpush1.bf16.msra.mxu0 0
      %1641 = vmatprep.mubr.bf16.mxu0 0
      %1642 = vmatmul.mubr.bf16.gmra.mrb[0].mxu0 %v1604
      %v1643 = vpop.f32.mrb[0].mxu0
      %v1644 = vadd.f32 %v1597, %v1643
      %v1645 = vpop.f32.mrb[0].mxu0
      %v1646 = vpop.f32.mrb[0].mxu0
      %v1647 = vadd.f32 %v1600, %v1646
      %v1648 = vpop.f32.mrb[0].mxu0
      %1649 = vdwg.mxu0
      %s1650 = scalar_lea.vmem %s3, 32
      %v1651 = vld [vmem:[%s1650] sm:$0xf]
      %v1652 = vld [vmem:[%s1650 + $0x4] sm:$0xf]
      %v1653 = vld [vmem:[%s1650 + $0x8] sm:$0xf]
      %v1654 = vld [vmem:[%s1650 + $0xc] sm:$0xf]
      %v1659 = vunpack.c.l.b16 %v1651
      %v1660 = vunpack.c.l.b16 %v1652
      %v1661 = vunpack.c.l.b16 %v1653
      %v1662 = vunpack.c.l.b16 %v1654
      %v1663 = vpack.c.b16 %v1660, %v1659
      %v1664 = vpack.c.b16 %v1662, %v1661
      %1667 = vmatprep.subr.bf16.mxu0 0
      %1668 = vmatpush1.bf16.msra.mxu0 %v1663
      %1669 = vmatprep.subr.bf16.mxu0 0
      %1670 = vmatpush1.bf16.msra.mxu0 %v1664
      %1671 = vmatprep.subr.bf16.mxu0 0
      %1672 = vmatpush1.bf16.msra.mxu0 0
      %1673 = vmatprep.subr.bf16.mxu0 0
      %1674 = vmatpush1.bf16.msra.mxu0 0
      %1675 = vmatprep.subr.bf16.mxu0 0
      %1676 = vmatpush1.bf16.msra.mxu0 0
      %1677 = vmatprep.subr.bf16.mxu0 0
      %1678 = vmatpush1.bf16.msra.mxu0 0
      %1679 = vmatprep.subr.bf16.mxu0 0
      %1680 = vmatpush1.bf16.msra.mxu0 0
      %1681 = vmatprep.subr.bf16.mxu0 0
      %1682 = vmatpush1.bf16.msra.mxu0 0
      %1683 = vmatprep.subr.bf16.mxu0 0
      %1684 = vmatpush1.bf16.msra.mxu0 0
      %1685 = vmatprep.subr.bf16.mxu0 0
      %1686 = vmatpush1.bf16.msra.mxu0 0
      %1687 = vmatprep.subr.bf16.mxu0 0
      %1688 = vmatpush1.bf16.msra.mxu0 0
      %1689 = vmatprep.subr.bf16.mxu0 0
      %1690 = vmatpush1.bf16.msra.mxu0 0
      %1691 = vmatprep.subr.bf16.mxu0 0
      %1692 = vmatpush1.bf16.msra.mxu0 0
      %1693 = vmatprep.subr.bf16.mxu0 0
      %1694 = vmatpush1.bf16.msra.mxu0 0
      %1695 = vmatprep.subr.bf16.mxu0 0
      %1696 = vmatpush1.bf16.msra.mxu0 0
      %1697 = vmatprep.subr.bf16.mxu0 0
      %1698 = vmatpush1.bf16.msra.mxu0 0
      %1699 = vmatprep.mubr.bf16.mxu0 0
      %1700 = vmatmul.mubr.bf16.gmra.mrb[0].mxu0 %v574
      %v1701 = vpop.f32.mrb[0].mxu0
      %v1702 = vadd.f32 0.0, %v1701
      %v1703 = vpop.f32.mrb[0].mxu0
      %v1704 = vpop.f32.mrb[0].mxu0
      %v1705 = vadd.f32 0.0, %v1704
      %v1706 = vpop.f32.mrb[0].mxu0
      %1707 = vdwg.mxu0
      %s1708 = scalar_lea.vmem %s4, 32
      %v1709 = vld [vmem:[%s1708] sm:$0xf]
      %v1710 = vld [vmem:[%s1708 + $0x4] sm:$0xf]
      %v1711 = vld [vmem:[%s1708 + $0x8] sm:$0xf]
      %v1712 = vld [vmem:[%s1708 + $0xc] sm:$0xf]
      %v1717 = vunpack.c.l.b16 %v1709
      %v1718 = vunpack.c.l.b16 %v1710
      %v1719 = vunpack.c.l.b16 %v1711
      %v1720 = vunpack.c.l.b16 %v1712
      %v1721 = vpack.c.b16 %v1718, %v1717
      %v1722 = vpack.c.b16 %v1720, %v1719
      %1725 = vmatprep.subr.bf16.mxu0 0
      %1726 = vmatpush1.bf16.msra.mxu0 %v1721
      %1727 = vmatprep.subr.bf16.mxu0 0
      %1728 = vmatpush1.bf16.msra.mxu0 %v1722
      %1729 = vmatprep.subr.bf16.mxu0 0
      %1730 = vmatpush1.bf16.msra.mxu0 0
      %1731 = vmatprep.subr.bf16.mxu0 0
      %1732 = vmatpush1.bf16.msra.mxu0 0
      %1733 = vmatprep.subr.bf16.mxu0 0
      %1734 = vmatpush1.bf16.msra.mxu0 0
      %1735 = vmatprep.subr.bf16.mxu0 0
      %1736 = vmatpush1.bf16.msra.mxu0 0
      %1737 = vmatprep.subr.bf16.mxu0 0
      %1738 = vmatpush1.bf16.msra.mxu0 0
      %1739 = vmatprep.subr.bf16.mxu0 0
      %1740 = vmatpush1.bf16.msra.mxu0 0
      %1741 = vmatprep.subr.bf16.mxu0 0
      %1742 = vmatpush1.bf16.msra.mxu0 0
      %1743 = vmatprep.subr.bf16.mxu0 0
      %1744 = vmatpush1.bf16.msra.mxu0 0
      %1745 = vmatprep.subr.bf16.mxu0 0
      %1746 = vmatpush1.bf16.msra.mxu0 0
      %1747 = vmatprep.subr.bf16.mxu0 0
      %1748 = vmatpush1.bf16.msra.mxu0 0
      %1749 = vmatprep.subr.bf16.mxu0 0
      %1750 = vmatpush1.bf16.msra.mxu0 0
      %1751 = vmatprep.subr.bf16.mxu0 0
      %1752 = vmatpush1.bf16.msra.mxu0 0
      %1753 = vmatprep.subr.bf16.mxu0 0
      %1754 = vmatpush1.bf16.msra.mxu0 0
      %1755 = vmatprep.subr.bf16.mxu0 0
      %1756 = vmatpush1.bf16.msra.mxu0 0
      %1757 = vmatprep.mubr.bf16.mxu0 0
      %1758 = vmatmul.mubr.bf16.gmra.mrb[0].mxu0 %v574
      %v1759 = vpop.f32.mrb[0].mxu0
      %v1760 = vadd.f32 0.0, %v1759
      %v1761 = vpop.f32.mrb[0].mxu0
      %v1762 = vpop.f32.mrb[0].mxu0
      %v1763 = vadd.f32 0.0, %v1762
      %v1764 = vpop.f32.mrb[0].mxu0
      %1765 = vdwg.mxu0
      %s1766 = scalar_lea.vmem %s5, 32
      %v1767 = vld [vmem:[%s1766] sm:$0xf]
      %v1768 = vld [vmem:[%s1766 + $0x4] sm:$0xf]
      %v1769 = vld [vmem:[%s1766 + $0x8] sm:$0xf]
      %v1770 = vld [vmem:[%s1766 + $0xc] sm:$0xf]
      %v1775 = vunpack.c.l.b16 %v1767
      %v1776 = vunpack.c.l.b16 %v1768
      %v1777 = vunpack.c.l.b16 %v1769
      %v1778 = vunpack.c.l.b16 %v1770
      %v1779 = vpack.c.b16 %v1776, %v1775
      %v1780 = vpack.c.b16 %v1778, %v1777
      %1783 = vmatprep.subr.bf16.mxu0 0
      %1784 = vmatpush1.bf16.msra.mxu0 %v1779
      %1785 = vmatprep.subr.bf16.mxu0 0
      %1786 = vmatpush1.bf16.msra.mxu0 %v1780
      %1787 = vmatprep.subr.bf16.mxu0 0
      %1788 = vmatpush1.bf16.msra.mxu0 0
      %1789 = vmatprep.subr.bf16.mxu0 0
      %1790 = vmatpush1.bf16.msra.mxu0 0
      %1791 = vmatprep.subr.bf16.mxu0 0
      %1792 = vmatpush1.bf16.msra.mxu0 0
      %1793 = vmatprep.subr.bf16.mxu0 0
      %1794 = vmatpush1.bf16.msra.mxu0 0
      %1795 = vmatprep.subr.bf16.mxu0 0
      %1796 = vmatpush1.bf16.msra.mxu0 0
      %1797 = vmatprep.subr.bf16.mxu0 0
      %1798 = vmatpush1.bf16.msra.mxu0 0
      %1799 = vmatprep.subr.bf16.mxu0 0
      %1800 = vmatpush1.bf16.msra.mxu0 0
      %1801 = vmatprep.subr.bf16.mxu0 0
      %1802 = vmatpush1.bf16.msra.mxu0 0
      %1803 = vmatprep.subr.bf16.mxu0 0
      %1804 = vmatpush1.bf16.msra.mxu0 0
      %1805 = vmatprep.subr.bf16.mxu0 0
      %1806 = vmatpush1.bf16.msra.mxu0 0
      %1807 = vmatprep.subr.bf16.mxu0 0
      %1808 = vmatpush1.bf16.msra.mxu0 0
      %1809 = vmatprep.subr.bf16.mxu0 0
      %1810 = vmatpush1.bf16.msra.mxu0 0
      %1811 = vmatprep.subr.bf16.mxu0 0
      %1812 = vmatpush1.bf16.msra.mxu0 0
      %1813 = vmatprep.subr.bf16.mxu0 0
      %1814 = vmatpush1.bf16.msra.mxu0 0
      %1815 = vmatprep.mubr.bf16.mxu0 0
      %1816 = vmatmul.mubr.bf16.gmra.mrb[0].mxu0 %v574
      %v1817 = vpop.f32.mrb[0].mxu0
      %v1818 = vadd.f32 0.0, %v1817
      %v1819 = vpop.f32.mrb[0].mxu0
      %v1820 = vpop.f32.mrb[0].mxu0
      %v1821 = vadd.f32 0.0, %v1820
      %v1822 = vpop.f32.mrb[0].mxu0
      %1823 = vdwg.mxu0
      %v1825 = vsel %vm731, %v1702, 0
      %v1828 = vsel %vm731, %v1760, 0
      %1830 = vmatprep.subr.mxu0 0.0
      %1831 = vmatpush1.xpose.msra.mxu0 %v1828
      %1832 = vmatprep.subr.mxu0 0.0
      %1833 = vmatpush1.xpose.msra.mxu0 0.0
      %1834 = vmatprep.subr.mxu0 0.0
      %1835 = vmatpush1.xpose.msra.mxu0 0.0
      %1836 = vmatprep.subr.mxu0 0.0
      %1837 = vmatpush1.xpose.msra.mxu0 0.0
      %1838 = vmatprep.subr.mxu0 0.0
      %1839 = vmatpush1.xpose.msra.mxu0 0.0
      %1840 = vmatprep.subr.mxu0 0.0
      %1841 = vmatpush1.xpose.msra.mxu0 0.0
      %1842 = vmatprep.subr.mxu0 0.0
      %1843 = vmatpush1.xpose.msra.mxu0 0.0
      %1844 = vmatprep.subr.mxu0 0.0
      %1845 = vmatpush1.xpose.msra.mxu0 0.0
      %1846 = vmatprep.subr.mxu0 0.0
      %1847 = vmatpush1.xpose.msra.mxu0 0.0
      %1848 = vmatprep.subr.mxu0 0.0
      %1849 = vmatpush1.xpose.msra.mxu0 0.0
      %1850 = vmatprep.subr.mxu0 0.0
      %1851 = vmatpush1.xpose.msra.mxu0 0.0
      %1852 = vmatprep.subr.mxu0 0.0
      %1853 = vmatpush1.xpose.msra.mxu0 0.0
      %1854 = vmatprep.subr.mxu0 0.0
      %1855 = vmatpush1.xpose.msra.mxu0 0.0
      %1856 = vmatprep.subr.mxu0 0.0
      %1857 = vmatpush1.xpose.msra.mxu0 0.0
      %1858 = vmatprep.subr.mxu0 0.0
      %1859 = vmatpush1.xpose.msra.mxu0 0.0
      %1860 = vmatprep.subr.mxu0 0.0
      %1861 = vmatpush1.xpose.msra.mxu0 0.0
      %1862 = vmatprep.subr.mxu0 0.0
      %1863 = vmatpush1.xpose.msra.mxu0 0.0
      %1864 = vmatprep.subr.mxu0 0.0
      %1865 = vmatpush1.xpose.msra.mxu0 0.0
      %1866 = vmatprep.subr.mxu0 0.0
      %1867 = vmatpush1.xpose.msra.mxu0 0.0
      %1868 = vmatprep.subr.mxu0 0.0
      %1869 = vmatpush1.xpose.msra.mxu0 0.0
      %1870 = vmatprep.subr.mxu0 0.0
      %1871 = vmatpush1.xpose.msra.mxu0 0.0
      %1872 = vmatprep.subr.mxu0 0.0
      %1873 = vmatpush1.xpose.msra.mxu0 0.0
      %1874 = vmatprep.subr.mxu0 0.0
      %1875 = vmatpush1.xpose.msra.mxu0 0.0
      %1876 = vmatprep.subr.mxu0 0.0
      %1877 = vmatpush1.xpose.msra.mxu0 0.0
      %1878 = vmatprep.subr.mxu0 0.0
      %1879 = vmatpush1.xpose.msra.mxu0 0.0
      %1880 = vmatprep.subr.mxu0 0.0
      %1881 = vmatpush1.xpose.msra.mxu0 0.0
      %1882 = vmatprep.subr.mxu0 0.0
      %1883 = vmatpush1.xpose.msra.mxu0 0.0
      %1884 = vmatprep.subr.mxu0 0.0
      %1885 = vmatpush1.xpose.msra.mxu0 0.0
      %1886 = vmatprep.subr.mxu0 0.0
      %1887 = vmatpush1.xpose.msra.mxu0 0.0
      %1888 = vmatprep.subr.mxu0 0.0
      %1889 = vmatpush1.xpose.msra.mxu0 0.0
      %1890 = vmatprep.subr.mxu0 0.0
      %1891 = vmatpush1.xpose.msra.mxu0 0.0
      %1892 = vmatprep.subr.mxu0 0.0
      %1893 = vmatpush1.xpose.msra.mxu0 0.0
      %1894 = vmatprep.mubr.f32.mxu0 0.0
      %1895 = vmatmul.mubr.f32.gmra.mrb[0].mxu0 %v1825
      %v1896 = vpop.f32.mrb[0].mxu0
      %v1897 = vadd.f32 0.0, %v1896
      %v1898 = vpop.f32.mrb[0].mxu0
      %1899 = vdwg.mxu0
      %v1900 = vmul.f32 %v1897, 0.35355338
      %v1901 = vsel %vm731, %v1900, -inf
      %1902 = vmax.xlane.f32.xlu0 %v1901
      %v1903 = vpop.xlane.xlu0 %1902
      %v1904 = vsub.f32 %v1900, %v1903
      %v1905 = vmul.f32 %v1904, 1.442695
      %v1906 = vpow.pop %v1905
      %v1907 = vsel %vm731, %v1906, 0.0
      %1908 = vadd.xlane.f32.xlu0 %v1907
      %v1909 = vpop.xlane.xlu0 %1908
      %v1910 = vrcp.pop %v1909
      %v1911 = vmul.f32 %v1906, %v1910
      %v1913 = vsel %vm731, %v1911, 0
      %1915 = vmatprep.subr.mxu0 0.0
      %1916 = vmatpush1.msra.mxu0 %v1818
      %1917 = vmatprep.subr.mxu0 0.0
      %1918 = vmatpush1.msra.mxu0 0.0
      %1919 = vmatprep.subr.mxu0 0.0
      %1920 = vmatpush1.msra.mxu0 0.0
      %1921 = vmatprep.subr.mxu0 0.0
      %1922 = vmatpush1.msra.mxu0 0.0
      %1923 = vmatprep.subr.mxu0 0.0
      %1924 = vmatpush1.msra.mxu0 0.0
      %1925 = vmatprep.subr.mxu0 0.0
      %1926 = vmatpush1.msra.mxu0 0.0
      %1927 = vmatprep.subr.mxu0 0.0
      %1928 = vmatpush1.msra.mxu0 0.0
      %1929 = vmatprep.subr.mxu0 0.0
      %1930 = vmatpush1.msra.mxu0 0.0
      %1931 = vmatprep.subr.mxu0 0.0
      %1932 = vmatpush1.msra.mxu0 0.0
      %1933 = vmatprep.subr.mxu0 0.0
      %1934 = vmatpush1.msra.mxu0 0.0
      %1935 = vmatprep.subr.mxu0 0.0
      %1936 = vmatpush1.msra.mxu0 0.0
      %1937 = vmatprep.subr.mxu0 0.0
      %1938 = vmatpush1.msra.mxu0 0.0
      %1939 = vmatprep.subr.mxu0 0.0
      %1940 = vmatpush1.msra.mxu0 0.0
      %1941 = vmatprep.subr.mxu0 0.0
      %1942 = vmatpush1.msra.mxu0 0.0
      %1943 = vmatprep.subr.mxu0 0.0
      %1944 = vmatpush1.msra.mxu0 0.0
      %1945 = vmatprep.subr.mxu0 0.0
      %1946 = vmatpush1.msra.mxu0 0.0
      %1947 = vmatprep.subr.mxu0 0.0
      %1948 = vmatpush1.msra.mxu0 0.0
      %1949 = vmatprep.subr.mxu0 0.0
      %1950 = vmatpush1.msra.mxu0 0.0
      %1951 = vmatprep.subr.mxu0 0.0
      %1952 = vmatpush1.msra.mxu0 0.0
      %1953 = vmatprep.subr.mxu0 0.0
      %1954 = vmatpush1.msra.mxu0 0.0
      %1955 = vmatprep.subr.mxu0 0.0
      %1956 = vmatpush1.msra.mxu0 0.0
      %1957 = vmatprep.subr.mxu0 0.0
      %1958 = vmatpush1.msra.mxu0 0.0
      %1959 = vmatprep.subr.mxu0 0.0
      %1960 = vmatpush1.msra.mxu0 0.0
      %1961 = vmatprep.subr.mxu0 0.0
      %1962 = vmatpush1.msra.mxu0 0.0
      %1963 = vmatprep.subr.mxu0 0.0
      %1964 = vmatpush1.msra.mxu0 0.0
      %1965 = vmatprep.subr.mxu0 0.0
      %1966 = vmatpush1.msra.mxu0 0.0
      %1967 = vmatprep.subr.mxu0 0.0
      %1968 = vmatpush1.msra.mxu0 0.0
      %1969 = vmatprep.subr.mxu0 0.0
      %1970 = vmatpush1.msra.mxu0 0.0
      %1971 = vmatprep.subr.mxu0 0.0
      %1972 = vmatpush1.msra.mxu0 0.0
      %1973 = vmatprep.subr.mxu0 0.0
      %1974 = vmatpush1.msra.mxu0 0.0
      %1975 = vmatprep.subr.mxu0 0.0
      %1976 = vmatpush1.msra.mxu0 0.0
      %1977 = vmatprep.subr.mxu0 0.0
      %1978 = vmatpush1.msra.mxu0 0.0
      %1979 = vmatprep.mubr.f32.mxu0 0.0
      %1980 = vmatmul.mubr.f32.gmra.mrb[0].mxu0 %v1913
      %v1981 = vpop.f32.mrb[0].mxu0
      %v1982 = vadd.f32 0.0, %v1981
      %v1983 = vpop.f32.mrb[0].mxu0
      %1984 = vdwg.mxu0
      %v1986 = vsel %vm731, %v1705, 0
      %v1989 = vsel %vm731, %v1763, 0
      %1991 = vmatprep.subr.mxu0 0.0
      %1992 = vmatpush1.xpose.msra.mxu0 %v1989
      %1993 = vmatprep.subr.mxu0 0.0
      %1994 = vmatpush1.xpose.msra.mxu0 0.0
      %1995 = vmatprep.subr.mxu0 0.0
      %1996 = vmatpush1.xpose.msra.mxu0 0.0
      %1997 = vmatprep.subr.mxu0 0.0
      %1998 = vmatpush1.xpose.msra.mxu0 0.0
      %1999 = vmatprep.subr.mxu0 0.0
      %2000 = vmatpush1.xpose.msra.mxu0 0.0
      %2001 = vmatprep.subr.mxu0 0.0
      %2002 = vmatpush1.xpose.msra.mxu0 0.0
      %2003 = vmatprep.subr.mxu0 0.0
      %2004 = vmatpush1.xpose.msra.mxu0 0.0
      %2005 = vmatprep.subr.mxu0 0.0
      %2006 = vmatpush1.xpose.msra.mxu0 0.0
      %2007 = vmatprep.subr.mxu0 0.0
      %2008 = vmatpush1.xpose.msra.mxu0 0.0
      %2009 = vmatprep.subr.mxu0 0.0
      %2010 = vmatpush1.xpose.msra.mxu0 0.0
      %2011 = vmatprep.subr.mxu0 0.0
      %2012 = vmatpush1.xpose.msra.mxu0 0.0
      %2013 = vmatprep.subr.mxu0 0.0
      %2014 = vmatpush1.xpose.msra.mxu0 0.0
      %2015 = vmatprep.subr.mxu0 0.0
      %2016 = vmatpush1.xpose.msra.mxu0 0.0
      %2017 = vmatprep.subr.mxu0 0.0
      %2018 = vmatpush1.xpose.msra.mxu0 0.0
      %2019 = vmatprep.subr.mxu0 0.0
      %2020 = vmatpush1.xpose.msra.mxu0 0.0
      %2021 = vmatprep.subr.mxu0 0.0
      %2022 = vmatpush1.xpose.msra.mxu0 0.0
      %2023 = vmatprep.subr.mxu0 0.0
      %2024 = vmatpush1.xpose.msra.mxu0 0.0
      %2025 = vmatprep.subr.mxu0 0.0
      %2026 = vmatpush1.xpose.msra.mxu0 0.0
      %2027 = vmatprep.subr.mxu0 0.0
      %2028 = vmatpush1.xpose.msra.mxu0 0.0
      %2029 = vmatprep.subr.mxu0 0.0
      %2030 = vmatpush1.xpose.msra.mxu0 0.0
      %2031 = vmatprep.subr.mxu0 0.0
      %2032 = vmatpush1.xpose.msra.mxu0 0.0
      %2033 = vmatprep.subr.mxu0 0.0
      %2034 = vmatpush1.xpose.msra.mxu0 0.0
      %2035 = vmatprep.subr.mxu0 0.0
      %2036 = vmatpush1.xpose.msra.mxu0 0.0
      %2037 = vmatprep.subr.mxu0 0.0
      %2038 = vmatpush1.xpose.msra.mxu0 0.0
      %2039 = vmatprep.subr.mxu0 0.0
      %2040 = vmatpush1.xpose.msra.mxu0 0.0
      %2041 = vmatprep.subr.mxu0 0.0
      %2042 = vmatpush1.xpose.msra.mxu0 0.0
      %2043 = vmatprep.subr.mxu0 0.0
      %2044 = vmatpush1.xpose.msra.mxu0 0.0
      %2045 = vmatprep.subr.mxu0 0.0
      %2046 = vmatpush1.xpose.msra.mxu0 0.0
      %2047 = vmatprep.subr.mxu0 0.0
      %2048 = vmatpush1.xpose.msra.mxu0 0.0
      %2049 = vmatprep.subr.mxu0 0.0
      %2050 = vmatpush1.xpose.msra.mxu0 0.0
      %2051 = vmatprep.subr.mxu0 0.0
      %2052 = vmatpush1.xpose.msra.mxu0 0.0
      %2053 = vmatprep.subr.mxu0 0.0
      %2054 = vmatpush1.xpose.msra.mxu0 0.0
      %2055 = vmatprep.mubr.f32.mxu0 0.0
      %2056 = vmatmul.mubr.f32.gmra.mrb[0].mxu0 %v1986
      %v2057 = vpop.f32.mrb[0].mxu0
      %v2058 = vadd.f32 0.0, %v2057
      %v2059 = vpop.f32.mrb[0].mxu0
      %2060 = vdwg.mxu0
      %v2061 = vmul.f32 %v2058, 0.35355338
      %v2062 = vsel %vm731, %v2061, -inf
      %2063 = vmax.xlane.f32.xlu0 %v2062
      %v2064 = vpop.xlane.xlu0 %2063
      %v2065 = vsub.f32 %v2061, %v2064
      %v2066 = vmul.f32 %v2065, 1.442695
      %v2067 = vpow.pop %v2066
      %v2068 = vsel %vm731, %v2067, 0.0
      %2069 = vadd.xlane.f32.xlu0 %v2068
      %v2070 = vpop.xlane.xlu0 %2069
      %v2071 = vrcp.pop %v2070
      %v2072 = vmul.f32 %v2067, %v2071
      %v2074 = vsel %vm731, %v2072, 0
      %2076 = vmatprep.subr.mxu0 0.0
      %2077 = vmatpush1.msra.mxu0 %v1821
      %2078 = vmatprep.subr.mxu0 0.0
      %2079 = vmatpush1.msra.mxu0 0.0
      %2080 = vmatprep.subr.mxu0 0.0
      %2081 = vmatpush1.msra.mxu0 0.0
      %2082 = vmatprep.subr.mxu0 0.0
      %2083 = vmatpush1.msra.mxu0 0.0
      %2084 = vmatprep.subr.mxu0 0.0
      %2085 = vmatpush1.msra.mxu0 0.0
      %2086 = vmatprep.subr.mxu0 0.0
      %2087 = vmatpush1.msra.mxu0 0.0
      %2088 = vmatprep.subr.mxu0 0.0
      %2089 = vmatpush1.msra.mxu0 0.0
      %2090 = vmatprep.subr.mxu0 0.0
      %2091 = vmatpush1.msra.mxu0 0.0
      %2092 = vmatprep.subr.mxu0 0.0
      %2093 = vmatpush1.msra.mxu0 0.0
      %2094 = vmatprep.subr.mxu0 0.0
      %2095 = vmatpush1.msra.mxu0 0.0
      %2096 = vmatprep.subr.mxu0 0.0
      %2097 = vmatpush1.msra.mxu0 0.0
      %2098 = vmatprep.subr.mxu0 0.0
      %2099 = vmatpush1.msra.mxu0 0.0
      %2100 = vmatprep.subr.mxu0 0.0
      %2101 = vmatpush1.msra.mxu0 0.0
      %2102 = vmatprep.subr.mxu0 0.0
      %2103 = vmatpush1.msra.mxu0 0.0
      %2104 = vmatprep.subr.mxu0 0.0
      %2105 = vmatpush1.msra.mxu0 0.0
      %2106 = vmatprep.subr.mxu0 0.0
      %2107 = vmatpush1.msra.mxu0 0.0
      %2108 = vmatprep.subr.mxu0 0.0
      %2109 = vmatpush1.msra.mxu0 0.0
      %2110 = vmatprep.subr.mxu0 0.0
      %2111 = vmatpush1.msra.mxu0 0.0
      %2112 = vmatprep.subr.mxu0 0.0
      %2113 = vmatpush1.msra.mxu0 0.0
      %2114 = vmatprep.subr.mxu0 0.0
      %2115 = vmatpush1.msra.mxu0 0.0
      %2116 = vmatprep.subr.mxu0 0.0
      %2117 = vmatpush1.msra.mxu0 0.0
      %2118 = vmatprep.subr.mxu0 0.0
      %2119 = vmatpush1.msra.mxu0 0.0
      %2120 = vmatprep.subr.mxu0 0.0
      %2121 = vmatpush1.msra.mxu0 0.0
      %2122 = vmatprep.subr.mxu0 0.0
      %2123 = vmatpush1.msra.mxu0 0.0
      %2124 = vmatprep.subr.mxu0 0.0
      %2125 = vmatpush1.msra.mxu0 0.0
      %2126 = vmatprep.subr.mxu0 0.0
      %2127 = vmatpush1.msra.mxu0 0.0
      %2128 = vmatprep.subr.mxu0 0.0
      %2129 = vmatpush1.msra.mxu0 0.0
      %2130 = vmatprep.subr.mxu0 0.0
      %2131 = vmatpush1.msra.mxu0 0.0
      %2132 = vmatprep.subr.mxu0 0.0
      %2133 = vmatpush1.msra.mxu0 0.0
      %2134 = vmatprep.subr.mxu0 0.0
      %2135 = vmatpush1.msra.mxu0 0.0
      %2136 = vmatprep.subr.mxu0 0.0
      %2137 = vmatpush1.msra.mxu0 0.0
      %2138 = vmatprep.subr.mxu0 0.0
      %2139 = vmatpush1.msra.mxu0 0.0
      %2140 = vmatprep.mubr.f32.mxu0 0.0
      %2141 = vmatmul.mubr.f32.gmra.mrb[0].mxu0 %v2074
      %v2142 = vpop.f32.mrb[0].mxu0
      %v2143 = vadd.f32 0.0, %v2142
      %v2144 = vpop.f32.mrb[0].mxu0
      %2145 = vdwg.mxu0
      %v2146 = vpack.c.bf16 %v2143, %v1982
      %s2147 = scalar_lea.vmem %s6, 8
      %v2148 = vld [vmem:[%s2147] sm:$0xf]
      %v2150 = vsel %vm731, %v2146, 0
      %v2153 = vsel %vm1558, %v2148, 0
      %2155 = vmatprep.subr.bf16.mxu0 0
      %2156 = vmatpush1.bf16.msra.mxu0 %v2153
      %2157 = vmatprep.subr.bf16.mxu0 0
      %2158 = vmatpush1.bf16.msra.mxu0 0
      %2159 = vmatprep.subr.bf16.mxu0 0
      %2160 = vmatpush1.bf16.msra.mxu0 0
      %2161 = vmatprep.subr.bf16.mxu0 0
      %2162 = vmatpush1.bf16.msra.mxu0 0
      %2163 = vmatprep.subr.bf16.mxu0 0
      %2164 = vmatpush1.bf16.msra.mxu0 0
      %2165 = vmatprep.subr.bf16.mxu0 0
      %2166 = vmatpush1.bf16.msra.mxu0 0
      %2167 = vmatprep.subr.bf16.mxu0 0
      %2168 = vmatpush1.bf16.msra.mxu0 0
      %2169 = vmatprep.subr.bf16.mxu0 0
      %2170 = vmatpush1.bf16.msra.mxu0 0
      %2171 = vmatprep.subr.bf16.mxu0 0
      %2172 = vmatpush1.bf16.msra.mxu0 0
      %2173 = vmatprep.subr.bf16.mxu0 0
      %2174 = vmatpush1.bf16.msra.mxu0 0
      %2175 = vmatprep.subr.bf16.mxu0 0
      %2176 = vmatpush1.bf16.msra.mxu0 0
      %2177 = vmatprep.subr.bf16.mxu0 0
      %2178 = vmatpush1.bf16.msra.mxu0 0
      %2179 = vmatprep.subr.bf16.mxu0 0
      %2180 = vmatpush1.bf16.msra.mxu0 0
      %2181 = vmatprep.subr.bf16.mxu0 0
      %2182 = vmatpush1.bf16.msra.mxu0 0
      %2183 = vmatprep.subr.bf16.mxu0 0
      %2184 = vmatpush1.bf16.msra.mxu0 0
      %2185 = vmatprep.subr.bf16.mxu0 0
      %2186 = vmatpush1.bf16.msra.mxu0 0
      %2187 = vmatprep.mubr.bf16.mxu0 0
      %2188 = vmatmul.mubr.bf16.gmra.mrb[0].mxu0 %v2150
      %v2189 = vpop.f32.mrb[0].mxu0
      %v2190 = vadd.f32 0.0, %v2189
      %v2191 = vpop.f32.mrb[0].mxu0
      %v2192 = vpop.f32.mrb[0].mxu0
      %v2193 = vadd.f32 0.0, %v2192
      %v2194 = vpop.f32.mrb[0].mxu0
      %2195 = vdwg.mxu0
      %v2196 = vadd.f32 %v1644, %v2190
      %v2197 = vadd.f32 %v1647, %v2193
      %s2198 = scalar_lea.vmem %s3, 48
      %v2199 = vld [vmem:[%s2198] sm:$0xf]
      %v2200 = vld [vmem:[%s2198 + $0x4] sm:$0xf]
      %v2201 = vld [vmem:[%s2198 + $0x8] sm:$0xf]
      %v2202 = vld [vmem:[%s2198 + $0xc] sm:$0xf]
      %v2207 = vunpack.c.l.b16 %v2199
      %v2208 = vunpack.c.l.b16 %v2200
      %v2209 = vunpack.c.l.b16 %v2201
      %v2210 = vunpack.c.l.b16 %v2202
      %v2211 = vpack.c.b16 %v2208, %v2207
      %v2212 = vpack.c.b16 %v2210, %v2209
      %2215 = vmatprep.subr.bf16.mxu0 0
      %2216 = vmatpush1.bf16.msra.mxu0 %v2211
      %2217 = vmatprep.subr.bf16.mxu0 0
      %2218 = vmatpush1.bf16.msra.mxu0 %v2212
      %2219 = vmatprep.subr.bf16.mxu0 0
      %2220 = vmatpush1.bf16.msra.mxu0 0
      %2221 = vmatprep.subr.bf16.mxu0 0
      %2222 = vmatpush1.bf16.msra.mxu0 0
      %2223 = vmatprep.subr.bf16.mxu0 0
      %2224 = vmatpush1.bf16.msra.mxu0 0
      %2225 = vmatprep.subr.bf16.mxu0 0
      %2226 = vmatpush1.bf16.msra.mxu0 0
      %2227 = vmatprep.subr.bf16.mxu0 0
      %2228 = vmatpush1.bf16.msra.mxu0 0
      %2229 = vmatprep.subr.bf16.mxu0 0
      %2230 = vmatpush1.bf16.msra.mxu0 0
      %2231 = vmatprep.subr.bf16.mxu0 0
      %2232 = vmatpush1.bf16.msra.mxu0 0
      %2233 = vmatprep.subr.bf16.mxu0 0
      %2234 = vmatpush1.bf16.msra.mxu0 0
      %2235 = vmatprep.subr.bf16.mxu0 0
      %2236 = vmatpush1.bf16.msra.mxu0 0
      %2237 = vmatprep.subr.bf16.mxu0 0
      %2238 = vmatpush1.bf16.msra.mxu0 0
      %2239 = vmatprep.subr.bf16.mxu0 0
      %2240 = vmatpush1.bf16.msra.mxu0 0
      %2241 = vmatprep.subr.bf16.mxu0 0
      %2242 = vmatpush1.bf16.msra.mxu0 0
      %2243 = vmatprep.subr.bf16.mxu0 0
      %2244 = vmatpush1.bf16.msra.mxu0 0
      %2245 = vmatprep.subr.bf16.mxu0 0
      %2246 = vmatpush1.bf16.msra.mxu0 0
      %2247 = vmatprep.mubr.bf16.mxu0 0
      %2248 = vmatmul.mubr.bf16.gmra.mrb[0].mxu0 %v574
      %v2249 = vpop.f32.mrb[0].mxu0
      %v2250 = vadd.f32 0.0, %v2249
      %v2251 = vpop.f32.mrb[0].mxu0
      %v2252 = vpop.f32.mrb[0].mxu0
      %v2253 = vadd.f32 0.0, %v2252
      %v2254 = vpop.f32.mrb[0].mxu0
      %2255 = vdwg.mxu0
      %s2256 = scalar_lea.vmem %s4, 48
      %v2257 = vld [vmem:[%s2256] sm:$0xf]
      %v2258 = vld [vmem:[%s2256 + $0x4] sm:$0xf]
      %v2259 = vld [vmem:[%s2256 + $0x8] sm:$0xf]
      %v2260 = vld [vmem:[%s2256 + $0xc] sm:$0xf]
      %v2265 = vunpack.c.l.b16 %v2257
      %v2266 = vunpack.c.l.b16 %v2258
      %v2267 = vunpack.c.l.b16 %v2259
      %v2268 = vunpack.c.l.b16 %v2260
      %v2269 = vpack.c.b16 %v2266, %v2265
      %v2270 = vpack.c.b16 %v2268, %v2267
      %2273 = vmatprep.subr.bf16.mxu0 0
      %2274 = vmatpush1.bf16.msra.mxu0 %v2269
      %2275 = vmatprep.subr.bf16.mxu0 0
      %2276 = vmatpush1.bf16.msra.mxu0 %v2270
      %2277 = vmatprep.subr.bf16.mxu0 0
      %2278 = vmatpush1.bf16.msra.mxu0 0
      %2279 = vmatprep.subr.bf16.mxu0 0
      %2280 = vmatpush1.bf16.msra.mxu0 0
      %2281 = vmatprep.subr.bf16.mxu0 0
      %2282 = vmatpush1.bf16.msra.mxu0 0
      %2283 = vmatprep.subr.bf16.mxu0 0
      %2284 = vmatpush1.bf16.msra.mxu0 0
      %2285 = vmatprep.subr.bf16.mxu0 0
      %2286 = vmatpush1.bf16.msra.mxu0 0
      %2287 = vmatprep.subr.bf16.mxu0 0
      %2288 = vmatpush1.bf16.msra.mxu0 0
      %2289 = vmatprep.subr.bf16.mxu0 0
      %2290 = vmatpush1.bf16.msra.mxu0 0
      %2291 = vmatprep.subr.bf16.mxu0 0
      %2292 = vmatpush1.bf16.msra.mxu0 0
      %2293 = vmatprep.subr.bf16.mxu0 0
      %2294 = vmatpush1.bf16.msra.mxu0 0
      %2295 = vmatprep.subr.bf16.mxu0 0
      %2296 = vmatpush1.bf16.msra.mxu0 0
      %2297 = vmatprep.subr.bf16.mxu0 0
      %2298 = vmatpush1.bf16.msra.mxu0 0
      %2299 = vmatprep.subr.bf16.mxu0 0
      %2300 = vmatpush1.bf16.msra.mxu0 0
      %2301 = vmatprep.subr.bf16.mxu0 0
      %2302 = vmatpush1.bf16.msra.mxu0 0
      %2303 = vmatprep.subr.bf16.mxu0 0
      %2304 = vmatpush1.bf16.msra.mxu0 0
      %2305 = vmatprep.mubr.bf16.mxu0 0
      %2306 = vmatmul.mubr.bf16.gmra.mrb[0].mxu0 %v574
      %v2307 = vpop.f32.mrb[0].mxu0
      %v2308 = vadd.f32 0.0, %v2307
      %v2309 = vpop.f32.mrb[0].mxu0
      %v2310 = vpop.f32.mrb[0].mxu0
      %v2311 = vadd.f32 0.0, %v2310
      %v2312 = vpop.f32.mrb[0].mxu0
      %2313 = vdwg.mxu0
      %s2314 = scalar_lea.vmem %s5, 48
      %v2315 = vld [vmem:[%s2314] sm:$0xf]
      %v2316 = vld [vmem:[%s2314 + $0x4] sm:$0xf]
      %v2317 = vld [vmem:[%s2314 + $0x8] sm:$0xf]
      %v2318 = vld [vmem:[%s2314 + $0xc] sm:$0xf]
      %v2323 = vunpack.c.l.b16 %v2315
      %v2324 = vunpack.c.l.b16 %v2316
      %v2325 = vunpack.c.l.b16 %v2317
      %v2326 = vunpack.c.l.b16 %v2318
      %v2327 = vpack.c.b16 %v2324, %v2323
      %v2328 = vpack.c.b16 %v2326, %v2325
      %2331 = vmatprep.subr.bf16.mxu0 0
      %2332 = vmatpush1.bf16.msra.mxu0 %v2327
      %2333 = vmatprep.subr.bf16.mxu0 0
      %2334 = vmatpush1.bf16.msra.mxu0 %v2328
      %2335 = vmatprep.subr.bf16.mxu0 0
      %2336 = vmatpush1.bf16.msra.mxu0 0
      %2337 = vmatprep.subr.bf16.mxu0 0
      %2338 = vmatpush1.bf16.msra.mxu0 0
      %2339 = vmatprep.subr.bf16.mxu0 0
      %2340 = vmatpush1.bf16.msra.mxu0 0
      %2341 = vmatprep.subr.bf16.mxu0 0
      %2342 = vmatpush1.bf16.msra.mxu0 0
      %2343 = vmatprep.subr.bf16.mxu0 0
      %2344 = vmatpush1.bf16.msra.mxu0 0
      %2345 = vmatprep.subr.bf16.mxu0 0
      %2346 = vmatpush1.bf16.msra.mxu0 0
      %2347 = vmatprep.subr.bf16.mxu0 0
      %2348 = vmatpush1.bf16.msra.mxu0 0
      %2349 = vmatprep.subr.bf16.mxu0 0
      %2350 = vmatpush1.bf16.msra.mxu0 0
      %2351 = vmatprep.subr.bf16.mxu0 0
      %2352 = vmatpush1.bf16.msra.mxu0 0
      %2353 = vmatprep.subr.bf16.mxu0 0
      %2354 = vmatpush1.bf16.msra.mxu0 0
      %2355 = vmatprep.subr.bf16.mxu0 0
      %2356 = vmatpush1.bf16.msra.mxu0 0
      %2357 = vmatprep.subr.bf16.mxu0 0
      %2358 = vmatpush1.bf16.msra.mxu0 0
      %2359 = vmatprep.subr.bf16.mxu0 0
      %2360 = vmatpush1.bf16.msra.mxu0 0
      %2361 = vmatprep.subr.bf16.mxu0 0
      %2362 = vmatpush1.bf16.msra.mxu0 0
      %2363 = vmatprep.mubr.bf16.mxu0 0
      %2364 = vmatmul.mubr.bf16.gmra.mrb[0].mxu0 %v574
      %v2365 = vpop.f32.mrb[0].mxu0
      %v2366 = vadd.f32 0.0, %v2365
      %v2367 = vpop.f32.mrb[0].mxu0
      %v2368 = vpop.f32.mrb[0].mxu0
      %v2369 = vadd.f32 0.0, %v2368
      %v2370 = vpop.f32.mrb[0].mxu0
      %2371 = vdwg.mxu0
      %v2373 = vsel %vm731, %v2250, 0
      %v2376 = vsel %vm731, %v2308, 0
      %2378 = vmatprep.subr.mxu0 0.0
      %2379 = vmatpush1.xpose.msra.mxu0 %v2376
      %2380 = vmatprep.subr.mxu0 0.0
      %2381 = vmatpush1.xpose.msra.mxu0 0.0
      %2382 = vmatprep.subr.mxu0 0.0
      %2383 = vmatpush1.xpose.msra.mxu0 0.0
      %2384 = vmatprep.subr.mxu0 0.0
      %2385 = vmatpush1.xpose.msra.mxu0 0.0
      %2386 = vmatprep.subr.mxu0 0.0
      %2387 = vmatpush1.xpose.msra.mxu0 0.0
      %2388 = vmatprep.subr.mxu0 0.0
      %2389 = vmatpush1.xpose.msra.mxu0 0.0
      %2390 = vmatprep.subr.mxu0 0.0
      %2391 = vmatpush1.xpose.msra.mxu0 0.0
      %2392 = vmatprep.subr.mxu0 0.0
      %2393 = vmatpush1.xpose.msra.mxu0 0.0
      %2394 = vmatprep.subr.mxu0 0.0
      %2395 = vmatpush1.xpose.msra.mxu0 0.0
      %2396 = vmatprep.subr.mxu0 0.0
      %2397 = vmatpush1.xpose.msra.mxu0 0.0
      %2398 = vmatprep.subr.mxu0 0.0
      %2399 = vmatpush1.xpose.msra.mxu0 0.0
      %2400 = vmatprep.subr.mxu0 0.0
      %2401 = vmatpush1.xpose.msra.mxu0 0.0
      %2402 = vmatprep.subr.mxu0 0.0
      %2403 = vmatpush1.xpose.msra.mxu0 0.0
      %2404 = vmatprep.subr.mxu0 0.0
      %2405 = vmatpush1.xpose.msra.mxu0 0.0
      %2406 = vmatprep.subr.mxu0 0.0
      %2407 = vmatpush1.xpose.msra.mxu0 0.0
      %2408 = vmatprep.subr.mxu0 0.0
      %2409 = vmatpush1.xpose.msra.mxu0 0.0
      %2410 = vmatprep.subr.mxu0 0.0
      %2411 = vmatpush1.xpose.msra.mxu0 0.0
      %2412 = vmatprep.subr.mxu0 0.0
      %2413 = vmatpush1.xpose.msra.mxu0 0.0
      %2414 = vmatprep.subr.mxu0 0.0
      %2415 = vmatpush1.xpose.msra.mxu0 0.0
      %2416 = vmatprep.subr.mxu0 0.0
      %2417 = vmatpush1.xpose.msra.mxu0 0.0
      %2418 = vmatprep.subr.mxu0 0.0
      %2419 = vmatpush1.xpose.msra.mxu0 0.0
      %2420 = vmatprep.subr.mxu0 0.0
      %2421 = vmatpush1.xpose.msra.mxu0 0.0
      %2422 = vmatprep.subr.mxu0 0.0
      %2423 = vmatpush1.xpose.msra.mxu0 0.0
      %2424 = vmatprep.subr.mxu0 0.0
      %2425 = vmatpush1.xpose.msra.mxu0 0.0
      %2426 = vmatprep.subr.mxu0 0.0
      %2427 = vmatpush1.xpose.msra.mxu0 0.0
      %2428 = vmatprep.subr.mxu0 0.0
      %2429 = vmatpush1.xpose.msra.mxu0 0.0
      %2430 = vmatprep.subr.mxu0 0.0
      %2431 = vmatpush1.xpose.msra.mxu0 0.0
      %2432 = vmatprep.subr.mxu0 0.0
      %2433 = vmatpush1.xpose.msra.mxu0 0.0
      %2434 = vmatprep.subr.mxu0 0.0
      %2435 = vmatpush1.xpose.msra.mxu0 0.0
      %2436 = vmatprep.subr.mxu0 0.0
      %2437 = vmatpush1.xpose.msra.mxu0 0.0
      %2438 = vmatprep.subr.mxu0 0.0
      %2439 = vmatpush1.xpose.msra.mxu0 0.0
      %2440 = vmatprep.subr.mxu0 0.0
      %2441 = vmatpush1.xpose.msra.mxu0 0.0
      %2442 = vmatprep.mubr.f32.mxu0 0.0
      %2443 = vmatmul.mubr.f32.gmra.mrb[0].mxu0 %v2373
      %v2444 = vpop.f32.mrb[0].mxu0
      %v2445 = vadd.f32 0.0, %v2444
      %v2446 = vpop.f32.mrb[0].mxu0
      %2447 = vdwg.mxu0
      %v2448 = vmul.f32 %v2445, 0.35355338
      %v2449 = vsel %vm731, %v2448, -inf
      %2450 = vmax.xlane.f32.xlu0 %v2449
      %v2451 = vpop.xlane.xlu0 %2450
      %v2452 = vsub.f32 %v2448, %v2451
      %v2453 = vmul.f32 %v2452, 1.442695
      %v2454 = vpow.pop %v2453
      %v2455 = vsel %vm731, %v2454, 0.0
      %2456 = vadd.xlane.f32.xlu0 %v2455
      %v2457 = vpop.xlane.xlu0 %2456
      %v2458 = vrcp.pop %v2457
      %v2459 = vmul.f32 %v2454, %v2458
      %v2461 = vsel %vm731, %v2459, 0
      %2463 = vmatprep.subr.mxu0 0.0
      %2464 = vmatpush1.msra.mxu0 %v2366
      %2465 = vmatprep.subr.mxu0 0.0
      %2466 = vmatpush1.msra.mxu0 0.0
      %2467 = vmatprep.subr.mxu0 0.0
      %2468 = vmatpush1.msra.mxu0 0.0
      %2469 = vmatprep.subr.mxu0 0.0
      %2470 = vmatpush1.msra.mxu0 0.0
      %2471 = vmatprep.subr.mxu0 0.0
      %2472 = vmatpush1.msra.mxu0 0.0
      %2473 = vmatprep.subr.mxu0 0.0
      %2474 = vmatpush1.msra.mxu0 0.0
      %2475 = vmatprep.subr.mxu0 0.0
      %2476 = vmatpush1.msra.mxu0 0.0
      %2477 = vmatprep.subr.mxu0 0.0
      %2478 = vmatpush1.msra.mxu0 0.0
      %2479 = vmatprep.subr.mxu0 0.0
      %2480 = vmatpush1.msra.mxu0 0.0
      %2481 = vmatprep.subr.mxu0 0.0
      %2482 = vmatpush1.msra.mxu0 0.0
      %2483 = vmatprep.subr.mxu0 0.0
      %2484 = vmatpush1.msra.mxu0 0.0
      %2485 = vmatprep.subr.mxu0 0.0
      %2486 = vmatpush1.msra.mxu0 0.0
      %2487 = vmatprep.subr.mxu0 0.0
      %2488 = vmatpush1.msra.mxu0 0.0
      %2489 = vmatprep.subr.mxu0 0.0
      %2490 = vmatpush1.msra.mxu0 0.0
      %2491 = vmatprep.subr.mxu0 0.0
      %2492 = vmatpush1.msra.mxu0 0.0
      %2493 = vmatprep.subr.mxu0 0.0
      %2494 = vmatpush1.msra.mxu0 0.0
      %2495 = vmatprep.subr.mxu0 0.0
      %2496 = vmatpush1.msra.mxu0 0.0
      %2497 = vmatprep.subr.mxu0 0.0
      %2498 = vmatpush1.msra.mxu0 0.0
      %2499 = vmatprep.subr.mxu0 0.0
      %2500 = vmatpush1.msra.mxu0 0.0
      %2501 = vmatprep.subr.mxu0 0.0
      %2502 = vmatpush1.msra.mxu0 0.0
      %2503 = vmatprep.subr.mxu0 0.0
      %2504 = vmatpush1.msra.mxu0 0.0
      %2505 = vmatprep.subr.mxu0 0.0
      %2506 = vmatpush1.msra.mxu0 0.0
      %2507 = vmatprep.subr.mxu0 0.0
      %2508 = vmatpush1.msra.mxu0 0.0
      %2509 = vmatprep.subr.mxu0 0.0
      %2510 = vmatpush1.msra.mxu0 0.0
      %2511 = vmatprep.subr.mxu0 0.0
      %2512 = vmatpush1.msra.mxu0 0.0
      %2513 = vmatprep.subr.mxu0 0.0
      %2514 = vmatpush1.msra.mxu0 0.0
      %2515 = vmatprep.subr.mxu0 0.0
      %2516 = vmatpush1.msra.mxu0 0.0
      %2517 = vmatprep.subr.mxu0 0.0
      %2518 = vmatpush1.msra.mxu0 0.0
      %2519 = vmatprep.subr.mxu0 0.0
      %2520 = vmatpush1.msra.mxu0 0.0
      %2521 = vmatprep.subr.mxu0 0.0
      %2522 = vmatpush1.msra.mxu0 0.0
      %2523 = vmatprep.subr.mxu0 0.0
      %2524 = vmatpush1.msra.mxu0 0.0
      %2525 = vmatprep.subr.mxu0 0.0
      %2526 = vmatpush1.msra.mxu0 0.0
      %2527 = vmatprep.mubr.f32.mxu0 0.0
      %2528 = vmatmul.mubr.f32.gmra.mrb[0].mxu0 %v2461
      %v2529 = vpop.f32.mrb[0].mxu0
      %v2530 = vadd.f32 0.0, %v2529
      %v2531 = vpop.f32.mrb[0].mxu0
      %2532 = vdwg.mxu0
      %v2534 = vsel %vm731, %v2253, 0
      %v2537 = vsel %vm731, %v2311, 0
      %2539 = vmatprep.subr.mxu0 0.0
      %2540 = vmatpush1.xpose.msra.mxu0 %v2537
      %2541 = vmatprep.subr.mxu0 0.0
      %2542 = vmatpush1.xpose.msra.mxu0 0.0
      %2543 = vmatprep.subr.mxu0 0.0
      %2544 = vmatpush1.xpose.msra.mxu0 0.0
      %2545 = vmatprep.subr.mxu0 0.0
      %2546 = vmatpush1.xpose.msra.mxu0 0.0
      %2547 = vmatprep.subr.mxu0 0.0
      %2548 = vmatpush1.xpose.msra.mxu0 0.0
      %2549 = vmatprep.subr.mxu0 0.0
      %2550 = vmatpush1.xpose.msra.mxu0 0.0
      %2551 = vmatprep.subr.mxu0 0.0
      %2552 = vmatpush1.xpose.msra.mxu0 0.0
      %2553 = vmatprep.subr.mxu0 0.0
      %2554 = vmatpush1.xpose.msra.mxu0 0.0
      %2555 = vmatprep.subr.mxu0 0.0
      %2556 = vmatpush1.xpose.msra.mxu0 0.0
      %2557 = vmatprep.subr.mxu0 0.0
      %2558 = vmatpush1.xpose.msra.mxu0 0.0
      %2559 = vmatprep.subr.mxu0 0.0
      %2560 = vmatpush1.xpose.msra.mxu0 0.0
      %2561 = vmatprep.subr.mxu0 0.0
      %2562 = vmatpush1.xpose.msra.mxu0 0.0
      %2563 = vmatprep.subr.mxu0 0.0
      %2564 = vmatpush1.xpose.msra.mxu0 0.0
      %2565 = vmatprep.subr.mxu0 0.0
      %2566 = vmatpush1.xpose.msra.mxu0 0.0
      %2567 = vmatprep.subr.mxu0 0.0
      %2568 = vmatpush1.xpose.msra.mxu0 0.0
      %2569 = vmatprep.subr.mxu0 0.0
      %2570 = vmatpush1.xpose.msra.mxu0 0.0
      %2571 = vmatprep.subr.mxu0 0.0
      %2572 = vmatpush1.xpose.msra.mxu0 0.0
      %2573 = vmatprep.subr.mxu0 0.0
      %2574 = vmatpush1.xpose.msra.mxu0 0.0
      %2575 = vmatprep.subr.mxu0 0.0
      %2576 = vmatpush1.xpose.msra.mxu0 0.0
      %2577 = vmatprep.subr.mxu0 0.0
      %2578 = vmatpush1.xpose.msra.mxu0 0.0
      %2579 = vmatprep.subr.mxu0 0.0
      %2580 = vmatpush1.xpose.msra.mxu0 0.0
      %2581 = vmatprep.subr.mxu0 0.0
      %2582 = vmatpush1.xpose.msra.mxu0 0.0
      %2583 = vmatprep.subr.mxu0 0.0
      %2584 = vmatpush1.xpose.msra.mxu0 0.0
      %2585 = vmatprep.subr.mxu0 0.0
      %2586 = vmatpush1.xpose.msra.mxu0 0.0
      %2587 = vmatprep.subr.mxu0 0.0
      %2588 = vmatpush1.xpose.msra.mxu0 0.0
      %2589 = vmatprep.subr.mxu0 0.0
      %2590 = vmatpush1.xpose.msra.mxu0 0.0
      %2591 = vmatprep.subr.mxu0 0.0
      %2592 = vmatpush1.xpose.msra.mxu0 0.0
      %2593 = vmatprep.subr.mxu0 0.0
      %2594 = vmatpush1.xpose.msra.mxu0 0.0
      %2595 = vmatprep.subr.mxu0 0.0
      %2596 = vmatpush1.xpose.msra.mxu0 0.0
      %2597 = vmatprep.subr.mxu0 0.0
      %2598 = vmatpush1.xpose.msra.mxu0 0.0
      %2599 = vmatprep.subr.mxu0 0.0
      %2600 = vmatpush1.xpose.msra.mxu0 0.0
      %2601 = vmatprep.subr.mxu0 0.0
      %2602 = vmatpush1.xpose.msra.mxu0 0.0
      %2603 = vmatprep.mubr.f32.mxu0 0.0
      %2604 = vmatmul.mubr.f32.gmra.mrb[0].mxu0 %v2534
      %v2605 = vpop.f32.mrb[0].mxu0
      %v2606 = vadd.f32 0.0, %v2605
      %v2607 = vpop.f32.mrb[0].mxu0
      %2608 = vdwg.mxu0
      %v2609 = vmul.f32 %v2606, 0.35355338
      %v2610 = vsel %vm731, %v2609, -inf
      %2611 = vmax.xlane.f32.xlu0 %v2610
      %v2612 = vpop.xlane.xlu0 %2611
      %v2613 = vsub.f32 %v2609, %v2612
      %v2614 = vmul.f32 %v2613, 1.442695
      %v2615 = vpow.pop %v2614
      %v2616 = vsel %vm731, %v2615, 0.0
      %2617 = vadd.xlane.f32.xlu0 %v2616
      %v2618 = vpop.xlane.xlu0 %2617
      %v2619 = vrcp.pop %v2618
      %v2620 = vmul.f32 %v2615, %v2619
      %v2622 = vsel %vm731, %v2620, 0
      %2624 = vmatprep.subr.mxu0 0.0
      %2625 = vmatpush1.msra.mxu0 %v2369
      %2626 = vmatprep.subr.mxu0 0.0
      %2627 = vmatpush1.msra.mxu0 0.0
      %2628 = vmatprep.subr.mxu0 0.0
      %2629 = vmatpush1.msra.mxu0 0.0
      %2630 = vmatprep.subr.mxu0 0.0
      %2631 = vmatpush1.msra.mxu0 0.0
      %2632 = vmatprep.subr.mxu0 0.0
      %2633 = vmatpush1.msra.mxu0 0.0
      %2634 = vmatprep.subr.mxu0 0.0
      %2635 = vmatpush1.msra.mxu0 0.0
      %2636 = vmatprep.subr.mxu0 0.0
      %2637 = vmatpush1.msra.mxu0 0.0
      %2638 = vmatprep.subr.mxu0 0.0
      %2639 = vmatpush1.msra.mxu0 0.0
      %2640 = vmatprep.subr.mxu0 0.0
      %2641 = vmatpush1.msra.mxu0 0.0
      %2642 = vmatprep.subr.mxu0 0.0
      %2643 = vmatpush1.msra.mxu0 0.0
      %2644 = vmatprep.subr.mxu0 0.0
      %2645 = vmatpush1.msra.mxu0 0.0
      %2646 = vmatprep.subr.mxu0 0.0
      %2647 = vmatpush1.msra.mxu0 0.0
      %2648 = vmatprep.subr.mxu0 0.0
      %2649 = vmatpush1.msra.mxu0 0.0
      %2650 = vmatprep.subr.mxu0 0.0
      %2651 = vmatpush1.msra.mxu0 0.0
      %2652 = vmatprep.subr.mxu0 0.0
      %2653 = vmatpush1.msra.mxu0 0.0
      %2654 = vmatprep.subr.mxu0 0.0
      %2655 = vmatpush1.msra.mxu0 0.0
      %2656 = vmatprep.subr.mxu0 0.0
      %2657 = vmatpush1.msra.mxu0 0.0
      %2658 = vmatprep.subr.mxu0 0.0
      %2659 = vmatpush1.msra.mxu0 0.0
      %2660 = vmatprep.subr.mxu0 0.0
      %2661 = vmatpush1.msra.mxu0 0.0
      %2662 = vmatprep.subr.mxu0 0.0
      %2663 = vmatpush1.msra.mxu0 0.0
      %2664 = vmatprep.subr.mxu0 0.0
      %2665 = vmatpush1.msra.mxu0 0.0
      %2666 = vmatprep.subr.mxu0 0.0
      %2667 = vmatpush1.msra.mxu0 0.0
      %2668 = vmatprep.subr.mxu0 0.0
      %2669 = vmatpush1.msra.mxu0 0.0
      %2670 = vmatprep.subr.mxu0 0.0
      %2671 = vmatpush1.msra.mxu0 0.0
      %2672 = vmatprep.subr.mxu0 0.0
      %2673 = vmatpush1.msra.mxu0 0.0
      %2674 = vmatprep.subr.mxu0 0.0
      %2675 = vmatpush1.msra.mxu0 0.0
      %2676 = vmatprep.subr.mxu0 0.0
      %2677 = vmatpush1.msra.mxu0 0.0
      %2678 = vmatprep.subr.mxu0 0.0
      %2679 = vmatpush1.msra.mxu0 0.0
      %2680 = vmatprep.subr.mxu0 0.0
      %2681 = vmatpush1.msra.mxu0 0.0
      %2682 = vmatprep.subr.mxu0 0.0
      %2683 = vmatpush1.msra.mxu0 0.0
      %2684 = vmatprep.subr.mxu0 0.0
      %2685 = vmatpush1.msra.mxu0 0.0
      %2686 = vmatprep.subr.mxu0 0.0
      %2687 = vmatpush1.msra.mxu0 0.0
      %2688 = vmatprep.mubr.f32.mxu0 0.0
      %2689 = vmatmul.mubr.f32.gmra.mrb[0].mxu0 %v2622
      %v2690 = vpop.f32.mrb[0].mxu0
      %v2691 = vadd.f32 0.0, %v2690
      %v2692 = vpop.f32.mrb[0].mxu0
      %2693 = vdwg.mxu0
      %v2694 = vpack.c.bf16 %v2691, %v2530
      %s2695 = scalar_lea.vmem %s6, 12
      %v2696 = vld [vmem:[%s2695] sm:$0xf]
      %v2698 = vsel %vm731, %v2694, 0
      %v2701 = vsel %vm1558, %v2696, 0
      %2703 = vmatprep.subr.bf16.mxu0 0
      %2704 = vmatpush1.bf16.msra.mxu0 %v2701
      %2705 = vmatprep.subr.bf16.mxu0 0
      %2706 = vmatpush1.bf16.msra.mxu0 0
      %2707 = vmatprep.subr.bf16.mxu0 0
      %2708 = vmatpush1.bf16.msra.mxu0 0
      %2709 = vmatprep.subr.bf16.mxu0 0
      %2710 = vmatpush1.bf16.msra.mxu0 0
      %2711 = vmatprep.subr.bf16.mxu0 0
      %2712 = vmatpush1.bf16.msra.mxu0 0
      %2713 = vmatprep.subr.bf16.mxu0 0
      %2714 = vmatpush1.bf16.msra.mxu0 0
      %2715 = vmatprep.subr.bf16.mxu0 0
      %2716 = vmatpush1.bf16.msra.mxu0 0
      %2717 = vmatprep.subr.bf16.mxu0 0
      %2718 = vmatpush1.bf16.msra.mxu0 0
      %2719 = vmatprep.subr.bf16.mxu0 0
      %2720 = vmatpush1.bf16.msra.mxu0 0
      %2721 = vmatprep.subr.bf16.mxu0 0
      %2722 = vmatpush1.bf16.msra.mxu0 0
      %2723 = vmatprep.subr.bf16.mxu0 0
      %2724 = vmatpush1.bf16.msra.mxu0 0
      %2725 = vmatprep.subr.bf16.mxu0 0
      %2726 = vmatpush1.bf16.msra.mxu0 0
      %2727 = vmatprep.subr.bf16.mxu0 0
      %2728 = vmatpush1.bf16.msra.mxu0 0
      %2729 = vmatprep.subr.bf16.mxu0 0
      %2730 = vmatpush1.bf16.msra.mxu0 0
      %2731 = vmatprep.subr.bf16.mxu0 0
      %2732 = vmatpush1.bf16.msra.mxu0 0
      %2733 = vmatprep.subr.bf16.mxu0 0
      %2734 = vmatpush1.bf16.msra.mxu0 0
      %2735 = vmatprep.mubr.bf16.mxu0 0
      %2736 = vmatmul.mubr.bf16.gmra.mrb[0].mxu0 %v2698
      %v2737 = vpop.f32.mrb[0].mxu0
      %v2738 = vadd.f32 0.0, %v2737
      %v2739 = vpop.f32.mrb[0].mxu0
      %v2740 = vpop.f32.mrb[0].mxu0
      %v2741 = vadd.f32 0.0, %v2740
      %v2742 = vpop.f32.mrb[0].mxu0
      %2743 = vdwg.mxu0
      %v2744 = vadd.f32 %v2196, %v2738
      %v2745 = vadd.f32 %v2197, %v2741
      %v2746 = vadd.f32 %v508, %v2744
      %v2747 = vadd.f32 %v509, %v2745
      %v2748 = vld [vmem:[%s7] sm:$0x1]
      %v2750 = vlaneseq
      %v2751 = vshrl.u32 %v2750, 7
      %v2752 = vsub.s32 0, %v2751
      %v2753 = vrot.slane %v2748, %v2752
      %v2755 = vadd.f32 %v2746, %v2753
      %v2756 = vadd.f32 %v2747, %v2753
      %v2757 = vld [vmem:[%s8] sm:$0x1]
      %v2758 = vld [vmem:[%s9] sm:$0x1]
      %v2759 = vsel %vm512, %v2755, 0.0
      %2760 = vadd.xlane.f32.xlu0 %v2759
      %v2761 = vpop.xlane.xlu0 %2760
      %v2762 = vsel %vm512, %v2756, 0.0
      %2763 = vadd.xlane.f32.xlu0 %v2762
      %v2764 = vpop.xlane.xlu0 %2763
      %v2765 = vmul.f32 %v2761, %v519
      %v2766 = vmul.f32 %v2764, %v519
      %v2767 = vsub.f32 %v2755, %v2765
      %v2768 = vsub.f32 %v2756, %v2766
      %v2769 = vmul.f32 %v2767, %v2767
      %v2770 = vmul.f32 %v2768, %v2768
      %v2771 = vsel %vm512, %v2769, 0.0
      %2772 = vadd.xlane.f32.xlu0 %v2771
      %v2773 = vpop.xlane.xlu0 %2772
      %v2774 = vsel %vm512, %v2770, 0.0
      %2775 = vadd.xlane.f32.xlu0 %v2774
      %v2776 = vpop.xlane.xlu0 %2775
      %v2777 = vmul.f32 %v2773, %v519
      %v2778 = vmul.f32 %v2776, %v519
      %v2779 = vadd.f32 %v2777, 1e-05
      %v2780 = vadd.f32 %v2778, 1e-05
      %v2781 = vrsqrt.pop %v2779
      %v2782 = vrsqrt.pop %v2780
      %v2783 = vmul.f32 %v2767, %v2781
      %v2784 = vmul.f32 %v2768, %v2782
      %v2786 = vlaneseq
      %v2787 = vshrl.u32 %v2786, 7
      %v2788 = vsub.s32 0, %v2787
      %v2789 = vrot.slane %v2757, %v2788
      %v2791 = vmul.f32 %v2783, %v2789
      %v2792 = vmul.f32 %v2784, %v2789
      %v2794 = vlaneseq
      %v2795 = vshrl.u32 %v2794, 7
      %v2796 = vsub.s32 0, %v2795
      %v2797 = vrot.slane %v2758, %v2796
      %v2799 = vadd.f32 %v2791, %v2797
      %v2800 = vadd.f32 %v2792, %v2797
      %v2801 = vpack.c.bf16 %v2800, %v2799
      %v2802 = vld [vmem:[%s10] sm:$0xf]
      %v2803 = vld [vmem:[%s10 + $0x4] sm:$0xf]
      %v2804 = vld [vmem:[%s10 + $0x8] sm:$0xf]
      %v2805 = vld [vmem:[%s10 + $0xc] sm:$0xf]
      %v2806 = vld [vmem:[%s11] sm:$0x1]
      %v2808 = vlaneseq
      %v2809 = vshrl.u32 %v2808, 7
      %v2810 = vsub.s32 0, %v2809
      %v2811 = vrot.slane %v2806, %v2810
      %v2817 = vunpack.c.l.b16 %v2802
      %v2818 = vunpack.c.l.b16 %v2803
      %v2819 = vunpack.c.l.b16 %v2804
      %v2820 = vunpack.c.l.b16 %v2805
      %v2821 = vpack.c.b16 %v2818, %v2817
      %v2822 = vpack.c.b16 %v2820, %v2819
      %v2826 = vsel %vm512, %v2801, 0
      %2828 = vmatprep.subr.bf16.mxu0 0
      %2829 = vmatpush1.bf16.msra.mxu0 %v2821
      %2830 = vmatprep.subr.bf16.mxu0 0
      %2831 = vmatpush1.bf16.msra.mxu0 %v2822
      %2832 = vmatprep.subr.bf16.mxu0 0
      %2833 = vmatpush1.bf16.msra.mxu0 0
      %2834 = vmatprep.subr.bf16.mxu0 0
      %2835 = vmatpush1.bf16.msra.mxu0 0
      %2836 = vmatprep.subr.bf16.mxu0 0
      %2837 = vmatpush1.bf16.msra.mxu0 0
      %2838 = vmatprep.subr.bf16.mxu0 0
      %2839 = vmatpush1.bf16.msra.mxu0 0
      %2840 = vmatprep.subr.bf16.mxu0 0
      %2841 = vmatpush1.bf16.msra.mxu0 0
      %2842 = vmatprep.subr.bf16.mxu0 0
      %2843 = vmatpush1.bf16.msra.mxu0 0
      %2844 = vmatprep.subr.bf16.mxu0 0
      %2845 = vmatpush1.bf16.msra.mxu0 0
      %2846 = vmatprep.subr.bf16.mxu0 0
      %2847 = vmatpush1.bf16.msra.mxu0 0
      %2848 = vmatprep.subr.bf16.mxu0 0
      %2849 = vmatpush1.bf16.msra.mxu0 0
      %2850 = vmatprep.subr.bf16.mxu0 0
      %2851 = vmatpush1.bf16.msra.mxu0 0
      %2852 = vmatprep.subr.bf16.mxu0 0
      %2853 = vmatpush1.bf16.msra.mxu0 0
      %2854 = vmatprep.subr.bf16.mxu0 0
      %2855 = vmatpush1.bf16.msra.mxu0 0
      %2856 = vmatprep.subr.bf16.mxu0 0
      %2857 = vmatpush1.bf16.msra.mxu0 0
      %2858 = vmatprep.subr.bf16.mxu0 0
      %2859 = vmatpush1.bf16.msra.mxu0 0
      %2860 = vmatprep.mubr.bf16.mxu0 0
      %2861 = vmatmul.mubr.bf16.gmra.mrb[0].mxu0 %v2826
      %v2862 = vpop.f32.mrb[0].mxu0
      %v2863 = vadd.f32 %v2811, %v2862
      %v2864 = vpop.f32.mrb[0].mxu0
      %v2865 = vpop.f32.mrb[0].mxu0
      %v2866 = vadd.f32 %v2811, %v2865
      %v2867 = vpop.f32.mrb[0].mxu0
      %2868 = vdwg.mxu0
      %v2869 = vmul.f32 %v2863, %v2863
      %v2870 = vmul.f32 %v2866, %v2866
      %v2871 = vmul.f32 %v2863, %v2869
      %v2872 = vmul.f32 %v2866, %v2870
      %v2873 = vmul.f32 %v2871, 0.044715
      %v2874 = vmul.f32 %v2872, 0.044715
      %v2875 = vadd.f32 %v2863, %v2873
      %v2876 = vadd.f32 %v2866, %v2874
      %v2877 = vmul.f32 %v2875, 0.7978846
      %v2878 = vmul.f32 %v2876, 0.7978846
      %v2879 = vtanh.pop %v2877
      %v2880 = vtanh.pop %v2878
      %v2881 = vadd.f32 %v2879, 1.0
      %v2882 = vadd.f32 %v2880, 1.0
      %v2883 = vmul.f32 %v2881, 0.5
      %v2884 = vmul.f32 %v2882, 0.5
      %v2885 = vmul.f32 %v2863, %v2883
      %v2886 = vmul.f32 %v2866, %v2884
      %v2887 = vpack.c.bf16 %v2886, %v2885
      %v2888 = vld [vmem:[%s12] sm:$0xf]
      %v2889 = vld [vmem:[%s12 + $0x4] sm:$0xf]
      %v2890 = vld [vmem:[%s12 + $0x8] sm:$0xf]
      %v2891 = vld [vmem:[%s12 + $0xc] sm:$0xf]
      %v2892 = vld [vmem:[%s12 + $0x10] sm:$0xf]
      %v2893 = vld [vmem:[%s12 + $0x14] sm:$0xf]
      %v2894 = vld [vmem:[%s12 + $0x18] sm:$0xf]
      %v2895 = vld [vmem:[%s12 + $0x1c] sm:$0xf]
      %v2896 = vld [vmem:[%s12 + $0x20] sm:$0xf]
      %v2897 = vld [vmem:[%s12 + $0x24] sm:$0xf]
      %v2898 = vld [vmem:[%s12 + $0x28] sm:$0xf]
      %v2899 = vld [vmem:[%s12 + $0x2c] sm:$0xf]
      %v2900 = vld [vmem:[%s12 + $0x30] sm:$0xf]
      %v2901 = vld [vmem:[%s12 + $0x34] sm:$0xf]
      %v2902 = vld [vmem:[%s12 + $0x38] sm:$0xf]
      %v2903 = vld [vmem:[%s12 + $0x3c] sm:$0xf]
      %v2904 = vld [vmem:[%s13] sm:$0x1]
      %v2906 = vlaneseq
      %v2907 = vshrl.u32 %v2906, 7
      %v2908 = vsub.s32 0, %v2907
      %v2909 = vrot.slane %v2904, %v2908
      %v2927 = vunpack.c.l.b16 %v2888
      %v2928 = vunpack.c.l.b16 %v2889
      %v2929 = vunpack.c.l.b16 %v2890
      %v2930 = vunpack.c.l.b16 %v2891
      %v2931 = vunpack.c.l.b16 %v2892
      %v2932 = vunpack.c.l.b16 %v2893
      %v2933 = vunpack.c.l.b16 %v2894
      %v2934 = vunpack.c.l.b16 %v2895
      %v2935 = vunpack.c.l.b16 %v2896
      %v2936 = vunpack.c.l.b16 %v2897
      %v2937 = vunpack.c.l.b16 %v2898
      %v2938 = vunpack.c.l.b16 %v2899
      %v2939 = vunpack.c.l.b16 %v2900
      %v2940 = vunpack.c.l.b16 %v2901
      %v2941 = vunpack.c.l.b16 %v2902
      %v2942 = vunpack.c.l.b16 %v2903
      %v2943 = vpack.c.b16 %v2928, %v2927
      %v2944 = vpack.c.b16 %v2930, %v2929
      %v2945 = vpack.c.b16 %v2932, %v2931
      %v2946 = vpack.c.b16 %v2934, %v2933
      %v2947 = vpack.c.b16 %v2936, %v2935
      %v2948 = vpack.c.b16 %v2938, %v2937
      %v2949 = vpack.c.b16 %v2940, %v2939
      %v2950 = vpack.c.b16 %v2942, %v2941
      %2959 = vmatprep.subr.bf16.mxu0 0
      %2960 = vmatpush1.bf16.msra.mxu0 %v2943
      %2961 = vmatprep.subr.bf16.mxu0 0
      %2962 = vmatpush1.bf16.msra.mxu0 %v2944
      %2963 = vmatprep.subr.bf16.mxu0 0
      %2964 = vmatpush1.bf16.msra.mxu0 %v2945
      %2965 = vmatprep.subr.bf16.mxu0 0
      %2966 = vmatpush1.bf16.msra.mxu0 %v2946
      %2967 = vmatprep.subr.bf16.mxu0 0
      %2968 = vmatpush1.bf16.msra.mxu0 %v2947
      %2969 = vmatprep.subr.bf16.mxu0 0
      %2970 = vmatpush1.bf16.msra.mxu0 %v2948
      %2971 = vmatprep.subr.bf16.mxu0 0
      %2972 = vmatpush1.bf16.msra.mxu0 %v2949
      %2973 = vmatprep.subr.bf16.mxu0 0
      %2974 = vmatpush1.bf16.msra.mxu0 %v2950
      %2975 = vmatprep.subr.bf16.mxu0 0
      %2976 = vmatpush1.bf16.msra.mxu0 0
      %2977 = vmatprep.subr.bf16.mxu0 0
      %2978 = vmatpush1.bf16.msra.mxu0 0
      %2979 = vmatprep.subr.bf16.mxu0 0
      %2980 = vmatpush1.bf16.msra.mxu0 0
      %2981 = vmatprep.subr.bf16.mxu0 0
      %2982 = vmatpush1.bf16.msra.mxu0 0
      %2983 = vmatprep.subr.bf16.mxu0 0
      %2984 = vmatpush1.bf16.msra.mxu0 0
      %2985 = vmatprep.subr.bf16.mxu0 0
      %2986 = vmatpush1.bf16.msra.mxu0 0
      %2987 = vmatprep.subr.bf16.mxu0 0
      %2988 = vmatpush1.bf16.msra.mxu0 0
      %2989 = vmatprep.subr.bf16.mxu0 0
      %2990 = vmatpush1.bf16.msra.mxu0 0
      %2991 = vmatprep.mubr.bf16.mxu0 0
      %2992 = vmatmul.mubr.bf16.gmra.mrb[0].mxu0 %v2887
      %v2993 = vpop.f32.mrb[0].mxu0
      %v2994 = vadd.f32 %v2909, %v2993
      %v2995 = vpop.f32.mrb[0].mxu0
      %v2996 = vpop.f32.mrb[0].mxu0
      %v2997 = vadd.f32 %v2909, %v2996
      %v2998 = vpop.f32.mrb[0].mxu0
      %2999 = vdwg.mxu0
      %v3000 = vadd.f32 %v2755, %v2994
      %v3001 = vadd.f32 %v2756, %v2997
      %3002 = vst.msk [vmem:[%s505] sm:$0xff] %vm512, %v3000
      %3003 = vst.msk [vmem:[%s505 + $0x8] sm:$0xff] %vm512, %v3001
      %s3004 = smul.u32 2, %s30
      %p3005 = scmp.lt.s32.totalorder %s29, 1
      %s3006 = scalar_select %p3005, %s29, 1
      %p3007 = scmp.lt.s32.totalorder %s3004, 1
      %s3008 = scalar_select %p3007, %s3004, 1
      %s3009 = smul.addr %s3006, 2
      %s3010 = sadd.s32 %s3008, %s3009
      %s3011 = smul.addr %s3010, 8
      %s3012 = scalar_lea.vmem %s14, %s3011
      // Predicated region
      $region77: #{hip_block_forward.4} parent=75 // pred_check
        %p3013 = pneg %p358
      $region78: #{hip_block_forward.4} parent=75 // pred_check_branch
        %3015 = sbr.rel (%p3013) target = $region80
      $region79: #{hip_block_forward.4} parent=75 // pred_region
        %s3016 = smul.u32 2, %s30
      $region80: #{hip_block_forward.4} parent=75 // pred_fallthru
        _
    $region76: #{hip_block_forward.4} parent=5 // pred_fallthru
      _
    %p3017 = scmp.le.s32.totalorder 2, %s20
    // Predicated region
    $region81: #{hip_block_forward.4} parent=5 // pred_check
      %p3018 = pneg %p3017
    $region82: #{hip_block_forward.4} parent=5 // pred_check_branch
      %3020 = sbr.rel (%p3018) target = $region84
    $region83: #{hip_block_forward.4} parent=5 // pred_region
      %s3021 = ssub.s32 %s20, 2
      // Predicated region
      $region85: #{hip_block_forward.4} parent=83 // pred_check
        %p3022 = pneg %p364
      $region86: #{hip_block_forward.4} parent=83 // pred_check_branch
        %3024 = sbr.rel (%p3022) target = $region88
      $region87: #{hip_block_forward.4} parent=83 // pred_region
        %s3025 = smul.u32 2, %s32
        %p3026 = scmp.lt.s32.totalorder %s31, 1
        %s3027 = scalar_select %p3026, %s31, 1
        %p3028 = scmp.lt.s32.totalorder %s3025, 1
        %s3029 = scalar_select %p3028, %s3025, 1
        %s3030 = smul.addr %s3027, 2
        %s3031 = sadd.s32 %s3029, %s3030
        %s3032 = smul.addr %s3031, 8
        %s3033 = scalar_lea.vmem %s14, %s3032
      $region88: #{hip_block_forward.4} parent=83 // pred_fallthru
        _
    $region84: #{hip_block_forward.4} parent=5 // pred_fallthru
      _
  $region6: #{hip_block_forward.4} parent=0 // loop_footer
    %s24 = sadd.s32 1, %s20
  $region7: #{hip_block_forward.4} parent=0 // loop_footer_branch
    %19 = sbr.rel target = $region3
  $region8: #{hip_block_forward.4} parent=0 // loop_exit
    _

// kernel: hip_block_forward.5
$region0: #{hip_block_forward.5}
  #allocation0 [shape = 'u32[]', space=smem, size = 0x4, offset = 0x4, fixed_abs, tag = 'smem constant byte address 0x4 - core index']
  #allocation1 [shape = 'u32[144,128]{1,0:T(1,128)}', space=vmem, size = 0x12000, scoped, tag = 'internal scratch']
  %s0 = inlined_call_operand.vmem [shape: f32[2,2,8,32], index: 0, kind: input, shape index: {}]
  %s1 = inlined_call_operand.vmem [shape: f32[1,32], index: 1, kind: input, shape index: {}]
  %s2 = inlined_call_operand.vmem [shape: f32[1,32], index: 2, kind: input, shape index: {}]
  %s3 = inlined_call_operand.vmem [shape: bf16[4,32,8], index: 3, kind: input, shape index: {}]
  %s4 = inlined_call_operand.vmem [shape: bf16[4,32,8], index: 4, kind: input, shape index: {}]
  %s5 = inlined_call_operand.vmem [shape: bf16[4,32,8], index: 5, kind: input, shape index: {}]
  %s6 = inlined_call_operand.vmem [shape: bf16[4,8,32], index: 6, kind: input, shape index: {}]
  %s7 = inlined_call_operand.vmem [shape: f32[1,32], index: 7, kind: input, shape index: {}]
  %s8 = inlined_call_operand.vmem [shape: f32[1,32], index: 8, kind: input, shape index: {}]
  %s9 = inlined_call_operand.vmem [shape: f32[1,32], index: 9, kind: input, shape index: {}]
  %s10 = inlined_call_operand.vmem [shape: bf16[32,128], index: 10, kind: input, shape index: {}]
  %s11 = inlined_call_operand.vmem [shape: f32[1,128], index: 11, kind: input, shape index: {}]
  %s12 = inlined_call_operand.vmem [shape: bf16[128,32], index: 12, kind: input, shape index: {}]
  %s13 = inlined_call_operand.vmem [shape: f32[1,32], index: 13, kind: input, shape index: {}]
  %s14 = inlined_call_operand.hbm [shape: f32[2,2,8,32], index: 14, kind: output, shape index: {}]
  %s15 = sld [smem:[#allocation0]]
  $region89: #{hip_block_forward.5} parent=0
    _
  %s17 = ssub.s32 1, %s15
  %s18 = scalar_select 0, %s17, %s15
  $region1: #{hip_block_forward.5} parent=0
    #allocation2 [shape = 'u8[16384]{0}', space=vmem, size = 0x4000, scoped, tag = 'output window, operand 0']
    #allocation3 [shape = 's32[2]{0}', space=sflag, size = 0x8, scoped, tag = 'scoped memory for hip_block_forward.5']
    %19 = vsyncpa [#allocation3], 0
    %s20 = scalar_lea.sflag [#allocation3], 1
    %21 = vsyncpa %s20, 0
    loop: start=0, step=1, limit=4
    $region2: #{hip_block_forward.5} parent=1 // loop_pre_header
      _
    $region3: #{hip_block_forward.5} parent=1 // loop_header
      %s23 = sphi 0, %s27
      %p24 = scmp.ge.s32.totalorder %s23, 4
      %s30 = sphi 0, %s42
      %s31 = sphi 0, %s38
      %s32 = sphi 0, %s30
      %s33 = sphi 0, %s31
      %s34 = sphi 0, %s32
      %s35 = sphi 0, %s33
      %s47 = sphi 0, %s49
      %s50 = sphi 0, %s47
      %s51 = sphi 0, %s50
      %s67 = sphi 0, %s51
      %s71 = sphi 0, %s71
      %s73 = sphi 0, %s71
      %s74 = sphi 0, %s73
      %s88 = sphi 0, %s74
      %s92 = sphi 0, %s92
      %s94 = sphi 0, %s92
      %s95 = sphi 0, %s94
      %s109 = sphi 0, %s95
      %s113 = sphi 0, %s113
      %s115 = sphi 0, %s113
      %s116 = sphi 0, %s115
      %s130 = sphi 0, %s116
      %s134 = sphi 0, %s134
      %s136 = sphi 0, %s134
      %s137 = sphi 0, %s136
      %s151 = sphi 0, %s137
      %s155 = sphi 0, %s155
      %s157 = sphi 0, %s155
      %s158 = sphi 0, %s157
      %s172 = sphi 0, %s158
      %s176 = sphi 0, %s176
      %s178 = sphi 0, %s176
      %s179 = sphi 0, %s178
      %s193 = sphi 0, %s179
      %s197 = sphi 0, %s197
      %s199 = sphi 0, %s197
      %s200 = sphi 0, %s199
      %s214 = sphi 0, %s200
      %s218 = sphi 0, %s218
      %s220 = sphi 0, %s218
      %s221 = sphi 0, %s220
      %s235 = sphi 0, %s221
      %s239 = sphi 0, %s239
      %s241 = sphi 0, %s239
      %s242 = sphi 0, %s241
      %s256 = sphi 0, %s242
      %s260 = sphi 0, %s260
      %s262 = sphi 0, %s260
      %s263 = sphi 0, %s262
      %s277 = sphi 0, %s263
      %s281 = sphi 0, %s281
      %s283 = sphi 0, %s281
      %s284 = sphi 0, %s283
      %s298 = sphi 0, %s284
      %s302 = sphi 0, %s302
      %s304 = sphi 0, %s302
      %s305 = sphi 0, %s304
      %s319 = sphi 0, %s305
      %s323 = sphi 0, %s323
      %s325 = sphi 0, %s323
      %s326 = sphi 0, %s325
      %s340 = sphi 0, %s326
      %s348 = sphi 0, %s350
      %s351 = sphi 0, %s348
      %s352 = sphi 0, %s351
      %s368 = sphi 0, %s352
    $region4: #{hip_block_forward.5} parent=1 // loop_header_branch
      %26 = sbr.rel (%p24) target = $region8
    $region5: #{hip_block_forward.5} parent=1 // loop_body
      %s28 = ssub.s32 %s23, 1
      %s29 = ssub.s32 %s23, 2
      %s36 = sadd.s32 1, %s31
      %p37 = scmp.ge.s32.totalorder %s36, 1
      %s38 = scalar_select %p37, 0, %s36
      %s39 = sadd.s32 1, %s30
      %s40 = scalar_select %p37, %s39, %s30
      %p41 = scmp.ge.s32.totalorder %s40, 2
      %s42 = scalar_select %p41, 0, %s40
      %s43 = ssub.s32 %s30, %s42
      %s44 = ssub.s32 %s31, %s38
      %s45 = sor.u32 %s43, %s44
      %p46 = scmp.eq.s32.totalorder %s45, 0
      %s48 = sadd.s32 %s47, 1
      %s49 = scalar_select %p46, %s47, %s48
      %p52 = pneg %p46
      %p53 = scmp.eq.s32.totalorder %s23, 1
      %p54 = por %p52, %p53
      %p55 = scmp.ne.s32.totalorder %s47, %s50
      %p56 = scmp.eq.s32.totalorder %s23, 0
      %p57 = por %p55, %p56
      %p58 = scmp.ne.s32.totalorder %s47, %s50
      %p59 = scmp.eq.s32.totalorder %s28, 1
      %p60 = por %p58, %p59
      %p61 = scmp.ne.s32.totalorder %s50, %s51
      %p62 = scmp.eq.s32.totalorder %s28, 0
      %p63 = por %p61, %p62
      %p64 = scmp.ne.s32.totalorder %s50, %s51
      %p65 = scmp.eq.s32.totalorder %s29, 1
      %p66 = por %p64, %p65
      %p68 = scmp.ne.s32.totalorder %s51, %s67
      %p69 = scmp.eq.s32.totalorder %s29, 0
      %p70 = por %p68, %p69
      %s72 = sadd.s32 %s71, 1
      %p75 = scmp.eq.s32.totalorder %s23, 1
      %p76 = scmp.ne.s32.totalorder %s71, %s73
      %p77 = scmp.eq.s32.totalorder %s23, 0
      %p78 = por %p76, %p77
      %p79 = scmp.ne.s32.totalorder %s71, %s73
      %p80 = scmp.eq.s32.totalorder %s28, 1
      %p81 = por %p79, %p80
      %p82 = scmp.ne.s32.totalorder %s73, %s74
      %p83 = scmp.eq.s32.totalorder %s28, 0
      %p84 = por %p82, %p83
      %p85 = scmp.ne.s32.totalorder %s73, %s74
      %p86 = scmp.eq.s32.totalorder %s29, 1
      %p87 = por %p85, %p86
      %p89 = scmp.ne.s32.totalorder %s74, %s88
      %p90 = scmp.eq.s32.totalorder %s29, 0
      %p91 = por %p89, %p90
      %s93 = sadd.s32 %s92, 1
      %p96 = scmp.eq.s32.totalorder %s23, 1
      %p97 = scmp.ne.s32.totalorder %s92, %s94
      %p98 = scmp.eq.s32.totalorder %s23, 0
      %p99 = por %p97, %p98
      %p100 = scmp.ne.s32.totalorder %s92, %s94
      %p101 = scmp.eq.s32.totalorder %s28, 1
      %p102 = por %p100, %p101
      %p103 = scmp.ne.s32.totalorder %s94, %s95
      %p104 = scmp.eq.s32.totalorder %s28, 0
      %p105 = por %p103, %p104
      %p106 = scmp.ne.s32.totalorder %s94, %s95
      %p107 = scmp.eq.s32.totalorder %s29, 1
      %p108 = por %p106, %p107
      %p110 = scmp.ne.s32.totalorder %s95, %s109
      %p111 = scmp.eq.s32.totalorder %s29, 0
      %p112 = por %p110, %p111
      %s114 = sadd.s32 %s113, 1
      %p117 = scmp.eq.s32.totalorder %s23, 1
      %p118 = scmp.ne.s32.totalorder %s113, %s115
      %p119 = scmp.eq.s32.totalorder %s23, 0
      %p120 = por %p118, %p119
      %p121 = scmp.ne.s32.totalorder %s113, %s115
      %p122 = scmp.eq.s32.totalorder %s28, 1
      %p123 = por %p121, %p122
      %p124 = scmp.ne.s32.totalorder %s115, %s116
      %p125 = scmp.eq.s32.totalorder %s28, 0
      %p126 = por %p124, %p125
      %p127 = scmp.ne.s32.totalorder %s115, %s116
      %p128 = scmp.eq.s32.totalorder %s29, 1
      %p129 = por %p127, %p128
      %p131 = scmp.ne.s32.totalorder %s116, %s130
      %p132 = scmp.eq.s32.totalorder %s29, 0
      %p133 = por %p131, %p132
      %s135 = sadd.s32 %s134, 1
      %p138 = scmp.eq.s32.totalorder %s23, 1
      %p139 = scmp.ne.s32.totalorder %s134, %s136
      %p140 = scmp.eq.s32.totalorder %s23, 0
      %p141 = por %p139, %p140
      %p142 = scmp.ne.s32.totalorder %s134, %s136
      %p143 = scmp.eq.s32.totalorder %s28, 1
      %p144 = por %p142, %p143
      %p145 = scmp.ne.s32.totalorder %s136, %s137
      %p146 = scmp.eq.s32.totalorder %s28, 0
      %p147 = por %p145, %p146
      %p148 = scmp.ne.s32.totalorder %s136, %s137
      %p149 = scmp.eq.s32.totalorder %s29, 1
      %p150 = por %p148, %p149
      %p152 = scmp.ne.s32.totalorder %s137, %s151
      %p153 = scmp.eq.s32.totalorder %s29, 0
      %p154 = por %p152, %p153
      %s156 = sadd.s32 %s155, 1
      %p159 = scmp.eq.s32.totalorder %s23, 1
      %p160 = scmp.ne.s32.totalorder %s155, %s157
      %p161 = scmp.eq.s32.totalorder %s23, 0
      %p162 = por %p160, %p161
      %p163 = scmp.ne.s32.totalorder %s155, %s157
      %p164 = scmp.eq.s32.totalorder %s28, 1
      %p165 = por %p163, %p164
      %p166 = scmp.ne.s32.totalorder %s157, %s158
      %p167 = scmp.eq.s32.totalorder %s28, 0
      %p168 = por %p166, %p167
      %p169 = scmp.ne.s32.totalorder %s157, %s158
      %p170 = scmp.eq.s32.totalorder %s29, 1
      %p171 = por %p169, %p170
      %p173 = scmp.ne.s32.totalorder %s158, %s172
      %p174 = scmp.eq.s32.totalorder %s29, 0
      %p175 = por %p173, %p174
      %s177 = sadd.s32 %s176, 1
      %p180 = scmp.eq.s32.totalorder %s23, 1
      %p181 = scmp.ne.s32.totalorder %s176, %s178
      %p182 = scmp.eq.s32.totalorder %s23, 0
      %p183 = por %p181, %p182
      %p184 = scmp.ne.s32.totalorder %s176, %s178
      %p185 = scmp.eq.s32.totalorder %s28, 1
      %p186 = por %p184, %p185
      %p187 = scmp.ne.s32.totalorder %s178, %s179
      %p188 = scmp.eq.s32.totalorder %s28, 0
      %p189 = por %p187, %p188
      %p190 = scmp.ne.s32.totalorder %s178, %s179
      %p191 = scmp.eq.s32.totalorder %s29, 1
      %p192 = por %p190, %p191
      %p194 = scmp.ne.s32.totalorder %s179, %s193
      %p195 = scmp.eq.s32.totalorder %s29, 0
      %p196 = por %p194, %p195
      %s198 = sadd.s32 %s197, 1
      %p201 = scmp.eq.s32.totalorder %s23, 1
      %p202 = scmp.ne.s32.totalorder %s197, %s199
      %p203 = scmp.eq.s32.totalorder %s23, 0
      %p204 = por %p202, %p203
      %p205 = scmp.ne.s32.totalorder %s197, %s199
      %p206 = scmp.eq.s32.totalorder %s28, 1
      %p207 = por %p205, %p206
      %p208 = scmp.ne.s32.totalorder %s199, %s200
      %p209 = scmp.eq.s32.totalorder %s28, 0
      %p210 = por %p208, %p209
      %p211 = scmp.ne.s32.totalorder %s199, %s200
      %p212 = scmp.eq.s32.totalorder %s29, 1
      %p213 = por %p211, %p212
      %p215 = scmp.ne.s32.totalorder %s200, %s214
      %p216 = scmp.eq.s32.totalorder %s29, 0
      %p217 = por %p215, %p216
      %s219 = sadd.s32 %s218, 1
      %p222 = scmp.eq.s32.totalorder %s23, 1
      %p223 = scmp.ne.s32.totalorder %s218, %s220
      %p224 = scmp.eq.s32.totalorder %s23, 0
      %p225 = por %p223, %p224
      %p226 = scmp.ne.s32.totalorder %s218, %s220
      %p227 = scmp.eq.s32.totalorder %s28, 1
      %p228 = por %p226, %p227
      %p229 = scmp.ne.s32.totalorder %s220, %s221
      %p230 = scmp.eq.s32.totalorder %s28, 0
      %p231 = por %p229, %p230
      %p232 = scmp.ne.s32.totalorder %s220, %s221
      %p233 = scmp.eq.s32.totalorder %s29, 1
      %p234 = por %p232, %p233
      %p236 = scmp.ne.s32.totalorder %s221, %s235
      %p237 = scmp.eq.s32.totalorder %s29, 0
      %p238 = por %p236, %p237
      %s240 = sadd.s32 %s239, 1
      %p243 = scmp.eq.s32.totalorder %s23, 1
      %p244 = scmp.ne.s32.totalorder %s239, %s241
      %p245 = scmp.eq.s32.totalorder %s23, 0
      %p246 = por %p244, %p245
      %p247 = scmp.ne.s32.totalorder %s239, %s241
      %p248 = scmp.eq.s32.totalorder %s28, 1
      %p249 = por %p247, %p248
      %p250 = scmp.ne.s32.totalorder %s241, %s242
      %p251 = scmp.eq.s32.totalorder %s28, 0
      %p252 = por %p250, %p251
      %p253 = scmp.ne.s32.totalorder %s241, %s242
      %p254 = scmp.eq.s32.totalorder %s29, 1
      %p255 = por %p253, %p254
      %p257 = scmp.ne.s32.totalorder %s242, %s256
      %p258 = scmp.eq.s32.totalorder %s29, 0
      %p259 = por %p257, %p258
      %s261 = sadd.s32 %s260, 1
      %p264 = scmp.eq.s32.totalorder %s23, 1
      %p265 = scmp.ne.s32.totalorder %s260, %s262
      %p266 = scmp.eq.s32.totalorder %s23, 0
      %p267 = por %p265, %p266
      %p268 = scmp.ne.s32.totalorder %s260, %s262
      %p269 = scmp.eq.s32.totalorder %s28, 1
      %p270 = por %p268, %p269
      %p271 = scmp.ne.s32.totalorder %s262, %s263
      %p272 = scmp.eq.s32.totalorder %s28, 0
      %p273 = por %p271, %p272
      %p274 = scmp.ne.s32.totalorder %s262, %s263
      %p275 = scmp.eq.s32.totalorder %s29, 1
      %p276 = por %p274, %p275
      %p278 = scmp.ne.s32.totalorder %s263, %s277
      %p279 = scmp.eq.s32.totalorder %s29, 0
      %p280 = por %p278, %p279
      %s282 = sadd.s32 %s281, 1
      %p285 = scmp.eq.s32.totalorder %s23, 1
      %p286 = scmp.ne.s32.totalorder %s281, %s283
      %p287 = scmp.eq.s32.totalorder %s23, 0
      %p288 = por %p286, %p287
      %p289 = scmp.ne.s32.totalorder %s281, %s283
      %p290 = scmp.eq.s32.totalorder %s28, 1
      %p291 = por %p289, %p290
      %p292 = scmp.ne.s32.totalorder %s283, %s284
      %p293 = scmp.eq.s32.totalorder %s28, 0
      %p294 = por %p292, %p293
      %p295 = scmp.ne.s32.totalorder %s283, %s284
      %p296 = scmp.eq.s32.totalorder %s29, 1
      %p297 = por %p295, %p296
      %p299 = scmp.ne.s32.totalorder %s284, %s298
      %p300 = scmp.eq.s32.totalorder %s29, 0
      %p301 = por %p299, %p300
      %s303 = sadd.s32 %s302, 1
      %p306 = scmp.eq.s32.totalorder %s23, 1
      %p307 = scmp.ne.s32.totalorder %s302, %s304
      %p308 = scmp.eq.s32.totalorder %s23, 0
      %p309 = por %p307, %p308
      %p310 = scmp.ne.s32.totalorder %s302, %s304
      %p311 = scmp.eq.s32.totalorder %s28, 1
      %p312 = por %p310, %p311
      %p313 = scmp.ne.s32.totalorder %s304, %s305
      %p314 = scmp.eq.s32.totalorder %s28, 0
      %p315 = por %p313, %p314
      %p316 = scmp.ne.s32.totalorder %s304, %s305
      %p317 = scmp.eq.s32.totalorder %s29, 1
      %p318 = por %p316, %p317
      %p320 = scmp.ne.s32.totalorder %s305, %s319
      %p321 = scmp.eq.s32.totalorder %s29, 0
      %p322 = por %p320, %p321
      %s324 = sadd.s32 %s323, 1
      %p327 = scmp.eq.s32.totalorder %s23, 1
      %p328 = scmp.ne.s32.totalorder %s323, %s325
      %p329 = scmp.eq.s32.totalorder %s23, 0
      %p330 = por %p328, %p329
      %p331 = scmp.ne.s32.totalorder %s323, %s325
      %p332 = scmp.eq.s32.totalorder %s28, 1
      %p333 = por %p331, %p332
      %p334 = scmp.ne.s32.totalorder %s325, %s326
      %p335 = scmp.eq.s32.totalorder %s28, 0
      %p336 = por %p334, %p335
      %p337 = scmp.ne.s32.totalorder %s325, %s326
      %p338 = scmp.eq.s32.totalorder %s29, 1
      %p339 = por %p337, %p338
      %p341 = scmp.ne.s32.totalorder %s326, %s340
      %p342 = scmp.eq.s32.totalorder %s29, 0
      %p343 = por %p341, %p342
      %s344 = ssub.s32 %s30, %s42
      %s345 = ssub.s32 %s31, %s38
      %s346 = sor.u32 %s344, %s345
      %p347 = scmp.eq.s32.totalorder %s346, 0
      %s349 = sadd.s32 %s348, 1
      %s350 = scalar_select %p347, %s348, %s349
      %p353 = pneg %p347
      %p354 = scmp.eq.s32.totalorder %s23, 1
      %p355 = por %p353, %p354
      %p356 = scmp.ne.s32.totalorder %s348, %s351
      %p357 = scmp.eq.s32.totalorder %s23, 0
      %p358 = por %p356, %p357
      %p359 = scmp.ne.s32.totalorder %s348, %s351
      %p360 = scmp.eq.s32.totalorder %s28, 1
      %p361 = por %p359, %p360
      %p362 = scmp.ne.s32.totalorder %s351, %s352
      %p363 = scmp.eq.s32.totalorder %s28, 0
      %p364 = por %p362, %p363
      %p365 = scmp.ne.s32.totalorder %s351, %s352
      %p366 = scmp.eq.s32.totalorder %s29, 1
      %p367 = por %p365, %p366
      %p369 = scmp.ne.s32.totalorder %s352, %s368
      %p370 = scmp.eq.s32.totalorder %s29, 0
      %p371 = por %p369, %p370
      %p372 = scmp.le.s32.totalorder 1, %s23
      %p373 = scmp.lt.s32.totalorder %s23, 3
      %p374 = pnand %p372, %p373
      %p375 = pneg %p374
      // Predicated region
      $region9: #{hip_block_forward.5} parent=5 // pred_check
        _
      $region10: #{hip_block_forward.5} parent=5 // pred_check_branch
        %377 = sbr.rel (%p374) target = $region12
      $region11: #{hip_block_forward.5} parent=5 // pred_region
        %s378 = ssub.s32 %s23, 1
        // Predicated region
        $region13: #{hip_block_forward.5} parent=11 // pred_check
          %p379 = pneg %p84
        $region14: #{hip_block_forward.5} parent=11 // pred_check_branch
          %381 = sbr.rel (%p379) target = $region16
        $region15: #{hip_block_forward.5} parent=11 // pred_region
          _
        $region16: #{hip_block_forward.5} parent=11 // pred_fallthru
          _
        // Predicated region
        $region17: #{hip_block_forward.5} parent=11 // pred_check
          %p382 = pneg %p105
        $region18: #{hip_block_forward.5} parent=11 // pred_check_branch
          %384 = sbr.rel (%p382) target = $region20
        $region19: #{hip_block_forward.5} parent=11 // pred_region
          _
        $region20: #{hip_block_forward.5} parent=11 // pred_fallthru
          _
        // Predicated region
        $region21: #{hip_block_forward.5} parent=11 // pred_check
          %p385 = pneg %p126
        $region22: #{hip_block_forward.5} parent=11 // pred_check_branch
          %387 = sbr.rel (%p385) target = $region24
        $region23: #{hip_block_forward.5} parent=11 // pred_region
          _
        $region24: #{hip_block_forward.5} parent=11 // pred_fallthru
          _
        // Predicated region
        $region25: #{hip_block_forward.5} parent=11 // pred_check
          %p388 = pneg %p147
        $region26: #{hip_block_forward.5} parent=11 // pred_check_branch
          %390 = sbr.rel (%p388) target = $region28
        $region27: #{hip_block_forward.5} parent=11 // pred_region
          _
        $region28: #{hip_block_forward.5} parent=11 // pred_fallthru
          _
        // Predicated region
        $region29: #{hip_block_forward.5} parent=11 // pred_check
          %p391 = pneg %p168
        $region30: #{hip_block_forward.5} parent=11 // pred_check_branch
          %393 = sbr.rel (%p391) target = $region32
        $region31: #{hip_block_forward.5} parent=11 // pred_region
          _
        $region32: #{hip_block_forward.5} parent=11 // pred_fallthru
          _
        // Predicated region
        $region33: #{hip_block_forward.5} parent=11 // pred_check
          %p394 = pneg %p189
        $region34: #{hip_block_forward.5} parent=11 // pred_check_branch
          %396 = sbr.rel (%p394) target = $region36
        $region35: #{hip_block_forward.5} parent=11 // pred_region
          _
        $region36: #{hip_block_forward.5} parent=11 // pred_fallthru
          _
        // Predicated region
        $region37: #{hip_block_forward.5} parent=11 // pred_check
          %p397 = pneg %p210
        $region38: #{hip_block_forward.5} parent=11 // pred_check_branch
          %399 = sbr.rel (%p397) target = $region40
        $region39: #{hip_block_forward.5} parent=11 // pred_region
          _
        $region40: #{hip_block_forward.5} parent=11 // pred_fallthru
          _
        // Predicated region
        $region41: #{hip_block_forward.5} parent=11 // pred_check
          %p400 = pneg %p231
        $region42: #{hip_block_forward.5} parent=11 // pred_check_branch
          %402 = sbr.rel (%p400) target = $region44
        $region43: #{hip_block_forward.5} parent=11 // pred_region
          _
        $region44: #{hip_block_forward.5} parent=11 // pred_fallthru
          _
        // Predicated region
        $region45: #{hip_block_forward.5} parent=11 // pred_check
          %p403 = pneg %p252
        $region46: #{hip_block_forward.5} parent=11 // pred_check_branch
          %405 = sbr.rel (%p403) target = $region48
        $region47: #{hip_block_forward.5} parent=11 // pred_region
          _
        $region48: #{hip_block_forward.5} parent=11 // pred_fallthru
          _
        // Predicated region
        $region49: #{hip_block_forward.5} parent=11 // pred_check
          %p406 = pneg %p273
        $region50: #{hip_block_forward.5} parent=11 // pred_check_branch
          %408 = sbr.rel (%p406) target = $region52
        $region51: #{hip_block_forward.5} parent=11 // pred_region
          _
        $region52: #{hip_block_forward.5} parent=11 // pred_fallthru
          _
        // Predicated region
        $region53: #{hip_block_forward.5} parent=11 // pred_check
          %p409 = pneg %p294
        $region54: #{hip_block_forward.5} parent=11 // pred_check_branch
          %411 = sbr.rel (%p409) target = $region56
        $region55: #{hip_block_forward.5} parent=11 // pred_region
          _
        $region56: #{hip_block_forward.5} parent=11 // pred_fallthru
          _
        // Predicated region
        $region57: #{hip_block_forward.5} parent=11 // pred_check
          %p412 = pneg %p315
        $region58: #{hip_block_forward.5} parent=11 // pred_check_branch
          %414 = sbr.rel (%p412) target = $region60
        $region59: #{hip_block_forward.5} parent=11 // pred_region
          _
        $region60: #{hip_block_forward.5} parent=11 // pred_fallthru
          _
        // Predicated region
        $region61: #{hip_block_forward.5} parent=11 // pred_check
          %p415 = pneg %p336
        $region62: #{hip_block_forward.5} parent=11 // pred_check_branch
          %417 = sbr.rel (%p415) target = $region64
        $region63: #{hip_block_forward.5} parent=11 // pred_region
          _
        $region64: #{hip_block_forward.5} parent=11 // pred_fallthru
          _
      $region12: #{hip_block_forward.5} parent=5 // pred_fallthru
        _
      %p418 = scmp.lt.s32.totalorder %s23, 2
      // Predicated region
      $region65: #{hip_block_forward.5} parent=5 // pred_check
        %p419 = pneg %p418
      $region66: #{hip_block_forward.5} parent=5 // pred_check_branch
        %421 = sbr.rel (%p419) target = $region68
      $region67: #{hip_block_forward.5} parent=5 // pred_region
        // Predicated region
        $region69: #{hip_block_forward.5} parent=67 // pred_check
          %p422 = pneg %p57
        $region70: #{hip_block_forward.5} parent=67 // pred_check_branch
          %424 = sbr.rel (%p422) target = $region72
        $region71: #{hip_block_forward.5} parent=67 // pred_region
          %s425 = smul.u32 2, %s31
          %p426 = scmp.lt.s32.totalorder %s30, 1
          %s427 = scalar_select %p426, %s30, 1
          %p428 = scmp.lt.s32.totalorder %s425, 1
          %s429 = scalar_select %p428, %s425, 1
          %s430 = smul.addr %s427, 2
          %s431 = sadd.s32 %s429, %s430
          %s432 = smul.addr %s431, 8
          %s433 = scalar_lea.vmem %s0, %s432
          %s434 = smul.u32 2, %s31
        $region72: #{hip_block_forward.5} parent=67 // pred_fallthru
          _
      $region68: #{hip_block_forward.5} parent=5 // pred_fallthru
        _
      %p435 = scmp.le.s32.totalorder 1, %s23
      %p436 = scmp.lt.s32.totalorder %s23, 3
      %p437 = pnand %p435, %p436
      %p438 = pneg %p437
      // Predicated region
      $region73: #{hip_block_forward.5} parent=5 // pred_check
        _
      $region74: #{hip_block_forward.5} parent=5 // pred_check_branch
        %440 = sbr.rel (%p437) target = $region76
      $region75: #{hip_block_forward.5} parent=5 // pred_region
        %s441 = ssub.s32 %s23, 1
        %s442 = smul.u32 2, %s33
        %p443 = scmp.lt.s32.totalorder %s32, 1
        %s444 = scalar_select %p443, %s32, 1
        %p445 = scmp.lt.s32.totalorder %s442, 1
        %s446 = scalar_select %p445, %s442, 1
        %s447 = smul.addr %s444, 2
        %s448 = sadd.s32 %s446, %s447
        %s449 = smul.addr %s448, 8
        %s450 = scalar_lea.vmem %s0, %s449
        %p451 = pneg %p63
        %p452 = pneg %p60
        %p453 = pneg %p84
        %p454 = pneg %p81
        %p455 = pneg %p105
        %p456 = pneg %p102
        %p457 = pneg %p126
        %p458 = pneg %p123
        %p459 = pneg %p147
        %p460 = pneg %p144
        %p461 = pneg %p168
        %p462 = pneg %p165
        %p463 = pneg %p189
        %p464 = pneg %p186
        %p465 = pneg %p210
        %p466 = pneg %p207
        %p467 = pneg %p231
        %p468 = pneg %p228
        %p469 = pneg %p252
        %p470 = pneg %p249
        %p471 = pneg %p273
        %p472 = pneg %p270
        %p473 = pneg %p294
        %p474 = pneg %p291
        %p475 = pneg %p315
        %p476 = pneg %p312
        %p477 = pneg %p336
        %p478 = pneg %p333
        %p479 = pneg %p364
        %p480 = pneg %p361
        %s481 = sand.u32 %s351, 1
        %s482 = scalar_lea.sflag [#allocation3], %s481
        %s483 = sand.u32 %s351, 1
        %s484 = smul.addr %s483, 16
        %s485 = scalar_lea.vmem [#allocation2], %s484
        %s486 = smul.u32 2, %s33
        %p487 = scmp.lt.s32.totalorder %s32, 1
        %s488 = scalar_select %p487, %s32, 1
        %p489 = scmp.lt.s32.totalorder %s486, 1
        %s490 = scalar_select %p489, %s486, 1
        %s491 = smul.addr %s488, 2
        %s492 = sadd.s32 %s490, %s491
        %s493 = smul.addr %s492, 8
        %s494 = scalar_lea.vmem %s0, %s493
        %s495 = smul.u32 2, %s33
        %s496 = smul.u32 2, %s33
        %v498 = vld [vmem:[%s494] sm:$0xff]
        %v499 = vld [vmem:[%s494 + $0x8] sm:$0xff]
        %v500 = vld [vmem:[%s1] sm:$0x1]
        %v501 = vld [vmem:[%s2] sm:$0x1]
        %vm502 = vcmask 261120
        %v503 = vsel %vm502, %v498, 0.0
        %504 = vadd.xlane.f32.xlu0 %v503
        %v505 = vpop.xlane.xlu0 %504
        %v506 = vsel %vm502, %v499, 0.0
        %507 = vadd.xlane.f32.xlu0 %v506
        %v508 = vpop.xlane.xlu0 %507
        %v509 = vrcp.pop 32.0
        %v510 = vmul.f32 %v505, %v509
        %v511 = vmul.f32 %v508, %v509
        %v512 = vsub.f32 %v498, %v510
        %v513 = vsub.f32 %v499, %v511
        %v514 = vmul.f32 %v512, %v512
        %v515 = vmul.f32 %v513, %v513
        %v516 = vsel %vm502, %v514, 0.0
        %517 = vadd.xlane.f32.xlu0 %v516
        %v518 = vpop.xlane.xlu0 %517
        %v519 = vsel %vm502, %v515, 0.0
        %520 = vadd.xlane.f32.xlu0 %v519
        %v521 = vpop.xlane.xlu0 %520
        %v522 = vmul.f32 %v518, %v509
        %v523 = vmul.f32 %v521, %v509
        %v524 = vadd.f32 %v522, 1e-05
        %v525 = vadd.f32 %v523, 1e-05
        %v526 = vrsqrt.pop %v524
        %v527 = vrsqrt.pop %v525
        %v528 = vmul.f32 %v512, %v526
        %v529 = vmul.f32 %v513, %v527
        %v531 = vlaneseq
        %v532 = vshrl.u32 %v531, 7
        %v533 = vsub.s32 0, %v532
        %v534 = vrot.slane %v500, %v533
        %v536 = vmul.f32 %v528, %v534
        %v537 = vmul.f32 %v529, %v534
        %v539 = vlaneseq
        %v540 = vshrl.u32 %v539, 7
        %v541 = vsub.s32 0, %v540
        %v542 = vrot.slane %v501, %v541
        %v544 = vadd.f32 %v536, %v542
        %v545 = vadd.f32 %v537, %v542
        %v546 = vpack.c.bf16 %v545, %v544
        %v547 = vld [vmem:[%s3] sm:$0xf]
        %v548 = vld [vmem:[%s3 + $0x4] sm:$0xf]
        %v549 = vld [vmem:[%s3 + $0x8] sm:$0xf]
        %v550 = vld [vmem:[%s3 + $0xc] sm:$0xf]
        %v555 = vunpack.c.l.b16 %v547
        %v556 = vunpack.c.l.b16 %v548
        %v557 = vunpack.c.l.b16 %v549
        %v558 = vunpack.c.l.b16 %v550
        %v559 = vpack.c.b16 %v556, %v555
        %v560 = vpack.c.b16 %v558, %v557
        %v564 = vsel %vm502, %v546, 0
        %566 = vmatprep.subr.bf16.mxu0 0
        %567 = vmatpush1.bf16.msra.mxu0 %v559
        %568 = vmatprep.subr.bf16.mxu0 0
        %569 = vmatpush1.bf16.msra.mxu0 %v560
        %570 = vmatprep.subr.bf16.mxu0 0
        %571 = vmatpush1.bf16.msra.mxu0 0
        %572 = vmatprep.subr.bf16.mxu0 0
        %573 = vmatpush1.bf16.msra.mxu0 0
        %574 = vmatprep.subr.bf16.mxu0 0
        %575 = vmatpush1.bf16.msra.mxu0 0
        %576 = vmatprep.subr.bf16.mxu0 0
        %577 = vmatpush1.bf16.msra.mxu0 0
        %578 = vmatprep.subr.bf16.mxu0 0
        %579 = vmatpush1.bf16.msra.mxu0 0
        %580 = vmatprep.subr.bf16.mxu0 0
        %581 = vmatpush1.bf16.msra.mxu0 0
        %582 = vmatprep.subr.bf16.mxu0 0
        %583 = vmatpush1.bf16.msra.mxu0 0
        %584 = vmatprep.subr.bf16.mxu0 0
        %585 = vmatpush1.bf16.msra.mxu0 0
        %586 = vmatprep.subr.bf16.mxu0 0
        %587 = vmatpush1.bf16.msra.mxu0 0
        %588 = vmatprep.subr.bf16.mxu0 0
        %589 = vmatpush1.bf16.msra.mxu0 0
        %590 = vmatprep.subr.bf16.mxu0 0
        %591 = vmatpush1.bf16.msra.mxu0 0
        %592 = vmatprep.subr.bf16.mxu0 0
        %593 = vmatpush1.bf16.msra.mxu0 0
        %594 = vmatprep.subr.bf16.mxu0 0
        %595 = vmatpush1.bf16.msra.mxu0 0
        %596 = vmatprep.subr.bf16.mxu0 0
        %597 = vmatpush1.bf16.msra.mxu0 0
        %598 = vmatprep.mubr.bf16.mxu0 0
        %599 = vmatmul.mubr.bf16.gmra.mrb[0].mxu0 %v564
        %v600 = vpop.f32.mrb[0].mxu0
        %v601 = vadd.f32 0.0, %v600
        %v602 = vpop.f32.mrb[0].mxu0
        %v603 = vpop.f32.mrb[0].mxu0
        %v604 = vadd.f32 0.0, %v603
        %v605 = vpop.f32.mrb[0].mxu0
        %606 = vdwg.mxu0
        %v607 = vld [vmem:[%s4] sm:$0xf]
        %v608 = vld [vmem:[%s4 + $0x4] sm:$0xf]
        %v609 = vld [vmem:[%s4 + $0x8] sm:$0xf]
        %v610 = vld [vmem:[%s4 + $0xc] sm:$0xf]
        %v615 = vunpack.c.l.b16 %v607
        %v616 = vunpack.c.l.b16 %v608
        %v617 = vunpack.c.l.b16 %v609
        %v618 = vunpack.c.l.b16 %v610
        %v619 = vpack.c.b16 %v616, %v615
        %v620 = vpack.c.b16 %v618, %v617
        %623 = vmatprep.subr.bf16.mxu0 0
        %624 = vmatpush1.bf16.msra.mxu0 %v619
        %625 = vmatprep.subr.bf16.mxu0 0
        %626 = vmatpush1.bf16.msra.mxu0 %v620
        %627 = vmatprep.subr.bf16.mxu0 0
        %628 = vmatpush1.bf16.msra.mxu0 0
        %629 = vmatprep.subr.bf16.mxu0 0
        %630 = vmatpush1.bf16.msra.mxu0 0
        %631 = vmatprep.subr.bf16.mxu0 0
        %632 = vmatpush1.bf16.msra.mxu0 0
        %633 = vmatprep.subr.bf16.mxu0 0
        %634 = vmatpush1.bf16.msra.mxu0 0
        %635 = vmatprep.subr.bf16.mxu0 0
        %636 = vmatpush1.bf16.msra.mxu0 0
        %637 = vmatprep.subr.bf16.mxu0 0
        %638 = vmatpush1.bf16.msra.mxu0 0
        %639 = vmatprep.subr.bf16.mxu0 0
        %640 = vmatpush1.bf16.msra.mxu0 0
        %641 = vmatprep.subr.bf16.mxu0 0
        %642 = vmatpush1.bf16.msra.mxu0 0
        %643 = vmatprep.subr.bf16.mxu0 0
        %644 = vmatpush1.bf16.msra.mxu0 0
        %645 = vmatprep.subr.bf16.mxu0 0
        %646 = vmatpush1.bf16.msra.mxu0 0
        %647 = vmatprep.subr.bf16.mxu0 0
        %648 = vmatpush1.bf16.msra.mxu0 0
        %649 = vmatprep.subr.bf16.mxu0 0
        %650 = vmatpush1.bf16.msra.mxu0 0
        %651 = vmatprep.subr.bf16.mxu0 0
        %652 = vmatpush1.bf16.msra.mxu0 0
        %653 = vmatprep.subr.bf16.mxu0 0
        %654 = vmatpush1.bf16.msra.mxu0 0
        %655 = vmatprep.mubr.bf16.mxu0 0
        %656 = vmatmul.mubr.bf16.gmra.mrb[0].mxu0 %v564
        %v657 = vpop.f32.mrb[0].mxu0
        %v658 = vadd.f32 0.0, %v657
        %v659 = vpop.f32.mrb[0].mxu0
        %v660 = vpop.f32.mrb[0].mxu0
        %v661 = vadd.f32 0.0, %v660
        %v662 = vpop.f32.mrb[0].mxu0
        %663 = vdwg.mxu0
        %v664 = vld [vmem:[%s5] sm:$0xf]
        %v665 = vld [vmem:[%s5 + $0x4] sm:$0xf]
        %v666 = vld [vmem:[%s5 + $0x8] sm:$0xf]
        %v667 = vld [vmem:[%s5 + $0xc] sm:$0xf]
        %v672 = vunpack.c.l.b16 %v664
        %v673 = vunpack.c.l.b16 %v665
        %v674 = vunpack.c.l.b16 %v666
        %v675 = vunpack.c.l.b16 %v667
        %v676 = vpack.c.b16 %v673, %v672
        %v677 = vpack.c.b16 %v675, %v674
        %680 = vmatprep.subr.bf16.mxu0 0
        %681 = vmatpush1.bf16.msra.mxu0 %v676
        %682 = vmatprep.subr.bf16.mxu0 0
        %683 = vmatpush1.bf16.msra.mxu0 %v677
        %684 = vmatprep.subr.bf16.mxu0 0
        %685 = vmatpush1.bf16.msra.mxu0 0
        %686 = vmatprep.subr.bf16.mxu0 0
        %687 = vmatpush1.bf16.msra.mxu0 0
        %688 = vmatprep.subr.bf16.mxu0 0
        %689 = vmatpush1.bf16.msra.mxu0 0
        %690 = vmatprep.subr.bf16.mxu0 0
        %691 = vmatpush1.bf16.msra.mxu0 0
        %692 = vmatprep.subr.bf16.mxu0 0
        %693 = vmatpush1.bf16.msra.mxu0 0
        %694 = vmatprep.subr.bf16.mxu0 0
        %695 = vmatpush1.bf16.msra.mxu0 0
        %696 = vmatprep.subr.bf16.mxu0 0
        %697 = vmatpush1.bf16.msra.mxu0 0
        %698 = vmatprep.subr.bf16.mxu0 0
        %699 = vmatpush1.bf16.msra.mxu0 0
        %700 = vmatprep.subr.bf16.mxu0 0
        %701 = vmatpush1.bf16.msra.mxu0 0
        %702 = vmatprep.subr.bf16.mxu0 0
        %703 = vmatpush1.bf16.msra.mxu0 0
        %704 = vmatprep.subr.bf16.mxu0 0
        %705 = vmatpush1.bf16.msra.mxu0 0
        %706 = vmatprep.subr.bf16.mxu0 0
        %707 = vmatpush1.bf16.msra.mxu0 0
        %708 = vmatprep.subr.bf16.mxu0 0
        %709 = vmatpush1.bf16.msra.mxu0 0
        %710 = vmatprep.subr.bf16.mxu0 0
        %711 = vmatpush1.bf16.msra.mxu0 0
        %712 = vmatprep.mubr.bf16.mxu0 0
        %713 = vmatmul.mubr.bf16.gmra.mrb[0].mxu0 %v564
        %v714 = vpop.f32.mrb[0].mxu0
        %v715 = vadd.f32 0.0, %v714
        %v716 = vpop.f32.mrb[0].mxu0
        %v717 = vpop.f32.mrb[0].mxu0
        %v718 = vadd.f32 0.0, %v717
        %v719 = vpop.f32.mrb[0].mxu0
        %720 = vdwg.mxu0
        %vm721 = vcmask 64512
        %v723 = vsel %vm721, %v601, 0
        %v726 = vsel %vm721, %v658, 0
        %728 = vmatprep.subr.mxu0 0.0
        %729 = vmatpush1.xpose.msra.mxu0 %v726
        %730 = vmatprep.subr.mxu0 0.0
        %731 = vmatpush1.xpose.msra.mxu0 0.0
        %732 = vmatprep.subr.mxu0 0.0
        %733 = vmatpush1.xpose.msra.mxu0 0.0
        %734 = vmatprep.subr.mxu0 0.0
        %735 = vmatpush1.xpose.msra.mxu0 0.0
        %736 = vmatprep.subr.mxu0 0.0
        %737 = vmatpush1.xpose.msra.mxu0 0.0
        %738 = vmatprep.subr.mxu0 0.0
        %739 = vmatpush1.xpose.msra.mxu0 0.0
        %740 = vmatprep.subr.mxu0 0.0
        %741 = vmatpush1.xpose.msra.mxu0 0.0
        %742 = vmatprep.subr.mxu0 0.0
        %743 = vmatpush1.xpose.msra.mxu0 0.0
        %744 = vmatprep.subr.mxu0 0.0
        %745 = vmatpush1.xpose.msra.mxu0 0.0
        %746 = vmatprep.subr.mxu0 0.0
        %747 = vmatpush1.xpose.msra.mxu0 0.0
        %748 = vmatprep.subr.mxu0 0.0
        %749 = vmatpush1.xpose.msra.mxu0 0.0
        %750 = vmatprep.subr.mxu0 0.0
        %751 = vmatpush1.xpose.msra.mxu0 0.0
        %752 = vmatprep.subr.mxu0 0.0
        %753 = vmatpush1.xpose.msra.mxu0 0.0
        %754 = vmatprep.subr.mxu0 0.0
        %755 = vmatpush1.xpose.msra.mxu0 0.0
        %756 = vmatprep.subr.mxu0 0.0
        %757 = vmatpush1.xpose.msra.mxu0 0.0
        %758 = vmatprep.subr.mxu0 0.0
        %759 = vmatpush1.xpose.msra.mxu0 0.0
        %760 = vmatprep.subr.mxu0 0.0
        %761 = vmatpush1.xpose.msra.mxu0 0.0
        %762 = vmatprep.subr.mxu0 0.0
        %763 = vmatpush1.xpose.msra.mxu0 0.0
        %764 = vmatprep.subr.mxu0 0.0
        %765 = vmatpush1.xpose.msra.mxu0 0.0
        %766 = vmatprep.subr.mxu0 0.0
        %767 = vmatpush1.xpose.msra.mxu0 0.0
        %768 = vmatprep.subr.mxu0 0.0
        %769 = vmatpush1.xpose.msra.mxu0 0.0
        %770 = vmatprep.subr.mxu0 0.0
        %771 = vmatpush1.xpose.msra.mxu0 0.0
        %772 = vmatprep.subr.mxu0 0.0
        %773 = vmatpush1.xpose.msra.mxu0 0.0
        %774 = vmatprep.subr.mxu0 0.0
        %775 = vmatpush1.xpose.msra.mxu0 0.0
        %776 = vmatprep.subr.mxu0 0.0
        %777 = vmatpush1.xpose.msra.mxu0 0.0
        %778 = vmatprep.subr.mxu0 0.0
        %779 = vmatpush1.xpose.msra.mxu0 0.0
        %780 = vmatprep.subr.mxu0 0.0
        %781 = vmatpush1.xpose.msra.mxu0 0.0
        %782 = vmatprep.subr.mxu0 0.0
        %783 = vmatpush1.xpose.msra.mxu0 0.0
        %784 = vmatprep.subr.mxu0 0.0
        %785 = vmatpush1.xpose.msra.mxu0 0.0
        %786 = vmatprep.subr.mxu0 0.0
        %787 = vmatpush1.xpose.msra.mxu0 0.0
        %788 = vmatprep.subr.mxu0 0.0
        %789 = vmatpush1.xpose.msra.mxu0 0.0
        %790 = vmatprep.subr.mxu0 0.0
        %791 = vmatpush1.xpose.msra.mxu0 0.0
        %792 = vmatprep.mubr.f32.mxu0 0.0
        %793 = vmatmul.mubr.f32.gmra.mrb[0].mxu0 %v723
        %v794 = vpop.f32.mrb[0].mxu0
        %v795 = vadd.f32 0.0, %v794
        %v796 = vpop.f32.mrb[0].mxu0
        %797 = vdwg.mxu0
        %v798 = vmul.f32 %v795, 0.35355338
        %v799 = vsel %vm721, %v798, -inf
        %800 = vmax.xlane.f32.xlu0 %v799
        %v801 = vpop.xlane.xlu0 %800
        %v802 = vsub.f32 %v798, %v801
        %v803 = vmul.f32 %v802, 1.442695
        %v804 = vpow.pop %v803
        %v805 = vsel %vm721, %v804, 0.0
        %806 = vadd.xlane.f32.xlu0 %v805
        %v807 = vpop.xlane.xlu0 %806
        %v808 = vrcp.pop %v807
        %v809 = vmul.f32 %v804, %v808
        %v811 = vsel %vm721, %v809, 0
        %813 = vmatprep.subr.mxu0 0.0
        %814 = vmatpush1.msra.mxu0 %v715
        %815 = vmatprep.subr.mxu0 0.0
        %816 = vmatpush1.msra.mxu0 0.0
        %817 = vmatprep.subr.mxu0 0.0
        %818 = vmatpush1.msra.mxu0 0.0
        %819 = vmatprep.subr.mxu0 0.0
        %820 = vmatpush1.msra.mxu0 0.0
        %821 = vmatprep.subr.mxu0 0.0
        %822 = vmatpush1.msra.mxu0 0.0
        %823 = vmatprep.subr.mxu0 0.0
        %824 = vmatpush1.msra.mxu0 0.0
        %825 = vmatprep.subr.mxu0 0.0
        %826 = vmatpush1.msra.mxu0 0.0
        %827 = vmatprep.subr.mxu0 0.0
        %828 = vmatpush1.msra.mxu0 0.0
        %829 = vmatprep.subr.mxu0 0.0
        %830 = vmatpush1.msra.mxu0 0.0
        %831 = vmatprep.subr.mxu0 0.0
        %832 = vmatpush1.msra.mxu0 0.0
        %833 = vmatprep.subr.mxu0 0.0
        %834 = vmatpush1.msra.mxu0 0.0
        %835 = vmatprep.subr.mxu0 0.0
        %836 = vmatpush1.msra.mxu0 0.0
        %837 = vmatprep.subr.mxu0 0.0
        %838 = vmatpush1.msra.mxu0 0.0
        %839 = vmatprep.subr.mxu0 0.0
        %840 = vmatpush1.msra.mxu0 0.0
        %841 = vmatprep.subr.mxu0 0.0
        %842 = vmatpush1.msra.mxu0 0.0
        %843 = vmatprep.subr.mxu0 0.0
        %844 = vmatpush1.msra.mxu0 0.0
        %845 = vmatprep.subr.mxu0 0.0
        %846 = vmatpush1.msra.mxu0 0.0
        %847 = vmatprep.subr.mxu0 0.0
        %848 = vmatpush1.msra.mxu0 0.0
        %849 = vmatprep.subr.mxu0 0.0
        %850 = vmatpush1.msra.mxu0 0.0
        %851 = vmatprep.subr.mxu0 0.0
        %852 = vmatpush1.msra.mxu0 0.0
        %853 = vmatprep.subr.mxu0 0.0
        %854 = vmatpush1.msra.mxu0 0.0
        %855 = vmatprep.subr.mxu0 0.0
        %856 = vmatpush1.msra.mxu0 0.0
        %857 = vmatprep.subr.mxu0 0.0
        %858 = vmatpush1.msra.mxu0 0.0
        %859 = vmatprep.subr.mxu0 0.0
        %860 = vmatpush1.msra.mxu0 0.0
        %861 = vmatprep.subr.mxu0 0.0
        %862 = vmatpush1.msra.mxu0 0.0
        %863 = vmatprep.subr.mxu0 0.0
        %864 = vmatpush1.msra.mxu0 0.0
        %865 = vmatprep.subr.mxu0 0.0
        %866 = vmatpush1.msra.mxu0 0.0
        %867 = vmatprep.subr.mxu0 0.0
        %868 = vmatpush1.msra.mxu0 0.0
        %869 = vmatprep.subr.mxu0 0.0
        %870 = vmatpush1.msra.mxu0 0.0
        %871 = vmatprep.subr.mxu0 0.0
        %872 = vmatpush1.msra.mxu0 0.0
        %873 = vmatprep.subr.mxu0 0.0
        %874 = vmatpush1.msra.mxu0 0.0
        %875 = vmatprep.subr.mxu0 0.0
        %876 = vmatpush1.msra.mxu0 0.0
        %877 = vmatprep.mubr.f32.mxu0 0.0
        %878 = vmatmul.mubr.f32.gmra.mrb[0].mxu0 %v811
        %v879 = vpop.f32.mrb[0].mxu0
        %v880 = vadd.f32 0.0, %v879
        %v881 = vpop.f32.mrb[0].mxu0
        %882 = vdwg.mxu0
        %v884 = vsel %vm721, %v604, 0
        %v887 = vsel %vm721, %v661, 0
        %889 = vmatprep.subr.mxu0 0.0
        %890 = vmatpush1.xpose.msra.mxu0 %v887
        %891 = vmatprep.subr.mxu0 0.0
        %892 = vmatpush1.xpose.msra.mxu0 0.0
        %893 = vmatprep.subr.mxu0 0.0
        %894 = vmatpush1.xpose.msra.mxu0 0.0
        %895 = vmatprep.subr.mxu0 0.0
        %896 = vmatpush1.xpose.msra.mxu0 0.0
        %897 = vmatprep.subr.mxu0 0.0
        %898 = vmatpush1.xpose.msra.mxu0 0.0
        %899 = vmatprep.subr.mxu0 0.0
        %900 = vmatpush1.xpose.msra.mxu0 0.0
        %901 = vmatprep.subr.mxu0 0.0
        %902 = vmatpush1.xpose.msra.mxu0 0.0
        %903 = vmatprep.subr.mxu0 0.0
        %904 = vmatpush1.xpose.msra.mxu0 0.0
        %905 = vmatprep.subr.mxu0 0.0
        %906 = vmatpush1.xpose.msra.mxu0 0.0
        %907 = vmatprep.subr.mxu0 0.0
        %908 = vmatpush1.xpose.msra.mxu0 0.0
        %909 = vmatprep.subr.mxu0 0.0
        %910 = vmatpush1.xpose.msra.mxu0 0.0
        %911 = vmatprep.subr.mxu0 0.0
        %912 = vmatpush1.xpose.msra.mxu0 0.0
        %913 = vmatprep.subr.mxu0 0.0
        %914 = vmatpush1.xpose.msra.mxu0 0.0
        %915 = vmatprep.subr.mxu0 0.0
        %916 = vmatpush1.xpose.msra.mxu0 0.0
        %917 = vmatprep.subr.mxu0 0.0
        %918 = vmatpush1.xpose.msra.mxu0 0.0
        %919 = vmatprep.subr.mxu0 0.0
        %920 = vmatpush1.xpose.msra.mxu0 0.0
        %921 = vmatprep.subr.mxu0 0.0
        %922 = vmatpush1.xpose.msra.mxu0 0.0
        %923 = vmatprep.subr.mxu0 0.0
        %924 = vmatpush1.xpose.msra.mxu0 0.0
        %925 = vmatprep.subr.mxu0 0.0
        %926 = vmatpush1.xpose.msra.mxu0 0.0
        %927 = vmatprep.subr.mxu0 0.0
        %928 = vmatpush1.xpose.msra.mxu0 0.0
        %929 = vmatprep.subr.mxu0 0.0
        %930 = vmatpush1.xpose.msra.mxu0 0.0
        %931 = vmatprep.subr.mxu0 0.0
        %932 = vmatpush1.xpose.msra.mxu0 0.0
        %933 = vmatprep.subr.mxu0 0.0
        %934 = vmatpush1.xpose.msra.mxu0 0.0
        %935 = vmatprep.subr.mxu0 0.0
        %936 = vmatpush1.xpose.msra.mxu0 0.0
        %937 = vmatprep.subr.mxu0 0.0
        %938 = vmatpush1.xpose.msra.mxu0 0.0
        %939 = vmatprep.subr.mxu0 0.0
        %940 = vmatpush1.xpose.msra.mxu0 0.0
        %941 = vmatprep.subr.mxu0 0.0
        %942 = vmatpush1.xpose.msra.mxu0 0.0
        %943 = vmatprep.subr.mxu0 0.0
        %944 = vmatpush1.xpose.msra.mxu0 0.0
        %945 = vmatprep.subr.mxu0 0.0
        %946 = vmatpush1.xpose.msra.mxu0 0.0
        %947 = vmatprep.subr.mxu0 0.0
        %948 = vmatpush1.xpose.msra.mxu0 0.0
        %949 = vmatprep.subr.mxu0 0.0
        %950 = vmatpush1.xpose.msra.mxu0 0.0
        %951 = vmatprep.subr.mxu0 0.0
        %952 = vmatpush1.xpose.msra.mxu0 0.0
        %953 = vmatprep.mubr.f32.mxu0 0.0
        %954 = vmatmul.mubr.f32.gmra.mrb[0].mxu0 %v884
        %v955 = vpop.f32.mrb[0].mxu0
        %v956 = vadd.f32 0.0, %v955
        %v957 = vpop.f32.mrb[0].mxu0
        %958 = vdwg.mxu0
        %v959 = vmul.f32 %v956, 0.35355338
        %v960 = vsel %vm721, %v959, -inf
        %961 = vmax.xlane.f32.xlu0 %v960
        %v962 = vpop.xlane.xlu0 %961
        %v963 = vsub.f32 %v959, %v962
        %v964 = vmul.f32 %v963, 1.442695
        %v965 = vpow.pop %v964
        %v966 = vsel %vm721, %v965, 0.0
        %967 = vadd.xlane.f32.xlu0 %v966
        %v968 = vpop.xlane.xlu0 %967
        %v969 = vrcp.pop %v968
        %v970 = vmul.f32 %v965, %v969
        %v972 = vsel %vm721, %v970, 0
        %974 = vmatprep.subr.mxu0 0.0
        %975 = vmatpush1.msra.mxu0 %v718
        %976 = vmatprep.subr.mxu0 0.0
        %977 = vmatpush1.msra.mxu0 0.0
        %978 = vmatprep.subr.mxu0 0.0
        %979 = vmatpush1.msra.mxu0 0.0
        %980 = vmatprep.subr.mxu0 0.0
        %981 = vmatpush1.msra.mxu0 0.0
        %982 = vmatprep.subr.mxu0 0.0
        %983 = vmatpush1.msra.mxu0 0.0
        %984 = vmatprep.subr.mxu0 0.0
        %985 = vmatpush1.msra.mxu0 0.0
        %986 = vmatprep.subr.mxu0 0.0
        %987 = vmatpush1.msra.mxu0 0.0
        %988 = vmatprep.subr.mxu0 0.0
        %989 = vmatpush1.msra.mxu0 0.0
        %990 = vmatprep.subr.mxu0 0.0
        %991 = vmatpush1.msra.mxu0 0.0
        %992 = vmatprep.subr.mxu0 0.0
        %993 = vmatpush1.msra.mxu0 0.0
        %994 = vmatprep.subr.mxu0 0.0
        %995 = vmatpush1.msra.mxu0 0.0
        %996 = vmatprep.subr.mxu0 0.0
        %997 = vmatpush1.msra.mxu0 0.0
        %998 = vmatprep.subr.mxu0 0.0
        %999 = vmatpush1.msra.mxu0 0.0
        %1000 = vmatprep.subr.mxu0 0.0
        %1001 = vmatpush1.msra.mxu0 0.0
        %1002 = vmatprep.subr.mxu0 0.0
        %1003 = vmatpush1.msra.mxu0 0.0
        %1004 = vmatprep.subr.mxu0 0.0
        %1005 = vmatpush1.msra.mxu0 0.0
        %1006 = vmatprep.subr.mxu0 0.0
        %1007 = vmatpush1.msra.mxu0 0.0
        %1008 = vmatprep.subr.mxu0 0.0
        %1009 = vmatpush1.msra.mxu0 0.0
        %1010 = vmatprep.subr.mxu0 0.0
        %1011 = vmatpush1.msra.mxu0 0.0
        %1012 = vmatprep.subr.mxu0 0.0
        %1013 = vmatpush1.msra.mxu0 0.0
        %1014 = vmatprep.subr.mxu0 0.0
        %1015 = vmatpush1.msra.mxu0 0.0
        %1016 = vmatprep.subr.mxu0 0.0
        %1017 = vmatpush1.msra.mxu0 0.0
        %1018 = vmatprep.subr.mxu0 0.0
        %1019 = vmatpush1.msra.mxu0 0.0
        %1020 = vmatprep.subr.mxu0 0.0
        %1021 = vmatpush1.msra.mxu0 0.0
        %1022 = vmatprep.subr.mxu0 0.0
        %1023 = vmatpush1.msra.mxu0 0.0
        %1024 = vmatprep.subr.mxu0 0.0
        %1025 = vmatpush1.msra.mxu0 0.0
        %1026 = vmatprep.subr.mxu0 0.0
        %1027 = vmatpush1.msra.mxu0 0.0
        %1028 = vmatprep.subr.mxu0 0.0
        %1029 = vmatpush1.msra.mxu0 0.0
        %1030 = vmatprep.subr.mxu0 0.0
        %1031 = vmatpush1.msra.mxu0 0.0
        %1032 = vmatprep.subr.mxu0 0.0
        %1033 = vmatpush1.msra.mxu0 0.0
        %1034 = vmatprep.subr.mxu0 0.0
        %1035 = vmatpush1.msra.mxu0 0.0
        %1036 = vmatprep.subr.mxu0 0.0
        %1037 = vmatpush1.msra.mxu0 0.0
        %1038 = vmatprep.mubr.f32.mxu0 0.0
        %1039 = vmatmul.mubr.f32.gmra.mrb[0].mxu0 %v972
        %v1040 = vpop.f32.mrb[0].mxu0
        %v1041 = vadd.f32 0.0, %v1040
        %v1042 = vpop.f32.mrb[0].mxu0
        %1043 = vdwg.mxu0
        %v1044 = vpack.c.bf16 %v1041, %v880
        %v1045 = vld [vmem:[%s6] sm:$0xf]
        %s1046 = scalar_lea.vmem %s3, 16
        %v1047 = vld [vmem:[%s1046] sm:$0xf]
        %v1048 = vld [vmem:[%s1046 + $0x4] sm:$0xf]
        %v1049 = vld [vmem:[%s1046 + $0x8] sm:$0xf]
        %v1050 = vld [vmem:[%s1046 + $0xc] sm:$0xf]
        %v1055 = vunpack.c.l.b16 %v1047
        %v1056 = vunpack.c.l.b16 %v1048
        %v1057 = vunpack.c.l.b16 %v1049
        %v1058 = vunpack.c.l.b16 %v1050
        %v1059 = vpack.c.b16 %v1056, %v1055
        %v1060 = vpack.c.b16 %v1058, %v1057
        %1063 = vmatprep.subr.bf16.mxu0 0
        %1064 = vmatpush1.bf16.msra.mxu0 %v1059
        %1065 = vmatprep.subr.bf16.mxu0 0
        %1066 = vmatpush1.bf16.msra.mxu0 %v1060
        %1067 = vmatprep.subr.bf16.mxu0 0
        %1068 = vmatpush1.bf16.msra.mxu0 0
        %1069 = vmatprep.subr.bf16.mxu0 0
        %1070 = vmatpush1.bf16.msra.mxu0 0
        %1071 = vmatprep.subr.bf16.mxu0 0
        %1072 = vmatpush1.bf16.msra.mxu0 0
        %1073 = vmatprep.subr.bf16.mxu0 0
        %1074 = vmatpush1.bf16.msra.mxu0 0
        %1075 = vmatprep.subr.bf16.mxu0 0
        %1076 = vmatpush1.bf16.msra.mxu0 0
        %1077 = vmatprep.subr.bf16.mxu0 0
        %1078 = vmatpush1.bf16.msra.mxu0 0
        %1079 = vmatprep.subr.bf16.mxu0 0
        %1080 = vmatpush1.bf16.msra.mxu0 0
        %1081 = vmatprep.subr.bf16.mxu0 0
        %1082 = vmatpush1.bf16.msra.mxu0 0
        %1083 = vmatprep.subr.bf16.mxu0 0
        %1084 = vmatpush1.bf16.msra.mxu0 0
        %1085 = vmatprep.subr.bf16.mxu0 0
        %1086 = vmatpush1.bf16.msra.mxu0 0
        %1087 = vmatprep.subr.bf16.mxu0 0
        %1088 = vmatpush1.bf16.msra.mxu0 0
        %1089 = vmatprep.subr.bf16.mxu0 0
        %1090 = vmatpush1.bf16.msra.mxu0 0
        %1091 = vmatprep.subr.bf16.mxu0 0
        %1092 = vmatpush1.bf16.msra.mxu0 0
        %1093 = vmatprep.subr.bf16.mxu0 0
        %1094 = vmatpush1.bf16.msra.mxu0 0
        %1095 = vmatprep.mubr.bf16.mxu0 0
        %1096 = vmatmul.mubr.bf16.gmra.mrb[0].mxu0 %v564
        %v1097 = vpop.f32.mrb[0].mxu0
        %v1098 = vadd.f32 0.0, %v1097
        %v1099 = vpop.f32.mrb[0].mxu0
        %v1100 = vpop.f32.mrb[0].mxu0
        %v1101 = vadd.f32 0.0, %v1100
        %v1102 = vpop.f32.mrb[0].mxu0
        %1103 = vdwg.mxu0
        %s1104 = scalar_lea.vmem %s4, 16
        %v1105 = vld [vmem:[%s1104] sm:$0xf]
        %v1106 = vld [vmem:[%s1104 + $0x4] sm:$0xf]
        %v1107 = vld [vmem:[%s1104 + $0x8] sm:$0xf]
        %v1108 = vld [vmem:[%s1104 + $0xc] sm:$0xf]
        %v1113 = vunpack.c.l.b16 %v1105
        %v1114 = vunpack.c.l.b16 %v1106
        %v1115 = vunpack.c.l.b16 %v1107
        %v1116 = vunpack.c.l.b16 %v1108
        %v1117 = vpack.c.b16 %v1114, %v1113
        %v1118 = vpack.c.b16 %v1116, %v1115
        %1121 = vmatprep.subr.bf16.mxu0 0
        %1122 = vmatpush1.bf16.msra.mxu0 %v1117
        %1123 = vmatprep.subr.bf16.mxu0 0
        %1124 = vmatpush1.bf16.msra.mxu0 %v1118
        %1125 = vmatprep.subr.bf16.mxu0 0
        %1126 = vmatpush1.bf16.msra.mxu0 0
        %1127 = vmatprep.subr.bf16.mxu0 0
        %1128 = vmatpush1.bf16.msra.mxu0 0
        %1129 = vmatprep.subr.bf16.mxu0 0
        %1130 = vmatpush1.bf16.msra.mxu0 0
        %1131 = vmatprep.subr.bf16.mxu0 0
        %1132 = vmatpush1.bf16.msra.mxu0 0
        %1133 = vmatprep.subr.bf16.mxu0 0
        %1134 = vmatpush1.bf16.msra.mxu0 0
        %1135 = vmatprep.subr.bf16.mxu0 0
        %1136 = vmatpush1.bf16.msra.mxu0 0
        %1137 = vmatprep.subr.bf16.mxu0 0
        %1138 = vmatpush1.bf16.msra.mxu0 0
        %1139 = vmatprep.subr.bf16.mxu0 0
        %1140 = vmatpush1.bf16.msra.mxu0 0
        %1141 = vmatprep.subr.bf16.mxu0 0
        %1142 = vmatpush1.bf16.msra.mxu0 0
        %1143 = vmatprep.subr.bf16.mxu0 0
        %1144 = vmatpush1.bf16.msra.mxu0 0
        %1145 = vmatprep.subr.bf16.mxu0 0
        %1146 = vmatpush1.bf16.msra.mxu0 0
        %1147 = vmatprep.subr.bf16.mxu0 0
        %1148 = vmatpush1.bf16.msra.mxu0 0
        %1149 = vmatprep.subr.bf16.mxu0 0
        %1150 = vmatpush1.bf16.msra.mxu0 0
        %1151 = vmatprep.subr.bf16.mxu0 0
        %1152 = vmatpush1.bf16.msra.mxu0 0
        %1153 = vmatprep.mubr.bf16.mxu0 0
        %1154 = vmatmul.mubr.bf16.gmra.mrb[0].mxu0 %v564
        %v1155 = vpop.f32.mrb[0].mxu0
        %v1156 = vadd.f32 0.0, %v1155
        %v1157 = vpop.f32.mrb[0].mxu0
        %v1158 = vpop.f32.mrb[0].mxu0
        %v1159 = vadd.f32 0.0, %v1158
        %v1160 = vpop.f32.mrb[0].mxu0
        %1161 = vdwg.mxu0
        %s1162 = scalar_lea.vmem %s5, 16
        %v1163 = vld [vmem:[%s1162] sm:$0xf]
        %v1164 = vld [vmem:[%s1162 + $0x4] sm:$0xf]
        %v1165 = vld [vmem:[%s1162 + $0x8] sm:$0xf]
        %v1166 = vld [vmem:[%s1162 + $0xc] sm:$0xf]
        %v1171 = vunpack.c.l.b16 %v1163
        %v1172 = vunpack.c.l.b16 %v1164
        %v1173 = vunpack.c.l.b16 %v1165
        %v1174 = vunpack.c.l.b16 %v1166
        %v1175 = vpack.c.b16 %v1172, %v1171
        %v1176 = vpack.c.b16 %v1174, %v1173
        %1179 = vmatprep.subr.bf16.mxu0 0
        %1180 = vmatpush1.bf16.msra.mxu0 %v1175
        %1181 = vmatprep.subr.bf16.mxu0 0
        %1182 = vmatpush1.bf16.msra.mxu0 %v1176
        %1183 = vmatprep.subr.bf16.mxu0 0
        %1184 = vmatpush1.bf16.msra.mxu0 0
        %1185 = vmatprep.subr.bf16.mxu0 0
        %1186 = vmatpush1.bf16.msra.mxu0 0
        %1187 = vmatprep.subr.bf16.mxu0 0
        %1188 = vmatpush1.bf16.msra.mxu0 0
        %1189 = vmatprep.subr.bf16.mxu0 0
        %1190 = vmatpush1.bf16.msra.mxu0 0
        %1191 = vmatprep.subr.bf16.mxu0 0
        %1192 = vmatpush1.bf16.msra.mxu0 0
        %1193 = vmatprep.subr.bf16.mxu0 0
        %1194 = vmatpush1.bf16.msra.mxu0 0
        %1195 = vmatprep.subr.bf16.mxu0 0
        %1196 = vmatpush1.bf16.msra.mxu0 0
        %1197 = vmatprep.subr.bf16.mxu0 0
        %1198 = vmatpush1.bf16.msra.mxu0 0
        %1199 = vmatprep.subr.bf16.mxu0 0
        %1200 = vmatpush1.bf16.msra.mxu0 0
        %1201 = vmatprep.subr.bf16.mxu0 0
        %1202 = vmatpush1.bf16.msra.mxu0 0
        %1203 = vmatprep.subr.bf16.mxu0 0
        %1204 = vmatpush1.bf16.msra.mxu0 0
        %1205 = vmatprep.subr.bf16.mxu0 0
        %1206 = vmatpush1.bf16.msra.mxu0 0
        %1207 = vmatprep.subr.bf16.mxu0 0
        %1208 = vmatpush1.bf16.msra.mxu0 0
        %1209 = vmatprep.subr.bf16.mxu0 0
        %1210 = vmatpush1.bf16.msra.mxu0 0
        %1211 = vmatprep.mubr.bf16.mxu0 0
        %1212 = vmatmul.mubr.bf16.gmra.mrb[0].mxu0 %v564
        %v1213 = vpop.f32.mrb[0].mxu0
        %v1214 = vadd.f32 0.0, %v1213
        %v1215 = vpop.f32.mrb[0].mxu0
        %v1216 = vpop.f32.mrb[0].mxu0
        %v1217 = vadd.f32 0.0, %v1216
        %v1218 = vpop.f32.mrb[0].mxu0
        %1219 = vdwg.mxu0
        %v1221 = vsel %vm721, %v1098, 0
        %v1224 = vsel %vm721, %v1156, 0
        %1226 = vmatprep.subr.mxu0 0.0
        %1227 = vmatpush1.xpose.msra.mxu0 %v1224
        %1228 = vmatprep.subr.mxu0 0.0
        %1229 = vmatpush1.xpose.msra.mxu0 0.0
        %1230 = vmatprep.subr.mxu0 0.0
        %1231 = vmatpush1.xpose.msra.mxu0 0.0
        %1232 = vmatprep.subr.mxu0 0.0
        %1233 = vmatpush1.xpose.msra.mxu0 0.0
        %1234 = vmatprep.subr.mxu0 0.0
        %1235 = vmatpush1.xpose.msra.mxu0 0.0
        %1236 = vmatprep.subr.mxu0 0.0
        %1237 = vmatpush1.xpose.msra.mxu0 0.0
        %1238 = vmatprep.subr.mxu0 0.0
        %1239 = vmatpush1.xpose.msra.mxu0 0.0
        %1240 = vmatprep.subr.mxu0 0.0
        %1241 = vmatpush1.xpose.msra.mxu0 0.0
        %1242 = vmatprep.subr.mxu0 0.0
        %1243 = vmatpush1.xpose.msra.mxu0 0.0
        %1244 = vmatprep.subr.mxu0 0.0
        %1245 = vmatpush1.xpose.msra.mxu0 0.0
        %1246 = vmatprep.subr.mxu0 0.0
        %1247 = vmatpush1.xpose.msra.mxu0 0.0
        %1248 = vmatprep.subr.mxu0 0.0
        %1249 = vmatpush1.xpose.msra.mxu0 0.0
        %1250 = vmatprep.subr.mxu0 0.0
        %1251 = vmatpush1.xpose.msra.mxu0 0.0
        %1252 = vmatprep.subr.mxu0 0.0
        %1253 = vmatpush1.xpose.msra.mxu0 0.0
        %1254 = vmatprep.subr.mxu0 0.0
        %1255 = vmatpush1.xpose.msra.mxu0 0.0
        %1256 = vmatprep.subr.mxu0 0.0
        %1257 = vmatpush1.xpose.msra.mxu0 0.0
        %1258 = vmatprep.subr.mxu0 0.0
        %1259 = vmatpush1.xpose.msra.mxu0 0.0
        %1260 = vmatprep.subr.mxu0 0.0
        %1261 = vmatpush1.xpose.msra.mxu0 0.0
        %1262 = vmatprep.subr.mxu0 0.0
        %1263 = vmatpush1.xpose.msra.mxu0 0.0
        %1264 = vmatprep.subr.mxu0 0.0
        %1265 = vmatpush1.xpose.msra.mxu0 0.0
        %1266 = vmatprep.subr.mxu0 0.0
        %1267 = vmatpush1.xpose.msra.mxu0 0.0
        %1268 = vmatprep.subr.mxu0 0.0
        %1269 = vmatpush1.xpose.msra.mxu0 0.0
        %1270 = vmatprep.subr.mxu0 0.0
        %1271 = vmatpush1.xpose.msra.mxu0 0.0
        %1272 = vmatprep.subr.mxu0 0.0
        %1273 = vmatpush1.xpose.msra.mxu0 0.0
        %1274 = vmatprep.subr.mxu0 0.0
        %1275 = vmatpush1.xpose.msra.mxu0 0.0
        %1276 = vmatprep.subr.mxu0 0.0
        %1277 = vmatpush1.xpose.msra.mxu0 0.0
        %1278 = vmatprep.subr.mxu0 0.0
        %1279 = vmatpush1.xpose.msra.mxu0 0.0
        %1280 = vmatprep.subr.mxu0 0.0
        %1281 = vmatpush1.xpose.msra.mxu0 0.0
        %1282 = vmatprep.subr.mxu0 0.0
        %1283 = vmatpush1.xpose.msra.mxu0 0.0
        %1284 = vmatprep.subr.mxu0 0.0
        %1285 = vmatpush1.xpose.msra.mxu0 0.0
        %1286 = vmatprep.subr.mxu0 0.0
        %1287 = vmatpush1.xpose.msra.mxu0 0.0
        %1288 = vmatprep.subr.mxu0 0.0
        %1289 = vmatpush1.xpose.msra.mxu0 0.0
        %1290 = vmatprep.mubr.f32.mxu0 0.0
        %1291 = vmatmul.mubr.f32.gmra.mrb[0].mxu0 %v1221
        %v1292 = vpop.f32.mrb[0].mxu0
        %v1293 = vadd.f32 0.0, %v1292
        %v1294 = vpop.f32.mrb[0].mxu0
        %1295 = vdwg.mxu0
        %v1296 = vmul.f32 %v1293, 0.35355338
        %v1297 = vsel %vm721, %v1296, -inf
        %1298 = vmax.xlane.f32.xlu0 %v1297
        %v1299 = vpop.xlane.xlu0 %1298
        %v1300 = vsub.f32 %v1296, %v1299
        %v1301 = vmul.f32 %v1300, 1.442695
        %v1302 = vpow.pop %v1301
        %v1303 = vsel %vm721, %v1302, 0.0
        %1304 = vadd.xlane.f32.xlu0 %v1303
        %v1305 = vpop.xlane.xlu0 %1304
        %v1306 = vrcp.pop %v1305
        %v1307 = vmul.f32 %v1302, %v1306
        %v1309 = vsel %vm721, %v1307, 0
        %1311 = vmatprep.subr.mxu0 0.0
        %1312 = vmatpush1.msra.mxu0 %v1214
        %1313 = vmatprep.subr.mxu0 0.0
        %1314 = vmatpush1.msra.mxu0 0.0
        %1315 = vmatprep.subr.mxu0 0.0
        %1316 = vmatpush1.msra.mxu0 0.0
        %1317 = vmatprep.subr.mxu0 0.0
        %1318 = vmatpush1.msra.mxu0 0.0
        %1319 = vmatprep.subr.mxu0 0.0
        %1320 = vmatpush1.msra.mxu0 0.0
        %1321 = vmatprep.subr.mxu0 0.0
        %1322 = vmatpush1.msra.mxu0 0.0
        %1323 = vmatprep.subr.mxu0 0.0
        %1324 = vmatpush1.msra.mxu0 0.0
        %1325 = vmatprep.subr.mxu0 0.0
        %1326 = vmatpush1.msra.mxu0 0.0
        %1327 = vmatprep.subr.mxu0 0.0
        %1328 = vmatpush1.msra.mxu0 0.0
        %1329 = vmatprep.subr.mxu0 0.0
        %1330 = vmatpush1.msra.mxu0 0.0
        %1331 = vmatprep.subr.mxu0 0.0
        %1332 = vmatpush1.msra.mxu0 0.0
        %1333 = vmatprep.subr.mxu0 0.0
        %1334 = vmatpush1.msra.mxu0 0.0
        %1335 = vmatprep.subr.mxu0 0.0
        %1336 = vmatpush1.msra.mxu0 0.0
        %1337 = vmatprep.subr.mxu0 0.0
        %1338 = vmatpush1.msra.mxu0 0.0
        %1339 = vmatprep.subr.mxu0 0.0
        %1340 = vmatpush1.msra.mxu0 0.0
        %1341 = vmatprep.subr.mxu0 0.0
        %1342 = vmatpush1.msra.mxu0 0.0
        %1343 = vmatprep.subr.mxu0 0.0
        %1344 = vmatpush1.msra.mxu0 0.0
        %1345 = vmatprep.subr.mxu0 0.0
        %1346 = vmatpush1.msra.mxu0 0.0
        %1347 = vmatprep.subr.mxu0 0.0
        %1348 = vmatpush1.msra.mxu0 0.0
        %1349 = vmatprep.subr.mxu0 0.0
        %1350 = vmatpush1.msra.mxu0 0.0
        %1351 = vmatprep.subr.mxu0 0.0
        %1352 = vmatpush1.msra.mxu0 0.0
        %1353 = vmatprep.subr.mxu0 0.0
        %1354 = vmatpush1.msra.mxu0 0.0
        %1355 = vmatprep.subr.mxu0 0.0
        %1356 = vmatpush1.msra.mxu0 0.0
        %1357 = vmatprep.subr.mxu0 0.0
        %1358 = vmatpush1.msra.mxu0 0.0
        %1359 = vmatprep.subr.mxu0 0.0
        %1360 = vmatpush1.msra.mxu0 0.0
        %1361 = vmatprep.subr.mxu0 0.0
        %1362 = vmatpush1.msra.mxu0 0.0
        %1363 = vmatprep.subr.mxu0 0.0
        %1364 = vmatpush1.msra.mxu0 0.0
        %1365 = vmatprep.subr.mxu0 0.0
        %1366 = vmatpush1.msra.mxu0 0.0
        %1367 = vmatprep.subr.mxu0 0.0
        %1368 = vmatpush1.msra.mxu0 0.0
        %1369 = vmatprep.subr.mxu0 0.0
        %1370 = vmatpush1.msra.mxu0 0.0
        %1371 = vmatprep.subr.mxu0 0.0
        %1372 = vmatpush1.msra.mxu0 0.0
        %1373 = vmatprep.subr.mxu0 0.0
        %1374 = vmatpush1.msra.mxu0 0.0
        %1375 = vmatprep.mubr.f32.mxu0 0.0
        %1376 = vmatmul.mubr.f32.gmra.mrb[0].mxu0 %v1309
        %v1377 = vpop.f32.mrb[0].mxu0
        %v1378 = vadd.f32 0.0, %v1377
        %v1379 = vpop.f32.mrb[0].mxu0
        %1380 = vdwg.mxu0
        %v1382 = vsel %vm721, %v1101, 0
        %v1385 = vsel %vm721, %v1159, 0
        %1387 = vmatprep.subr.mxu0 0.0
        %1388 = vmatpush1.xpose.msra.mxu0 %v1385
        %1389 = vmatprep.subr.mxu0 0.0
        %1390 = vmatpush1.xpose.msra.mxu0 0.0
        %1391 = vmatprep.subr.mxu0 0.0
        %1392 = vmatpush1.xpose.msra.mxu0 0.0
        %1393 = vmatprep.subr.mxu0 0.0
        %1394 = vmatpush1.xpose.msra.mxu0 0.0
        %1395 = vmatprep.subr.mxu0 0.0
        %1396 = vmatpush1.xpose.msra.mxu0 0.0
        %1397 = vmatprep.subr.mxu0 0.0
        %1398 = vmatpush1.xpose.msra.mxu0 0.0
        %1399 = vmatprep.subr.mxu0 0.0
        %1400 = vmatpush1.xpose.msra.mxu0 0.0
        %1401 = vmatprep.subr.mxu0 0.0
        %1402 = vmatpush1.xpose.msra.mxu0 0.0
        %1403 = vmatprep.subr.mxu0 0.0
        %1404 = vmatpush1.xpose.msra.mxu0 0.0
        %1405 = vmatprep.subr.mxu0 0.0
        %1406 = vmatpush1.xpose.msra.mxu0 0.0
        %1407 = vmatprep.subr.mxu0 0.0
        %1408 = vmatpush1.xpose.msra.mxu0 0.0
        %1409 = vmatprep.subr.mxu0 0.0
        %1410 = vmatpush1.xpose.msra.mxu0 0.0
        %1411 = vmatprep.subr.mxu0 0.0
        %1412 = vmatpush1.xpose.msra.mxu0 0.0
        %1413 = vmatprep.subr.mxu0 0.0
        %1414 = vmatpush1.xpose.msra.mxu0 0.0
        %1415 = vmatprep.subr.mxu0 0.0
        %1416 = vmatpush1.xpose.msra.mxu0 0.0
        %1417 = vmatprep.subr.mxu0 0.0
        %1418 = vmatpush1.xpose.msra.mxu0 0.0
        %1419 = vmatprep.subr.mxu0 0.0
        %1420 = vmatpush1.xpose.msra.mxu0 0.0
        %1421 = vmatprep.subr.mxu0 0.0
        %1422 = vmatpush1.xpose.msra.mxu0 0.0
        %1423 = vmatprep.subr.mxu0 0.0
        %1424 = vmatpush1.xpose.msra.mxu0 0.0
        %1425 = vmatprep.subr.mxu0 0.0
        %1426 = vmatpush1.xpose.msra.mxu0 0.0
        %1427 = vmatprep.subr.mxu0 0.0
        %1428 = vmatpush1.xpose.msra.mxu0 0.0
        %1429 = vmatprep.subr.mxu0 0.0
        %1430 = vmatpush1.xpose.msra.mxu0 0.0
        %1431 = vmatprep.subr.mxu0 0.0
        %1432 = vmatpush1.xpose.msra.mxu0 0.0
        %1433 = vmatprep.subr.mxu0 0.0
        %1434 = vmatpush1.xpose.msra.mxu0 0.0
        %1435 = vmatprep.subr.mxu0 0.0
        %1436 = vmatpush1.xpose.msra.mxu0 0.0
        %1437 = vmatprep.subr.mxu0 0.0
        %1438 = vmatpush1.xpose.msra.mxu0 0.0
        %1439 = vmatprep.subr.mxu0 0.0
        %1440 = vmatpush1.xpose.msra.mxu0 0.0
        %1441 = vmatprep.subr.mxu0 0.0
        %1442 = vmatpush1.xpose.msra.mxu0 0.0
        %1443 = vmatprep.subr.mxu0 0.0
        %1444 = vmatpush1.xpose.msra.mxu0 0.0
        %1445 = vmatprep.subr.mxu0 0.0
        %1446 = vmatpush1.xpose.msra.mxu0 0.0
        %1447 = vmatprep.subr.mxu0 0.0
        %1448 = vmatpush1.xpose.msra.mxu0 0.0
        %1449 = vmatprep.subr.mxu0 0.0
        %1450 = vmatpush1.xpose.msra.mxu0 0.0
        %1451 = vmatprep.mubr.f32.mxu0 0.0
        %1452 = vmatmul.mubr.f32.gmra.mrb[0].mxu0 %v1382
        %v1453 = vpop.f32.mrb[0].mxu0
        %v1454 = vadd.f32 0.0, %v1453
        %v1455 = vpop.f32.mrb[0].mxu0
        %1456 = vdwg.mxu0
        %v1457 = vmul.f32 %v1454, 0.35355338
        %v1458 = vsel %vm721, %v1457, -inf
        %1459 = vmax.xlane.f32.xlu0 %v1458
        %v1460 = vpop.xlane.xlu0 %1459
        %v1461 = vsub.f32 %v1457, %v1460
        %v1462 = vmul.f32 %v1461, 1.442695
        %v1463 = vpow.pop %v1462
        %v1464 = vsel %vm721, %v1463, 0.0
        %1465 = vadd.xlane.f32.xlu0 %v1464
        %v1466 = vpop.xlane.xlu0 %1465
        %v1467 = vrcp.pop %v1466
        %v1468 = vmul.f32 %v1463, %v1467
        %v1470 = vsel %vm721, %v1468, 0
        %1472 = vmatprep.subr.mxu0 0.0
        %1473 = vmatpush1.msra.mxu0 %v1217
        %1474 = vmatprep.subr.mxu0 0.0
        %1475 = vmatpush1.msra.mxu0 0.0
        %1476 = vmatprep.subr.mxu0 0.0
        %1477 = vmatpush1.msra.mxu0 0.0
        %1478 = vmatprep.subr.mxu0 0.0
        %1479 = vmatpush1.msra.mxu0 0.0
        %1480 = vmatprep.subr.mxu0 0.0
        %1481 = vmatpush1.msra.mxu0 0.0
        %1482 = vmatprep.subr.mxu0 0.0
        %1483 = vmatpush1.msra.mxu0 0.0
        %1484 = vmatprep.subr.mxu0 0.0
        %1485 = vmatpush1.msra.mxu0 0.0
        %1486 = vmatprep.subr.mxu0 0.0
        %1487 = vmatpush1.msra.mxu0 0.0
        %1488 = vmatprep.subr.mxu0 0.0
        %1489 = vmatpush1.msra.mxu0 0.0
        %1490 = vmatprep.subr.mxu0 0.0
        %1491 = vmatpush1.msra.mxu0 0.0
        %1492 = vmatprep.subr.mxu0 0.0
        %1493 = vmatpush1.msra.mxu0 0.0
        %1494 = vmatprep.subr.mxu0 0.0
        %1495 = vmatpush1.msra.mxu0 0.0
        %1496 = vmatprep.subr.mxu0 0.0
        %1497 = vmatpush1.msra.mxu0 0.0
        %1498 = vmatprep.subr.mxu0 0.0
        %1499 = vmatpush1.msra.mxu0 0.0
        %1500 = vmatprep.subr.mxu0 0.0
        %1501 = vmatpush1.msra.mxu0 0.0
        %1502 = vmatprep.subr.mxu0 0.0
        %1503 = vmatpush1.msra.mxu0 0.0
        %1504 = vmatprep.subr.mxu0 0.0
        %1505 = vmatpush1.msra.mxu0 0.0
        %1506 = vmatprep.subr.mxu0 0.0
        %1507 = vmatpush1.msra.mxu0 0.0
        %1508 = vmatprep.subr.mxu0 0.0
        %1509 = vmatpush1.msra.mxu0 0.0
        %1510 = vmatprep.subr.mxu0 0.0
        %1511 = vmatpush1.msra.mxu0 0.0
        %1512 = vmatprep.subr.mxu0 0.0
        %1513 = vmatpush1.msra.mxu0 0.0
        %1514 = vmatprep.subr.mxu0 0.0
        %1515 = vmatpush1.msra.mxu0 0.0
        %1516 = vmatprep.subr.mxu0 0.0
        %1517 = vmatpush1.msra.mxu0 0.0
        %1518 = vmatprep.subr.mxu0 0.0
        %1519 = vmatpush1.msra.mxu0 0.0
        %1520 = vmatprep.subr.mxu0 0.0
        %1521 = vmatpush1.msra.mxu0 0.0
        %1522 = vmatprep.subr.mxu0 0.0
        %1523 = vmatpush1.msra.mxu0 0.0
        %1524 = vmatprep.subr.mxu0 0.0
        %1525 = vmatpush1.msra.mxu0 0.0
        %1526 = vmatprep.subr.mxu0 0.0
        %1527 = vmatpush1.msra.mxu0 0.0
        %1528 = vmatprep.subr.mxu0 0.0
        %1529 = vmatpush1.msra.mxu0 0.0
        %1530 = vmatprep.subr.mxu0 0.0
        %1531 = vmatpush1.msra.mxu0 0.0
        %1532 = vmatprep.subr.mxu0 0.0
        %1533 = vmatpush1.msra.mxu0 0.0
        %1534 = vmatprep.subr.mxu0 0.0
        %1535 = vmatpush1.msra.mxu0 0.0
        %1536 = vmatprep.mubr.f32.mxu0 0.0
        %1537 = vmatmul.mubr.f32.gmra.mrb[0].mxu0 %v1470
        %v1538 = vpop.f32.mrb[0].mxu0
        %v1539 = vadd.f32 0.0, %v1538
        %v1540 = vpop.f32.mrb[0].mxu0
        %1541 = vdwg.mxu0
        %v1542 = vpack.c.bf16 %v1539, %v1378
        %s1543 = scalar_lea.vmem %s6, 4
        %v1544 = vld [vmem:[%s1543] sm:$0xf]
        %v1546 = vsel %vm721, %v1542, 0
        %vm1548 = vcmask 1043456
        %v1550 = vsel %vm1548, %v1544, 0
        %1552 = vmatprep.subr.bf16.mxu0 0
        %1553 = vmatpush1.bf16.msra.mxu0 %v1550
        %1554 = vmatprep.subr.bf16.mxu0 0
        %1555 = vmatpush1.bf16.msra.mxu0 0
        %1556 = vmatprep.subr.bf16.mxu0 0
        %1557 = vmatpush1.bf16.msra.mxu0 0
        %1558 = vmatprep.subr.bf16.mxu0 0
        %1559 = vmatpush1.bf16.msra.mxu0 0
        %1560 = vmatprep.subr.bf16.mxu0 0
        %1561 = vmatpush1.bf16.msra.mxu0 0
        %1562 = vmatprep.subr.bf16.mxu0 0
        %1563 = vmatpush1.bf16.msra.mxu0 0
        %1564 = vmatprep.subr.bf16.mxu0 0
        %1565 = vmatpush1.bf16.msra.mxu0 0
        %1566 = vmatprep.subr.bf16.mxu0 0
        %1567 = vmatpush1.bf16.msra.mxu0 0
        %1568 = vmatprep.subr.bf16.mxu0 0
        %1569 = vmatpush1.bf16.msra.mxu0 0
        %1570 = vmatprep.subr.bf16.mxu0 0
        %1571 = vmatpush1.bf16.msra.mxu0 0
        %1572 = vmatprep.subr.bf16.mxu0 0
        %1573 = vmatpush1.bf16.msra.mxu0 0
        %1574 = vmatprep.subr.bf16.mxu0 0
        %1575 = vmatpush1.bf16.msra.mxu0 0
        %1576 = vmatprep.subr.bf16.mxu0 0
        %1577 = vmatpush1.bf16.msra.mxu0 0
        %1578 = vmatprep.subr.bf16.mxu0 0
        %1579 = vmatpush1.bf16.msra.mxu0 0
        %1580 = vmatprep.subr.bf16.mxu0 0
        %1581 = vmatpush1.bf16.msra.mxu0 0
        %1582 = vmatprep.subr.bf16.mxu0 0
        %1583 = vmatpush1.bf16.msra.mxu0 0
        %1584 = vmatprep.mubr.bf16.mxu0 0
        %1585 = vmatmul.mubr.bf16.gmra.mrb[0].mxu0 %v1546
        %v1586 = vpop.f32.mrb[0].mxu0
        %v1587 = vadd.f32 0.0, %v1586
        %v1588 = vpop.f32.mrb[0].mxu0
        %v1589 = vpop.f32.mrb[0].mxu0
        %v1590 = vadd.f32 0.0, %v1589
        %v1591 = vpop.f32.mrb[0].mxu0
        %1592 = vdwg.mxu0
        %v1594 = vsel %vm721, %v1044, 0
        %v1597 = vsel %vm1548, %v1045, 0
        %1599 = vmatprep.subr.bf16.mxu0 0
        %1600 = vmatpush1.bf16.msra.mxu0 %v1597
        %1601 = vmatprep.subr.bf16.mxu0 0
        %1602 = vmatpush1.bf16.msra.mxu0 0
        %1603 = vmatprep.subr.bf16.mxu0 0
        %1604 = vmatpush1.bf16.msra.mxu0 0
        %1605 = vmatprep.subr.bf16.mxu0 0
        %1606 = vmatpush1.bf16.msra.mxu0 0
        %1607 = vmatprep.subr.bf16.mxu0 0
        %1608 = vmatpush1.bf16.msra.mxu0 0
        %1609 = vmatprep.subr.bf16.mxu0 0
        %1610 = vmatpush1.bf16.msra.mxu0 0
        %1611 = vmatprep.subr.bf16.mxu0 0
        %1612 = vmatpush1.bf16.msra.mxu0 0
        %1613 = vmatprep.subr.bf16.mxu0 0
        %1614 = vmatpush1.bf16.msra.mxu0 0
        %1615 = vmatprep.subr.bf16.mxu0 0
        %1616 = vmatpush1.bf16.msra.mxu0 0
        %1617 = vmatprep.subr.bf16.mxu0 0
        %1618 = vmatpush1.bf16.msra.mxu0 0
        %1619 = vmatprep.subr.bf16.mxu0 0
        %1620 = vmatpush1.bf16.msra.mxu0 0
        %1621 = vmatprep.subr.bf16.mxu0 0
        %1622 = vmatpush1.bf16.msra.mxu0 0
        %1623 = vmatprep.subr.bf16.mxu0 0
        %1624 = vmatpush1.bf16.msra.mxu0 0
        %1625 = vmatprep.subr.bf16.mxu0 0
        %1626 = vmatpush1.bf16.msra.mxu0 0
        %1627 = vmatprep.subr.bf16.mxu0 0
        %1628 = vmatpush1.bf16.msra.mxu0 0
        %1629 = vmatprep.subr.bf16.mxu0 0
        %1630 = vmatpush1.bf16.msra.mxu0 0
        %1631 = vmatprep.mubr.bf16.mxu0 0
        %1632 = vmatmul.mubr.bf16.gmra.mrb[0].mxu0 %v1594
        %v1633 = vpop.f32.mrb[0].mxu0
        %v1634 = vadd.f32 %v1587, %v1633
        %v1635 = vpop.f32.mrb[0].mxu0
        %v1636 = vpop.f32.mrb[0].mxu0
        %v1637 = vadd.f32 %v1590, %v1636
        %v1638 = vpop.f32.mrb[0].mxu0
        %1639 = vdwg.mxu0
        %s1640 = scalar_lea.vmem %s3, 32
        %v1641 = vld [vmem:[%s1640] sm:$0xf]
        %v1642 = vld [vmem:[%s1640 + $0x4] sm:$0xf]
        %v1643 = vld [vmem:[%s1640 + $0x8] sm:$0xf]
        %v1644 = vld [vmem:[%s1640 + $0xc] sm:$0xf]
        %v1649 = vunpack.c.l.b16 %v1641
        %v1650 = vunpack.c.l.b16 %v1642
        %v1651 = vunpack.c.l.b16 %v1643
        %v1652 = vunpack.c.l.b16 %v1644
        %v1653 = vpack.c.b16 %v1650, %v1649
        %v1654 = vpack.c.b16 %v1652, %v1651
        %1657 = vmatprep.subr.bf16.mxu0 0
        %1658 = vmatpush1.bf16.msra.mxu0 %v1653
        %1659 = vmatprep.subr.bf16.mxu0 0
        %1660 = vmatpush1.bf16.msra.mxu0 %v1654
        %1661 = vmatprep.subr.bf16.mxu0 0
        %1662 = vmatpush1.bf16.msra.mxu0 0
        %1663 = vmatprep.subr.bf16.mxu0 0
        %1664 = vmatpush1.bf16.msra.mxu0 0
        %1665 = vmatprep.subr.bf16.mxu0 0
        %1666 = vmatpush1.bf16.msra.mxu0 0
        %1667 = vmatprep.subr.bf16.mxu0 0
        %1668 = vmatpush1.bf16.msra.mxu0 0
        %1669 = vmatprep.subr.bf16.mxu0 0
        %1670 = vmatpush1.bf16.msra.mxu0 0
        %1671 = vmatprep.subr.bf16.mxu0 0
        %1672 = vmatpush1.bf16.msra.mxu0 0
        %1673 = vmatprep.subr.bf16.mxu0 0
        %1674 = vmatpush1.bf16.msra.mxu0 0
        %1675 = vmatprep.subr.bf16.mxu0 0
        %1676 = vmatpush1.bf16.msra.mxu0 0
        %1677 = vmatprep.subr.bf16.mxu0 0
        %1678 = vmatpush1.bf16.msra.mxu0 0
        %1679 = vmatprep.subr.bf16.mxu0 0
        %1680 = vmatpush1.bf16.msra.mxu0 0
        %1681 = vmatprep.subr.bf16.mxu0 0
        %1682 = vmatpush1.bf16.msra.mxu0 0
        %1683 = vmatprep.subr.bf16.mxu0 0
        %1684 = vmatpush1.bf16.msra.mxu0 0
        %1685 = vmatprep.subr.bf16.mxu0 0
        %1686 = vmatpush1.bf16.msra.mxu0 0
        %1687 = vmatprep.subr.bf16.mxu0 0
        %1688 = vmatpush1.bf16.msra.mxu0 0
        %1689 = vmatprep.mubr.bf16.mxu0 0
        %1690 = vmatmul.mubr.bf16.gmra.mrb[0].mxu0 %v564
        %v1691 = vpop.f32.mrb[0].mxu0
        %v1692 = vadd.f32 0.0, %v1691
        %v1693 = vpop.f32.mrb[0].mxu0
        %v1694 = vpop.f32.mrb[0].mxu0
        %v1695 = vadd.f32 0.0, %v1694
        %v1696 = vpop.f32.mrb[0].mxu0
        %1697 = vdwg.mxu0
        %s1698 = scalar_lea.vmem %s4, 32
        %v1699 = vld [vmem:[%s1698] sm:$0xf]
        %v1700 = vld [vmem:[%s1698 + $0x4] sm:$0xf]
        %v1701 = vld [vmem:[%s1698 + $0x8] sm:$0xf]
        %v1702 = vld [vmem:[%s1698 + $0xc] sm:$0xf]
        %v1707 = vunpack.c.l.b16 %v1699
        %v1708 = vunpack.c.l.b16 %v1700
        %v1709 = vunpack.c.l.b16 %v1701
        %v1710 = vunpack.c.l.b16 %v1702
        %v1711 = vpack.c.b16 %v1708, %v1707
        %v1712 = vpack.c.b16 %v1710, %v1709
        %1715 = vmatprep.subr.bf16.mxu0 0
        %1716 = vmatpush1.bf16.msra.mxu0 %v1711
        %1717 = vmatprep.subr.bf16.mxu0 0
        %1718 = vmatpush1.bf16.msra.mxu0 %v1712
        %1719 = vmatprep.subr.bf16.mxu0 0
        %1720 = vmatpush1.bf16.msra.mxu0 0
        %1721 = vmatprep.subr.bf16.mxu0 0
        %1722 = vmatpush1.bf16.msra.mxu0 0
        %1723 = vmatprep.subr.bf16.mxu0 0
        %1724 = vmatpush1.bf16.msra.mxu0 0
        %1725 = vmatprep.subr.bf16.mxu0 0
        %1726 = vmatpush1.bf16.msra.mxu0 0
        %1727 = vmatprep.subr.bf16.mxu0 0
        %1728 = vmatpush1.bf16.msra.mxu0 0
        %1729 = vmatprep.subr.bf16.mxu0 0
        %1730 = vmatpush1.bf16.msra.mxu0 0
        %1731 = vmatprep.subr.bf16.mxu0 0
        %1732 = vmatpush1.bf16.msra.mxu0 0
        %1733 = vmatprep.subr.bf16.mxu0 0
        %1734 = vmatpush1.bf16.msra.mxu0 0
        %1735 = vmatprep.subr.bf16.mxu0 0
        %1736 = vmatpush1.bf16.msra.mxu0 0
        %1737 = vmatprep.subr.bf16.mxu0 0
        %1738 = vmatpush1.bf16.msra.mxu0 0
        %1739 = vmatprep.subr.bf16.mxu0 0
        %1740 = vmatpush1.bf16.msra.mxu0 0
        %1741 = vmatprep.subr.bf16.mxu0 0
        %1742 = vmatpush1.bf16.msra.mxu0 0
        %1743 = vmatprep.subr.bf16.mxu0 0
        %1744 = vmatpush1.bf16.msra.mxu0 0
        %1745 = vmatprep.subr.bf16.mxu0 0
        %1746 = vmatpush1.bf16.msra.mxu0 0
        %1747 = vmatprep.mubr.bf16.mxu0 0
        %1748 = vmatmul.mubr.bf16.gmra.mrb[0].mxu0 %v564
        %v1749 = vpop.f32.mrb[0].mxu0
        %v1750 = vadd.f32 0.0, %v1749
        %v1751 = vpop.f32.mrb[0].mxu0
        %v1752 = vpop.f32.mrb[0].mxu0
        %v1753 = vadd.f32 0.0, %v1752
        %v1754 = vpop.f32.mrb[0].mxu0
        %1755 = vdwg.mxu0
        %s1756 = scalar_lea.vmem %s5, 32
        %v1757 = vld [vmem:[%s1756] sm:$0xf]
        %v1758 = vld [vmem:[%s1756 + $0x4] sm:$0xf]
        %v1759 = vld [vmem:[%s1756 + $0x8] sm:$0xf]
        %v1760 = vld [vmem:[%s1756 + $0xc] sm:$0xf]
        %v1765 = vunpack.c.l.b16 %v1757
        %v1766 = vunpack.c.l.b16 %v1758
        %v1767 = vunpack.c.l.b16 %v1759
        %v1768 = vunpack.c.l.b16 %v1760
        %v1769 = vpack.c.b16 %v1766, %v1765
        %v1770 = vpack.c.b16 %v1768, %v1767
        %1773 = vmatprep.subr.bf16.mxu0 0
        %1774 = vmatpush1.bf16.msra.mxu0 %v1769
        %1775 = vmatprep.subr.bf16.mxu0 0
        %1776 = vmatpush1.bf16.msra.mxu0 %v1770
        %1777 = vmatprep.subr.bf16.mxu0 0
        %1778 = vmatpush1.bf16.msra.mxu0 0
        %1779 = vmatprep.subr.bf16.mxu0 0
        %1780 = vmatpush1.bf16.msra.mxu0 0
        %1781 = vmatprep.subr.bf16.mxu0 0
        %1782 = vmatpush1.bf16.msra.mxu0 0
        %1783 = vmatprep.subr.bf16.mxu0 0
        %1784 = vmatpush1.bf16.msra.mxu0 0
        %1785 = vmatprep.subr.bf16.mxu0 0
        %1786 = vmatpush1.bf16.msra.mxu0 0
        %1787 = vmatprep.subr.bf16.mxu0 0
        %1788 = vmatpush1.bf16.msra.mxu0 0
        %1789 = vmatprep.subr.bf16.mxu0 0
        %1790 = vmatpush1.bf16.msra.mxu0 0
        %1791 = vmatprep.subr.bf16.mxu0 0
        %1792 = vmatpush1.bf16.msra.mxu0 0
        %1793 = vmatprep.subr.bf16.mxu0 0
        %1794 = vmatpush1.bf16.msra.mxu0 0
        %1795 = vmatprep.subr.bf16.mxu0 0
        %1796 = vmatpush1.bf16.msra.mxu0 0
        %1797 = vmatprep.subr.bf16.mxu0 0
        %1798 = vmatpush1.bf16.msra.mxu0 0
        %1799 = vmatprep.subr.bf16.mxu0 0
        %1800 = vmatpush1.bf16.msra.mxu0 0
        %1801 = vmatprep.subr.bf16.mxu0 0
        %1802 = vmatpush1.bf16.msra.mxu0 0
        %1803 = vmatprep.subr.bf16.mxu0 0
        %1804 = vmatpush1.bf16.msra.mxu0 0
        %1805 = vmatprep.mubr.bf16.mxu0 0
        %1806 = vmatmul.mubr.bf16.gmra.mrb[0].mxu0 %v564
        %v1807 = vpop.f32.mrb[0].mxu0
        %v1808 = vadd.f32 0.0, %v1807
        %v1809 = vpop.f32.mrb[0].mxu0
        %v1810 = vpop.f32.mrb[0].mxu0
        %v1811 = vadd.f32 0.0, %v1810
        %v1812 = vpop.f32.mrb[0].mxu0
        %1813 = vdwg.mxu0
        %v1815 = vsel %vm721, %v1692, 0
        %v1818 = vsel %vm721, %v1750, 0
        %1820 = vmatprep.subr.mxu0 0.0
        %1821 = vmatpush1.xpose.msra.mxu0 %v1818
        %1822 = vmatprep.subr.mxu0 0.0
        %1823 = vmatpush1.xpose.msra.mxu0 0.0
        %1824 = vmatprep.subr.mxu0 0.0
        %1825 = vmatpush1.xpose.msra.mxu0 0.0
        %1826 = vmatprep.subr.mxu0 0.0
        %1827 = vmatpush1.xpose.msra.mxu0 0.0
        %1828 = vmatprep.subr.mxu0 0.0
        %1829 = vmatpush1.xpose.msra.mxu0 0.0
        %1830 = vmatprep.subr.mxu0 0.0
        %1831 = vmatpush1.xpose.msra.mxu0 0.0
        %1832 = vmatprep.subr.mxu0 0.0
        %1833 = vmatpush1.xpose.msra.mxu0 0.0
        %1834 = vmatprep.subr.mxu0 0.0
        %1835 = vmatpush1.xpose.msra.mxu0 0.0
        %1836 = vmatprep.subr.mxu0 0.0
        %1837 = vmatpush1.xpose.msra.mxu0 0.0
        %1838 = vmatprep.subr.mxu0 0.0
        %1839 = vmatpush1.xpose.msra.mxu0 0.0
        %1840 = vmatprep.subr.mxu0 0.0
        %1841 = vmatpush1.xpose.msra.mxu0 0.0
        %1842 = vmatprep.subr.mxu0 0.0
        %1843 = vmatpush1.xpose.msra.mxu0 0.0
        %1844 = vmatprep.subr.mxu0 0.0
        %1845 = vmatpush1.xpose.msra.mxu0 0.0
        %1846 = vmatprep.subr.mxu0 0.0
        %1847 = vmatpush1.xpose.msra.mxu0 0.0
        %1848 = vmatprep.subr.mxu0 0.0
        %1849 = vmatpush1.xpose.msra.mxu0 0.0
        %1850 = vmatprep.subr.mxu0 0.0
        %1851 = vmatpush1.xpose.msra.mxu0 0.0
        %1852 = vmatprep.subr.mxu0 0.0
        %1853 = vmatpush1.xpose.msra.mxu0 0.0
        %1854 = vmatprep.subr.mxu0 0.0
        %1855 = vmatpush1.xpose.msra.mxu0 0.0
        %1856 = vmatprep.subr.mxu0 0.0
        %1857 = vmatpush1.xpose.msra.mxu0 0.0
        %1858 = vmatprep.subr.mxu0 0.0
        %1859 = vmatpush1.xpose.msra.mxu0 0.0
        %1860 = vmatprep.subr.mxu0 0.0
        %1861 = vmatpush1.xpose.msra.mxu0 0.0
        %1862 = vmatprep.subr.mxu0 0.0
        %1863 = vmatpush1.xpose.msra.mxu0 0.0
        %1864 = vmatprep.subr.mxu0 0.0
        %1865 = vmatpush1.xpose.msra.mxu0 0.0
        %1866 = vmatprep.subr.mxu0 0.0
        %1867 = vmatpush1.xpose.msra.mxu0 0.0
        %1868 = vmatprep.subr.mxu0 0.0
        %1869 = vmatpush1.xpose.msra.mxu0 0.0
        %1870 = vmatprep.subr.mxu0 0.0
        %1871 = vmatpush1.xpose.msra.mxu0 0.0
        %1872 = vmatprep.subr.mxu0 0.0
        %1873 = vmatpush1.xpose.msra.mxu0 0.0
        %1874 = vmatprep.subr.mxu0 0.0
        %1875 = vmatpush1.xpose.msra.mxu0 0.0
        %1876 = vmatprep.subr.mxu0 0.0
        %1877 = vmatpush1.xpose.msra.mxu0 0.0
        %1878 = vmatprep.subr.mxu0 0.0
        %1879 = vmatpush1.xpose.msra.mxu0 0.0
        %1880 = vmatprep.subr.mxu0 0.0
        %1881 = vmatpush1.xpose.msra.mxu0 0.0
        %1882 = vmatprep.subr.mxu0 0.0
        %1883 = vmatpush1.xpose.msra.mxu0 0.0
        %1884 = vmatprep.mubr.f32.mxu0 0.0
        %1885 = vmatmul.mubr.f32.gmra.mrb[0].mxu0 %v1815
        %v1886 = vpop.f32.mrb[0].mxu0
        %v1887 = vadd.f32 0.0, %v1886
        %v1888 = vpop.f32.mrb[0].mxu0
        %1889 = vdwg.mxu0
        %v1890 = vmul.f32 %v1887, 0.35355338
        %v1891 = vsel %vm721, %v1890, -inf
        %1892 = vmax.xlane.f32.xlu0 %v1891
        %v1893 = vpop.xlane.xlu0 %1892
        %v1894 = vsub.f32 %v1890, %v1893
        %v1895 = vmul.f32 %v1894, 1.442695
        %v1896 = vpow.pop %v1895
        %v1897 = vsel %vm721, %v1896, 0.0
        %1898 = vadd.xlane.f32.xlu0 %v1897
        %v1899 = vpop.xlane.xlu0 %1898
        %v1900 = vrcp.pop %v1899
        %v1901 = vmul.f32 %v1896, %v1900
        %v1903 = vsel %vm721, %v1901, 0
        %1905 = vmatprep.subr.mxu0 0.0
        %1906 = vmatpush1.msra.mxu0 %v1808
        %1907 = vmatprep.subr.mxu0 0.0
        %1908 = vmatpush1.msra.mxu0 0.0
        %1909 = vmatprep.subr.mxu0 0.0
        %1910 = vmatpush1.msra.mxu0 0.0
        %1911 = vmatprep.subr.mxu0 0.0
        %1912 = vmatpush1.msra.mxu0 0.0
        %1913 = vmatprep.subr.mxu0 0.0
        %1914 = vmatpush1.msra.mxu0 0.0
        %1915 = vmatprep.subr.mxu0 0.0
        %1916 = vmatpush1.msra.mxu0 0.0
        %1917 = vmatprep.subr.mxu0 0.0
        %1918 = vmatpush1.msra.mxu0 0.0
        %1919 = vmatprep.subr.mxu0 0.0
        %1920 = vmatpush1.msra.mxu0 0.0
        %1921 = vmatprep.subr.mxu0 0.0
        %1922 = vmatpush1.msra.mxu0 0.0
        %1923 = vmatprep.subr.mxu0 0.0
        %1924 = vmatpush1.msra.mxu0 0.0
        %1925 = vmatprep.subr.mxu0 0.0
        %1926 = vmatpush1.msra.mxu0 0.0
        %1927 = vmatprep.subr.mxu0 0.0
        %1928 = vmatpush1.msra.mxu0 0.0
        %1929 = vmatprep.subr.mxu0 0.0
        %1930 = vmatpush1.msra.mxu0 0.0
        %1931 = vmatprep.subr.mxu0 0.0
        %1932 = vmatpush1.msra.mxu0 0.0
        %1933 = vmatprep.subr.mxu0 0.0
        %1934 = vmatpush1.msra.mxu0 0.0
        %1935 = vmatprep.subr.mxu0 0.0
        %1936 = vmatpush1.msra.mxu0 0.0
        %1937 = vmatprep.subr.mxu0 0.0
        %1938 = vmatpush1.msra.mxu0 0.0
        %1939 = vmatprep.subr.mxu0 0.0
        %1940 = vmatpush1.msra.mxu0 0.0
        %1941 = vmatprep.subr.mxu0 0.0
        %1942 = vmatpush1.msra.mxu0 0.0
        %1943 = vmatprep.subr.mxu0 0.0
        %1944 = vmatpush1.msra.mxu0 0.0
        %1945 = vmatprep.subr.mxu0 0.0
        %1946 = vmatpush1.msra.mxu0 0.0
        %1947 = vmatprep.subr.mxu0 0.0
        %1948 = vmatpush1.msra.mxu0 0.0
        %1949 = vmatprep.subr.mxu0 0.0
        %1950 = vmatpush1.msra.mxu0 0.0
        %1951 = vmatprep.subr.mxu0 0.0
        %1952 = vmatpush1.msra.mxu0 0.0
        %1953 = vmatprep.subr.mxu0 0.0
        %1954 = vmatpush1.msra.mxu0 0.0
        %1955 = vmatprep.subr.mxu0 0.0
        %1956 = vmatpush1.msra.mxu0 0.0
        %1957 = vmatprep.subr.mxu0 0.0
        %1958 = vmatpush1.msra.mxu0 0.0
        %1959 = vmatprep.subr.mxu0 0.0
        %1960 = vmatpush1.msra.mxu0 0.0
        %1961 = vmatprep.subr.mxu0 0.0
        %1962 = vmatpush1.msra.mxu0 0.0
        %1963 = vmatprep.subr.mxu0 0.0
        %1964 = vmatpush1.msra.mxu0 0.0
        %1965 = vmatprep.subr.mxu0 0.0
        %1966 = vmatpush1.msra.mxu0 0.0
        %1967 = vmatprep.subr.mxu0 0.0
        %1968 = vmatpush1.msra.mxu0 0.0
        %1969 = vmatprep.mubr.f32.mxu0 0.0
        %1970 = vmatmul.mubr.f32.gmra.mrb[0].mxu0 %v1903
        %v1971 = vpop.f32.mrb[0].mxu0
        %v1972 = vadd.f32 0.0, %v1971
        %v1973 = vpop.f32.mrb[0].mxu0
        %1974 = vdwg.mxu0
        %v1976 = vsel %vm721, %v1695, 0
        %v1979 = vsel %vm721, %v1753, 0
        %1981 = vmatprep.subr.mxu0 0.0
        %1982 = vmatpush1.xpose.msra.mxu0 %v1979
        %1983 = vmatprep.subr.mxu0 0.0
        %1984 = vmatpush1.xpose.msra.mxu0 0.0
        %1985 = vmatprep.subr.mxu0 0.0
        %1986 = vmatpush1.xpose.msra.mxu0 0.0
        %1987 = vmatprep.subr.mxu0 0.0
        %1988 = vmatpush1.xpose.msra.mxu0 0.0
        %1989 = vmatprep.subr.mxu0 0.0
        %1990 = vmatpush1.xpose.msra.mxu0 0.0
        %1991 = vmatprep.subr.mxu0 0.0
        %1992 = vmatpush1.xpose.msra.mxu0 0.0
        %1993 = vmatprep.subr.mxu0 0.0
        %1994 = vmatpush1.xpose.msra.mxu0 0.0
        %1995 = vmatprep.subr.mxu0 0.0
        %1996 = vmatpush1.xpose.msra.mxu0 0.0
        %1997 = vmatprep.subr.mxu0 0.0
        %1998 = vmatpush1.xpose.msra.mxu0 0.0
        %1999 = vmatprep.subr.mxu0 0.0
        %2000 = vmatpush1.xpose.msra.mxu0 0.0
        %2001 = vmatprep.subr.mxu0 0.0
        %2002 = vmatpush1.xpose.msra.mxu0 0.0
        %2003 = vmatprep.subr.mxu0 0.0
        %2004 = vmatpush1.xpose.msra.mxu0 0.0
        %2005 = vmatprep.subr.mxu0 0.0
        %2006 = vmatpush1.xpose.msra.mxu0 0.0
        %2007 = vmatprep.subr.mxu0 0.0
        %2008 = vmatpush1.xpose.msra.mxu0 0.0
        %2009 = vmatprep.subr.mxu0 0.0
        %2010 = vmatpush1.xpose.msra.mxu0 0.0
        %2011 = vmatprep.subr.mxu0 0.0
        %2012 = vmatpush1.xpose.msra.mxu0 0.0
        %2013 = vmatprep.subr.mxu0 0.0
        %2014 = vmatpush1.xpose.msra.mxu0 0.0
        %2015 = vmatprep.subr.mxu0 0.0
        %2016 = vmatpush1.xpose.msra.mxu0 0.0
        %2017 = vmatprep.subr.mxu0 0.0
        %2018 = vmatpush1.xpose.msra.mxu0 0.0
        %2019 = vmatprep.subr.mxu0 0.0
        %2020 = vmatpush1.xpose.msra.mxu0 0.0
        %2021 = vmatprep.subr.mxu0 0.0
        %2022 = vmatpush1.xpose.msra.mxu0 0.0
        %2023 = vmatprep.subr.mxu0 0.0
        %2024 = vmatpush1.xpose.msra.mxu0 0.0
        %2025 = vmatprep.subr.mxu0 0.0
        %2026 = vmatpush1.xpose.msra.mxu0 0.0
        %2027 = vmatprep.subr.mxu0 0.0
        %2028 = vmatpush1.xpose.msra.mxu0 0.0
        %2029 = vmatprep.subr.mxu0 0.0
        %2030 = vmatpush1.xpose.msra.mxu0 0.0
        %2031 = vmatprep.subr.mxu0 0.0
        %2032 = vmatpush1.xpose.msra.mxu0 0.0
        %2033 = vmatprep.subr.mxu0 0.0
        %2034 = vmatpush1.xpose.msra.mxu0 0.0
        %2035 = vmatprep.subr.mxu0 0.0
        %2036 = vmatpush1.xpose.msra.mxu0 0.0
        %2037 = vmatprep.subr.mxu0 0.0
        %2038 = vmatpush1.xpose.msra.mxu0 0.0
        %2039 = vmatprep.subr.mxu0 0.0
        %2040 = vmatpush1.xpose.msra.mxu0 0.0
        %2041 = vmatprep.subr.mxu0 0.0
        %2042 = vmatpush1.xpose.msra.mxu0 0.0
        %2043 = vmatprep.subr.mxu0 0.0
        %2044 = vmatpush1.xpose.msra.mxu0 0.0
        %2045 = vmatprep.mubr.f32.mxu0 0.0
        %2046 = vmatmul.mubr.f32.gmra.mrb[0].mxu0 %v1976
        %v2047 = vpop.f32.mrb[0].mxu0
        %v2048 = vadd.f32 0.0, %v2047
        %v2049 = vpop.f32.mrb[0].mxu0
        %2050 = vdwg.mxu0
        %v2051 = vmul.f32 %v2048, 0.35355338
        %v2052 = vsel %vm721, %v2051, -inf
        %2053 = vmax.xlane.f32.xlu0 %v2052
        %v2054 = vpop.xlane.xlu0 %2053
        %v2055 = vsub.f32 %v2051, %v2054
        %v2056 = vmul.f32 %v2055, 1.442695
        %v2057 = vpow.pop %v2056
        %v2058 = vsel %vm721, %v2057, 0.0
        %2059 = vadd.xlane.f32.xlu0 %v2058
        %v2060 = vpop.xlane.xlu0 %2059
        %v2061 = vrcp.pop %v2060
        %v2062 = vmul.f32 %v2057, %v2061
        %v2064 = vsel %vm721, %v2062, 0
        %2066 = vmatprep.subr.mxu0 0.0
        %2067 = vmatpush1.msra.mxu0 %v1811
        %2068 = vmatprep.subr.mxu0 0.0
        %2069 = vmatpush1.msra.mxu0 0.0
        %2070 = vmatprep.subr.mxu0 0.0
        %2071 = vmatpush1.msra.mxu0 0.0
        %2072 = vmatprep.subr.mxu0 0.0
        %2073 = vmatpush1.msra.mxu0 0.0
        %2074 = vmatprep.subr.mxu0 0.0
        %2075 = vmatpush1.msra.mxu0 0.0
        %2076 = vmatprep.subr.mxu0 0.0
        %2077 = vmatpush1.msra.mxu0 0.0
        %2078 = vmatprep.subr.mxu0 0.0
        %2079 = vmatpush1.msra.mxu0 0.0
        %2080 = vmatprep.subr.mxu0 0.0
        %2081 = vmatpush1.msra.mxu0 0.0
        %2082 = vmatprep.subr.mxu0 0.0
        %2083 = vmatpush1.msra.mxu0 0.0
        %2084 = vmatprep.subr.mxu0 0.0
        %2085 = vmatpush1.msra.mxu0 0.0
        %2086 = vmatprep.subr.mxu0 0.0
        %2087 = vmatpush1.msra.mxu0 0.0
        %2088 = vmatprep.subr.mxu0 0.0
        %2089 = vmatpush1.msra.mxu0 0.0
        %2090 = vmatprep.subr.mxu0 0.0
        %2091 = vmatpush1.msra.mxu0 0.0
        %2092 = vmatprep.subr.mxu0 0.0
        %2093 = vmatpush1.msra.mxu0 0.0
        %2094 = vmatprep.subr.mxu0 0.0
        %2095 = vmatpush1.msra.mxu0 0.0
        %2096 = vmatprep.subr.mxu0 0.0
        %2097 = vmatpush1.msra.mxu0 0.0
        %2098 = vmatprep.subr.mxu0 0.0
        %2099 = vmatpush1.msra.mxu0 0.0
        %2100 = vmatprep.subr.mxu0 0.0
        %2101 = vmatpush1.msra.mxu0 0.0
        %2102 = vmatprep.subr.mxu0 0.0
        %2103 = vmatpush1.msra.mxu0 0.0
        %2104 = vmatprep.subr.mxu0 0.0
        %2105 = vmatpush1.msra.mxu0 0.0
        %2106 = vmatprep.subr.mxu0 0.0
        %2107 = vmatpush1.msra.mxu0 0.0
        %2108 = vmatprep.subr.mxu0 0.0
        %2109 = vmatpush1.msra.mxu0 0.0
        %2110 = vmatprep.subr.mxu0 0.0
        %2111 = vmatpush1.msra.mxu0 0.0
        %2112 = vmatprep.subr.mxu0 0.0
        %2113 = vmatpush1.msra.mxu0 0.0
        %2114 = vmatprep.subr.mxu0 0.0
        %2115 = vmatpush1.msra.mxu0 0.0
        %2116 = vmatprep.subr.mxu0 0.0
        %2117 = vmatpush1.msra.mxu0 0.0
        %2118 = vmatprep.subr.mxu0 0.0
        %2119 = vmatpush1.msra.mxu0 0.0
        %2120 = vmatprep.subr.mxu0 0.0
        %2121 = vmatpush1.msra.mxu0 0.0
        %2122 = vmatprep.subr.mxu0 0.0
        %2123 = vmatpush1.msra.mxu0 0.0
        %2124 = vmatprep.subr.mxu0 0.0
        %2125 = vmatpush1.msra.mxu0 0.0
        %2126 = vmatprep.subr.mxu0 0.0
        %2127 = vmatpush1.msra.mxu0 0.0
        %2128 = vmatprep.subr.mxu0 0.0
        %2129 = vmatpush1.msra.mxu0 0.0
        %2130 = vmatprep.mubr.f32.mxu0 0.0
        %2131 = vmatmul.mubr.f32.gmra.mrb[0].mxu0 %v2064
        %v2132 = vpop.f32.mrb[0].mxu0
        %v2133 = vadd.f32 0.0, %v2132
        %v2134 = vpop.f32.mrb[0].mxu0
        %2135 = vdwg.mxu0
        %v2136 = vpack.c.bf16 %v2133, %v1972
        %s2137 = scalar_lea.vmem %s6, 8
        %v2138 = vld [vmem:[%s2137] sm:$0xf]
        %v2140 = vsel %vm721, %v2136, 0
        %v2143 = vsel %vm1548, %v2138, 0
        %2145 = vmatprep.subr.bf16.mxu0 0
        %2146 = vmatpush1.bf16.msra.mxu0 %v2143
        %2147 = vmatprep.subr.bf16.mxu0 0
        %2148 = vmatpush1.bf16.msra.mxu0 0
        %2149 = vmatprep.subr.bf16.mxu0 0
        %2150 = vmatpush1.bf16.msra.mxu0 0
        %2151 = vmatprep.subr.bf16.mxu0 0
        %2152 = vmatpush1.bf16.msra.mxu0 0
        %2153 = vmatprep.subr.bf16.mxu0 0
        %2154 = vmatpush1.bf16.msra.mxu0 0
        %2155 = vmatprep.subr.bf16.mxu0 0
        %2156 = vmatpush1.bf16.msra.mxu0 0
        %2157 = vmatprep.subr.bf16.mxu0 0
        %2158 = vmatpush1.bf16.msra.mxu0 0
        %2159 = vmatprep.subr.bf16.mxu0 0
        %2160 = vmatpush1.bf16.msra.mxu0 0
        %2161 = vmatprep.subr.bf16.mxu0 0
        %2162 = vmatpush1.bf16.msra.mxu0 0
        %2163 = vmatprep.subr.bf16.mxu0 0
        %2164 = vmatpush1.bf16.msra.mxu0 0
        %2165 = vmatprep.subr.bf16.mxu0 0
        %2166 = vmatpush1.bf16.msra.mxu0 0
        %2167 = vmatprep.subr.bf16.mxu0 0
        %2168 = vmatpush1.bf16.msra.mxu0 0
        %2169 = vmatprep.subr.bf16.mxu0 0
        %2170 = vmatpush1.bf16.msra.mxu0 0
        %2171 = vmatprep.subr.bf16.mxu0 0
        %2172 = vmatpush1.bf16.msra.mxu0 0
        %2173 = vmatprep.subr.bf16.mxu0 0
        %2174 = vmatpush1.bf16.msra.mxu0 0
        %2175 = vmatprep.subr.bf16.mxu0 0
        %2176 = vmatpush1.bf16.msra.mxu0 0
        %2177 = vmatprep.mubr.bf16.mxu0 0
        %2178 = vmatmul.mubr.bf16.gmra.mrb[0].mxu0 %v2140
        %v2179 = vpop.f32.mrb[0].mxu0
        %v2180 = vadd.f32 0.0, %v2179
        %v2181 = vpop.f32.mrb[0].mxu0
        %v2182 = vpop.f32.mrb[0].mxu0
        %v2183 = vadd.f32 0.0, %v2182
        %v2184 = vpop.f32.mrb[0].mxu0
        %2185 = vdwg.mxu0
        %v2186 = vadd.f32 %v1634, %v2180
        %v2187 = vadd.f32 %v1637, %v2183
        %s2188 = scalar_lea.vmem %s3, 48
        %v2189 = vld [vmem:[%s2188] sm:$0xf]
        %v2190 = vld [vmem:[%s2188 + $0x4] sm:$0xf]
        %v2191 = vld [vmem:[%s2188 + $0x8] sm:$0xf]
        %v2192 = vld [vmem:[%s2188 + $0xc] sm:$0xf]
        %v2197 = vunpack.c.l.b16 %v2189
        %v2198 = vunpack.c.l.b16 %v2190
        %v2199 = vunpack.c.l.b16 %v2191
        %v2200 = vunpack.c.l.b16 %v2192
        %v2201 = vpack.c.b16 %v2198, %v2197
        %v2202 = vpack.c.b16 %v2200, %v2199
        %2205 = vmatprep.subr.bf16.mxu0 0
        %2206 = vmatpush1.bf16.msra.mxu0 %v2201
        %2207 = vmatprep.subr.bf16.mxu0 0
        %2208 = vmatpush1.bf16.msra.mxu0 %v2202
        %2209 = vmatprep.subr.bf16.mxu0 0
        %2210 = vmatpush1.bf16.msra.mxu0 0
        %2211 = vmatprep.subr.bf16.mxu0 0
        %2212 = vmatpush1.bf16.msra.mxu0 0
        %2213 = vmatprep.subr.bf16.mxu0 0
        %2214 = vmatpush1.bf16.msra.mxu0 0
        %2215 = vmatprep.subr.bf16.mxu0 0
        %2216 = vmatpush1.bf16.msra.mxu0 0
        %2217 = vmatprep.subr.bf16.mxu0 0
        %2218 = vmatpush1.bf16.msra.mxu0 0
        %2219 = vmatprep.subr.bf16.mxu0 0
        %2220 = vmatpush1.bf16.msra.mxu0 0
        %2221 = vmatprep.subr.bf16.mxu0 0
        %2222 = vmatpush1.bf16.msra.mxu0 0
        %2223 = vmatprep.subr.bf16.mxu0 0
        %2224 = vmatpush1.bf16.msra.mxu0 0
        %2225 = vmatprep.subr.bf16.mxu0 0
        %2226 = vmatpush1.bf16.msra.mxu0 0
        %2227 = vmatprep.subr.bf16.mxu0 0
        %2228 = vmatpush1.bf16.msra.mxu0 0
        %2229 = vmatprep.subr.bf16.mxu0 0
        %2230 = vmatpush1.bf16.msra.mxu0 0
        %2231 = vmatprep.subr.bf16.mxu0 0
        %2232 = vmatpush1.bf16.msra.mxu0 0
        %2233 = vmatprep.subr.bf16.mxu0 0
        %2234 = vmatpush1.bf16.msra.mxu0 0
        %2235 = vmatprep.subr.bf16.mxu0 0
        %2236 = vmatpush1.bf16.msra.mxu0 0
        %2237 = vmatprep.mubr.bf16.mxu0 0
        %2238 = vmatmul.mubr.bf16.gmra.mrb[0].mxu0 %v564
        %v2239 = vpop.f32.mrb[0].mxu0
        %v2240 = vadd.f32 0.0, %v2239
        %v2241 = vpop.f32.mrb[0].mxu0
        %v2242 = vpop.f32.mrb[0].mxu0
        %v2243 = vadd.f32 0.0, %v2242
        %v2244 = vpop.f32.mrb[0].mxu0
        %2245 = vdwg.mxu0
        %s2246 = scalar_lea.vmem %s4, 48
        %v2247 = vld [vmem:[%s2246] sm:$0xf]
        %v2248 = vld [vmem:[%s2246 + $0x4] sm:$0xf]
        %v2249 = vld [vmem:[%s2246 + $0x8] sm:$0xf]
        %v2250 = vld [vmem:[%s2246 + $0xc] sm:$0xf]
        %v2255 = vunpack.c.l.b16 %v2247
        %v2256 = vunpack.c.l.b16 %v2248
        %v2257 = vunpack.c.l.b16 %v2249
        %v2258 = vunpack.c.l.b16 %v2250
        %v2259 = vpack.c.b16 %v2256, %v2255
        %v2260 = vpack.c.b16 %v2258, %v2257
        %2263 = vmatprep.subr.bf16.mxu0 0
        %2264 = vmatpush1.bf16.msra.mxu0 %v2259
        %2265 = vmatprep.subr.bf16.mxu0 0
        %2266 = vmatpush1.bf16.msra.mxu0 %v2260
        %2267 = vmatprep.subr.bf16.mxu0 0
        %2268 = vmatpush1.bf16.msra.mxu0 0
        %2269 = vmatprep.subr.bf16.mxu0 0
        %2270 = vmatpush1.bf16.msra.mxu0 0
        %2271 = vmatprep.subr.bf16.mxu0 0
        %2272 = vmatpush1.bf16.msra.mxu0 0
        %2273 = vmatprep.subr.bf16.mxu0 0
        %2274 = vmatpush1.bf16.msra.mxu0 0
        %2275 = vmatprep.subr.bf16.mxu0 0
        %2276 = vmatpush1.bf16.msra.mxu0 0
        %2277 = vmatprep.subr.bf16.mxu0 0
        %2278 = vmatpush1.bf16.msra.mxu0 0
        %2279 = vmatprep.subr.bf16.mxu0 0
        %2280 = vmatpush1.bf16.msra.mxu0 0
        %2281 = vmatprep.subr.bf16.mxu0 0
        %2282 = vmatpush1.bf16.msra.mxu0 0
        %2283 = vmatprep.subr.bf16.mxu0 0
        %2284 = vmatpush1.bf16.msra.mxu0 0
        %2285 = vmatprep.subr.bf16.mxu0 0
        %2286 = vmatpush1.bf16.msra.mxu0 0
        %2287 = vmatprep.subr.bf16.mxu0 0
        %2288 = vmatpush1.bf16.msra.mxu0 0
        %2289 = vmatprep.subr.bf16.mxu0 0
        %2290 = vmatpush1.bf16.msra.mxu0 0
        %2291 = vmatprep.subr.bf16.mxu0 0
        %2292 = vmatpush1.bf16.msra.mxu0 0
        %2293 = vmatprep.subr.bf16.mxu0 0
        %2294 = vmatpush1.bf16.msra.mxu0 0
        %2295 = vmatprep.mubr.bf16.mxu0 0
        %2296 = vmatmul.mubr.bf16.gmra.mrb[0].mxu0 %v564
        %v2297 = vpop.f32.mrb[0].mxu0
        %v2298 = vadd.f32 0.0, %v2297
        %v2299 = vpop.f32.mrb[0].mxu0
        %v2300 = vpop.f32.mrb[0].mxu0
        %v2301 = vadd.f32 0.0, %v2300
        %v2302 = vpop.f32.mrb[0].mxu0
        %2303 = vdwg.mxu0
        %s2304 = scalar_lea.vmem %s5, 48
        %v2305 = vld [vmem:[%s2304] sm:$0xf]
        %v2306 = vld [vmem:[%s2304 + $0x4] sm:$0xf]
        %v2307 = vld [vmem:[%s2304 + $0x8] sm:$0xf]
        %v2308 = vld [vmem:[%s2304 + $0xc] sm:$0xf]
        %v2313 = vunpack.c.l.b16 %v2305
        %v2314 = vunpack.c.l.b16 %v2306
        %v2315 = vunpack.c.l.b16 %v2307
        %v2316 = vunpack.c.l.b16 %v2308
        %v2317 = vpack.c.b16 %v2314, %v2313
        %v2318 = vpack.c.b16 %v2316, %v2315
        %2321 = vmatprep.subr.bf16.mxu0 0
        %2322 = vmatpush1.bf16.msra.mxu0 %v2317
        %2323 = vmatprep.subr.bf16.mxu0 0
        %2324 = vmatpush1.bf16.msra.mxu0 %v2318
        %2325 = vmatprep.subr.bf16.mxu0 0
        %2326 = vmatpush1.bf16.msra.mxu0 0
        %2327 = vmatprep.subr.bf16.mxu0 0
        %2328 = vmatpush1.bf16.msra.mxu0 0
        %2329 = vmatprep.subr.bf16.mxu0 0
        %2330 = vmatpush1.bf16.msra.mxu0 0
        %2331 = vmatprep.subr.bf16.mxu0 0
        %2332 = vmatpush1.bf16.msra.mxu0 0
        %2333 = vmatprep.subr.bf16.mxu0 0
        %2334 = vmatpush1.bf16.msra.mxu0 0
        %2335 = vmatprep.subr.bf16.mxu0 0
        %2336 = vmatpush1.bf16.msra.mxu0 0
        %2337 = vmatprep.subr.bf16.mxu0 0
        %2338 = vmatpush1.bf16.msra.mxu0 0
        %2339 = vmatprep.subr.bf16.mxu0 0
        %2340 = vmatpush1.bf16.msra.mxu0 0
        %2341 = vmatprep.subr.bf16.mxu0 0
        %2342 = vmatpush1.bf16.msra.mxu0 0
        %2343 = vmatprep.subr.bf16.mxu0 0
        %2344 = vmatpush1.bf16.msra.mxu0 0
        %2345 = vmatprep.subr.bf16.mxu0 0
        %2346 = vmatpush1.bf16.msra.mxu0 0
        %2347 = vmatprep.subr.bf16.mxu0 0
        %2348 = vmatpush1.bf16.msra.mxu0 0
        %2349 = vmatprep.subr.bf16.mxu0 0
        %2350 = vmatpush1.bf16.msra.mxu0 0
        %2351 = vmatprep.subr.bf16.mxu0 0
        %2352 = vmatpush1.bf16.msra.mxu0 0
        %2353 = vmatprep.mubr.bf16.mxu0 0
        %2354 = vmatmul.mubr.bf16.gmra.mrb[0].mxu0 %v564
        %v2355 = vpop.f32.mrb[0].mxu0
        %v2356 = vadd.f32 0.0, %v2355
        %v2357 = vpop.f32.mrb[0].mxu0
        %v2358 = vpop.f32.mrb[0].mxu0
        %v2359 = vadd.f32 0.0, %v2358
        %v2360 = vpop.f32.mrb[0].mxu0
        %2361 = vdwg.mxu0
        %v2363 = vsel %vm721, %v2240, 0
        %v2366 = vsel %vm721, %v2298, 0
        %2368 = vmatprep.subr.mxu0 0.0
        %2369 = vmatpush1.xpose.msra.mxu0 %v2366
        %2370 = vmatprep.subr.mxu0 0.0
        %2371 = vmatpush1.xpose.msra.mxu0 0.0
        %2372 = vmatprep.subr.mxu0 0.0
        %2373 = vmatpush1.xpose.msra.mxu0 0.0
        %2374 = vmatprep.subr.mxu0 0.0
        %2375 = vmatpush1.xpose.msra.mxu0 0.0
        %2376 = vmatprep.subr.mxu0 0.0
        %2377 = vmatpush1.xpose.msra.mxu0 0.0
        %2378 = vmatprep.subr.mxu0 0.0
        %2379 = vmatpush1.xpose.msra.mxu0 0.0
        %2380 = vmatprep.subr.mxu0 0.0
        %2381 = vmatpush1.xpose.msra.mxu0 0.0
        %2382 = vmatprep.subr.mxu0 0.0
        %2383 = vmatpush1.xpose.msra.mxu0 0.0
        %2384 = vmatprep.subr.mxu0 0.0
        %2385 = vmatpush1.xpose.msra.mxu0 0.0
        %2386 = vmatprep.subr.mxu0 0.0
        %2387 = vmatpush1.xpose.msra.mxu0 0.0
        %2388 = vmatprep.subr.mxu0 0.0
        %2389 = vmatpush1.xpose.msra.mxu0 0.0
        %2390 = vmatprep.subr.mxu0 0.0
        %2391 = vmatpush1.xpose.msra.mxu0 0.0
        %2392 = vmatprep.subr.mxu0 0.0
        %2393 = vmatpush1.xpose.msra.mxu0 0.0
        %2394 = vmatprep.subr.mxu0 0.0
        %2395 = vmatpush1.xpose.msra.mxu0 0.0
        %2396 = vmatprep.subr.mxu0 0.0
        %2397 = vmatpush1.xpose.msra.mxu0 0.0
        %2398 = vmatprep.subr.mxu0 0.0
        %2399 = vmatpush1.xpose.msra.mxu0 0.0
        %2400 = vmatprep.subr.mxu0 0.0
        %2401 = vmatpush1.xpose.msra.mxu0 0.0
        %2402 = vmatprep.subr.mxu0 0.0
        %2403 = vmatpush1.xpose.msra.mxu0 0.0
        %2404 = vmatprep.subr.mxu0 0.0
        %2405 = vmatpush1.xpose.msra.mxu0 0.0
        %2406 = vmatprep.subr.mxu0 0.0
        %2407 = vmatpush1.xpose.msra.mxu0 0.0
        %2408 = vmatprep.subr.mxu0 0.0
        %2409 = vmatpush1.xpose.msra.mxu0 0.0
        %2410 = vmatprep.subr.mxu0 0.0
        %2411 = vmatpush1.xpose.msra.mxu0 0.0
        %2412 = vmatprep.subr.mxu0 0.0
        %2413 = vmatpush1.xpose.msra.mxu0 0.0
        %2414 = vmatprep.subr.mxu0 0.0
        %2415 = vmatpush1.xpose.msra.mxu0 0.0
        %2416 = vmatprep.subr.mxu0 0.0
        %2417 = vmatpush1.xpose.msra.mxu0 0.0
        %2418 = vmatprep.subr.mxu0 0.0
        %2419 = vmatpush1.xpose.msra.mxu0 0.0
        %2420 = vmatprep.subr.mxu0 0.0
        %2421 = vmatpush1.xpose.msra.mxu0 0.0
        %2422 = vmatprep.subr.mxu0 0.0
        %2423 = vmatpush1.xpose.msra.mxu0 0.0
        %2424 = vmatprep.subr.mxu0 0.0
        %2425 = vmatpush1.xpose.msra.mxu0 0.0
        %2426 = vmatprep.subr.mxu0 0.0
        %2427 = vmatpush1.xpose.msra.mxu0 0.0
        %2428 = vmatprep.subr.mxu0 0.0
        %2429 = vmatpush1.xpose.msra.mxu0 0.0
        %2430 = vmatprep.subr.mxu0 0.0
        %2431 = vmatpush1.xpose.msra.mxu0 0.0
        %2432 = vmatprep.mubr.f32.mxu0 0.0
        %2433 = vmatmul.mubr.f32.gmra.mrb[0].mxu0 %v2363
        %v2434 = vpop.f32.mrb[0].mxu0
        %v2435 = vadd.f32 0.0, %v2434
        %v2436 = vpop.f32.mrb[0].mxu0
        %2437 = vdwg.mxu0
        %v2438 = vmul.f32 %v2435, 0.35355338
        %v2439 = vsel %vm721, %v2438, -inf
        %2440 = vmax.xlane.f32.xlu0 %v2439
        %v2441 = vpop.xlane.xlu0 %2440
        %v2442 = vsub.f32 %v2438, %v2441
        %v2443 = vmul.f32 %v2442, 1.442695
        %v2444 = vpow.pop %v2443
        %v2445 = vsel %vm721, %v2444, 0.0
        %2446 = vadd.xlane.f32.xlu0 %v2445
        %v2447 = vpop.xlane.xlu0 %2446
        %v2448 = vrcp.pop %v2447
        %v2449 = vmul.f32 %v2444, %v2448
        %v2451 = vsel %vm721, %v2449, 0
        %2453 = vmatprep.subr.mxu0 0.0
        %2454 = vmatpush1.msra.mxu0 %v2356
        %2455 = vmatprep.subr.mxu0 0.0
        %2456 = vmatpush1.msra.mxu0 0.0
        %2457 = vmatprep.subr.mxu0 0.0
        %2458 = vmatpush1.msra.mxu0 0.0
        %2459 = vmatprep.subr.mxu0 0.0
        %2460 = vmatpush1.msra.mxu0 0.0
        %2461 = vmatprep.subr.mxu0 0.0
        %2462 = vmatpush1.msra.mxu0 0.0
        %2463 = vmatprep.subr.mxu0 0.0
        %2464 = vmatpush1.msra.mxu0 0.0
        %2465 = vmatprep.subr.mxu0 0.0
        %2466 = vmatpush1.msra.mxu0 0.0
        %2467 = vmatprep.subr.mxu0 0.0
        %2468 = vmatpush1.msra.mxu0 0.0
        %2469 = vmatprep.subr.mxu0 0.0
        %2470 = vmatpush1.msra.mxu0 0.0
        %2471 = vmatprep.subr.mxu0 0.0
        %2472 = vmatpush1.msra.mxu0 0.0
        %2473 = vmatprep.subr.mxu0 0.0
        %2474 = vmatpush1.msra.mxu0 0.0
        %2475 = vmatprep.subr.mxu0 0.0
        %2476 = vmatpush1.msra.mxu0 0.0
        %2477 = vmatprep.subr.mxu0 0.0
        %2478 = vmatpush1.msra.mxu0 0.0
        %2479 = vmatprep.subr.mxu0 0.0
        %2480 = vmatpush1.msra.mxu0 0.0
        %2481 = vmatprep.subr.mxu0 0.0
        %2482 = vmatpush1.msra.mxu0 0.0
        %2483 = vmatprep.subr.mxu0 0.0
        %2484 = vmatpush1.msra.mxu0 0.0
        %2485 = vmatprep.subr.mxu0 0.0
        %2486 = vmatpush1.msra.mxu0 0.0
        %2487 = vmatprep.subr.mxu0 0.0
        %2488 = vmatpush1.msra.mxu0 0.0
        %2489 = vmatprep.subr.mxu0 0.0
        %2490 = vmatpush1.msra.mxu0 0.0
        %2491 = vmatprep.subr.mxu0 0.0
        %2492 = vmatpush1.msra.mxu0 0.0
        %2493 = vmatprep.subr.mxu0 0.0
        %2494 = vmatpush1.msra.mxu0 0.0
        %2495 = vmatprep.subr.mxu0 0.0
        %2496 = vmatpush1.msra.mxu0 0.0
        %2497 = vmatprep.subr.mxu0 0.0
        %2498 = vmatpush1.msra.mxu0 0.0
        %2499 = vmatprep.subr.mxu0 0.0
        %2500 = vmatpush1.msra.mxu0 0.0
        %2501 = vmatprep.subr.mxu0 0.0
        %2502 = vmatpush1.msra.mxu0 0.0
        %2503 = vmatprep.subr.mxu0 0.0
        %2504 = vmatpush1.msra.mxu0 0.0
        %2505 = vmatprep.subr.mxu0 0.0
        %2506 = vmatpush1.msra.mxu0 0.0
        %2507 = vmatprep.subr.mxu0 0.0
        %2508 = vmatpush1.msra.mxu0 0.0
        %2509 = vmatprep.subr.mxu0 0.0
        %2510 = vmatpush1.msra.mxu0 0.0
        %2511 = vmatprep.subr.mxu0 0.0
        %2512 = vmatpush1.msra.mxu0 0.0
        %2513 = vmatprep.subr.mxu0 0.0
        %2514 = vmatpush1.msra.mxu0 0.0
        %2515 = vmatprep.subr.mxu0 0.0
        %2516 = vmatpush1.msra.mxu0 0.0
        %2517 = vmatprep.mubr.f32.mxu0 0.0
        %2518 = vmatmul.mubr.f32.gmra.mrb[0].mxu0 %v2451
        %v2519 = vpop.f32.mrb[0].mxu0
        %v2520 = vadd.f32 0.0, %v2519
        %v2521 = vpop.f32.mrb[0].mxu0
        %2522 = vdwg.mxu0
        %v2524 = vsel %vm721, %v2243, 0
        %v2527 = vsel %vm721, %v2301, 0
        %2529 = vmatprep.subr.mxu0 0.0
        %2530 = vmatpush1.xpose.msra.mxu0 %v2527
        %2531 = vmatprep.subr.mxu0 0.0
        %2532 = vmatpush1.xpose.msra.mxu0 0.0
        %2533 = vmatprep.subr.mxu0 0.0
        %2534 = vmatpush1.xpose.msra.mxu0 0.0
        %2535 = vmatprep.subr.mxu0 0.0
        %2536 = vmatpush1.xpose.msra.mxu0 0.0
        %2537 = vmatprep.subr.mxu0 0.0
        %2538 = vmatpush1.xpose.msra.mxu0 0.0
        %2539 = vmatprep.subr.mxu0 0.0
        %2540 = vmatpush1.xpose.msra.mxu0 0.0
        %2541 = vmatprep.subr.mxu0 0.0
        %2542 = vmatpush1.xpose.msra.mxu0 0.0
        %2543 = vmatprep.subr.mxu0 0.0
        %2544 = vmatpush1.xpose.msra.mxu0 0.0
        %2545 = vmatprep.subr.mxu0 0.0
        %2546 = vmatpush1.xpose.msra.mxu0 0.0
        %2547 = vmatprep.subr.mxu0 0.0
        %2548 = vmatpush1.xpose.msra.mxu0 0.0
        %2549 = vmatprep.subr.mxu0 0.0
        %2550 = vmatpush1.xpose.msra.mxu0 0.0
        %2551 = vmatprep.subr.mxu0 0.0
        %2552 = vmatpush1.xpose.msra.mxu0 0.0
        %2553 = vmatprep.subr.mxu0 0.0
        %2554 = vmatpush1.xpose.msra.mxu0 0.0
        %2555 = vmatprep.subr.mxu0 0.0
        %2556 = vmatpush1.xpose.msra.mxu0 0.0
        %2557 = vmatprep.subr.mxu0 0.0
        %2558 = vmatpush1.xpose.msra.mxu0 0.0
        %2559 = vmatprep.subr.mxu0 0.0
        %2560 = vmatpush1.xpose.msra.mxu0 0.0
        %2561 = vmatprep.subr.mxu0 0.0
        %2562 = vmatpush1.xpose.msra.mxu0 0.0
        %2563 = vmatprep.subr.mxu0 0.0
        %2564 = vmatpush1.xpose.msra.mxu0 0.0
        %2565 = vmatprep.subr.mxu0 0.0
        %2566 = vmatpush1.xpose.msra.mxu0 0.0
        %2567 = vmatprep.subr.mxu0 0.0
        %2568 = vmatpush1.xpose.msra.mxu0 0.0
        %2569 = vmatprep.subr.mxu0 0.0
        %2570 = vmatpush1.xpose.msra.mxu0 0.0
        %2571 = vmatprep.subr.mxu0 0.0
        %2572 = vmatpush1.xpose.msra.mxu0 0.0
        %2573 = vmatprep.subr.mxu0 0.0
        %2574 = vmatpush1.xpose.msra.mxu0 0.0
        %2575 = vmatprep.subr.mxu0 0.0
        %2576 = vmatpush1.xpose.msra.mxu0 0.0
        %2577 = vmatprep.subr.mxu0 0.0
        %2578 = vmatpush1.xpose.msra.mxu0 0.0
        %2579 = vmatprep.subr.mxu0 0.0
        %2580 = vmatpush1.xpose.msra.mxu0 0.0
        %2581 = vmatprep.subr.mxu0 0.0
        %2582 = vmatpush1.xpose.msra.mxu0 0.0
        %2583 = vmatprep.subr.mxu0 0.0
        %2584 = vmatpush1.xpose.msra.mxu0 0.0
        %2585 = vmatprep.subr.mxu0 0.0
        %2586 = vmatpush1.xpose.msra.mxu0 0.0
        %2587 = vmatprep.subr.mxu0 0.0
        %2588 = vmatpush1.xpose.msra.mxu0 0.0
        %2589 = vmatprep.subr.mxu0 0.0
        %2590 = vmatpush1.xpose.msra.mxu0 0.0
        %2591 = vmatprep.subr.mxu0 0.0
        %2592 = vmatpush1.xpose.msra.mxu0 0.0
        %2593 = vmatprep.mubr.f32.mxu0 0.0
        %2594 = vmatmul.mubr.f32.gmra.mrb[0].mxu0 %v2524
        %v2595 = vpop.f32.mrb[0].mxu0
        %v2596 = vadd.f32 0.0, %v2595
        %v2597 = vpop.f32.mrb[0].mxu0
        %2598 = vdwg.mxu0
        %v2599 = vmul.f32 %v2596, 0.35355338
        %v2600 = vsel %vm721, %v2599, -inf
        %2601 = vmax.xlane.f32.xlu0 %v2600
        %v2602 = vpop.xlane.xlu0 %2601
        %v2603 = vsub.f32 %v2599, %v2602
        %v2604 = vmul.f32 %v2603, 1.442695
        %v2605 = vpow.pop %v2604
        %v2606 = vsel %vm721, %v2605, 0.0
        %2607 = vadd.xlane.f32.xlu0 %v2606
        %v2608 = vpop.xlane.xlu0 %2607
        %v2609 = vrcp.pop %v2608
        %v2610 = vmul.f32 %v2605, %v2609
        %v2612 = vsel %vm721, %v2610, 0
        %2614 = vmatprep.subr.mxu0 0.0
        %2615 = vmatpush1.msra.mxu0 %v2359
        %2616 = vmatprep.subr.mxu0 0.0
        %2617 = vmatpush1.msra.mxu0 0.0
        %2618 = vmatprep.subr.mxu0 0.0
        %2619 = vmatpush1.msra.mxu0 0.0
        %2620 = vmatprep.subr.mxu0 0.0
        %2621 = vmatpush1.msra.mxu0 0.0
        %2622 = vmatprep.subr.mxu0 0.0
        %2623 = vmatpush1.msra.mxu0 0.0
        %2624 = vmatprep.subr.mxu0 0.0
        %2625 = vmatpush1.msra.mxu0 0.0
        %2626 = vmatprep.subr.mxu0 0.0
        %2627 = vmatpush1.msra.mxu0 0.0
        %2628 = vmatprep.subr.mxu0 0.0
        %2629 = vmatpush1.msra.mxu0 0.0
        %2630 = vmatprep.subr.mxu0 0.0
        %2631 = vmatpush1.msra.mxu0 0.0
        %2632 = vmatprep.subr.mxu0 0.0
        %2633 = vmatpush1.msra.mxu0 0.0
        %2634 = vmatprep.subr.mxu0 0.0
        %2635 = vmatpush1.msra.mxu0 0.0
        %2636 = vmatprep.subr.mxu0 0.0
        %2637 = vmatpush1.msra.mxu0 0.0
        %2638 = vmatprep.subr.mxu0 0.0
        %2639 = vmatpush1.msra.mxu0 0.0
        %2640 = vmatprep.subr.mxu0 0.0
        %2641 = vmatpush1.msra.mxu0 0.0
        %2642 = vmatprep.subr.mxu0 0.0
        %2643 = vmatpush1.msra.mxu0 0.0
        %2644 = vmatprep.subr.mxu0 0.0
        %2645 = vmatpush1.msra.mxu0 0.0
        %2646 = vmatprep.subr.mxu0 0.0
        %2647 = vmatpush1.msra.mxu0 0.0
        %2648 = vmatprep.subr.mxu0 0.0
        %2649 = vmatpush1.msra.mxu0 0.0
        %2650 = vmatprep.subr.mxu0 0.0
        %2651 = vmatpush1.msra.mxu0 0.0
        %2652 = vmatprep.subr.mxu0 0.0
        %2653 = vmatpush1.msra.mxu0 0.0
        %2654 = vmatprep.subr.mxu0 0.0
        %2655 = vmatpush1.msra.mxu0 0.0
        %2656 = vmatprep.subr.mxu0 0.0
        %2657 = vmatpush1.msra.mxu0 0.0
        %2658 = vmatprep.subr.mxu0 0.0
        %2659 = vmatpush1.msra.mxu0 0.0
        %2660 = vmatprep.subr.mxu0 0.0
        %2661 = vmatpush1.msra.mxu0 0.0
        %2662 = vmatprep.subr.mxu0 0.0
        %2663 = vmatpush1.msra.mxu0 0.0
        %2664 = vmatprep.subr.mxu0 0.0
        %2665 = vmatpush1.msra.mxu0 0.0
        %2666 = vmatprep.subr.mxu0 0.0
        %2667 = vmatpush1.msra.mxu0 0.0
        %2668 = vmatprep.subr.mxu0 0.0
        %2669 = vmatpush1.msra.mxu0 0.0
        %2670 = vmatprep.subr.mxu0 0.0
        %2671 = vmatpush1.msra.mxu0 0.0
        %2672 = vmatprep.subr.mxu0 0.0
        %2673 = vmatpush1.msra.mxu0 0.0
        %2674 = vmatprep.subr.mxu0 0.0
        %2675 = vmatpush1.msra.mxu0 0.0
        %2676 = vmatprep.subr.mxu0 0.0
        %2677 = vmatpush1.msra.mxu0 0.0
        %2678 = vmatprep.mubr.f32.mxu0 0.0
        %2679 = vmatmul.mubr.f32.gmra.mrb[0].mxu0 %v2612
        %v2680 = vpop.f32.mrb[0].mxu0
        %v2681 = vadd.f32 0.0, %v2680
        %v2682 = vpop.f32.mrb[0].mxu0
        %2683 = vdwg.mxu0
        %v2684 = vpack.c.bf16 %v2681, %v2520
        %s2685 = scalar_lea.vmem %s6, 12
        %v2686 = vld [vmem:[%s2685] sm:$0xf]
        %v2688 = vsel %vm721, %v2684, 0
        %v2691 = vsel %vm1548, %v2686, 0
        %2693 = vmatprep.subr.bf16.mxu0 0
        %2694 = vmatpush1.bf16.msra.mxu0 %v2691
        %2695 = vmatprep.subr.bf16.mxu0 0
        %2696 = vmatpush1.bf16.msra.mxu0 0
        %2697 = vmatprep.subr.bf16.mxu0 0
        %2698 = vmatpush1.bf16.msra.mxu0 0
        %2699 = vmatprep.subr.bf16.mxu0 0
        %2700 = vmatpush1.bf16.msra.mxu0 0
        %2701 = vmatprep.subr.bf16.mxu0 0
        %2702 = vmatpush1.bf16.msra.mxu0 0
        %2703 = vmatprep.subr.bf16.mxu0 0
        %2704 = vmatpush1.bf16.msra.mxu0 0
        %2705 = vmatprep.subr.bf16.mxu0 0
        %2706 = vmatpush1.bf16.msra.mxu0 0
        %2707 = vmatprep.subr.bf16.mxu0 0
        %2708 = vmatpush1.bf16.msra.mxu0 0
        %2709 = vmatprep.subr.bf16.mxu0 0
        %2710 = vmatpush1.bf16.msra.mxu0 0
        %2711 = vmatprep.subr.bf16.mxu0 0
        %2712 = vmatpush1.bf16.msra.mxu0 0
        %2713 = vmatprep.subr.bf16.mxu0 0
        %2714 = vmatpush1.bf16.msra.mxu0 0
        %2715 = vmatprep.subr.bf16.mxu0 0
        %2716 = vmatpush1.bf16.msra.mxu0 0
        %2717 = vmatprep.subr.bf16.mxu0 0
        %2718 = vmatpush1.bf16.msra.mxu0 0
        %2719 = vmatprep.subr.bf16.mxu0 0
        %2720 = vmatpush1.bf16.msra.mxu0 0
        %2721 = vmatprep.subr.bf16.mxu0 0
        %2722 = vmatpush1.bf16.msra.mxu0 0
        %2723 = vmatprep.subr.bf16.mxu0 0
        %2724 = vmatpush1.bf16.msra.mxu0 0
        %2725 = vmatprep.mubr.bf16.mxu0 0
        %2726 = vmatmul.mubr.bf16.gmra.mrb[0].mxu0 %v2688
        %v2727 = vpop.f32.mrb[0].mxu0
        %v2728 = vadd.f32 0.0, %v2727
        %v2729 = vpop.f32.mrb[0].mxu0
        %v2730 = vpop.f32.mrb[0].mxu0
        %v2731 = vadd.f32 0.0, %v2730
        %v2732 = vpop.f32.mrb[0].mxu0
        %2733 = vdwg.mxu0
        %v2734 = vadd.f32 %v2186, %v2728
        %v2735 = vadd.f32 %v2187, %v2731
        %v2736 = vadd.f32 %v498, %v2734
        %v2737 = vadd.f32 %v499, %v2735
        %v2738 = vld [vmem:[%s7] sm:$0x1]
        %v2740 = vlaneseq
        %v2741 = vshrl.u32 %v2740, 7
        %v2742 = vsub.s32 0, %v2741
        %v2743 = vrot.slane %v2738, %v2742
        %v2745 = vadd.f32 %v2736, %v2743
        %v2746 = vadd.f32 %v2737, %v2743
        %v2747 = vld [vmem:[%s8] sm:$0x1]
        %v2748 = vld [vmem:[%s9] sm:$0x1]
        %v2749 = vsel %vm502, %v2745, 0.0
        %2750 = vadd.xlane.f32.xlu0 %v2749
        %v2751 = vpop.xlane.xlu0 %2750
        %v2752 = vsel %vm502, %v2746, 0.0
        %2753 = vadd.xlane.f32.xlu0 %v2752
        %v2754 = vpop.xlane.xlu0 %2753
        %v2755 = vmul.f32 %v2751, %v509
        %v2756 = vmul.f32 %v2754, %v509
        %v2757 = vsub.f32 %v2745, %v2755
        %v2758 = vsub.f32 %v2746, %v2756
        %v2759 = vmul.f32 %v2757, %v2757
        %v2760 = vmul.f32 %v2758, %v2758
        %v2761 = vsel %vm502, %v2759, 0.0
        %2762 = vadd.xlane.f32.xlu0 %v2761
        %v2763 = vpop.xlane.xlu0 %2762
        %v2764 = vsel %vm502, %v2760, 0.0
        %2765 = vadd.xlane.f32.xlu0 %v2764
        %v2766 = vpop.xlane.xlu0 %2765
        %v2767 = vmul.f32 %v2763, %v509
        %v2768 = vmul.f32 %v2766, %v509
        %v2769 = vadd.f32 %v2767, 1e-05
        %v2770 = vadd.f32 %v2768, 1e-05
        %v2771 = vrsqrt.pop %v2769
        %v2772 = vrsqrt.pop %v2770
        %v2773 = vmul.f32 %v2757, %v2771
        %v2774 = vmul.f32 %v2758, %v2772
        %v2776 = vlaneseq
        %v2777 = vshrl.u32 %v2776, 7
        %v2778 = vsub.s32 0, %v2777
        %v2779 = vrot.slane %v2747, %v2778
        %v2781 = vmul.f32 %v2773, %v2779
        %v2782 = vmul.f32 %v2774, %v2779
        %v2784 = vlaneseq
        %v2785 = vshrl.u32 %v2784, 7
        %v2786 = vsub.s32 0, %v2785
        %v2787 = vrot.slane %v2748, %v2786
        %v2789 = vadd.f32 %v2781, %v2787
        %v2790 = vadd.f32 %v2782, %v2787
        %v2791 = vpack.c.bf16 %v2790, %v2789
        %v2792 = vld [vmem:[%s10] sm:$0xf]
        %v2793 = vld [vmem:[%s10 + $0x4] sm:$0xf]
        %v2794 = vld [vmem:[%s10 + $0x8] sm:$0xf]
        %v2795 = vld [vmem:[%s10 + $0xc] sm:$0xf]
        %v2796 = vld [vmem:[%s11] sm:$0x1]
        %v2798 = vlaneseq
        %v2799 = vshrl.u32 %v2798, 7
        %v2800 = vsub.s32 0, %v2799
        %v2801 = vrot.slane %v2796, %v2800
        %v2807 = vunpack.c.l.b16 %v2792
        %v2808 = vunpack.c.l.b16 %v2793
        %v2809 = vunpack.c.l.b16 %v2794
        %v2810 = vunpack.c.l.b16 %v2795
        %v2811 = vpack.c.b16 %v2808, %v2807
        %v2812 = vpack.c.b16 %v2810, %v2809
        %v2816 = vsel %vm502, %v2791, 0
        %2818 = vmatprep.subr.bf16.mxu0 0
        %2819 = vmatpush1.bf16.msra.mxu0 %v2811
        %2820 = vmatprep.subr.bf16.mxu0 0
        %2821 = vmatpush1.bf16.msra.mxu0 %v2812
        %2822 = vmatprep.subr.bf16.mxu0 0
        %2823 = vmatpush1.bf16.msra.mxu0 0
        %2824 = vmatprep.subr.bf16.mxu0 0
        %2825 = vmatpush1.bf16.msra.mxu0 0
        %2826 = vmatprep.subr.bf16.mxu0 0
        %2827 = vmatpush1.bf16.msra.mxu0 0
        %2828 = vmatprep.subr.bf16.mxu0 0
        %2829 = vmatpush1.bf16.msra.mxu0 0
        %2830 = vmatprep.subr.bf16.mxu0 0
        %2831 = vmatpush1.bf16.msra.mxu0 0
        %2832 = vmatprep.subr.bf16.mxu0 0
        %2833 = vmatpush1.bf16.msra.mxu0 0
        %2834 = vmatprep.subr.bf16.mxu0 0
        %2835 = vmatpush1.bf16.msra.mxu0 0
        %2836 = vmatprep.subr.bf16.mxu0 0
        %2837 = vmatpush1.bf16.msra.mxu0 0
        %2838 = vmatprep.subr.bf16.mxu0 0
        %2839 = vmatpush1.bf16.msra.mxu0 0
        %2840 = vmatprep.subr.bf16.mxu0 0
        %2841 = vmatpush1.bf16.msra.mxu0 0
        %2842 = vmatprep.subr.bf16.mxu0 0
        %2843 = vmatpush1.bf16.msra.mxu0 0
        %2844 = vmatprep.subr.bf16.mxu0 0
        %2845 = vmatpush1.bf16.msra.mxu0 0
        %2846 = vmatprep.subr.bf16.mxu0 0
        %2847 = vmatpush1.bf16.msra.mxu0 0
        %2848 = vmatprep.subr.bf16.mxu0 0
        %2849 = vmatpush1.bf16.msra.mxu0 0
        %2850 = vmatprep.mubr.bf16.mxu0 0
        %2851 = vmatmul.mubr.bf16.gmra.mrb[0].mxu0 %v2816
        %v2852 = vpop.f32.mrb[0].mxu0
        %v2853 = vadd.f32 %v2801, %v2852
        %v2854 = vpop.f32.mrb[0].mxu0
        %v2855 = vpop.f32.mrb[0].mxu0
        %v2856 = vadd.f32 %v2801, %v2855
        %v2857 = vpop.f32.mrb[0].mxu0
        %2858 = vdwg.mxu0
        %v2859 = vmul.f32 %v2853, %v2853
        %v2860 = vmul.f32 %v2856, %v2856
        %v2861 = vmul.f32 %v2853, %v2859
        %v2862 = vmul.f32 %v2856, %v2860
        %v2863 = vmul.f32 %v2861, 0.044715
        %v2864 = vmul.f32 %v2862, 0.044715
        %v2865 = vadd.f32 %v2853, %v2863
        %v2866 = vadd.f32 %v2856, %v2864
        %v2867 = vmul.f32 %v2865, 0.7978846
        %v2868 = vmul.f32 %v2866, 0.7978846
        %v2869 = vtanh.pop %v2867
        %v2870 = vtanh.pop %v2868
        %v2871 = vadd.f32 %v2869, 1.0
        %v2872 = vadd.f32 %v2870, 1.0
        %v2873 = vmul.f32 %v2871, 0.5
        %v2874 = vmul.f32 %v2872, 0.5
        %v2875 = vmul.f32 %v2853, %v2873
        %v2876 = vmul.f32 %v2856, %v2874
        %v2877 = vpack.c.bf16 %v2876, %v2875
        %v2878 = vld [vmem:[%s12] sm:$0xf]
        %v2879 = vld [vmem:[%s12 + $0x4] sm:$0xf]
        %v2880 = vld [vmem:[%s12 + $0x8] sm:$0xf]
        %v2881 = vld [vmem:[%s12 + $0xc] sm:$0xf]
        %v2882 = vld [vmem:[%s12 + $0x10] sm:$0xf]
        %v2883 = vld [vmem:[%s12 + $0x14] sm:$0xf]
        %v2884 = vld [vmem:[%s12 + $0x18] sm:$0xf]
        %v2885 = vld [vmem:[%s12 + $0x1c] sm:$0xf]
        %v2886 = vld [vmem:[%s12 + $0x20] sm:$0xf]
        %v2887 = vld [vmem:[%s12 + $0x24] sm:$0xf]
        %v2888 = vld [vmem:[%s12 + $0x28] sm:$0xf]
        %v2889 = vld [vmem:[%s12 + $0x2c] sm:$0xf]
        %v2890 = vld [vmem:[%s12 + $0x30] sm:$0xf]
        %v2891 = vld [vmem:[%s12 + $0x34] sm:$0xf]
        %v2892 = vld [vmem:[%s12 + $0x38] sm:$0xf]
        %v2893 = vld [vmem:[%s12 + $0x3c] sm:$0xf]
        %v2894 = vld [vmem:[%s13] sm:$0x1]
        %v2896 = vlaneseq
        %v2897 = vshrl.u32 %v2896, 7
        %v2898 = vsub.s32 0, %v2897
        %v2899 = vrot.slane %v2894, %v2898
        %v2917 = vunpack.c.l.b16 %v2878
        %v2918 = vunpack.c.l.b16 %v2879
        %v2919 = vunpack.c.l.b16 %v2880
        %v2920 = vunpack.c.l.b16 %v2881
        %v2921 = vunpack.c.l.b16 %v2882
        %v2922 = vunpack.c.l.b16 %v2883
        %v2923 = vunpack.c.l.b16 %v2884
        %v2924 = vunpack.c.l.b16 %v2885
        %v2925 = vunpack.c.l.b16 %v2886
        %v2926 = vunpack.c.l.b16 %v2887
        %v2927 = vunpack.c.l.b16 %v2888
        %v2928 = vunpack.c.l.b16 %v2889
        %v2929 = vunpack.c.l.b16 %v2890
        %v2930 = vunpack.c.l.b16 %v2891
        %v2931 = vunpack.c.l.b16 %v2892
        %v2932 = vunpack.c.l.b16 %v2893
        %v2933 = vpack.c.b16 %v2918, %v2917
        %v2934 = vpack.c.b16 %v2920, %v2919
        %v2935 = vpack.c.b16 %v2922, %v2921
        %v2936 = vpack.c.b16 %v2924, %v2923
        %v2937 = vpack.c.b16 %v2926, %v2925
        %v2938 = vpack.c.b16 %v2928, %v2927
        %v2939 = vpack.c.b16 %v2930, %v2929
        %v2940 = vpack.c.b16 %v2932, %v2931
        %2949 = vmatprep.subr.bf16.mxu0 0
        %2950 = vmatpush1.bf16.msra.mxu0 %v2933
        %2951 = vmatprep.subr.bf16.mxu0 0
        %2952 = vmatpush1.bf16.msra.mxu0 %v2934
        %2953 = vmatprep.subr.bf16.mxu0 0
        %2954 = vmatpush1.bf16.msra.mxu0 %v2935
        %2955 = vmatprep.subr.bf16.mxu0 0
        %2956 = vmatpush1.bf16.msra.mxu0 %v2936
        %2957 = vmatprep.subr.bf16.mxu0 0
        %2958 = vmatpush1.bf16.msra.mxu0 %v2937
        %2959 = vmatprep.subr.bf16.mxu0 0
        %2960 = vmatpush1.bf16.msra.mxu0 %v2938
        %2961 = vmatprep.subr.bf16.mxu0 0
        %2962 = vmatpush1.bf16.msra.mxu0 %v2939
        %2963 = vmatprep.subr.bf16.mxu0 0
        %2964 = vmatpush1.bf16.msra.mxu0 %v2940
        %2965 = vmatprep.subr.bf16.mxu0 0
        %2966 = vmatpush1.bf16.msra.mxu0 0
        %2967 = vmatprep.subr.bf16.mxu0 0
        %2968 = vmatpush1.bf16.msra.mxu0 0
        %2969 = vmatprep.subr.bf16.mxu0 0
        %2970 = vmatpush1.bf16.msra.mxu0 0
        %2971 = vmatprep.subr.bf16.mxu0 0
        %2972 = vmatpush1.bf16.msra.mxu0 0
        %2973 = vmatprep.subr.bf16.mxu0 0
        %2974 = vmatpush1.bf16.msra.mxu0 0
        %2975 = vmatprep.subr.bf16.mxu0 0
        %2976 = vmatpush1.bf16.msra.mxu0 0
        %2977 = vmatprep.subr.bf16.mxu0 0
        %2978 = vmatpush1.bf16.msra.mxu0 0
        %2979 = vmatprep.subr.bf16.mxu0 0
        %2980 = vmatpush1.bf16.msra.mxu0 0
        %2981 = vmatprep.mubr.bf16.mxu0 0
        %2982 = vmatmul.mubr.bf16.gmra.mrb[0].mxu0 %v2877
        %v2983 = vpop.f32.mrb[0].mxu0
        %v2984 = vadd.f32 %v2899, %v2983
        %v2985 = vpop.f32.mrb[0].mxu0
        %v2986 = vpop.f32.mrb[0].mxu0
        %v2987 = vadd.f32 %v2899, %v2986
        %v2988 = vpop.f32.mrb[0].mxu0
        %2989 = vdwg.mxu0
        %v2990 = vadd.f32 %v2745, %v2984
        %v2991 = vadd.f32 %v2746, %v2987
        %2992 = vst.msk [vmem:[%s485] sm:$0xff] %vm502, %v2990
        %2993 = vst.msk [vmem:[%s485 + $0x8] sm:$0xff] %vm502, %v2991
        %s2994 = sand.u32 %s351, 1
        %s2995 = scalar_lea.sflag [#allocation3], %s2994
        %s2996 = sand.u32 %s351, 1
        %s2997 = smul.addr %s2996, 16
        %s2998 = scalar_lea.vmem [#allocation2], %s2997
        // Predicated region
        $region77: #{hip_block_forward.5} parent=75 // pred_check
          %p2999 = pneg %p361
        $region78: #{hip_block_forward.5} parent=75 // pred_check_branch
          %3001 = sbr.rel (%p2999) target = $region80
        $region79: #{hip_block_forward.5} parent=75 // pred_region
          %s3002 = smul.u32 2, %s33
          %s3004 = ssub.s32 256, 256
          %3005 = vsyncadd %s2995, %s3004
          %s3006 = smul.addr %s32, 2
          %s3007 = sadd.s32 %s3002, %s3006
          %s3008 = smul.addr %s3007, 128
          %s3009 = scalar_lea.hbm %s14, %s3008
          %s3010 = sshll.u32 %s2998, 4
          %s3011 = int_to_ptr.vmem [resolvable:$true] %s3010
          %3016 = dma.vmem_to_hbm [thread:$0]  %s3011, 256, %s3009, %s2995, 128, 128, 8
        $region80: #{hip_block_forward.5} parent=75 // pred_fallthru
          _
      $region76: #{hip_block_forward.5} parent=5 // pred_fallthru
        _
      %p3017 = scmp.le.s32.totalorder 2, %s23
      // Predicated region
      $region81: #{hip_block_forward.5} parent=5 // pred_check
        %p3018 = pneg %p3017
      $region82: #{hip_block_forward.5} parent=5 // pred_check_branch
        %3020 = sbr.rel (%p3018) target = $region84
      $region83: #{hip_block_forward.5} parent=5 // pred_region
        %s3021 = ssub.s32 %s23, 2
        // Predicated region
        $region85: #{hip_block_forward.5} parent=83 // pred_check
          %p3022 = pneg %p367
        $region86: #{hip_block_forward.5} parent=83 // pred_check_branch
          %3024 = sbr.rel (%p3022) target = $region88
        $region87: #{hip_block_forward.5} parent=83 // pred_region
          %s3025 = sand.u32 %s352, 1
          %s3026 = scalar_lea.sflag [#allocation3], %s3025
          %s3027 = sand.u32 %s352, 1
          %s3028 = smul.addr %s3027, 16
          %s3029 = scalar_lea.vmem [#allocation2], %s3028
          %3030 = dma.done %s3026, 256
        $region88: #{hip_block_forward.5} parent=83 // pred_fallthru
          _
      $region84: #{hip_block_forward.5} parent=5 // pred_fallthru
        _
    $region6: #{hip_block_forward.5} parent=1 // loop_footer
      %s27 = sadd.s32 1, %s23
    $region7: #{hip_block_forward.5} parent=1 // loop_footer_branch
      %22 = sbr.rel target = $region3
    $region8: #{hip_block_forward.5} parent=1 // loop_exit
      _
    %3031 = vsyncpa [#allocation3], 1
    %s3032 = scalar_lea.sflag [#allocation3], 1
    %3033 = vsyncpa %s3032, 1

// kernel: hip_block_forward.3
$region0: #{hip_block_forward.3}
  #allocation0 [shape = 'u32[]', space=smem, size = 0x4, offset = 0x4, fixed_abs, tag = 'smem constant byte address 0x4 - core index']
  #allocation1 [shape = 'u32[144,128]{1,0:T(1,128)}', space=vmem, size = 0x12000, scoped, tag = 'internal scratch']
  %s0 = inlined_call_operand.vmem [shape: f32[2,2,8,16], index: 0, kind: input, shape index: {}]
  %s1 = inlined_call_operand.vmem [shape: f32[2,8,32], index: 1, kind: input, shape index: {}]
  %s2 = inlined_call_operand.vmem [shape: f32[1,16], index: 2, kind: input, shape index: {}]
  %s3 = inlined_call_operand.vmem [shape: f32[1,16], index: 3, kind: input, shape index: {}]
  %s4 = inlined_call_operand.vmem [shape: f32[1,32], index: 4, kind: input, shape index: {}]
  %s5 = inlined_call_operand.vmem [shape: f32[1,32], index: 5, kind: input, shape index: {}]
  %s6 = inlined_call_operand.vmem [shape: bf16[4,32,8], index: 6, kind: input, shape index: {}]
  %s7 = inlined_call_operand.vmem [shape: bf16[4,16,8], index: 7, kind: input, shape index: {}]
  %s8 = inlined_call_operand.vmem [shape: bf16[4,16,8], index: 8, kind: input, shape index: {}]
  %s9 = inlined_call_operand.vmem [shape: bf16[4,8,32], index: 9, kind: input, shape index: {}]
  %s10 = inlined_call_operand.vmem [shape: f32[1,32], index: 10, kind: input, shape index: {}]
  %s11 = inlined_call_operand.vmem [shape: f32[2,2,8,32], index: 11, kind: output, shape index: {}]
  %s12 = sld [smem:[#allocation0]]
  $region77: #{hip_block_forward.3} parent=0
    _
  %s14 = ssub.s32 1, %s12
  %s15 = scalar_select 0, %s14, %s12
  loop: start=0, step=1, limit=4
  $region2: #{hip_block_forward.3} parent=0 // loop_pre_header
    _
  $region3: #{hip_block_forward.3} parent=0 // loop_header
    %s17 = sphi 0, %s21
    %p18 = scmp.ge.s32.totalorder %s17, 4
    %s24 = sphi 0, %s36
    %s25 = sphi 0, %s32
    %s26 = sphi 0, %s24
    %s27 = sphi 0, %s25
    %s28 = sphi 0, %s26
    %s29 = sphi 0, %s27
    %s41 = sphi 0, %s43
    %s44 = sphi 0, %s41
    %s45 = sphi 0, %s44
    %s61 = sphi 0, %s45
    %s67 = sphi 0, %s69
    %s70 = sphi 0, %s67
    %s71 = sphi 0, %s70
    %s87 = sphi 0, %s71
    %s91 = sphi 0, %s91
    %s93 = sphi 0, %s91
    %s94 = sphi 0, %s93
    %s108 = sphi 0, %s94
    %s112 = sphi 0, %s112
    %s114 = sphi 0, %s112
    %s115 = sphi 0, %s114
    %s129 = sphi 0, %s115
    %s133 = sphi 0, %s133
    %s135 = sphi 0, %s133
    %s136 = sphi 0, %s135
    %s150 = sphi 0, %s136
    %s154 = sphi 0, %s154
    %s156 = sphi 0, %s154
    %s157 = sphi 0, %s156
    %s171 = sphi 0, %s157
    %s175 = sphi 0, %s175
    %s177 = sphi 0, %s175
    %s178 = sphi 0, %s177
    %s192 = sphi 0, %s178
    %s196 = sphi 0, %s196
    %s198 = sphi 0, %s196
    %s199 = sphi 0, %s198
    %s213 = sphi 0, %s199
    %s217 = sphi 0, %s217
    %s219 = sphi 0, %s217
    %s220 = sphi 0, %s219
    %s234 = sphi 0, %s220
    %s238 = sphi 0, %s238
    %s240 = sphi 0, %s238
    %s241 = sphi 0, %s240
    %s255 = sphi 0, %s241
    %s259 = sphi 0, %s259
    %s261 = sphi 0, %s259
    %s262 = sphi 0, %s261
    %s276 = sphi 0, %s262
    %s284 = sphi 0, %s286
    %s287 = sphi 0, %s284
    %s288 = sphi 0, %s287
    %s304 = sphi 0, %s288
  $region4: #{hip_block_forward.3} parent=0 // loop_header_branch
    %20 = sbr.rel (%p18) target = $region8
  $region5: #{hip_block_forward.3} parent=0 // loop_body
    %s22 = ssub.s32 %s17, 1
    %s23 = ssub.s32 %s17, 2
    %s30 = sadd.s32 1, %s25
    %p31 = scmp.ge.s32.totalorder %s30, 1
    %s32 = scalar_select %p31, 0, %s30
    %s33 = sadd.s32 1, %s24
    %s34 = scalar_select %p31, %s33, %s24
    %p35 = scmp.ge.s32.totalorder %s34, 2
    %s36 = scalar_select %p35, 0, %s34
    %s37 = ssub.s32 %s24, %s36
    %s38 = ssub.s32 %s25, %s32
    %s39 = sor.u32 %s37, %s38
    %p40 = scmp.eq.s32.totalorder %s39, 0
    %s42 = sadd.s32 %s41, 1
    %s43 = scalar_select %p40, %s41, %s42
    %p46 = pneg %p40
    %p47 = scmp.eq.s32.totalorder %s17, 1
    %p48 = por %p46, %p47
    %p49 = scmp.ne.s32.totalorder %s41, %s44
    %p50 = scmp.eq.s32.totalorder %s17, 0
    %p51 = por %p49, %p50
    %p52 = scmp.ne.s32.totalorder %s41, %s44
    %p53 = scmp.eq.s32.totalorder %s22, 1
    %p54 = por %p52, %p53
    %p55 = scmp.ne.s32.totalorder %s44, %s45
    %p56 = scmp.eq.s32.totalorder %s22, 0
    %p57 = por %p55, %p56
    %p58 = scmp.ne.s32.totalorder %s44, %s45
    %p59 = scmp.eq.s32.totalorder %s23, 1
    %p60 = por %p58, %p59
    %p62 = scmp.ne.s32.totalorder %s45, %s61
    %p63 = scmp.eq.s32.totalorder %s23, 0
    %p64 = por %p62, %p63
    %s65 = ssub.s32 %s25, %s32
    %p66 = scmp.eq.s32.totalorder %s65, 0
    %s68 = sadd.s32 %s67, 1
    %s69 = scalar_select %p66, %s67, %s68
    %p72 = pneg %p66
    %p73 = scmp.eq.s32.totalorder %s17, 1
    %p74 = por %p72, %p73
    %p75 = scmp.ne.s32.totalorder %s67, %s70
    %p76 = scmp.eq.s32.totalorder %s17, 0
    %p77 = por %p75, %p76
    %p78 = scmp.ne.s32.totalorder %s67, %s70
    %p79 = scmp.eq.s32.totalorder %s22, 1
    %p80 = por %p78, %p79
    %p81 = scmp.ne.s32.totalorder %s70, %s71
    %p82 = scmp.eq.s32.totalorder %s22, 0
    %p83 = por %p81, %p82
    %p84 = scmp.ne.s32.totalorder %s70, %s71
    %p85 = scmp.eq.s32.totalorder %s23, 1
    %p86 = por %p84, %p85
    %p88 = scmp.ne.s32.totalorder %s71, %s87
    %p89 = scmp.eq.s32.totalorder %s23, 0
    %p90 = por %p88, %p89
    %s92 = sadd.s32 %s91, 1
    %p95 = scmp.eq.s32.totalorder %s17, 1
    %p96 = scmp.ne.s32.totalorder %s91, %s93
    %p97 = scmp.eq.s32.totalorder %s17, 0
    %p98 = por %p96, %p97
    %p99 = scmp.ne.s32.totalorder %s91, %s93
    %p100 = scmp.eq.s32.totalorder %s22, 1
    %p101 = por %p99, %p100
    %p102 = scmp.ne.s32.totalorder %s93, %s94
    %p103 = scmp.eq.s32.totalorder %s22, 0
    %p104 = por %p102, %p103
    %p105 = scmp.ne.s32.totalorder %s93, %s94
    %p106 = scmp.eq.s32.totalorder %s23, 1
    %p107 = por %p105, %p106
    %p109 = scmp.ne.s32.totalorder %s94, %s108
    %p110 = scmp.eq.s32.totalorder %s23, 0
    %p111 = por %p109, %p110
    %s113 = sadd.s32 %s112, 1
    %p116 = scmp.eq.s32.totalorder %s17, 1
    %p117 = scmp.ne.s32.totalorder %s112, %s114
    %p118 = scmp.eq.s32.totalorder %s17, 0
    %p119 = por %p117, %p118
    %p120 = scmp.ne.s32.totalorder %s112, %s114
    %p121 = scmp.eq.s32.totalorder %s22, 1
    %p122 = por %p120, %p121
    %p123 = scmp.ne.s32.totalorder %s114, %s115
    %p124 = scmp.eq.s32.totalorder %s22, 0
    %p125 = por %p123, %p124
    %p126 = scmp.ne.s32.totalorder %s114, %s115
    %p127 = scmp.eq.s32.totalorder %s23, 1
    %p128 = por %p126, %p127
    %p130 = scmp.ne.s32.totalorder %s115, %s129
    %p131 = scmp.eq.s32.totalorder %s23, 0
    %p132 = por %p130, %p131
    %s134 = sadd.s32 %s133, 1
    %p137 = scmp.eq.s32.totalorder %s17, 1
    %p138 = scmp.ne.s32.totalorder %s133, %s135
    %p139 = scmp.eq.s32.totalorder %s17, 0
    %p140 = por %p138, %p139
    %p141 = scmp.ne.s32.totalorder %s133, %s135
    %p142 = scmp.eq.s32.totalorder %s22, 1
    %p143 = por %p141, %p142
    %p144 = scmp.ne.s32.totalorder %s135, %s136
    %p145 = scmp.eq.s32.totalorder %s22, 0
    %p146 = por %p144, %p145
    %p147 = scmp.ne.s32.totalorder %s135, %s136
    %p148 = scmp.eq.s32.totalorder %s23, 1
    %p149 = por %p147, %p148
    %p151 = scmp.ne.s32.totalorder %s136, %s150
    %p152 = scmp.eq.s32.totalorder %s23, 0
    %p153 = por %p151, %p152
    %s155 = sadd.s32 %s154, 1
    %p158 = scmp.eq.s32.totalorder %s17, 1
    %p159 = scmp.ne.s32.totalorder %s154, %s156
    %p160 = scmp.eq.s32.totalorder %s17, 0
    %p161 = por %p159, %p160
    %p162 = scmp.ne.s32.totalorder %s154, %s156
    %p163 = scmp.eq.s32.totalorder %s22, 1
    %p164 = por %p162, %p163
    %p165 = scmp.ne.s32.totalorder %s156, %s157
    %p166 = scmp.eq.s32.totalorder %s22, 0
    %p167 = por %p165, %p166
    %p168 = scmp.ne.s32.totalorder %s156, %s157
    %p169 = scmp.eq.s32.totalorder %s23, 1
    %p170 = por %p168, %p169
    %p172 = scmp.ne.s32.totalorder %s157, %s171
    %p173 = scmp.eq.s32.totalorder %s23, 0
    %p174 = por %p172, %p173
    %s176 = sadd.s32 %s175, 1
    %p179 = scmp.eq.s32.totalorder %s17, 1
    %p180 = scmp.ne.s32.totalorder %s175, %s177
    %p181 = scmp.eq.s32.totalorder %s17, 0
    %p182 = por %p180, %p181
    %p183 = scmp.ne.s32.totalorder %s175, %s177
    %p184 = scmp.eq.s32.totalorder %s22, 1
    %p185 = por %p183, %p184
    %p186 = scmp.ne.s32.totalorder %s177, %s178
    %p187 = scmp.eq.s32.totalorder %s22, 0
    %p188 = por %p186, %p187
    %p189 = scmp.ne.s32.totalorder %s177, %s178
    %p190 = scmp.eq.s32.totalorder %s23, 1
    %p191 = por %p189, %p190
    %p193 = scmp.ne.s32.totalorder %s178, %s192
    %p194 = scmp.eq.s32.totalorder %s23, 0
    %p195 = por %p193, %p194
    %s197 = sadd.s32 %s196, 1
    %p200 = scmp.eq.s32.totalorder %s17, 1
    %p201 = scmp.ne.s32.totalorder %s196, %s198
    %p202 = scmp.eq.s32.totalorder %s17, 0
    %p203 = por %p201, %p202
    %p204 = scmp.ne.s32.totalorder %s196, %s198
    %p205 = scmp.eq.s32.totalorder %s22, 1
    %p206 = por %p204, %p205
    %p207 = scmp.ne.s32.totalorder %s198, %s199
    %p208 = scmp.eq.s32.totalorder %s22, 0
    %p209 = por %p207, %p208
    %p210 = scmp.ne.s32.totalorder %s198, %s199
    %p211 = scmp.eq.s32.totalorder %s23, 1
    %p212 = por %p210, %p211
    %p214 = scmp.ne.s32.totalorder %s199, %s213
    %p215 = scmp.eq.s32.totalorder %s23, 0
    %p216 = por %p214, %p215
    %s218 = sadd.s32 %s217, 1
    %p221 = scmp.eq.s32.totalorder %s17, 1
    %p222 = scmp.ne.s32.totalorder %s217, %s219
    %p223 = scmp.eq.s32.totalorder %s17, 0
    %p224 = por %p222, %p223
    %p225 = scmp.ne.s32.totalorder %s217, %s219
    %p226 = scmp.eq.s32.totalorder %s22, 1
    %p227 = por %p225, %p226
    %p228 = scmp.ne.s32.totalorder %s219, %s220
    %p229 = scmp.eq.s32.totalorder %s22, 0
    %p230 = por %p228, %p229
    %p231 = scmp.ne.s32.totalorder %s219, %s220
    %p232 = scmp.eq.s32.totalorder %s23, 1
    %p233 = por %p231, %p232
    %p235 = scmp.ne.s32.totalorder %s220, %s234
    %p236 = scmp.eq.s32.totalorder %s23, 0
    %p237 = por %p235, %p236
    %s239 = sadd.s32 %s238, 1
    %p242 = scmp.eq.s32.totalorder %s17, 1
    %p243 = scmp.ne.s32.totalorder %s238, %s240
    %p244 = scmp.eq.s32.totalorder %s17, 0
    %p245 = por %p243, %p244
    %p246 = scmp.ne.s32.totalorder %s238, %s240
    %p247 = scmp.eq.s32.totalorder %s22, 1
    %p248 = por %p246, %p247
    %p249 = scmp.ne.s32.totalorder %s240, %s241
    %p250 = scmp.eq.s32.totalorder %s22, 0
    %p251 = por %p249, %p250
    %p252 = scmp.ne.s32.totalorder %s240, %s241
    %p253 = scmp.eq.s32.totalorder %s23, 1
    %p254 = por %p252, %p253
    %p256 = scmp.ne.s32.totalorder %s241, %s255
    %p257 = scmp.eq.s32.totalorder %s23, 0
    %p258 = por %p256, %p257
    %s260 = sadd.s32 %s259, 1
    %p263 = scmp.eq.s32.totalorder %s17, 1
    %p264 = scmp.ne.s32.totalorder %s259, %s261
    %p265 = scmp.eq.s32.totalorder %s17, 0
    %p266 = por %p264, %p265
    %p267 = scmp.ne.s32.totalorder %s259, %s261
    %p268 = scmp.eq.s32.totalorder %s22, 1
    %p269 = por %p267, %p268
    %p270 = scmp.ne.s32.totalorder %s261, %s262
    %p271 = scmp.eq.s32.totalorder %s22, 0
    %p272 = por %p270, %p271
    %p273 = scmp.ne.s32.totalorder %s261, %s262
    %p274 = scmp.eq.s32.totalorder %s23, 1
    %p275 = por %p273, %p274
    %p277 = scmp.ne.s32.totalorder %s262, %s276
    %p278 = scmp.eq.s32.totalorder %s23, 0
    %p279 = por %p277, %p278
    %s280 = ssub.s32 %s24, %s36
    %s281 = ssub.s32 %s25, %s32
    %s282 = sor.u32 %s280, %s281
    %p283 = scmp.eq.s32.totalorder %s282, 0
    %s285 = sadd.s32 %s284, 1
    %s286 = scalar_select %p283, %s284, %s285
    %p289 = pneg %p283
    %p290 = scmp.eq.s32.totalorder %s17, 1
    %p291 = por %p289, %p290
    %p292 = scmp.ne.s32.totalorder %s284, %s287
    %p293 = scmp.eq.s32.totalorder %s17, 0
    %p294 = por %p292, %p293
    %p295 = scmp.ne.s32.totalorder %s284, %s287
    %p296 = scmp.eq.s32.totalorder %s22, 1
    %p297 = por %p295, %p296
    %p298 = scmp.ne.s32.totalorder %s287, %s288
    %p299 = scmp.eq.s32.totalorder %s22, 0
    %p300 = por %p298, %p299
    %p301 = scmp.ne.s32.totalorder %s287, %s288
    %p302 = scmp.eq.s32.totalorder %s23, 1
    %p303 = por %p301, %p302
    %p305 = scmp.ne.s32.totalorder %s288, %s304
    %p306 = scmp.eq.s32.totalorder %s23, 0
    %p307 = por %p305, %p306
    %p308 = scmp.le.s32.totalorder 1, %s17
    %p309 = scmp.lt.s32.totalorder %s17, 3
    %p310 = pnand %p308, %p309
    %p311 = pneg %p310
    // Predicated region
    $region9: #{hip_block_forward.3} parent=5 // pred_check
      _
    $region10: #{hip_block_forward.3} parent=5 // pred_check_branch
      %313 = sbr.rel (%p310) target = $region12
    $region11: #{hip_block_forward.3} parent=5 // pred_region
      %s314 = ssub.s32 %s17, 1
      // Predicated region
      $region13: #{hip_block_forward.3} parent=11 // pred_check
        %p315 = pneg %p83
      $region14: #{hip_block_forward.3} parent=11 // pred_check_branch
        %317 = sbr.rel (%p315) target = $region16
      $region15: #{hip_block_forward.3} parent=11 // pred_region
        %s318 = smul.u32 2, %s27
        %p319 = scmp.lt.s32.totalorder %s318, 1
        %s320 = scalar_select %p319, %s318, 1
        %s321 = smul.addr %s320, 8
        %s322 = scalar_lea.vmem %s1, %s321
        %s323 = smul.u32 2, %s27
      $region16: #{hip_block_forward.3} parent=11 // pred_fallthru
        _
      // Predicated region
      $region17: #{hip_block_forward.3} parent=11 // pred_check
        %p324 = pneg %p104
      $region18: #{hip_block_forward.3} parent=11 // pred_check_branch
        %326 = sbr.rel (%p324) target = $region20
      $region19: #{hip_block_forward.3} parent=11 // pred_region
        _
      $region20: #{hip_block_forward.3} parent=11 // pred_fallthru
        _
      // Predicated region
      $region21: #{hip_block_forward.3} parent=11 // pred_check
        %p327 = pneg %p125
      $region22: #{hip_block_forward.3} parent=11 // pred_check_branch
        %329 = sbr.rel (%p327) target = $region24
      $region23: #{hip_block_forward.3} parent=11 // pred_region
        _
      $region24: #{hip_block_forward.3} parent=11 // pred_fallthru
        _
      // Predicated region
      $region25: #{hip_block_forward.3} parent=11 // pred_check
        %p330 = pneg %p146
      $region26: #{hip_block_forward.3} parent=11 // pred_check_branch
        %332 = sbr.rel (%p330) target = $region28
      $region27: #{hip_block_forward.3} parent=11 // pred_region
        _
      $region28: #{hip_block_forward.3} parent=11 // pred_fallthru
        _
      // Predicated region
      $region29: #{hip_block_forward.3} parent=11 // pred_check
        %p333 = pneg %p167
      $region30: #{hip_block_forward.3} parent=11 // pred_check_branch
        %335 = sbr.rel (%p333) target = $region32
      $region31: #{hip_block_forward.3} parent=11 // pred_region
        _
      $region32: #{hip_block_forward.3} parent=11 // pred_fallthru
        _
      // Predicated region
      $region33: #{hip_block_forward.3} parent=11 // pred_check
        %p336 = pneg %p188
      $region34: #{hip_block_forward.3} parent=11 // pred_check_branch
        %338 = sbr.rel (%p336) target = $region36
      $region35: #{hip_block_forward.3} parent=11 // pred_region
        _
      $region36: #{hip_block_forward.3} parent=11 // pred_fallthru
        _
      // Predicated region
      $region37: #{hip_block_forward.3} parent=11 // pred_check
        %p339 = pneg %p209
      $region38: #{hip_block_forward.3} parent=11 // pred_check_branch
        %341 = sbr.rel (%p339) target = $region40
      $region39: #{hip_block_forward.3} parent=11 // pred_region
        _
      $region40: #{hip_block_forward.3} parent=11 // pred_fallthru
        _
      // Predicated region
      $region41: #{hip_block_forward.3} parent=11 // pred_check
        %p342 = pneg %p230
      $region42: #{hip_block_forward.3} parent=11 // pred_check_branch
        %344 = sbr.rel (%p342) target = $region44
      $region43: #{hip_block_forward.3} parent=11 // pred_region
        _
      $region44: #{hip_block_forward.3} parent=11 // pred_fallthru
        _
      // Predicated region
      $region45: #{hip_block_forward.3} parent=11 // pred_check
        %p345 = pneg %p251
      $region46: #{hip_block_forward.3} parent=11 // pred_check_branch
        %347 = sbr.rel (%p345) target = $region48
      $region47: #{hip_block_forward.3} parent=11 // pred_region
        _
      $region48: #{hip_block_forward.3} parent=11 // pred_fallthru
        _
      // Predicated region
      $region49: #{hip_block_forward.3} parent=11 // pred_check
        %p348 = pneg %p272
      $region50: #{hip_block_forward.3} parent=11 // pred_check_branch
        %350 = sbr.rel (%p348) target = $region52
      $region51: #{hip_block_forward.3} parent=11 // pred_region
        _
      $region52: #{hip_block_forward.3} parent=11 // pred_fallthru
        _
    $region12: #{hip_block_forward.3} parent=5 // pred_fallthru
      _
    %p351 = scmp.lt.s32.totalorder %s17, 2
    // Predicated region
    $region53: #{hip_block_forward.3} parent=5 // pred_check
      %p352 = pneg %p351
    $region54: #{hip_block_forward.3} parent=5 // pred_check_branch
      %354 = sbr.rel (%p352) target = $region56
    $region55: #{hip_block_forward.3} parent=5 // pred_region
      // Predicated region
      $region57: #{hip_block_forward.3} parent=55 // pred_check
        %p355 = pneg %p51
      $region58: #{hip_block_forward.3} parent=55 // pred_check_branch
        %357 = sbr.rel (%p355) target = $region60
      $region59: #{hip_block_forward.3} parent=55 // pred_region
        %s358 = smul.u32 2, %s25
        %p359 = scmp.lt.s32.totalorder %s24, 1
        %s360 = scalar_select %p359, %s24, 1
        %p361 = scmp.lt.s32.totalorder %s358, 1
        %s362 = scalar_select %p361, %s358, 1
        %s363 = smul.addr %s360, 2
        %s364 = sadd.s32 %s362, %s363
        %s365 = smul.addr %s364, 8
        %s366 = scalar_lea.vmem %s0, %s365
        %s367 = smul.u32 2, %s25
      $region60: #{hip_block_forward.3} parent=55 // pred_fallthru
        _
    $region56: #{hip_block_forward.3} parent=5 // pred_fallthru
      _
    %p368 = scmp.le.s32.totalorder 1, %s17
    %p369 = scmp.lt.s32.totalorder %s17, 3
    %p370 = pnand %p368, %p369
    %p371 = pneg %p370
    // Predicated region
    $region61: #{hip_block_forward.3} parent=5 // pred_check
      _
    $region62: #{hip_block_forward.3} parent=5 // pred_check_branch
      %373 = sbr.rel (%p370) target = $region64
    $region63: #{hip_block_forward.3} parent=5 // pred_region
      %s374 = ssub.s32 %s17, 1
      %s375 = smul.u32 2, %s27
      %p376 = scmp.lt.s32.totalorder %s26, 1
      %s377 = scalar_select %p376, %s26, 1
      %p378 = scmp.lt.s32.totalorder %s375, 1
      %s379 = scalar_select %p378, %s375, 1
      %s380 = smul.addr %s377, 2
      %s381 = sadd.s32 %s379, %s380
      %s382 = smul.addr %s381, 8
      %s383 = scalar_lea.vmem %s0, %s382
      %p384 = pneg %p57
      %p385 = pneg %p54
      %s386 = smul.u32 2, %s27
      %p387 = scmp.lt.s32.totalorder %s386, 1
      %s388 = scalar_select %p387, %s386, 1
      %s389 = smul.addr %s388, 8
      %s390 = scalar_lea.vmem %s1, %s389
      %p391 = pneg %p83
      %p392 = pneg %p80
      %p393 = pneg %p104
      %p394 = pneg %p101
      %p395 = pneg %p125
      %p396 = pneg %p122
      %p397 = pneg %p146
      %p398 = pneg %p143
      %p399 = pneg %p167
      %p400 = pneg %p164
      %p401 = pneg %p188
      %p402 = pneg %p185
      %p403 = pneg %p209
      %p404 = pneg %p206
      %p405 = pneg %p230
      %p406 = pneg %p227
      %p407 = pneg %p251
      %p408 = pneg %p248
      %p409 = pneg %p272
      %p410 = pneg %p269
      %p411 = pneg %p300
      %p412 = pneg %p297
      %s413 = smul.u32 2, %s27
      %p414 = scmp.lt.s32.totalorder %s26, 1
      %s415 = scalar_select %p414, %s26, 1
      %p416 = scmp.lt.s32.totalorder %s413, 1
      %s417 = scalar_select %p416, %s413, 1
      %s418 = smul.addr %s415, 2
      %s419 = sadd.s32 %s417, %s418
      %s420 = smul.addr %s419, 8
      %s421 = scalar_lea.vmem %s11, %s420
      %s422 = smul.u32 2, %s27
      %p423 = scmp.lt.s32.totalorder %s26, 1
      %s424 = scalar_select %p423, %s26, 1
      %p425 = scmp.lt.s32.totalorder %s422, 1
      %s426 = scalar_select %p425, %s422, 1
      %s427 = smul.addr %s424, 2
      %s428 = sadd.s32 %s426, %s427
      %s429 = smul.addr %s428, 8
      %s430 = scalar_lea.vmem %s0, %s429
      %s431 = smul.u32 2, %s27
      %s432 = smul.u32 2, %s27
      %p433 = scmp.lt.s32.totalorder %s432, 1
      %s434 = scalar_select %p433, %s432, 1
      %s435 = smul.addr %s434, 8
      %s436 = scalar_lea.vmem %s1, %s435
      %s437 = smul.u32 2, %s27
      %s438 = smul.u32 2, %s27
      %p439 = scmp.lt.s32.totalorder %s26, 1
      %s440 = scalar_select %p439, %s26, 1
      %p441 = scmp.lt.s32.totalorder %s438, 1
      %s442 = scalar_select %p441, %s438, 1
      %s443 = smul.addr %s440, 2
      %s444 = sadd.s32 %s442, %s443
      %s445 = smul.addr %s444, 8
      %s446 = scalar_lea.vmem %s11, %s445
      %s447 = smul.u32 2, %s27
      %v449 = vld [vmem:[%s430] sm:$0xff]
      %v450 = vld [vmem:[%s430 + $0x8] sm:$0xff]
      %v451 = vld [vmem:[%s436] sm:$0xff]
      %v452 = vld [vmem:[%s436 + $0x8] sm:$0xff]
      %v453 = vld [vmem:[%s2] sm:$0x1]
      %v454 = vld [vmem:[%s3] sm:$0x1]
      %vm455 = vcmask 130048
      %v456 = vsel %vm455, %v449, 0.0
      %457 = vadd.xlane.f32.xlu0 %v456
      %v458 = vpop.xlane.xlu0 %457
      %v459 = vsel %vm455, %v450, 0.0
      %460 = vadd.xlane.f32.xlu0 %v459
      %v461 = vpop.xlane.xlu0 %460
      %v462 = vrcp.pop 16.0
      %v463 = vmul.f32 %v458, %v462
      %v464 = vmul.f32 %v461, %v462
      %v465 = vsub.f32 %v449, %v463
      %v466 = vsub.f32 %v450, %v464
      %v467 = vmul.f32 %v465, %v465
      %v468 = vmul.f32 %v466, %v466
      %v469 = vsel %vm455, %v467, 0.0
      %470 = vadd.xlane.f32.xlu0 %v469
      %v471 = vpop.xlane.xlu0 %470
      %v472 = vsel %vm455, %v468, 0.0
      %473 = vadd.xlane.f32.xlu0 %v472
      %v474 = vpop.xlane.xlu0 %473
      %v475 = vmul.f32 %v471, %v462
      %v476 = vmul.f32 %v474, %v462
      %v477 = vadd.f32 %v475, 1e-05
      %v478 = vadd.f32 %v476, 1e-05
      %v479 = vrsqrt.pop %v477
      %v480 = vrsqrt.pop %v478
      %v481 = vmul.f32 %v465, %v479
      %v482 = vmul.f32 %v466, %v480
      %v484 = vlaneseq
      %v485 = vshrl.u32 %v484, 7
      %v486 = vsub.s32 0, %v485
      %v487 = vrot.slane %v453, %v486
      %v489 = vmul.f32 %v481, %v487
      %v490 = vmul.f32 %v482, %v487
      %v492 = vlaneseq
      %v493 = vshrl.u32 %v492, 7
      %v494 = vsub.s32 0, %v493
      %v495 = vrot.slane %v454, %v494
      %v497 = vadd.f32 %v489, %v495
      %v498 = vadd.f32 %v490, %v495
      %v499 = vld [vmem:[%s4] sm:$0x1]
      %v500 = vld [vmem:[%s5] sm:$0x1]
      %vm501 = vcmask 261120
      %v502 = vsel %vm501, %v451, 0.0
      %503 = vadd.xlane.f32.xlu0 %v502
      %v504 = vpop.xlane.xlu0 %503
      %v505 = vsel %vm501, %v452, 0.0
      %506 = vadd.xlane.f32.xlu0 %v505
      %v507 = vpop.xlane.xlu0 %506
      %v508 = vrcp.pop 32.0
      %v509 = vmul.f32 %v504, %v508
      %v510 = vmul.f32 %v507, %v508
      %v511 = vsub.f32 %v451, %v509
      %v512 = vsub.f32 %v452, %v510
      %v513 = vmul.f32 %v511, %v511
      %v514 = vmul.f32 %v512, %v512
      %v515 = vsel %vm501, %v513, 0.0
      %516 = vadd.xlane.f32.xlu0 %v515
      %v517 = vpop.xlane.xlu0 %516
      %v518 = vsel %vm501, %v514, 0.0
      %519 = vadd.xlane.f32.xlu0 %v518
      %v520 = vpop.xlane.xlu0 %519
      %v521 = vmul.f32 %v517, %v508
      %v522 = vmul.f32 %v520, %v508
      %v523 = vadd.f32 %v521, 1e-05
      %v524 = vadd.f32 %v522, 1e-05
      %v525 = vrsqrt.pop %v523
      %v526 = vrsqrt.pop %v524
      %v527 = vmul.f32 %v511, %v525
      %v528 = vmul.f32 %v512, %v526
      %v530 = vlaneseq
      %v531 = vshrl.u32 %v530, 7
      %v532 = vsub.s32 0, %v531
      %v533 = vrot.slane %v499, %v532
      %v535 = vmul.f32 %v527, %v533
      %v536 = vmul.f32 %v528, %v533
      %v538 = vlaneseq
      %v539 = vshrl.u32 %v538, 7
      %v540 = vsub.s32 0, %v539
      %v541 = vrot.slane %v500, %v540
      %v543 = vadd.f32 %v535, %v541
      %v544 = vadd.f32 %v536, %v541
      %v545 = vpack.c.bf16 %v544, %v543
      %v546 = vpack.c.bf16 %v498, %v497
      %v547 = vld [vmem:[%s6] sm:$0xf]
      %v548 = vld [vmem:[%s6 + $0x4] sm:$0xf]
      %v549 = vld [vmem:[%s6 + $0x8] sm:$0xf]
      %v550 = vld [vmem:[%s6 + $0xc] sm:$0xf]
      %v555 = vunpack.c.l.b16 %v547
      %v556 = vunpack.c.l.b16 %v548
      %v557 = vunpack.c.l.b16 %v549
      %v558 = vunpack.c.l.b16 %v550
      %v559 = vpack.c.b16 %v556, %v555
      %v560 = vpack.c.b16 %v558, %v557
      %v564 = vsel %vm501, %v545, 0
      %566 = vmatprep.subr.bf16.mxu0 0
      %567 = vmatpush1.bf16.msra.mxu0 %v559
      %568 = vmatprep.subr.bf16.mxu0 0
      %569 = vmatpush1.bf16.msra.mxu0 %v560
      %570 = vmatprep.subr.bf16.mxu0 0
      %571 = vmatpush1.bf16.msra.mxu0 0
      %572 = vmatprep.subr.bf16.mxu0 0
      %573 = vmatpush1.bf16.msra.mxu0 0
      %574 = vmatprep.subr.bf16.mxu0 0
      %575 = vmatpush1.bf16.msra.mxu0 0
      %576 = vmatprep.subr.bf16.mxu0 0
      %577 = vmatpush1.bf16.msra.mxu0 0
      %578 = vmatprep.subr.bf16.mxu0 0
      %579 = vmatpush1.bf16.msra.mxu0 0
      %580 = vmatprep.subr.bf16.mxu0 0
      %581 = vmatpush1.bf16.msra.mxu0 0
      %582 = vmatprep.subr.bf16.mxu0 0
      %583 = vmatpush1.bf16.msra.mxu0 0
      %584 = vmatprep.subr.bf16.mxu0 0
      %585 = vmatpush1.bf16.msra.mxu0 0
      %586 = vmatprep.subr.bf16.mxu0 0
      %587 = vmatpush1.bf16.msra.mxu0 0
      %588 = vmatprep.subr.bf16.mxu0 0
      %589 = vmatpush1.bf16.msra.mxu0 0
      %590 = vmatprep.subr.bf16.mxu0 0
      %591 = vmatpush1.bf16.msra.mxu0 0
      %592 = vmatprep.subr.bf16.mxu0 0
      %593 = vmatpush1.bf16.msra.mxu0 0
      %594 = vmatprep.subr.bf16.mxu0 0
      %595 = vmatpush1.bf16.msra.mxu0 0
      %596 = vmatprep.subr.bf16.mxu0 0
      %597 = vmatpush1.bf16.msra.mxu0 0
      %598 = vmatprep.mubr.bf16.mxu0 0
      %599 = vmatmul.mubr.bf16.gmra.mrb[0].mxu0 %v564
      %v600 = vpop.f32.mrb[0].mxu0
      %v601 = vadd.f32 0.0, %v600
      %v602 = vpop.f32.mrb[0].mxu0
      %v603 = vpop.f32.mrb[0].mxu0
      %v604 = vadd.f32 0.0, %v603
      %v605 = vpop.f32.mrb[0].mxu0
      %606 = vdwg.mxu0
      %v607 = vld [vmem:[%s7] sm:$0xf]
      %v608 = vld [vmem:[%s7 + $0x4] sm:$0xf]
      %v611 = vunpack.c.l.b16 %v607
      %v612 = vunpack.c.l.b16 %v608
      %v613 = vpack.c.b16 %v612, %v611
      %v616 = vsel %vm455, %v546, 0
      %618 = vmatprep.subr.bf16.mxu0 0
      %619 = vmatpush1.bf16.msra.mxu0 %v613
      %620 = vmatprep.subr.bf16.mxu0 0
      %621 = vmatpush1.bf16.msra.mxu0 0
      %622 = vmatprep.subr.bf16.mxu0 0
      %623 = vmatpush1.bf16.msra.mxu0 0
      %624 = vmatprep.subr.bf16.mxu0 0
      %625 = vmatpush1.bf16.msra.mxu0 0
      %626 = vmatprep.subr.bf16.mxu0 0
      %627 = vmatpush1.bf16.msra.mxu0 0
      %628 = vmatprep.subr.bf16.mxu0 0
      %629 = vmatpush1.bf16.msra.mxu0 0
      %630 = vmatprep.subr.bf16.mxu0 0
      %631 = vmatpush1.bf16.msra.mxu0 0
      %632 = vmatprep.subr.bf16.mxu0 0
      %633 = vmatpush1.bf16.msra.mxu0 0
      %634 = vmatprep.subr.bf16.mxu0 0
      %635 = vmatpush1.bf16.msra.mxu0 0
      %636 = vmatprep.subr.bf16.mxu0 0
      %637 = vmatpush1.bf16.msra.mxu0 0
      %638 = vmatprep.subr.bf16.mxu0 0
      %639 = vmatpush1.bf16.msra.mxu0 0
      %640 = vmatprep.subr.bf16.mxu0 0
      %641 = vmatpush1.bf16.msra.mxu0 0
      %642 = vmatprep.subr.bf16.mxu0 0
      %643 = vmatpush1.bf16.msra.mxu0 0
      %644 = vmatprep.subr.bf16.mxu0 0
      %645 = vmatpush1.bf16.msra.mxu0 0
      %646 = vmatprep.subr.bf16.mxu0 0
      %647 = vmatpush1.bf16.msra.mxu0 0
      %648 = vmatprep.subr.bf16.mxu0 0
      %649 = vmatpush1.bf16.msra.mxu0 0
      %650 = vmatprep.mubr.bf16.mxu0 0
      %651 = vmatmul.mubr.bf16.gmra.mrb[0].mxu0 %v616
      %v652 = vpop.f32.mrb[0].mxu0
      %v653 = vadd.f32 0.0, %v652
      %v654 = vpop.f32.mrb[0].mxu0
      %v655 = vpop.f32.mrb[0].mxu0
      %v656 = vadd.f32 0.0, %v655
      %v657 = vpop.f32.mrb[0].mxu0
      %658 = vdwg.mxu0
      %v659 = vld [vmem:[%s8] sm:$0xf]
      %v660 = vld [vmem:[%s8 + $0x4] sm:$0xf]
      %v663 = vunpack.c.l.b16 %v659
      %v664 = vunpack.c.l.b16 %v660
      %v665 = vpack.c.b16 %v664, %v663
      %667 = vmatprep.subr.bf16.mxu0 0
      %668 = vmatpush1.bf16.msra.mxu0 %v665
      %669 = vmatprep.subr.bf16.mxu0 0
      %670 = vmatpush1.bf16.msra.mxu0 0
      %671 = vmatprep.subr.bf16.mxu0 0
      %672 = vmatpush1.bf16.msra.mxu0 0
      %673 = vmatprep.subr.bf16.mxu0 0
      %674 = vmatpush1.bf16.msra.mxu0 0
      %675 = vmatprep.subr.bf16.mxu0 0
      %676 = vmatpush1.bf16.msra.mxu0 0
      %677 = vmatprep.subr.bf16.mxu0 0
      %678 = vmatpush1.bf16.msra.mxu0 0
      %679 = vmatprep.subr.bf16.mxu0 0
      %680 = vmatpush1.bf16.msra.mxu0 0
      %681 = vmatprep.subr.bf16.mxu0 0
      %682 = vmatpush1.bf16.msra.mxu0 0
      %683 = vmatprep.subr.bf16.mxu0 0
      %684 = vmatpush1.bf16.msra.mxu0 0
      %685 = vmatprep.subr.bf16.mxu0 0
      %686 = vmatpush1.bf16.msra.mxu0 0
      %687 = vmatprep.subr.bf16.mxu0 0
      %688 = vmatpush1.bf16.msra.mxu0 0
      %689 = vmatprep.subr.bf16.mxu0 0
      %690 = vmatpush1.bf16.msra.mxu0 0
      %691 = vmatprep.subr.bf16.mxu0 0
      %692 = vmatpush1.bf16.msra.mxu0 0
      %693 = vmatprep.subr.bf16.mxu0 0
      %694 = vmatpush1.bf16.msra.mxu0 0
      %695 = vmatprep.subr.bf16.mxu0 0
      %696 = vmatpush1.bf16.msra.mxu0 0
      %697 = vmatprep.subr.bf16.mxu0 0
      %698 = vmatpush1.bf16.msra.mxu0 0
      %699 = vmatprep.mubr.bf16.mxu0 0
      %700 = vmatmul.mubr.bf16.gmra.mrb[0].mxu0 %v616
      %v701 = vpop.f32.mrb[0].mxu0
      %v702 = vadd.f32 0.0, %v701
      %v703 = vpop.f32.mrb[0].mxu0
      %v704 = vpop.f32.mrb[0].mxu0
      %v705 = vadd.f32 0.0, %v704
      %v706 = vpop.f32.mrb[0].mxu0
      %707 = vdwg.mxu0
      %vm708 = vcmask 64512
      %v710 = vsel %vm708, %v601, 0
      %v713 = vsel %vm708, %v653, 0
      %715 = vmatprep.subr.mxu0 0.0
      %716 = vmatpush1.xpose.msra.mxu0 %v713
      %717 = vmatprep.subr.mxu0 0.0
      %718 = vmatpush1.xpose.msra.mxu0 0.0
      %719 = vmatprep.subr.mxu0 0.0
      %720 = vmatpush1.xpose.msra.mxu0 0.0
      %721 = vmatprep.subr.mxu0 0.0
      %722 = vmatpush1.xpose.msra.mxu0 0.0
      %723 = vmatprep.subr.mxu0 0.0
      %724 = vmatpush1.xpose.msra.mxu0 0.0
      %725 = vmatprep.subr.mxu0 0.0
      %726 = vmatpush1.xpose.msra.mxu0 0.0
      %727 = vmatprep.subr.mxu0 0.0
      %728 = vmatpush1.xpose.msra.mxu0 0.0
      %729 = vmatprep.subr.mxu0 0.0
      %730 = vmatpush1.xpose.msra.mxu0 0.0
      %731 = vmatprep.subr.mxu0 0.0
      %732 = vmatpush1.xpose.msra.mxu0 0.0
      %733 = vmatprep.subr.mxu0 0.0
      %734 = vmatpush1.xpose.msra.mxu0 0.0
      %735 = vmatprep.subr.mxu0 0.0
      %736 = vmatpush1.xpose.msra.mxu0 0.0
      %737 = vmatprep.subr.mxu0 0.0
      %738 = vmatpush1.xpose.msra.mxu0 0.0
      %739 = vmatprep.subr.mxu0 0.0
      %740 = vmatpush1.xpose.msra.mxu0 0.0
      %741 = vmatprep.subr.mxu0 0.0
      %742 = vmatpush1.xpose.msra.mxu0 0.0
      %743 = vmatprep.subr.mxu0 0.0
      %744 = vmatpush1.xpose.msra.mxu0 0.0
      %745 = vmatprep.subr.mxu0 0.0
      %746 = vmatpush1.xpose.msra.mxu0 0.0
      %747 = vmatprep.subr.mxu0 0.0
      %748 = vmatpush1.xpose.msra.mxu0 0.0
      %749 = vmatprep.subr.mxu0 0.0
      %750 = vmatpush1.xpose.msra.mxu0 0.0
      %751 = vmatprep.subr.mxu0 0.0
      %752 = vmatpush1.xpose.msra.mxu0 0.0
      %753 = vmatprep.subr.mxu0 0.0
      %754 = vmatpush1.xpose.msra.mxu0 0.0
      %755 = vmatprep.subr.mxu0 0.0
      %756 = vmatpush1.xpose.msra.mxu0 0.0
      %757 = vmatprep.subr.mxu0 0.0
      %758 = vmatpush1.xpose.msra.mxu0 0.0
      %759 = vmatprep.subr.mxu0 0.0
      %760 = vmatpush1.xpose.msra.mxu0 0.0
      %761 = vmatprep.subr.mxu0 0.0
      %762 = vmatpush1.xpose.msra.mxu0 0.0
      %763 = vmatprep.subr.mxu0 0.0
      %764 = vmatpush1.xpose.msra.mxu0 0.0
      %765 = vmatprep.subr.mxu0 0.0
      %766 = vmatpush1.xpose.msra.mxu0 0.0
      %767 = vmatprep.subr.mxu0 0.0
      %768 = vmatpush1.xpose.msra.mxu0 0.0
      %769 = vmatprep.subr.mxu0 0.0
      %770 = vmatpush1.xpose.msra.mxu0 0.0
      %771 = vmatprep.subr.mxu0 0.0
      %772 = vmatpush1.xpose.msra.mxu0 0.0
      %773 = vmatprep.subr.mxu0 0.0
      %774 = vmatpush1.xpose.msra.mxu0 0.0
      %775 = vmatprep.subr.mxu0 0.0
      %776 = vmatpush1.xpose.msra.mxu0 0.0
      %777 = vmatprep.subr.mxu0 0.0
      %778 = vmatpush1.xpose.msra.mxu0 0.0
      %779 = vmatprep.mubr.f32.mxu0 0.0
      %780 = vmatmul.mubr.f32.gmra.mrb[0].mxu0 %v710
      %v781 = vpop.f32.mrb[0].mxu0
      %v782 = vadd.f32 0.0, %v781
      %v783 = vpop.f32.mrb[0].mxu0
      %784 = vdwg.mxu0
      %v785 = vmul.f32 %v782, 0.35355338
      %v786 = vsel %vm708, %v785, -inf
      %787 = vmax.xlane.f32.xlu0 %v786
      %v788 = vpop.xlane.xlu0 %787
      %v789 = vsub.f32 %v785, %v788
      %v790 = vmul.f32 %v789, 1.442695
      %v791 = vpow.pop %v790
      %v792 = vsel %vm708, %v791, 0.0
      %793 = vadd.xlane.f32.xlu0 %v792
      %v794 = vpop.xlane.xlu0 %793
      %v795 = vrcp.pop %v794
      %v796 = vmul.f32 %v791, %v795
      %v798 = vsel %vm708, %v796, 0
      %800 = vmatprep.subr.mxu0 0.0
      %801 = vmatpush1.msra.mxu0 %v702
      %802 = vmatprep.subr.mxu0 0.0
      %803 = vmatpush1.msra.mxu0 0.0
      %804 = vmatprep.subr.mxu0 0.0
      %805 = vmatpush1.msra.mxu0 0.0
      %806 = vmatprep.subr.mxu0 0.0
      %807 = vmatpush1.msra.mxu0 0.0
      %808 = vmatprep.subr.mxu0 0.0
      %809 = vmatpush1.msra.mxu0 0.0
      %810 = vmatprep.subr.mxu0 0.0
      %811 = vmatpush1.msra.mxu0 0.0
      %812 = vmatprep.subr.mxu0 0.0
      %813 = vmatpush1.msra.mxu0 0.0
      %814 = vmatprep.subr.mxu0 0.0
      %815 = vmatpush1.msra.mxu0 0.0
      %816 = vmatprep.subr.mxu0 0.0
      %817 = vmatpush1.msra.mxu0 0.0
      %818 = vmatprep.subr.mxu0 0.0
      %819 = vmatpush1.msra.mxu0 0.0
      %820 = vmatprep.subr.mxu0 0.0
      %821 = vmatpush1.msra.mxu0 0.0
      %822 = vmatprep.subr.mxu0 0.0
      %823 = vmatpush1.msra.mxu0 0.0
      %824 = vmatprep.subr.mxu0 0.0
      %825 = vmatpush1.msra.mxu0 0.0
      %826 = vmatprep.subr.mxu0 0.0
      %827 = vmatpush1.msra.mxu0 0.0
      %828 = vmatprep.subr.mxu0 0.0
      %829 = vmatpush1.msra.mxu0 0.0
      %830 = vmatprep.subr.mxu0 0.0
      %831 = vmatpush1.msra.mxu0 0.0
      %832 = vmatprep.subr.mxu0 0.0
      %833 = vmatpush1.msra.mxu0 0.0
      %834 = vmatprep.subr.mxu0 0.0
      %835 = vmatpush1.msra.mxu0 0.0
      %836 = vmatprep.subr.mxu0 0.0
      %837 = vmatpush1.msra.mxu0 0.0
      %838 = vmatprep.subr.mxu0 0.0
      %839 = vmatpush1.msra.mxu0 0.0
      %840 = vmatprep.subr.mxu0 0.0
      %841 = vmatpush1.msra.mxu0 0.0
      %842 = vmatprep.subr.mxu0 0.0
      %843 = vmatpush1.msra.mxu0 0.0
      %844 = vmatprep.subr.mxu0 0.0
      %845 = vmatpush1.msra.mxu0 0.0
      %846 = vmatprep.subr.mxu0 0.0
      %847 = vmatpush1.msra.mxu0 0.0
      %848 = vmatprep.subr.mxu0 0.0
      %849 = vmatpush1.msra.mxu0 0.0
      %850 = vmatprep.subr.mxu0 0.0
      %851 = vmatpush1.msra.mxu0 0.0
      %852 = vmatprep.subr.mxu0 0.0
      %853 = vmatpush1.msra.mxu0 0.0
      %854 = vmatprep.subr.mxu0 0.0
      %855 = vmatpush1.msra.mxu0 0.0
      %856 = vmatprep.subr.mxu0 0.0
      %857 = vmatpush1.msra.mxu0 0.0
      %858 = vmatprep.subr.mxu0 0.0
      %859 = vmatpush1.msra.mxu0 0.0
      %860 = vmatprep.subr.mxu0 0.0
      %861 = vmatpush1.msra.mxu0 0.0
      %862 = vmatprep.subr.mxu0 0.0
      %863 = vmatpush1.msra.mxu0 0.0
      %864 = vmatprep.mubr.f32.mxu0 0.0
      %865 = vmatmul.mubr.f32.gmra.mrb[0].mxu0 %v798
      %v866 = vpop.f32.mrb[0].mxu0
      %v867 = vadd.f32 0.0, %v866
      %v868 = vpop.f32.mrb[0].mxu0
      %869 = vdwg.mxu0
      %v871 = vsel %vm708, %v604, 0
      %v874 = vsel %vm708, %v656, 0
      %876 = vmatprep.subr.mxu0 0.0
      %877 = vmatpush1.xpose.msra.mxu0 %v874
      %878 = vmatprep.subr.mxu0 0.0
      %879 = vmatpush1.xpose.msra.mxu0 0.0
      %880 = vmatprep.subr.mxu0 0.0
      %881 = vmatpush1.xpose.msra.mxu0 0.0
      %882 = vmatprep.subr.mxu0 0.0
      %883 = vmatpush1.xpose.msra.mxu0 0.0
      %884 = vmatprep.subr.mxu0 0.0
      %885 = vmatpush1.xpose.msra.mxu0 0.0
      %886 = vmatprep.subr.mxu0 0.0
      %887 = vmatpush1.xpose.msra.mxu0 0.0
      %888 = vmatprep.subr.mxu0 0.0
      %889 = vmatpush1.xpose.msra.mxu0 0.0
      %890 = vmatprep.subr.mxu0 0.0
      %891 = vmatpush1.xpose.msra.mxu0 0.0
      %892 = vmatprep.subr.mxu0 0.0
      %893 = vmatpush1.xpose.msra.mxu0 0.0
      %894 = vmatprep.subr.mxu0 0.0
      %895 = vmatpush1.xpose.msra.mxu0 0.0
      %896 = vmatprep.subr.mxu0 0.0
      %897 = vmatpush1.xpose.msra.mxu0 0.0
      %898 = vmatprep.subr.mxu0 0.0
      %899 = vmatpush1.xpose.msra.mxu0 0.0
      %900 = vmatprep.subr.mxu0 0.0
      %901 = vmatpush1.xpose.msra.mxu0 0.0
      %902 = vmatprep.subr.mxu0 0.0
      %903 = vmatpush1.xpose.msra.mxu0 0.0
      %904 = vmatprep.subr.mxu0 0.0
      %905 = vmatpush1.xpose.msra.mxu0 0.0
      %906 = vmatprep.subr.mxu0 0.0
      %907 = vmatpush1.xpose.msra.mxu0 0.0
      %908 = vmatprep.subr.mxu0 0.0
      %909 = vmatpush1.xpose.msra.mxu0 0.0
      %910 = vmatprep.subr.mxu0 0.0
      %911 = vmatpush1.xpose.msra.mxu0 0.0
      %912 = vmatprep.subr.mxu0 0.0
      %913 = vmatpush1.xpose.msra.mxu0 0.0
      %914 = vmatprep.subr.mxu0 0.0
      %915 = vmatpush1.xpose.msra.mxu0 0.0
      %916 = vmatprep.subr.mxu0 0.0
      %917 = vmatpush1.xpose.msra.mxu0 0.0
      %918 = vmatprep.subr.mxu0 0.0
      %919 = vmatpush1.xpose.msra.mxu0 0.0
      %920 = vmatprep.subr.mxu0 0.0
      %921 = vmatpush1.xpose.msra.mxu0 0.0
      %922 = vmatprep.subr.mxu0 0.0
      %923 = vmatpush1.xpose.msra.mxu0 0.0
      %924 = vmatprep.subr.mxu0 0.0
      %925 = vmatpush1.xpose.msra.mxu0 0.0
      %926 = vmatprep.subr.mxu0 0.0
      %927 = vmatpush1.xpose.msra.mxu0 0.0
      %928 = vmatprep.subr.mxu0 0.0
      %929 = vmatpush1.xpose.msra.mxu0 0.0
      %930 = vmatprep.subr.mxu0 0.0
      %931 = vmatpush1.xpose.msra.mxu0 0.0
      %932 = vmatprep.subr.mxu0 0.0
      %933 = vmatpush1.xpose.msra.mxu0 0.0
      %934 = vmatprep.subr.mxu0 0.0
      %935 = vmatpush1.xpose.msra.mxu0 0.0
      %936 = vmatprep.subr.mxu0 0.0
      %937 = vmatpush1.xpose.msra.mxu0 0.0
      %938 = vmatprep.subr.mxu0 0.0
      %939 = vmatpush1.xpose.msra.mxu0 0.0
      %940 = vmatprep.mubr.f32.mxu0 0.0
      %941 = vmatmul.mubr.f32.gmra.mrb[0].mxu0 %v871
      %v942 = vpop.f32.mrb[0].mxu0
      %v943 = vadd.f32 0.0, %v942
      %v944 = vpop.f32.mrb[0].mxu0
      %945 = vdwg.mxu0
      %v946 = vmul.f32 %v943, 0.35355338
      %v947 = vsel %vm708, %v946, -inf
      %948 = vmax.xlane.f32.xlu0 %v947
      %v949 = vpop.xlane.xlu0 %948
      %v950 = vsub.f32 %v946, %v949
      %v951 = vmul.f32 %v950, 1.442695
      %v952 = vpow.pop %v951
      %v953 = vsel %vm708, %v952, 0.0
      %954 = vadd.xlane.f32.xlu0 %v953
      %v955 = vpop.xlane.xlu0 %954
      %v956 = vrcp.pop %v955
      %v957 = vmul.f32 %v952, %v956
      %v959 = vsel %vm708, %v957, 0
      %961 = vmatprep.subr.mxu0 0.0
      %962 = vmatpush1.msra.mxu0 %v705
      %963 = vmatprep.subr.mxu0 0.0
      %964 = vmatpush1.msra.mxu0 0.0
      %965 = vmatprep.subr.mxu0 0.0
      %966 = vmatpush1.msra.mxu0 0.0
      %967 = vmatprep.subr.mxu0 0.0
      %968 = vmatpush1.msra.mxu0 0.0
      %969 = vmatprep.subr.mxu0 0.0
      %970 = vmatpush1.msra.mxu0 0.0
      %971 = vmatprep.subr.mxu0 0.0
      %972 = vmatpush1.msra.mxu0 0.0
      %973 = vmatprep.subr.mxu0 0.0
      %974 = vmatpush1.msra.mxu0 0.0
      %975 = vmatprep.subr.mxu0 0.0
      %976 = vmatpush1.msra.mxu0 0.0
      %977 = vmatprep.subr.mxu0 0.0
      %978 = vmatpush1.msra.mxu0 0.0
      %979 = vmatprep.subr.mxu0 0.0
      %980 = vmatpush1.msra.mxu0 0.0
      %981 = vmatprep.subr.mxu0 0.0
      %982 = vmatpush1.msra.mxu0 0.0
      %983 = vmatprep.subr.mxu0 0.0
      %984 = vmatpush1.msra.mxu0 0.0
      %985 = vmatprep.subr.mxu0 0.0
      %986 = vmatpush1.msra.mxu0 0.0
      %987 = vmatprep.subr.mxu0 0.0
      %988 = vmatpush1.msra.mxu0 0.0
      %989 = vmatprep.subr.mxu0 0.0
      %990 = vmatpush1.msra.mxu0 0.0
      %991 = vmatprep.subr.mxu0 0.0
      %992 = vmatpush1.msra.mxu0 0.0
      %993 = vmatprep.subr.mxu0 0.0
      %994 = vmatpush1.msra.mxu0 0.0
      %995 = vmatprep.subr.mxu0 0.0
      %996 = vmatpush1.msra.mxu0 0.0
      %997 = vmatprep.subr.mxu0 0.0
      %998 = vmatpush1.msra.mxu0 0.0
      %999 = vmatprep.subr.mxu0 0.0
      %1000 = vmatpush1.msra.mxu0 0.0
      %1001 = vmatprep.subr.mxu0 0.0
      %1002 = vmatpush1.msra.mxu0 0.0
      %1003 = vmatprep.subr.mxu0 0.0
      %1004 = vmatpush1.msra.mxu0 0.0
      %1005 = vmatprep.subr.mxu0 0.0
      %1006 = vmatpush1.msra.mxu0 0.0
      %1007 = vmatprep.subr.mxu0 0.0
      %1008 = vmatpush1.msra.mxu0 0.0
      %1009 = vmatprep.subr.mxu0 0.0
      %1010 = vmatpush1.msra.mxu0 0.0
      %1011 = vmatprep.subr.mxu0 0.0
      %1012 = vmatpush1.msra.mxu0 0.0
      %1013 = vmatprep.subr.mxu0 0.0
      %1014 = vmatpush1.msra.mxu0 0.0
      %1015 = vmatprep.subr.mxu0 0.0
      %1016 = vmatpush1.msra.mxu0 0.0
      %1017 = vmatprep.subr.mxu0 0.0
      %1018 = vmatpush1.msra.mxu0 0.0
      %1019 = vmatprep.subr.mxu0 0.0
      %1020 = vmatpush1.msra.mxu0 0.0
      %1021 = vmatprep.subr.mxu0 0.0
      %1022 = vmatpush1.msra.mxu0 0.0
      %1023 = vmatprep.subr.mxu0 0.0
      %1024 = vmatpush1.msra.mxu0 0.0
      %1025 = vmatprep.mubr.f32.mxu0 0.0
      %1026 = vmatmul.mubr.f32.gmra.mrb[0].mxu0 %v959
      %v1027 = vpop.f32.mrb[0].mxu0
      %v1028 = vadd.f32 0.0, %v1027
      %v1029 = vpop.f32.mrb[0].mxu0
      %1030 = vdwg.mxu0
      %v1031 = vpack.c.bf16 %v1028, %v867
      %v1032 = vld [vmem:[%s9] sm:$0xf]
      %s1033 = scalar_lea.vmem %s6, 16
      %v1034 = vld [vmem:[%s1033] sm:$0xf]
      %v1035 = vld [vmem:[%s1033 + $0x4] sm:$0xf]
      %v1036 = vld [vmem:[%s1033 + $0x8] sm:$0xf]
      %v1037 = vld [vmem:[%s1033 + $0xc] sm:$0xf]
      %v1042 = vunpack.c.l.b16 %v1034
      %v1043 = vunpack.c.l.b16 %v1035
      %v1044 = vunpack.c.l.b16 %v1036
      %v1045 = vunpack.c.l.b16 %v1037
      %v1046 = vpack.c.b16 %v1043, %v1042
      %v1047 = vpack.c.b16 %v1045, %v1044
      %1050 = vmatprep.subr.bf16.mxu0 0
      %1051 = vmatpush1.bf16.msra.mxu0 %v1046
      %1052 = vmatprep.subr.bf16.mxu0 0
      %1053 = vmatpush1.bf16.msra.mxu0 %v1047
      %1054 = vmatprep.subr.bf16.mxu0 0
      %1055 = vmatpush1.bf16.msra.mxu0 0
      %1056 = vmatprep.subr.bf16.mxu0 0
      %1057 = vmatpush1.bf16.msra.mxu0 0
      %1058 = vmatprep.subr.bf16.mxu0 0
      %1059 = vmatpush1.bf16.msra.mxu0 0
      %1060 = vmatprep.subr.bf16.mxu0 0
      %1061 = vmatpush1.bf16.msra.mxu0 0
      %1062 = vmatprep.subr.bf16.mxu0 0
      %1063 = vmatpush1.bf16.msra.mxu0 0
      %1064 = vmatprep.subr.bf16.mxu0 0
      %1065 = vmatpush1.bf16.msra.mxu0 0
      %1066 = vmatprep.subr.bf16.mxu0 0
      %1067 = vmatpush1.bf16.msra.mxu0 0
      %1068 = vmatprep.subr.bf16.mxu0 0
      %1069 = vmatpush1.bf16.msra.mxu0 0
      %1070 = vmatprep.subr.bf16.mxu0 0
      %1071 = vmatpush1.bf16.msra.mxu0 0
      %1072 = vmatprep.subr.bf16.mxu0 0
      %1073 = vmatpush1.bf16.msra.mxu0 0
      %1074 = vmatprep.subr.bf16.mxu0 0
      %1075 = vmatpush1.bf16.msra.mxu0 0
      %1076 = vmatprep.subr.bf16.mxu0 0
      %1077 = vmatpush1.bf16.msra.mxu0 0
      %1078 = vmatprep.subr.bf16.mxu0 0
      %1079 = vmatpush1.bf16.msra.mxu0 0
      %1080 = vmatprep.subr.bf16.mxu0 0
      %1081 = vmatpush1.bf16.msra.mxu0 0
      %1082 = vmatprep.mubr.bf16.mxu0 0
      %1083 = vmatmul.mubr.bf16.gmra.mrb[0].mxu0 %v564
      %v1084 = vpop.f32.mrb[0].mxu0
      %v1085 = vadd.f32 0.0, %v1084
      %v1086 = vpop.f32.mrb[0].mxu0
      %v1087 = vpop.f32.mrb[0].mxu0
      %v1088 = vadd.f32 0.0, %v1087
      %v1089 = vpop.f32.mrb[0].mxu0
      %1090 = vdwg.mxu0
      %s1091 = scalar_lea.vmem %s7, 8
      %v1092 = vld [vmem:[%s1091] sm:$0xf]
      %v1093 = vld [vmem:[%s1091 + $0x4] sm:$0xf]
      %v1096 = vunpack.c.l.b16 %v1092
      %v1097 = vunpack.c.l.b16 %v1093
      %v1098 = vpack.c.b16 %v1097, %v1096
      %1100 = vmatprep.subr.bf16.mxu0 0
      %1101 = vmatpush1.bf16.msra.mxu0 %v1098
      %1102 = vmatprep.subr.bf16.mxu0 0
      %1103 = vmatpush1.bf16.msra.mxu0 0
      %1104 = vmatprep.subr.bf16.mxu0 0
      %1105 = vmatpush1.bf16.msra.mxu0 0
      %1106 = vmatprep.subr.bf16.mxu0 0
      %1107 = vmatpush1.bf16.msra.mxu0 0
      %1108 = vmatprep.subr.bf16.mxu0 0
      %1109 = vmatpush1.bf16.msra.mxu0 0
      %1110 = vmatprep.subr.bf16.mxu0 0
      %1111 = vmatpush1.bf16.msra.mxu0 0
      %1112 = vmatprep.subr.bf16.mxu0 0
      %1113 = vmatpush1.bf16.msra.mxu0 0
      %1114 = vmatprep.subr.bf16.mxu0 0
      %1115 = vmatpush1.bf16.msra.mxu0 0
      %1116 = vmatprep.subr.bf16.mxu0 0
      %1117 = vmatpush1.bf16.msra.mxu0 0
      %1118 = vmatprep.subr.bf16.mxu0 0
      %1119 = vmatpush1.bf16.msra.mxu0 0
      %1120 = vmatprep.subr.bf16.mxu0 0
      %1121 = vmatpush1.bf16.msra.mxu0 0
      %1122 = vmatprep.subr.bf16.mxu0 0
      %1123 = vmatpush1.bf16.msra.mxu0 0
      %1124 = vmatprep.subr.bf16.mxu0 0
      %1125 = vmatpush1.bf16.msra.mxu0 0
      %1126 = vmatprep.subr.bf16.mxu0 0
      %1127 = vmatpush1.bf16.msra.mxu0 0
      %1128 = vmatprep.subr.bf16.mxu0 0
      %1129 = vmatpush1.bf16.msra.mxu0 0
      %1130 = vmatprep.subr.bf16.mxu0 0
      %1131 = vmatpush1.bf16.msra.mxu0 0
      %1132 = vmatprep.mubr.bf16.mxu0 0
      %1133 = vmatmul.mubr.bf16.gmra.mrb[0].mxu0 %v616
      %v1134 = vpop.f32.mrb[0].mxu0
      %v1135 = vadd.f32 0.0, %v1134
      %v1136 = vpop.f32.mrb[0].mxu0
      %v1137 = vpop.f32.mrb[0].mxu0
      %v1138 = vadd.f32 0.0, %v1137
      %v1139 = vpop.f32.mrb[0].mxu0
      %1140 = vdwg.mxu0
      %s1141 = scalar_lea.vmem %s8, 8
      %v1142 = vld [vmem:[%s1141] sm:$0xf]
      %v1143 = vld [vmem:[%s1141 + $0x4] sm:$0xf]
      %v1146 = vunpack.c.l.b16 %v1142
      %v1147 = vunpack.c.l.b16 %v1143
      %v1148 = vpack.c.b16 %v1147, %v1146
      %1150 = vmatprep.subr.bf16.mxu0 0
      %1151 = vmatpush1.bf16.msra.mxu0 %v1148
      %1152 = vmatprep.subr.bf16.mxu0 0
      %1153 = vmatpush1.bf16.msra.mxu0 0
      %1154 = vmatprep.subr.bf16.mxu0 0
      %1155 = vmatpush1.bf16.msra.mxu0 0
      %1156 = vmatprep.subr.bf16.mxu0 0
      %1157 = vmatpush1.bf16.msra.mxu0 0
      %1158 = vmatprep.subr.bf16.mxu0 0
      %1159 = vmatpush1.bf16.msra.mxu0 0
      %1160 = vmatprep.subr.bf16.mxu0 0
      %1161 = vmatpush1.bf16.msra.mxu0 0
      %1162 = vmatprep.subr.bf16.mxu0 0
      %1163 = vmatpush1.bf16.msra.mxu0 0
      %1164 = vmatprep.subr.bf16.mxu0 0
      %1165 = vmatpush1.bf16.msra.mxu0 0
      %1166 = vmatprep.subr.bf16.mxu0 0
      %1167 = vmatpush1.bf16.msra.mxu0 0
      %1168 = vmatprep.subr.bf16.mxu0 0
      %1169 = vmatpush1.bf16.msra.mxu0 0
      %1170 = vmatprep.subr.bf16.mxu0 0
      %1171 = vmatpush1.bf16.msra.mxu0 0
      %1172 = vmatprep.subr.bf16.mxu0 0
      %1173 = vmatpush1.bf16.msra.mxu0 0
      %1174 = vmatprep.subr.bf16.mxu0 0
      %1175 = vmatpush1.bf16.msra.mxu0 0
      %1176 = vmatprep.subr.bf16.mxu0 0
      %1177 = vmatpush1.bf16.msra.mxu0 0
      %1178 = vmatprep.subr.bf16.mxu0 0
      %1179 = vmatpush1.bf16.msra.mxu0 0
      %1180 = vmatprep.subr.bf16.mxu0 0
      %1181 = vmatpush1.bf16.msra.mxu0 0
      %1182 = vmatprep.mubr.bf16.mxu0 0
      %1183 = vmatmul.mubr.bf16.gmra.mrb[0].mxu0 %v616
      %v1184 = vpop.f32.mrb[0].mxu0
      %v1185 = vadd.f32 0.0, %v1184
      %v1186 = vpop.f32.mrb[0].mxu0
      %v1187 = vpop.f32.mrb[0].mxu0
      %v1188 = vadd.f32 0.0, %v1187
      %v1189 = vpop.f32.mrb[0].mxu0
      %1190 = vdwg.mxu0
      %v1192 = vsel %vm708, %v1085, 0
      %v1195 = vsel %vm708, %v1135, 0
      %1197 = vmatprep.subr.mxu0 0.0
      %1198 = vmatpush1.xpose.msra.mxu0 %v1195
      %1199 = vmatprep.subr.mxu0 0.0
      %1200 = vmatpush1.xpose.msra.mxu0 0.0
      %1201 = vmatprep.subr.mxu0 0.0
      %1202 = vmatpush1.xpose.msra.mxu0 0.0
      %1203 = vmatprep.subr.mxu0 0.0
      %1204 = vmatpush1.xpose.msra.mxu0 0.0
      %1205 = vmatprep.subr.mxu0 0.0
      %1206 = vmatpush1.xpose.msra.mxu0 0.0
      %1207 = vmatprep.subr.mxu0 0.0
      %1208 = vmatpush1.xpose.msra.mxu0 0.0
      %1209 = vmatprep.subr.mxu0 0.0
      %1210 = vmatpush1.xpose.msra.mxu0 0.0
      %1211 = vmatprep.subr.mxu0 0.0
      %1212 = vmatpush1.xpose.msra.mxu0 0.0
      %1213 = vmatprep.subr.mxu0 0.0
      %1214 = vmatpush1.xpose.msra.mxu0 0.0
      %1215 = vmatprep.subr.mxu0 0.0
      %1216 = vmatpush1.xpose.msra.mxu0 0.0
      %1217 = vmatprep.subr.mxu0 0.0
      %1218 = vmatpush1.xpose.msra.mxu0 0.0
      %1219 = vmatprep.subr.mxu0 0.0
      %1220 = vmatpush1.xpose.msra.mxu0 0.0
      %1221 = vmatprep.subr.mxu0 0.0
      %1222 = vmatpush1.xpose.msra.mxu0 0.0
      %1223 = vmatprep.subr.mxu0 0.0
      %1224 = vmatpush1.xpose.msra.mxu0 0.0
      %1225 = vmatprep.subr.mxu0 0.0
      %1226 = vmatpush1.xpose.msra.mxu0 0.0
      %1227 = vmatprep.subr.mxu0 0.0
      %1228 = vmatpush1.xpose.msra.mxu0 0.0
      %1229 = vmatprep.subr.mxu0 0.0
      %1230 = vmatpush1.xpose.msra.mxu0 0.0
      %1231 = vmatprep.subr.mxu0 0.0
      %1232 = vmatpush1.xpose.msra.mxu0 0.0
      %1233 = vmatprep.subr.mxu0 0.0
      %1234 = vmatpush1.xpose.msra.mxu0 0.0
      %1235 = vmatprep.subr.mxu0 0.0
      %1236 = vmatpush1.xpose.msra.mxu0 0.0
      %1237 = vmatprep.subr.mxu0 0.0
      %1238 = vmatpush1.xpose.msra.mxu0 0.0
      %1239 = vmatprep.subr.mxu0 0.0
      %1240 = vmatpush1.xpose.msra.mxu0 0.0
      %1241 = vmatprep.subr.mxu0 0.0
      %1242 = vmatpush1.xpose.msra.mxu0 0.0
      %1243 = vmatprep.subr.mxu0 0.0
      %1244 = vmatpush1.xpose.msra.mxu0 0.0
      %1245 = vmatprep.subr.mxu0 0.0
      %1246 = vmatpush1.xpose.msra.mxu0 0.0
      %1247 = vmatprep.subr.mxu0 0.0
      %1248 = vmatpush1.xpose.msra.mxu0 0.0
      %1249 = vmatprep.subr.mxu0 0.0
      %1250 = vmatpush1.xpose.msra.mxu0 0.0
      %1251 = vmatprep.subr.mxu0 0.0
      %1252 = vmatpush1.xpose.msra.mxu0 0.0
      %1253 = vmatprep.subr.mxu0 0.0
      %1254 = vmatpush1.xpose.msra.mxu0 0.0
      %1255 = vmatprep.subr.mxu0 0.0
      %1256 = vmatpush1.xpose.msra.mxu0 0.0
      %1257 = vmatprep.subr.mxu0 0.0
      %1258 = vmatpush1.xpose.msra.mxu0 0.0
      %1259 = vmatprep.subr.mxu0 0.0
      %1260 = vmatpush1.xpose.msra.mxu0 0.0
      %1261 = vmatprep.mubr.f32.mxu0 0.0
      %1262 = vmatmul.mubr.f32.gmra.mrb[0].mxu0 %v1192
      %v1263 = vpop.f32.mrb[0].mxu0
      %v1264 = vadd.f32 0.0, %v1263
      %v1265 = vpop.f32.mrb[0].mxu0
      %1266 = vdwg.mxu0
      %v1267 = vmul.f32 %v1264, 0.35355338
      %v1268 = vsel %vm708, %v1267, -inf
      %1269 = vmax.xlane.f32.xlu0 %v1268
      %v1270 = vpop.xlane.xlu0 %1269
      %v1271 = vsub.f32 %v1267, %v1270
      %v1272 = vmul.f32 %v1271, 1.442695
      %v1273 = vpow.pop %v1272
      %v1274 = vsel %vm708, %v1273, 0.0
      %1275 = vadd.xlane.f32.xlu0 %v1274
      %v1276 = vpop.xlane.xlu0 %1275
      %v1277 = vrcp.pop %v1276
      %v1278 = vmul.f32 %v1273, %v1277
      %v1280 = vsel %vm708, %v1278, 0
      %1282 = vmatprep.subr.mxu0 0.0
      %1283 = vmatpush1.msra.mxu0 %v1185
      %1284 = vmatprep.subr.mxu0 0.0
      %1285 = vmatpush1.msra.mxu0 0.0
      %1286 = vmatprep.subr.mxu0 0.0
      %1287 = vmatpush1.msra.mxu0 0.0
      %1288 = vmatprep.subr.mxu0 0.0
      %1289 = vmatpush1.msra.mxu0 0.0
      %1290 = vmatprep.subr.mxu0 0.0
      %1291 = vmatpush1.msra.mxu0 0.0
      %1292 = vmatprep.subr.mxu0 0.0
      %1293 = vmatpush1.msra.mxu0 0.0
      %1294 = vmatprep.subr.mxu0 0.0
      %1295 = vmatpush1.msra.mxu0 0.0
      %1296 = vmatprep.subr.mxu0 0.0
      %1297 = vmatpush1.msra.mxu0 0.0
      %1298 = vmatprep.subr.mxu0 0.0
      %1299 = vmatpush1.msra.mxu0 0.0
      %1300 = vmatprep.subr.mxu0 0.0
      %1301 = vmatpush1.msra.mxu0 0.0
      %1302 = vmatprep.subr.mxu0 0.0
      %1303 = vmatpush1.msra.mxu0 0.0
      %1304 = vmatprep.subr.mxu0 0.0
      %1305 = vmatpush1.msra.mxu0 0.0
      %1306 = vmatprep.subr.mxu0 0.0
      %1307 = vmatpush1.msra.mxu0 0.0
      %1308 = vmatprep.subr.mxu0 0.0
      %1309 = vmatpush1.msra.mxu0 0.0
      %1310 = vmatprep.subr.mxu0 0.0
      %1311 = vmatpush1.msra.mxu0 0.0
      %1312 = vmatprep.subr.mxu0 0.0
      %1313 = vmatpush1.msra.mxu0 0.0
      %1314 = vmatprep.subr.mxu0 0.0
      %1315 = vmatpush1.msra.mxu0 0.0
      %1316 = vmatprep.subr.mxu0 0.0
      %1317 = vmatpush1.msra.mxu0 0.0
      %1318 = vmatprep.subr.mxu0 0.0
      %1319 = vmatpush1.msra.mxu0 0.0
      %1320 = vmatprep.subr.mxu0 0.0
      %1321 = vmatpush1.msra.mxu0 0.0
      %1322 = vmatprep.subr.mxu0 0.0
      %1323 = vmatpush1.msra.mxu0 0.0
      %1324 = vmatprep.subr.mxu0 0.0
      %1325 = vmatpush1.msra.mxu0 0.0
      %1326 = vmatprep.subr.mxu0 0.0
      %1327 = vmatpush1.msra.mxu0 0.0
      %1328 = vmatprep.subr.mxu0 0.0
      %1329 = vmatpush1.msra.mxu0 0.0
      %1330 = vmatprep.subr.mxu0 0.0
      %1331 = vmatpush1.msra.mxu0 0.0
      %1332 = vmatprep.subr.mxu0 0.0
      %1333 = vmatpush1.msra.mxu0 0.0
      %1334 = vmatprep.subr.mxu0 0.0
      %1335 = vmatpush1.msra.mxu0 0.0
      %1336 = vmatprep.subr.mxu0 0.0
      %1337 = vmatpush1.msra.mxu0 0.0
      %1338 = vmatprep.subr.mxu0 0.0
      %1339 = vmatpush1.msra.mxu0 0.0
      %1340 = vmatprep.subr.mxu0 0.0
      %1341 = vmatpush1.msra.mxu0 0.0
      %1342 = vmatprep.subr.mxu0 0.0
      %1343 = vmatpush1.msra.mxu0 0.0
      %1344 = vmatprep.subr.mxu0 0.0
      %1345 = vmatpush1.msra.mxu0 0.0
      %1346 = vmatprep.mubr.f32.mxu0 0.0
      %1347 = vmatmul.mubr.f32.gmra.mrb[0].mxu0 %v1280
      %v1348 = vpop.f32.mrb[0].mxu0
      %v1349 = vadd.f32 0.0, %v1348
      %v1350 = vpop.f32.mrb[0].mxu0
      %1351 = vdwg.mxu0
      %v1353 = vsel %vm708, %v1088, 0
      %v1356 = vsel %vm708, %v1138, 0
      %1358 = vmatprep.subr.mxu0 0.0
      %1359 = vmatpush1.xpose.msra.mxu0 %v1356
      %1360 = vmatprep.subr.mxu0 0.0
      %1361 = vmatpush1.xpose.msra.mxu0 0.0
      %1362 = vmatprep.subr.mxu0 0.0
      %1363 = vmatpush1.xpose.msra.mxu0 0.0
      %1364 = vmatprep.subr.mxu0 0.0
      %1365 = vmatpush1.xpose.msra.mxu0 0.0
      %1366 = vmatprep.subr.mxu0 0.0
      %1367 = vmatpush1.xpose.msra.mxu0 0.0
      %1368 = vmatprep.subr.mxu0 0.0
      %1369 = vmatpush1.xpose.msra.mxu0 0.0
      %1370 = vmatprep.subr.mxu0 0.0
      %1371 = vmatpush1.xpose.msra.mxu0 0.0
      %1372 = vmatprep.subr.mxu0 0.0
      %1373 = vmatpush1.xpose.msra.mxu0 0.0
      %1374 = vmatprep.subr.mxu0 0.0
      %1375 = vmatpush1.xpose.msra.mxu0 0.0
      %1376 = vmatprep.subr.mxu0 0.0
      %1377 = vmatpush1.xpose.msra.mxu0 0.0
      %1378 = vmatprep.subr.mxu0 0.0
      %1379 = vmatpush1.xpose.msra.mxu0 0.0
      %1380 = vmatprep.subr.mxu0 0.0
      %1381 = vmatpush1.xpose.msra.mxu0 0.0
      %1382 = vmatprep.subr.mxu0 0.0
      %1383 = vmatpush1.xpose.msra.mxu0 0.0
      %1384 = vmatprep.subr.mxu0 0.0
      %1385 = vmatpush1.xpose.msra.mxu0 0.0
      %1386 = vmatprep.subr.mxu0 0.0
      %1387 = vmatpush1.xpose.msra.mxu0 0.0
      %1388 = vmatprep.subr.mxu0 0.0
      %1389 = vmatpush1.xpose.msra.mxu0 0.0
      %1390 = vmatprep.subr.mxu0 0.0
      %1391 = vmatpush1.xpose.msra.mxu0 0.0
      %1392 = vmatprep.subr.mxu0 0.0
      %1393 = vmatpush1.xpose.msra.mxu0 0.0
      %1394 = vmatprep.subr.mxu0 0.0
      %1395 = vmatpush1.xpose.msra.mxu0 0.0
      %1396 = vmatprep.subr.mxu0 0.0
      %1397 = vmatpush1.xpose.msra.mxu0 0.0
      %1398 = vmatprep.subr.mxu0 0.0
      %1399 = vmatpush1.xpose.msra.mxu0 0.0
      %1400 = vmatprep.subr.mxu0 0.0
      %1401 = vmatpush1.xpose.msra.mxu0 0.0
      %1402 = vmatprep.subr.mxu0 0.0
      %1403 = vmatpush1.xpose.msra.mxu0 0.0
      %1404 = vmatprep.subr.mxu0 0.0
      %1405 = vmatpush1.xpose.msra.mxu0 0.0
      %1406 = vmatprep.subr.mxu0 0.0
      %1407 = vmatpush1.xpose.msra.mxu0 0.0
      %1408 = vmatprep.subr.mxu0 0.0
      %1409 = vmatpush1.xpose.msra.mxu0 0.0
      %1410 = vmatprep.subr.mxu0 0.0
      %1411 = vmatpush1.xpose.msra.mxu0 0.0
      %1412 = vmatprep.subr.mxu0 0.0
      %1413 = vmatpush1.xpose.msra.mxu0 0.0
      %1414 = vmatprep.subr.mxu0 0.0
      %1415 = vmatpush1.xpose.msra.mxu0 0.0
      %1416 = vmatprep.subr.mxu0 0.0
      %1417 = vmatpush1.xpose.msra.mxu0 0.0
      %1418 = vmatprep.subr.mxu0 0.0
      %1419 = vmatpush1.xpose.msra.mxu0 0.0
      %1420 = vmatprep.subr.mxu0 0.0
      %1421 = vmatpush1.xpose.msra.mxu0 0.0
      %1422 = vmatprep.mubr.f32.mxu0 0.0
      %1423 = vmatmul.mubr.f32.gmra.mrb[0].mxu0 %v1353
      %v1424 = vpop.f32.mrb[0].mxu0
      %v1425 = vadd.f32 0.0, %v1424
      %v1426 = vpop.f32.mrb[0].mxu0
      %1427 = vdwg.mxu0
      %v1428 = vmul.f32 %v1425, 0.35355338
      %v1429 = vsel %vm708, %v1428, -inf
      %1430 = vmax.xlane.f32.xlu0 %v1429
      %v1431 = vpop.xlane.xlu0 %1430
      %v1432 = vsub.f32 %v1428, %v1431
      %v1433 = vmul.f32 %v1432, 1.442695
      %v1434 = vpow.pop %v1433
      %v1435 = vsel %vm708, %v1434, 0.0
      %1436 = vadd.xlane.f32.xlu0 %v1435
      %v1437 = vpop.xlane.xlu0 %1436
      %v1438 = vrcp.pop %v1437
      %v1439 = vmul.f32 %v1434, %v1438
      %v1441 = vsel %vm708, %v1439, 0
      %1443 = vmatprep.subr.mxu0 0.0
      %1444 = vmatpush1.msra.mxu0 %v1188
      %1445 = vmatprep.subr.mxu0 0.0
      %1446 = vmatpush1.msra.mxu0 0.0
      %1447 = vmatprep.subr.mxu0 0.0
      %1448 = vmatpush1.msra.mxu0 0.0
      %1449 = vmatprep.subr.mxu0 0.0
      %1450 = vmatpush1.msra.mxu0 0.0
      %1451 = vmatprep.subr.mxu0 0.0
      %1452 = vmatpush1.msra.mxu0 0.0
      %1453 = vmatprep.subr.mxu0 0.0
      %1454 = vmatpush1.msra.mxu0 0.0
      %1455 = vmatprep.subr.mxu0 0.0
      %1456 = vmatpush1.msra.mxu0 0.0
      %1457 = vmatprep.subr.mxu0 0.0
      %1458 = vmatpush1.msra.mxu0 0.0
      %1459 = vmatprep.subr.mxu0 0.0
      %1460 = vmatpush1.msra.mxu0 0.0
      %1461 = vmatprep.subr.mxu0 0.0
      %1462 = vmatpush1.msra.mxu0 0.0
      %1463 = vmatprep.subr.mxu0 0.0
      %1464 = vmatpush1.msra.mxu0 0.0
      %1465 = vmatprep.subr.mxu0 0.0
      %1466 = vmatpush1.msra.mxu0 0.0
      %1467 = vmatprep.subr.mxu0 0.0
      %1468 = vmatpush1.msra.mxu0 0.0
      %1469 = vmatprep.subr.mxu0 0.0
      %1470 = vmatpush1.msra.mxu0 0.0
      %1471 = vmatprep.subr.mxu0 0.0
      %1472 = vmatpush1.msra.mxu0 0.0
      %1473 = vmatprep.subr.mxu0 0.0
      %1474 = vmatpush1.msra.mxu0 0.0
      %1475 = vmatprep.subr.mxu0 0.0
      %1476 = vmatpush1.msra.mxu0 0.0
      %1477 = vmatprep.subr.mxu0 0.0
      %1478 = vmatpush1.msra.mxu0 0.0
      %1479 = vmatprep.subr.mxu0 0.0
      %1480 = vmatpush1.msra.mxu0 0.0
      %1481 = vmatprep.subr.mxu0 0.0
      %1482 = vmatpush1.msra.mxu0 0.0
      %1483 = vmatprep.subr.mxu0 0.0
      %1484 = vmatpush1.msra.mxu0 0.0
      %1485 = vmatprep.subr.mxu0 0.0
      %1486 = vmatpush1.msra.mxu0 0.0
      %1487 = vmatprep.subr.mxu0 0.0
      %1488 = vmatpush1.msra.mxu0 0.0
      %1489 = vmatprep.subr.mxu0 0.0
      %1490 = vmatpush1.msra.mxu0 0.0
      %1491 = vmatprep.subr.mxu0 0.0
      %1492 = vmatpush1.msra.mxu0 0.0
      %1493 = vmatprep.subr.mxu0 0.0
      %1494 = vmatpush1.msra.mxu0 0.0
      %1495 = vmatprep.subr.mxu0 0.0
      %1496 = vmatpush1.msra.mxu0 0.0
      %1497 = vmatprep.subr.mxu0 0.0
      %1498 = vmatpush1.msra.mxu0 0.0
      %1499 = vmatprep.subr.mxu0 0.0
      %1500 = vmatpush1.msra.mxu0 0.0
      %1501 = vmatprep.subr.mxu0 0.0
      %1502 = vmatpush1.msra.mxu0 0.0
      %1503 = vmatprep.subr.mxu0 0.0
      %1504 = vmatpush1.msra.mxu0 0.0
      %1505 = vmatprep.subr.mxu0 0.0
      %1506 = vmatpush1.msra.mxu0 0.0
      %1507 = vmatprep.mubr.f32.mxu0 0.0
      %1508 = vmatmul.mubr.f32.gmra.mrb[0].mxu0 %v1441
      %v1509 = vpop.f32.mrb[0].mxu0
      %v1510 = vadd.f32 0.0, %v1509
      %v1511 = vpop.f32.mrb[0].mxu0
      %1512 = vdwg.mxu0
      %v1513 = vpack.c.bf16 %v1510, %v1349
      %s1514 = scalar_lea.vmem %s9, 4
      %v1515 = vld [vmem:[%s1514] sm:$0xf]
      %v1517 = vsel %vm708, %v1513, 0
      %vm1519 = vcmask 1043456
      %v1521 = vsel %vm1519, %v1515, 0
      %1523 = vmatprep.subr.bf16.mxu0 0
      %1524 = vmatpush1.bf16.msra.mxu0 %v1521
      %1525 = vmatprep.subr.bf16.mxu0 0
      %1526 = vmatpush1.bf16.msra.mxu0 0
      %1527 = vmatprep.subr.bf16.mxu0 0
      %1528 = vmatpush1.bf16.msra.mxu0 0
      %1529 = vmatprep.subr.bf16.mxu0 0
      %1530 = vmatpush1.bf16.msra.mxu0 0
      %1531 = vmatprep.subr.bf16.mxu0 0
      %1532 = vmatpush1.bf16.msra.mxu0 0
      %1533 = vmatprep.subr.bf16.mxu0 0
      %1534 = vmatpush1.bf16.msra.mxu0 0
      %1535 = vmatprep.subr.bf16.mxu0 0
      %1536 = vmatpush1.bf16.msra.mxu0 0
      %1537 = vmatprep.subr.bf16.mxu0 0
      %1538 = vmatpush1.bf16.msra.mxu0 0
      %1539 = vmatprep.subr.bf16.mxu0 0
      %1540 = vmatpush1.bf16.msra.mxu0 0
      %1541 = vmatprep.subr.bf16.mxu0 0
      %1542 = vmatpush1.bf16.msra.mxu0 0
      %1543 = vmatprep.subr.bf16.mxu0 0
      %1544 = vmatpush1.bf16.msra.mxu0 0
      %1545 = vmatprep.subr.bf16.mxu0 0
      %1546 = vmatpush1.bf16.msra.mxu0 0
      %1547 = vmatprep.subr.bf16.mxu0 0
      %1548 = vmatpush1.bf16.msra.mxu0 0
      %1549 = vmatprep.subr.bf16.mxu0 0
      %1550 = vmatpush1.bf16.msra.mxu0 0
      %1551 = vmatprep.subr.bf16.mxu0 0
      %1552 = vmatpush1.bf16.msra.mxu0 0
      %1553 = vmatprep.subr.bf16.mxu0 0
      %1554 = vmatpush1.bf16.msra.mxu0 0
      %1555 = vmatprep.mubr.bf16.mxu0 0
      %1556 = vmatmul.mubr.bf16.gmra.mrb[0].mxu0 %v1517
      %v1557 = vpop.f32.mrb[0].mxu0
      %v1558 = vadd.f32 0.0, %v1557
      %v1559 = vpop.f32.mrb[0].mxu0
      %v1560 = vpop.f32.mrb[0].mxu0
      %v1561 = vadd.f32 0.0, %v1560
      %v1562 = vpop.f32.mrb[0].mxu0
      %1563 = vdwg.mxu0
      %v1565 = vsel %vm708, %v1031, 0
      %v1568 = vsel %vm1519, %v1032, 0
      %1570 = vmatprep.subr.bf16.mxu0 0
      %1571 = vmatpush1.bf16.msra.mxu0 %v1568
      %1572 = vmatprep.subr.bf16.mxu0 0
      %1573 = vmatpush1.bf16.msra.mxu0 0
      %1574 = vmatprep.subr.bf16.mxu0 0
      %1575 = vmatpush1.bf16.msra.mxu0 0
      %1576 = vmatprep.subr.bf16.mxu0 0
      %1577 = vmatpush1.bf16.msra.mxu0 0
      %1578 = vmatprep.subr.bf16.mxu0 0
      %1579 = vmatpush1.bf16.msra.mxu0 0
      %1580 = vmatprep.subr.bf16.mxu0 0
      %1581 = vmatpush1.bf16.msra.mxu0 0
      %1582 = vmatprep.subr.bf16.mxu0 0
      %1583 = vmatpush1.bf16.msra.mxu0 0
      %1584 = vmatprep.subr.bf16.mxu0 0
      %1585 = vmatpush1.bf16.msra.mxu0 0
      %1586 = vmatprep.subr.bf16.mxu0 0
      %1587 = vmatpush1.bf16.msra.mxu0 0
      %1588 = vmatprep.subr.bf16.mxu0 0
      %1589 = vmatpush1.bf16.msra.mxu0 0
      %1590 = vmatprep.subr.bf16.mxu0 0
      %1591 = vmatpush1.bf16.msra.mxu0 0
      %1592 = vmatprep.subr.bf16.mxu0 0
      %1593 = vmatpush1.bf16.msra.mxu0 0
      %1594 = vmatprep.subr.bf16.mxu0 0
      %1595 = vmatpush1.bf16.msra.mxu0 0
      %1596 = vmatprep.subr.bf16.mxu0 0
      %1597 = vmatpush1.bf16.msra.mxu0 0
      %1598 = vmatprep.subr.bf16.mxu0 0
      %1599 = vmatpush1.bf16.msra.mxu0 0
      %1600 = vmatprep.subr.bf16.mxu0 0
      %1601 = vmatpush1.bf16.msra.mxu0 0
      %1602 = vmatprep.mubr.bf16.mxu0 0
      %1603 = vmatmul.mubr.bf16.gmra.mrb[0].mxu0 %v1565
      %v1604 = vpop.f32.mrb[0].mxu0
      %v1605 = vadd.f32 %v1558, %v1604
      %v1606 = vpop.f32.mrb[0].mxu0
      %v1607 = vpop.f32.mrb[0].mxu0
      %v1608 = vadd.f32 %v1561, %v1607
      %v1609 = vpop.f32.mrb[0].mxu0
      %1610 = vdwg.mxu0
      %s1611 = scalar_lea.vmem %s6, 32
      %v1612 = vld [vmem:[%s1611] sm:$0xf]
      %v1613 = vld [vmem:[%s1611 + $0x4] sm:$0xf]
      %v1614 = vld [vmem:[%s1611 + $0x8] sm:$0xf]
      %v1615 = vld [vmem:[%s1611 + $0xc] sm:$0xf]
      %v1620 = vunpack.c.l.b16 %v1612
      %v1621 = vunpack.c.l.b16 %v1613
      %v1622 = vunpack.c.l.b16 %v1614
      %v1623 = vunpack.c.l.b16 %v1615
      %v1624 = vpack.c.b16 %v1621, %v1620
      %v1625 = vpack.c.b16 %v1623, %v1622
      %1628 = vmatprep.subr.bf16.mxu0 0
      %1629 = vmatpush1.bf16.msra.mxu0 %v1624
      %1630 = vmatprep.subr.bf16.mxu0 0
      %1631 = vmatpush1.bf16.msra.mxu0 %v1625
      %1632 = vmatprep.subr.bf16.mxu0 0
      %1633 = vmatpush1.bf16.msra.mxu0 0
      %1634 = vmatprep.subr.bf16.mxu0 0
      %1635 = vmatpush1.bf16.msra.mxu0 0
      %1636 = vmatprep.subr.bf16.mxu0 0
      %1637 = vmatpush1.bf16.msra.mxu0 0
      %1638 = vmatprep.subr.bf16.mxu0 0
      %1639 = vmatpush1.bf16.msra.mxu0 0
      %1640 = vmatprep.subr.bf16.mxu0 0
      %1641 = vmatpush1.bf16.msra.mxu0 0
      %1642 = vmatprep.subr.bf16.mxu0 0
      %1643 = vmatpush1.bf16.msra.mxu0 0
      %1644 = vmatprep.subr.bf16.mxu0 0
      %1645 = vmatpush1.bf16.msra.mxu0 0
      %1646 = vmatprep.subr.bf16.mxu0 0
      %1647 = vmatpush1.bf16.msra.mxu0 0
      %1648 = vmatprep.subr.bf16.mxu0 0
      %1649 = vmatpush1.bf16.msra.mxu0 0
      %1650 = vmatprep.subr.bf16.mxu0 0
      %1651 = vmatpush1.bf16.msra.mxu0 0
      %1652 = vmatprep.subr.bf16.mxu0 0
      %1653 = vmatpush1.bf16.msra.mxu0 0
      %1654 = vmatprep.subr.bf16.mxu0 0
      %1655 = vmatpush1.bf16.msra.mxu0 0
      %1656 = vmatprep.subr.bf16.mxu0 0
      %1657 = vmatpush1.bf16.msra.mxu0 0
      %1658 = vmatprep.subr.bf16.mxu0 0
      %1659 = vmatpush1.bf16.msra.mxu0 0
      %1660 = vmatprep.mubr.bf16.mxu0 0
      %1661 = vmatmul.mubr.bf16.gmra.mrb[0].mxu0 %v564
      %v1662 = vpop.f32.mrb[0].mxu0
      %v1663 = vadd.f32 0.0, %v1662
      %v1664 = vpop.f32.mrb[0].mxu0
      %v1665 = vpop.f32.mrb[0].mxu0
      %v1666 = vadd.f32 0.0, %v1665
      %v1667 = vpop.f32.mrb[0].mxu0
      %1668 = vdwg.mxu0
      %s1669 = scalar_lea.vmem %s7, 16
      %v1670 = vld [vmem:[%s1669] sm:$0xf]
      %v1671 = vld [vmem:[%s1669 + $0x4] sm:$0xf]
      %v1674 = vunpack.c.l.b16 %v1670
      %v1675 = vunpack.c.l.b16 %v1671
      %v1676 = vpack.c.b16 %v1675, %v1674
      %1678 = vmatprep.subr.bf16.mxu0 0
      %1679 = vmatpush1.bf16.msra.mxu0 %v1676
      %1680 = vmatprep.subr.bf16.mxu0 0
      %1681 = vmatpush1.bf16.msra.mxu0 0
      %1682 = vmatprep.subr.bf16.mxu0 0
      %1683 = vmatpush1.bf16.msra.mxu0 0
      %1684 = vmatprep.subr.bf16.mxu0 0
      %1685 = vmatpush1.bf16.msra.mxu0 0
      %1686 = vmatprep.subr.bf16.mxu0 0
      %1687 = vmatpush1.bf16.msra.mxu0 0
      %1688 = vmatprep.subr.bf16.mxu0 0
      %1689 = vmatpush1.bf16.msra.mxu0 0
      %1690 = vmatprep.subr.bf16.mxu0 0
      %1691 = vmatpush1.bf16.msra.mxu0 0
      %1692 = vmatprep.subr.bf16.mxu0 0
      %1693 = vmatpush1.bf16.msra.mxu0 0
      %1694 = vmatprep.subr.bf16.mxu0 0
      %1695 = vmatpush1.bf16.msra.mxu0 0
      %1696 = vmatprep.subr.bf16.mxu0 0
      %1697 = vmatpush1.bf16.msra.mxu0 0
      %1698 = vmatprep.subr.bf16.mxu0 0
      %1699 = vmatpush1.bf16.msra.mxu0 0
      %1700 = vmatprep.subr.bf16.mxu0 0
      %1701 = vmatpush1.bf16.msra.mxu0 0
      %1702 = vmatprep.subr.bf16.mxu0 0
      %1703 = vmatpush1.bf16.msra.mxu0 0
      %1704 = vmatprep.subr.bf16.mxu0 0
      %1705 = vmatpush1.bf16.msra.mxu0 0
      %1706 = vmatprep.subr.bf16.mxu0 0
      %1707 = vmatpush1.bf16.msra.mxu0 0
      %1708 = vmatprep.subr.bf16.mxu0 0
      %1709 = vmatpush1.bf16.msra.mxu0 0
      %1710 = vmatprep.mubr.bf16.mxu0 0
      %1711 = vmatmul.mubr.bf16.gmra.mrb[0].mxu0 %v616
      %v1712 = vpop.f32.mrb[0].mxu0
      %v1713 = vadd.f32 0.0, %v1712
      %v1714 = vpop.f32.mrb[0].mxu0
      %v1715 = vpop.f32.mrb[0].mxu0
      %v1716 = vadd.f32 0.0, %v1715
      %v1717 = vpop.f32.mrb[0].mxu0
      %1718 = vdwg.mxu0
      %s1719 = scalar_lea.vmem %s8, 16
      %v1720 = vld [vmem:[%s1719] sm:$0xf]
      %v1721 = vld [vmem:[%s1719 + $0x4] sm:$0xf]
      %v1724 = vunpack.c.l.b16 %v1720
      %v1725 = vunpack.c.l.b16 %v1721
      %v1726 = vpack.c.b16 %v1725, %v1724
      %1728 = vmatprep.subr.bf16.mxu0 0
      %1729 = vmatpush1.bf16.msra.mxu0 %v1726
      %1730 = vmatprep.subr.bf16.mxu0 0
      %1731 = vmatpush1.bf16.msra.mxu0 0
      %1732 = vmatprep.subr.bf16.mxu0 0
      %1733 = vmatpush1.bf16.msra.mxu0 0
      %1734 = vmatprep.subr.bf16.mxu0 0
      %1735 = vmatpush1.bf16.msra.mxu0 0
      %1736 = vmatprep.subr.bf16.mxu0 0
      %1737 = vmatpush1.bf16.msra.mxu0 0
      %1738 = vmatprep.subr.bf16.mxu0 0
      %1739 = vmatpush1.bf16.msra.mxu0 0
      %1740 = vmatprep.subr.bf16.mxu0 0
      %1741 = vmatpush1.bf16.msra.mxu0 0
      %1742 = vmatprep.subr.bf16.mxu0 0
      %1743 = vmatpush1.bf16.msra.mxu0 0
      %1744 = vmatprep.subr.bf16.mxu0 0
      %1745 = vmatpush1.bf16.msra.mxu0 0
      %1746 = vmatprep.subr.bf16.mxu0 0
      %1747 = vmatpush1.bf16.msra.mxu0 0
      %1748 = vmatprep.subr.bf16.mxu0 0
      %1749 = vmatpush1.bf16.msra.mxu0 0
      %1750 = vmatprep.subr.bf16.mxu0 0
      %1751 = vmatpush1.bf16.msra.mxu0 0
      %1752 = vmatprep.subr.bf16.mxu0 0
      %1753 = vmatpush1.bf16.msra.mxu0 0
      %1754 = vmatprep.subr.bf16.mxu0 0
      %1755 = vmatpush1.bf16.msra.mxu0 0
      %1756 = vmatprep.subr.bf16.mxu0 0
      %1757 = vmatpush1.bf16.msra.mxu0 0
      %1758 = vmatprep.subr.bf16.mxu0 0
      %1759 = vmatpush1.bf16.msra.mxu0 0
      %1760 = vmatprep.mubr.bf16.mxu0 0
      %1761 = vmatmul.mubr.bf16.gmra.mrb[0].mxu0 %v616
      %v1762 = vpop.f32.mrb[0].mxu0
      %v1763 = vadd.f32 0.0, %v1762
      %v1764 = vpop.f32.mrb[0].mxu0
      %v1765 = vpop.f32.mrb[0].mxu0
      %v1766 = vadd.f32 0.0, %v1765
      %v1767 = vpop.f32.mrb[0].mxu0
      %1768 = vdwg.mxu0
      %v1770 = vsel %vm708, %v1663, 0
      %v1773 = vsel %vm708, %v1713, 0
      %1775 = vmatprep.subr.mxu0 0.0
      %1776 = vmatpush1.xpose.msra.mxu0 %v1773
      %1777 = vmatprep.subr.mxu0 0.0
      %1778 = vmatpush1.xpose.msra.mxu0 0.0
      %1779 = vmatprep.subr.mxu0 0.0
      %1780 = vmatpush1.xpose.msra.mxu0 0.0
      %1781 = vmatprep.subr.mxu0 0.0
      %1782 = vmatpush1.xpose.msra.mxu0 0.0
      %1783 = vmatprep.subr.mxu0 0.0
      %1784 = vmatpush1.xpose.msra.mxu0 0.0
      %1785 = vmatprep.subr.mxu0 0.0
      %1786 = vmatpush1.xpose.msra.mxu0 0.0
      %1787 = vmatprep.subr.mxu0 0.0
      %1788 = vmatpush1.xpose.msra.mxu0 0.0
      %1789 = vmatprep.subr.mxu0 0.0
      %1790 = vmatpush1.xpose.msra.mxu0 0.0
      %1791 = vmatprep.subr.mxu0 0.0
      %1792 = vmatpush1.xpose.msra.mxu0 0.0
      %1793 = vmatprep.subr.mxu0 0.0
      %1794 = vmatpush1.xpose.msra.mxu0 0.0
      %1795 = vmatprep.subr.mxu0 0.0
      %1796 = vmatpush1.xpose.msra.mxu0 0.0
      %1797 = vmatprep.subr.mxu0 0.0
      %1798 = vmatpush1.xpose.msra.mxu0 0.0
      %1799 = vmatprep.subr.mxu0 0.0
      %1800 = vmatpush1.xpose.msra.mxu0 0.0
      %1801 = vmatprep.subr.mxu0 0.0
      %1802 = vmatpush1.xpose.msra.mxu0 0.0
      %1803 = vmatprep.subr.mxu0 0.0
      %1804 = vmatpush1.xpose.msra.mxu0 0.0
      %1805 = vmatprep.subr.mxu0 0.0
      %1806 = vmatpush1.xpose.msra.mxu0 0.0
      %1807 = vmatprep.subr.mxu0 0.0
      %1808 = vmatpush1.xpose.msra.mxu0 0.0
      %1809 = vmatprep.subr.mxu0 0.0
      %1810 = vmatpush1.xpose.msra.mxu0 0.0
      %1811 = vmatprep.subr.mxu0 0.0
      %1812 = vmatpush1.xpose.msra.mxu0 0.0
      %1813 = vmatprep.subr.mxu0 0.0
      %1814 = vmatpush1.xpose.msra.mxu0 0.0
      %1815 = vmatprep.subr.mxu0 0.0
      %1816 = vmatpush1.xpose.msra.mxu0 0.0
      %1817 = vmatprep.subr.mxu0 0.0
      %1818 = vmatpush1.xpose.msra.mxu0 0.0
      %1819 = vmatprep.subr.mxu0 0.0
      %1820 = vmatpush1.xpose.msra.mxu0 0.0
      %1821 = vmatprep.subr.mxu0 0.0
      %1822 = vmatpush1.xpose.msra.mxu0 0.0
      %1823 = vmatprep.subr.mxu0 0.0
      %1824 = vmatpush1.xpose.msra.mxu0 0.0
      %1825 = vmatprep.subr.mxu0 0.0
      %1826 = vmatpush1.xpose.msra.mxu0 0.0
      %1827 = vmatprep.subr.mxu0 0.0
      %1828 = vmatpush1.xpose.msra.mxu0 0.0
      %1829 = vmatprep.subr.mxu0 0.0
      %1830 = vmatpush1.xpose.msra.mxu0 0.0
      %1831 = vmatprep.subr.mxu0 0.0
      %1832 = vmatpush1.xpose.msra.mxu0 0.0
      %1833 = vmatprep.subr.mxu0 0.0
      %1834 = vmatpush1.xpose.msra.mxu0 0.0
      %1835 = vmatprep.subr.mxu0 0.0
      %1836 = vmatpush1.xpose.msra.mxu0 0.0
      %1837 = vmatprep.subr.mxu0 0.0
      %1838 = vmatpush1.xpose.msra.mxu0 0.0
      %1839 = vmatprep.mubr.f32.mxu0 0.0
      %1840 = vmatmul.mubr.f32.gmra.mrb[0].mxu0 %v1770
      %v1841 = vpop.f32.mrb[0].mxu0
      %v1842 = vadd.f32 0.0, %v1841
      %v1843 = vpop.f32.mrb[0].mxu0
      %1844 = vdwg.mxu0
      %v1845 = vmul.f32 %v1842, 0.35355338
      %v1846 = vsel %vm708, %v1845, -inf
      %1847 = vmax.xlane.f32.xlu0 %v1846
      %v1848 = vpop.xlane.xlu0 %1847
      %v1849 = vsub.f32 %v1845, %v1848
      %v1850 = vmul.f32 %v1849, 1.442695
      %v1851 = vpow.pop %v1850
      %v1852 = vsel %vm708, %v1851, 0.0
      %1853 = vadd.xlane.f32.xlu0 %v1852
      %v1854 = vpop.xlane.xlu0 %1853
      %v1855 = vrcp.pop %v1854
      %v1856 = vmul.f32 %v1851, %v1855
      %v1858 = vsel %vm708, %v1856, 0
      %1860 = vmatprep.subr.mxu0 0.0
      %1861 = vmatpush1.msra.mxu0 %v1763
      %1862 = vmatprep.subr.mxu0 0.0
      %1863 = vmatpush1.msra.mxu0 0.0
      %1864 = vmatprep.subr.mxu0 0.0
      %1865 = vmatpush1.msra.mxu0 0.0
      %1866 = vmatprep.subr.mxu0 0.0
      %1867 = vmatpush1.msra.mxu0 0.0
      %1868 = vmatprep.subr.mxu0 0.0
      %1869 = vmatpush1.msra.mxu0 0.0
      %1870 = vmatprep.subr.mxu0 0.0
      %1871 = vmatpush1.msra.mxu0 0.0
      %1872 = vmatprep.subr.mxu0 0.0
      %1873 = vmatpush1.msra.mxu0 0.0
      %1874 = vmatprep.subr.mxu0 0.0
      %1875 = vmatpush1.msra.mxu0 0.0
      %1876 = vmatprep.subr.mxu0 0.0
      %1877 = vmatpush1.msra.mxu0 0.0
      %1878 = vmatprep.subr.mxu0 0.0
      %1879 = vmatpush1.msra.mxu0 0.0
      %1880 = vmatprep.subr.mxu0 0.0
      %1881 = vmatpush1.msra.mxu0 0.0
      %1882 = vmatprep.subr.mxu0 0.0
      %1883 = vmatpush1.msra.mxu0 0.0
      %1884 = vmatprep.subr.mxu0 0.0
      %1885 = vmatpush1.msra.mxu0 0.0
      %1886 = vmatprep.subr.mxu0 0.0
      %1887 = vmatpush1.msra.mxu0 0.0
      %1888 = vmatprep.subr.mxu0 0.0
      %1889 = vmatpush1.msra.mxu0 0.0
      %1890 = vmatprep.subr.mxu0 0.0
      %1891 = vmatpush1.msra.mxu0 0.0
      %1892 = vmatprep.subr.mxu0 0.0
      %1893 = vmatpush1.msra.mxu0 0.0
      %1894 = vmatprep.subr.mxu0 0.0
      %1895 = vmatpush1.msra.mxu0 0.0
      %1896 = vmatprep.subr.mxu0 0.0
      %1897 = vmatpush1.msra.mxu0 0.0
      %1898 = vmatprep.subr.mxu0 0.0
      %1899 = vmatpush1.msra.mxu0 0.0
      %1900 = vmatprep.subr.mxu0 0.0
      %1901 = vmatpush1.msra.mxu0 0.0
      %1902 = vmatprep.subr.mxu0 0.0
      %1903 = vmatpush1.msra.mxu0 0.0
      %1904 = vmatprep.subr.mxu0 0.0
      %1905 = vmatpush1.msra.mxu0 0.0
      %1906 = vmatprep.subr.mxu0 0.0
      %1907 = vmatpush1.msra.mxu0 0.0
      %1908 = vmatprep.subr.mxu0 0.0
      %1909 = vmatpush1.msra.mxu0 0.0
      %1910 = vmatprep.subr.mxu0 0.0
      %1911 = vmatpush1.msra.mxu0 0.0
      %1912 = vmatprep.subr.mxu0 0.0
      %1913 = vmatpush1.msra.mxu0 0.0
      %1914 = vmatprep.subr.mxu0 0.0
      %1915 = vmatpush1.msra.mxu0 0.0
      %1916 = vmatprep.subr.mxu0 0.0
      %1917 = vmatpush1.msra.mxu0 0.0
      %1918 = vmatprep.subr.mxu0 0.0
      %1919 = vmatpush1.msra.mxu0 0.0
      %1920 = vmatprep.subr.mxu0 0.0
      %1921 = vmatpush1.msra.mxu0 0.0
      %1922 = vmatprep.subr.mxu0 0.0
      %1923 = vmatpush1.msra.mxu0 0.0
      %1924 = vmatprep.mubr.f32.mxu0 0.0
      %1925 = vmatmul.mubr.f32.gmra.mrb[0].mxu0 %v1858
      %v1926 = vpop.f32.mrb[0].mxu0
      %v1927 = vadd.f32 0.0, %v1926
      %v1928 = vpop.f32.mrb[0].mxu0
      %1929 = vdwg.mxu0
      %v1931 = vsel %vm708, %v1666, 0
      %v1934 = vsel %vm708, %v1716, 0
      %1936 = vmatprep.subr.mxu0 0.0
      %1937 = vmatpush1.xpose.msra.mxu0 %v1934
      %1938 = vmatprep.subr.mxu0 0.0
      %1939 = vmatpush1.xpose.msra.mxu0 0.0
      %1940 = vmatprep.subr.mxu0 0.0
      %1941 = vmatpush1.xpose.msra.mxu0 0.0
      %1942 = vmatprep.subr.mxu0 0.0
      %1943 = vmatpush1.xpose.msra.mxu0 0.0
      %1944 = vmatprep.subr.mxu0 0.0
      %1945 = vmatpush1.xpose.msra.mxu0 0.0
      %1946 = vmatprep.subr.mxu0 0.0
      %1947 = vmatpush1.xpose.msra.mxu0 0.0
      %1948 = vmatprep.subr.mxu0 0.0
      %1949 = vmatpush1.xpose.msra.mxu0 0.0
      %1950 = vmatprep.subr.mxu0 0.0
      %1951 = vmatpush1.xpose.msra.mxu0 0.0
      %1952 = vmatprep.subr.mxu0 0.0
      %1953 = vmatpush1.xpose.msra.mxu0 0.0
      %1954 = vmatprep.subr.mxu0 0.0
      %1955 = vmatpush1.xpose.msra.mxu0 0.0
      %1956 = vmatprep.subr.mxu0 0.0
      %1957 = vmatpush1.xpose.msra.mxu0 0.0
      %1958 = vmatprep.subr.mxu0 0.0
      %1959 = vmatpush1.xpose.msra.mxu0 0.0
      %1960 = vmatprep.subr.mxu0 0.0
      %1961 = vmatpush1.xpose.msra.mxu0 0.0
      %1962 = vmatprep.subr.mxu0 0.0
      %1963 = vmatpush1.xpose.msra.mxu0 0.0
      %1964 = vmatprep.subr.mxu0 0.0
      %1965 = vmatpush1.xpose.msra.mxu0 0.0
      %1966 = vmatprep.subr.mxu0 0.0
      %1967 = vmatpush1.xpose.msra.mxu0 0.0
      %1968 = vmatprep.subr.mxu0 0.0
      %1969 = vmatpush1.xpose.msra.mxu0 0.0
      %1970 = vmatprep.subr.mxu0 0.0
      %1971 = vmatpush1.xpose.msra.mxu0 0.0
      %1972 = vmatprep.subr.mxu0 0.0
      %1973 = vmatpush1.xpose.msra.mxu0 0.0
      %1974 = vmatprep.subr.mxu0 0.0
      %1975 = vmatpush1.xpose.msra.mxu0 0.0
      %1976 = vmatprep.subr.mxu0 0.0
      %1977 = vmatpush1.xpose.msra.mxu0 0.0
      %1978 = vmatprep.subr.mxu0 0.0
      %1979 = vmatpush1.xpose.msra.mxu0 0.0
      %1980 = vmatprep.subr.mxu0 0.0
      %1981 = vmatpush1.xpose.msra.mxu0 0.0
      %1982 = vmatprep.subr.mxu0 0.0
      %1983 = vmatpush1.xpose.msra.mxu0 0.0
      %1984 = vmatprep.subr.mxu0 0.0
      %1985 = vmatpush1.xpose.msra.mxu0 0.0
      %1986 = vmatprep.subr.mxu0 0.0
      %1987 = vmatpush1.xpose.msra.mxu0 0.0
      %1988 = vmatprep.subr.mxu0 0.0
      %1989 = vmatpush1.xpose.msra.mxu0 0.0
      %1990 = vmatprep.subr.mxu0 0.0
      %1991 = vmatpush1.xpose.msra.mxu0 0.0
      %1992 = vmatprep.subr.mxu0 0.0
      %1993 = vmatpush1.xpose.msra.mxu0 0.0
      %1994 = vmatprep.subr.mxu0 0.0
      %1995 = vmatpush1.xpose.msra.mxu0 0.0
      %1996 = vmatprep.subr.mxu0 0.0
      %1997 = vmatpush1.xpose.msra.mxu0 0.0
      %1998 = vmatprep.subr.mxu0 0.0
      %1999 = vmatpush1.xpose.msra.mxu0 0.0
      %2000 = vmatprep.mubr.f32.mxu0 0.0
      %2001 = vmatmul.mubr.f32.gmra.mrb[0].mxu0 %v1931
      %v2002 = vpop.f32.mrb[0].mxu0
      %v2003 = vadd.f32 0.0, %v2002
      %v2004 = vpop.f32.mrb[0].mxu0
      %2005 = vdwg.mxu0
      %v2006 = vmul.f32 %v2003, 0.35355338
      %v2007 = vsel %vm708, %v2006, -inf
      %2008 = vmax.xlane.f32.xlu0 %v2007
      %v2009 = vpop.xlane.xlu0 %2008
      %v2010 = vsub.f32 %v2006, %v2009
      %v2011 = vmul.f32 %v2010, 1.442695
      %v2012 = vpow.pop %v2011
      %v2013 = vsel %vm708, %v2012, 0.0
      %2014 = vadd.xlane.f32.xlu0 %v2013
      %v2015 = vpop.xlane.xlu0 %2014
      %v2016 = vrcp.pop %v2015
      %v2017 = vmul.f32 %v2012, %v2016
      %v2019 = vsel %vm708, %v2017, 0
      %2021 = vmatprep.subr.mxu0 0.0
      %2022 = vmatpush1.msra.mxu0 %v1766
      %2023 = vmatprep.subr.mxu0 0.0
      %2024 = vmatpush1.msra.mxu0 0.0
      %2025 = vmatprep.subr.mxu0 0.0
      %2026 = vmatpush1.msra.mxu0 0.0
      %2027 = vmatprep.subr.mxu0 0.0
      %2028 = vmatpush1.msra.mxu0 0.0
      %2029 = vmatprep.subr.mxu0 0.0
      %2030 = vmatpush1.msra.mxu0 0.0
      %2031 = vmatprep.subr.mxu0 0.0
      %2032 = vmatpush1.msra.mxu0 0.0
      %2033 = vmatprep.subr.mxu0 0.0
      %2034 = vmatpush1.msra.mxu0 0.0
      %2035 = vmatprep.subr.mxu0 0.0
      %2036 = vmatpush1.msra.mxu0 0.0
      %2037 = vmatprep.subr.mxu0 0.0
      %2038 = vmatpush1.msra.mxu0 0.0
      %2039 = vmatprep.subr.mxu0 0.0
      %2040 = vmatpush1.msra.mxu0 0.0
      %2041 = vmatprep.subr.mxu0 0.0
      %2042 = vmatpush1.msra.mxu0 0.0
      %2043 = vmatprep.subr.mxu0 0.0
      %2044 = vmatpush1.msra.mxu0 0.0
      %2045 = vmatprep.subr.mxu0 0.0
      %2046 = vmatpush1.msra.mxu0 0.0
      %2047 = vmatprep.subr.mxu0 0.0
      %2048 = vmatpush1.msra.mxu0 0.0
      %2049 = vmatprep.subr.mxu0 0.0
      %2050 = vmatpush1.msra.mxu0 0.0
      %2051 = vmatprep.subr.mxu0 0.0
      %2052 = vmatpush1.msra.mxu0 0.0
      %2053 = vmatprep.subr.mxu0 0.0
      %2054 = vmatpush1.msra.mxu0 0.0
      %2055 = vmatprep.subr.mxu0 0.0
      %2056 = vmatpush1.msra.mxu0 0.0
      %2057 = vmatprep.subr.mxu0 0.0
      %2058 = vmatpush1.msra.mxu0 0.0
      %2059 = vmatprep.subr.mxu0 0.0
      %2060 = vmatpush1.msra.mxu0 0.0
      %2061 = vmatprep.subr.mxu0 0.0
      %2062 = vmatpush1.msra.mxu0 0.0
      %2063 = vmatprep.subr.mxu0 0.0
      %2064 = vmatpush1.msra.mxu0 0.0
      %2065 = vmatprep.subr.mxu0 0.0
      %2066 = vmatpush1.msra.mxu0 0.0
      %2067 = vmatprep.subr.mxu0 0.0
      %2068 = vmatpush1.msra.mxu0 0.0
      %2069 = vmatprep.subr.mxu0 0.0
      %2070 = vmatpush1.msra.mxu0 0.0
      %2071 = vmatprep.subr.mxu0 0.0
      %2072 = vmatpush1.msra.mxu0 0.0
      %2073 = vmatprep.subr.mxu0 0.0
      %2074 = vmatpush1.msra.mxu0 0.0
      %2075 = vmatprep.subr.mxu0 0.0
      %2076 = vmatpush1.msra.mxu0 0.0
      %2077 = vmatprep.subr.mxu0 0.0
      %2078 = vmatpush1.msra.mxu0 0.0
      %2079 = vmatprep.subr.mxu0 0.0
      %2080 = vmatpush1.msra.mxu0 0.0
      %2081 = vmatprep.subr.mxu0 0.0
      %2082 = vmatpush1.msra.mxu0 0.0
      %2083 = vmatprep.subr.mxu0 0.0
      %2084 = vmatpush1.msra.mxu0 0.0
      %2085 = vmatprep.mubr.f32.mxu0 0.0
      %2086 = vmatmul.mubr.f32.gmra.mrb[0].mxu0 %v2019
      %v2087 = vpop.f32.mrb[0].mxu0
      %v2088 = vadd.f32 0.0, %v2087
      %v2089 = vpop.f32.mrb[0].mxu0
      %2090 = vdwg.mxu0
      %v2091 = vpack.c.bf16 %v2088, %v1927
      %s2092 = scalar_lea.vmem %s9, 8
      %v2093 = vld [vmem:[%s2092] sm:$0xf]
      %v2095 = vsel %vm708, %v2091, 0
      %v2098 = vsel %vm1519, %v2093, 0
      %2100 = vmatprep.subr.bf16.mxu0 0
      %2101 = vmatpush1.bf16.msra.mxu0 %v2098
      %2102 = vmatprep.subr.bf16.mxu0 0
      %2103 = vmatpush1.bf16.msra.mxu0 0
      %2104 = vmatprep.subr.bf16.mxu0 0
      %2105 = vmatpush1.bf16.msra.mxu0 0
      %2106 = vmatprep.subr.bf16.mxu0 0
      %2107 = vmatpush1.bf16.msra.mxu0 0
      %2108 = vmatprep.subr.bf16.mxu0 0
      %2109 = vmatpush1.bf16.msra.mxu0 0
      %2110 = vmatprep.subr.bf16.mxu0 0
      %2111 = vmatpush1.bf16.msra.mxu0 0
      %2112 = vmatprep.subr.bf16.mxu0 0
      %2113 = vmatpush1.bf16.msra.mxu0 0
      %2114 = vmatprep.subr.bf16.mxu0 0
      %2115 = vmatpush1.bf16.msra.mxu0 0
      %2116 = vmatprep.subr.bf16.mxu0 0
      %2117 = vmatpush1.bf16.msra.mxu0 0
      %2118 = vmatprep.subr.bf16.mxu0 0
      %2119 = vmatpush1.bf16.msra.mxu0 0
      %2120 = vmatprep.subr.bf16.mxu0 0
      %2121 = vmatpush1.bf16.msra.mxu0 0
      %2122 = vmatprep.subr.bf16.mxu0 0
      %2123 = vmatpush1.bf16.msra.mxu0 0
      %2124 = vmatprep.subr.bf16.mxu0 0
      %2125 = vmatpush1.bf16.msra.mxu0 0
      %2126 = vmatprep.subr.bf16.mxu0 0
      %2127 = vmatpush1.bf16.msra.mxu0 0
      %2128 = vmatprep.subr.bf16.mxu0 0
      %2129 = vmatpush1.bf16.msra.mxu0 0
      %2130 = vmatprep.subr.bf16.mxu0 0
      %2131 = vmatpush1.bf16.msra.mxu0 0
      %2132 = vmatprep.mubr.bf16.mxu0 0
      %2133 = vmatmul.mubr.bf16.gmra.mrb[0].mxu0 %v2095
      %v2134 = vpop.f32.mrb[0].mxu0
      %v2135 = vadd.f32 0.0, %v2134
      %v2136 = vpop.f32.mrb[0].mxu0
      %v2137 = vpop.f32.mrb[0].mxu0
      %v2138 = vadd.f32 0.0, %v2137
      %v2139 = vpop.f32.mrb[0].mxu0
      %2140 = vdwg.mxu0
      %v2141 = vadd.f32 %v1605, %v2135
      %v2142 = vadd.f32 %v1608, %v2138
      %s2143 = scalar_lea.vmem %s6, 48
      %v2144 = vld [vmem:[%s2143] sm:$0xf]
      %v2145 = vld [vmem:[%s2143 + $0x4] sm:$0xf]
      %v2146 = vld [vmem:[%s2143 + $0x8] sm:$0xf]
      %v2147 = vld [vmem:[%s2143 + $0xc] sm:$0xf]
      %v2152 = vunpack.c.l.b16 %v2144
      %v2153 = vunpack.c.l.b16 %v2145
      %v2154 = vunpack.c.l.b16 %v2146
      %v2155 = vunpack.c.l.b16 %v2147
      %v2156 = vpack.c.b16 %v2153, %v2152
      %v2157 = vpack.c.b16 %v2155, %v2154
      %2160 = vmatprep.subr.bf16.mxu0 0
      %2161 = vmatpush1.bf16.msra.mxu0 %v2156
      %2162 = vmatprep.subr.bf16.mxu0 0
      %2163 = vmatpush1.bf16.msra.mxu0 %v2157
      %2164 = vmatprep.subr.bf16.mxu0 0
      %2165 = vmatpush1.bf16.msra.mxu0 0
      %2166 = vmatprep.subr.bf16.mxu0 0
      %2167 = vmatpush1.bf16.msra.mxu0 0
      %2168 = vmatprep.subr.bf16.mxu0 0
      %2169 = vmatpush1.bf16.msra.mxu0 0
      %2170 = vmatprep.subr.bf16.mxu0 0
      %2171 = vmatpush1.bf16.msra.mxu0 0
      %2172 = vmatprep.subr.bf16.mxu0 0
      %2173 = vmatpush1.bf16.msra.mxu0 0
      %2174 = vmatprep.subr.bf16.mxu0 0
      %2175 = vmatpush1.bf16.msra.mxu0 0
      %2176 = vmatprep.subr.bf16.mxu0 0
      %2177 = vmatpush1.bf16.msra.mxu0 0
      %2178 = vmatprep.subr.bf16.mxu0 0
      %2179 = vmatpush1.bf16.msra.mxu0 0
      %2180 = vmatprep.subr.bf16.mxu0 0
      %2181 = vmatpush1.bf16.msra.mxu0 0
      %2182 = vmatprep.subr.bf16.mxu0 0
      %2183 = vmatpush1.bf16.msra.mxu0 0
      %2184 = vmatprep.subr.bf16.mxu0 0
      %2185 = vmatpush1.bf16.msra.mxu0 0
      %2186 = vmatprep.subr.bf16.mxu0 0
      %2187 = vmatpush1.bf16.msra.mxu0 0
      %2188 = vmatprep.subr.bf16.mxu0 0
      %2189 = vmatpush1.bf16.msra.mxu0 0
      %2190 = vmatprep.subr.bf16.mxu0 0
      %2191 = vmatpush1.bf16.msra.mxu0 0
      %2192 = vmatprep.mubr.bf16.mxu0 0
      %2193 = vmatmul.mubr.bf16.gmra.mrb[0].mxu0 %v564
      %v2194 = vpop.f32.mrb[0].mxu0
      %v2195 = vadd.f32 0.0, %v2194
      %v2196 = vpop.f32.mrb[0].mxu0
      %v2197 = vpop.f32.mrb[0].mxu0
      %v2198 = vadd.f32 0.0, %v2197
      %v2199 = vpop.f32.mrb[0].mxu0
      %2200 = vdwg.mxu0
      %s2201 = scalar_lea.vmem %s7, 24
      %v2202 = vld [vmem:[%s2201] sm:$0xf]
      %v2203 = vld [vmem:[%s2201 + $0x4] sm:$0xf]
      %v2206 = vunpack.c.l.b16 %v2202
      %v2207 = vunpack.c.l.b16 %v2203
      %v2208 = vpack.c.b16 %v2207, %v2206
      %2210 = vmatprep.subr.bf16.mxu0 0
      %2211 = vmatpush1.bf16.msra.mxu0 %v2208
      %2212 = vmatprep.subr.bf16.mxu0 0
      %2213 = vmatpush1.bf16.msra.mxu0 0
      %2214 = vmatprep.subr.bf16.mxu0 0
      %2215 = vmatpush1.bf16.msra.mxu0 0
      %2216 = vmatprep.subr.bf16.mxu0 0
      %2217 = vmatpush1.bf16.msra.mxu0 0
      %2218 = vmatprep.subr.bf16.mxu0 0
      %2219 = vmatpush1.bf16.msra.mxu0 0
      %2220 = vmatprep.subr.bf16.mxu0 0
      %2221 = vmatpush1.bf16.msra.mxu0 0
      %2222 = vmatprep.subr.bf16.mxu0 0
      %2223 = vmatpush1.bf16.msra.mxu0 0
      %2224 = vmatprep.subr.bf16.mxu0 0
      %2225 = vmatpush1.bf16.msra.mxu0 0
      %2226 = vmatprep.subr.bf16.mxu0 0
      %2227 = vmatpush1.bf16.msra.mxu0 0
      %2228 = vmatprep.subr.bf16.mxu0 0
      %2229 = vmatpush1.bf16.msra.mxu0 0
      %2230 = vmatprep.subr.bf16.mxu0 0
      %2231 = vmatpush1.bf16.msra.mxu0 0
      %2232 = vmatprep.subr.bf16.mxu0 0
      %2233 = vmatpush1.bf16.msra.mxu0 0
      %2234 = vmatprep.subr.bf16.mxu0 0
      %2235 = vmatpush1.bf16.msra.mxu0 0
      %2236 = vmatprep.subr.bf16.mxu0 0
      %2237 = vmatpush1.bf16.msra.mxu0 0
      %2238 = vmatprep.subr.bf16.mxu0 0
      %2239 = vmatpush1.bf16.msra.mxu0 0
      %2240 = vmatprep.subr.bf16.mxu0 0
      %2241 = vmatpush1.bf16.msra.mxu0 0
      %2242 = vmatprep.mubr.bf16.mxu0 0
      %2243 = vmatmul.mubr.bf16.gmra.mrb[0].mxu0 %v616
      %v2244 = vpop.f32.mrb[0].mxu0
      %v2245 = vadd.f32 0.0, %v2244
      %v2246 = vpop.f32.mrb[0].mxu0
      %v2247 = vpop.f32.mrb[0].mxu0
      %v2248 = vadd.f32 0.0, %v2247
      %v2249 = vpop.f32.mrb[0].mxu0
      %2250 = vdwg.mxu0
      %s2251 = scalar_lea.vmem %s8, 24
      %v2252 = vld [vmem:[%s2251] sm:$0xf]
      %v2253 = vld [vmem:[%s2251 + $0x4] sm:$0xf]
      %v2256 = vunpack.c.l.b16 %v2252
      %v2257 = vunpack.c.l.b16 %v2253
      %v2258 = vpack.c.b16 %v2257, %v2256
      %2260 = vmatprep.subr.bf16.mxu0 0
      %2261 = vmatpush1.bf16.msra.mxu0 %v2258
      %2262 = vmatprep.subr.bf16.mxu0 0
      %2263 = vmatpush1.bf16.msra.mxu0 0
      %2264 = vmatprep.subr.bf16.mxu0 0
      %2265 = vmatpush1.bf16.msra.mxu0 0
      %2266 = vmatprep.subr.bf16.mxu0 0
      %2267 = vmatpush1.bf16.msra.mxu0 0
      %2268 = vmatprep.subr.bf16.mxu0 0
      %2269 = vmatpush1.bf16.msra.mxu0 0
      %2270 = vmatprep.subr.bf16.mxu0 0
      %2271 = vmatpush1.bf16.msra.mxu0 0
      %2272 = vmatprep.subr.bf16.mxu0 0
      %2273 = vmatpush1.bf16.msra.mxu0 0
      %2274 = vmatprep.subr.bf16.mxu0 0
      %2275 = vmatpush1.bf16.msra.mxu0 0
      %2276 = vmatprep.subr.bf16.mxu0 0
      %2277 = vmatpush1.bf16.msra.mxu0 0
      %2278 = vmatprep.subr.bf16.mxu0 0
      %2279 = vmatpush1.bf16.msra.mxu0 0
      %2280 = vmatprep.subr.bf16.mxu0 0
      %2281 = vmatpush1.bf16.msra.mxu0 0
      %2282 = vmatprep.subr.bf16.mxu0 0
      %2283 = vmatpush1.bf16.msra.mxu0 0
      %2284 = vmatprep.subr.bf16.mxu0 0
      %2285 = vmatpush1.bf16.msra.mxu0 0
      %2286 = vmatprep.subr.bf16.mxu0 0
      %2287 = vmatpush1.bf16.msra.mxu0 0
      %2288 = vmatprep.subr.bf16.mxu0 0
      %2289 = vmatpush1.bf16.msra.mxu0 0
      %2290 = vmatprep.subr.bf16.mxu0 0
      %2291 = vmatpush1.bf16.msra.mxu0 0
      %2292 = vmatprep.mubr.bf16.mxu0 0
      %2293 = vmatmul.mubr.bf16.gmra.mrb[0].mxu0 %v616
      %v2294 = vpop.f32.mrb[0].mxu0
      %v2295 = vadd.f32 0.0, %v2294
      %v2296 = vpop.f32.mrb[0].mxu0
      %v2297 = vpop.f32.mrb[0].mxu0
      %v2298 = vadd.f32 0.0, %v2297
      %v2299 = vpop.f32.mrb[0].mxu0
      %2300 = vdwg.mxu0
      %v2302 = vsel %vm708, %v2195, 0
      %v2305 = vsel %vm708, %v2245, 0
      %2307 = vmatprep.subr.mxu0 0.0
      %2308 = vmatpush1.xpose.msra.mxu0 %v2305
      %2309 = vmatprep.subr.mxu0 0.0
      %2310 = vmatpush1.xpose.msra.mxu0 0.0
      %2311 = vmatprep.subr.mxu0 0.0
      %2312 = vmatpush1.xpose.msra.mxu0 0.0
      %2313 = vmatprep.subr.mxu0 0.0
      %2314 = vmatpush1.xpose.msra.mxu0 0.0
      %2315 = vmatprep.subr.mxu0 0.0
      %2316 = vmatpush1.xpose.msra.mxu0 0.0
      %2317 = vmatprep.subr.mxu0 0.0
      %2318 = vmatpush1.xpose.msra.mxu0 0.0
      %2319 = vmatprep.subr.mxu0 0.0
      %2320 = vmatpush1.xpose.msra.mxu0 0.0
      %2321 = vmatprep.subr.mxu0 0.0
      %2322 = vmatpush1.xpose.msra.mxu0 0.0
      %2323 = vmatprep.subr.mxu0 0.0
      %2324 = vmatpush1.xpose.msra.mxu0 0.0
      %2325 = vmatprep.subr.mxu0 0.0
      %2326 = vmatpush1.xpose.msra.mxu0 0.0
      %2327 = vmatprep.subr.mxu0 0.0
      %2328 = vmatpush1.xpose.msra.mxu0 0.0
      %2329 = vmatprep.subr.mxu0 0.0
      %2330 = vmatpush1.xpose.msra.mxu0 0.0
      %2331 = vmatprep.subr.mxu0 0.0
      %2332 = vmatpush1.xpose.msra.mxu0 0.0
      %2333 = vmatprep.subr.mxu0 0.0
      %2334 = vmatpush1.xpose.msra.mxu0 0.0
      %2335 = vmatprep.subr.mxu0 0.0
      %2336 = vmatpush1.xpose.msra.mxu0 0.0
      %2337 = vmatprep.subr.mxu0 0.0
      %2338 = vmatpush1.xpose.msra.mxu0 0.0
      %2339 = vmatprep.subr.mxu0 0.0
      %2340 = vmatpush1.xpose.msra.mxu0 0.0
      %2341 = vmatprep.subr.mxu0 0.0
      %2342 = vmatpush1.xpose.msra.mxu0 0.0
      %2343 = vmatprep.subr.mxu0 0.0
      %2344 = vmatpush1.xpose.msra.mxu0 0.0
      %2345 = vmatprep.subr.mxu0 0.0
      %2346 = vmatpush1.xpose.msra.mxu0 0.0
      %2347 = vmatprep.subr.mxu0 0.0
      %2348 = vmatpush1.xpose.msra.mxu0 0.0
      %2349 = vmatprep.subr.mxu0 0.0
      %2350 = vmatpush1.xpose.msra.mxu0 0.0
      %2351 = vmatprep.subr.mxu0 0.0
      %2352 = vmatpush1.xpose.msra.mxu0 0.0
      %2353 = vmatprep.subr.mxu0 0.0
      %2354 = vmatpush1.xpose.msra.mxu0 0.0
      %2355 = vmatprep.subr.mxu0 0.0
      %2356 = vmatpush1.xpose.msra.mxu0 0.0
      %2357 = vmatprep.subr.mxu0 0.0
      %2358 = vmatpush1.xpose.msra.mxu0 0.0
      %2359 = vmatprep.subr.mxu0 0.0
      %2360 = vmatpush1.xpose.msra.mxu0 0.0
      %2361 = vmatprep.subr.mxu0 0.0
      %2362 = vmatpush1.xpose.msra.mxu0 0.0
      %2363 = vmatprep.subr.mxu0 0.0
      %2364 = vmatpush1.xpose.msra.mxu0 0.0
      %2365 = vmatprep.subr.mxu0 0.0
      %2366 = vmatpush1.xpose.msra.mxu0 0.0
      %2367 = vmatprep.subr.mxu0 0.0
      %2368 = vmatpush1.xpose.msra.mxu0 0.0
      %2369 = vmatprep.subr.mxu0 0.0
      %2370 = vmatpush1.xpose.msra.mxu0 0.0
      %2371 = vmatprep.mubr.f32.mxu0 0.0
      %2372 = vmatmul.mubr.f32.gmra.mrb[0].mxu0 %v2302
      %v2373 = vpop.f32.mrb[0].mxu0
      %v2374 = vadd.f32 0.0, %v2373
      %v2375 = vpop.f32.mrb[0].mxu0
      %2376 = vdwg.mxu0
      %v2377 = vmul.f32 %v2374, 0.35355338
      %v2378 = vsel %vm708, %v2377, -inf
      %2379 = vmax.xlane.f32.xlu0 %v2378
      %v2380 = vpop.xlane.xlu0 %2379
      %v2381 = vsub.f32 %v2377, %v2380
      %v2382 = vmul.f32 %v2381, 1.442695
      %v2383 = vpow.pop %v2382
      %v2384 = vsel %vm708, %v2383, 0.0
      %2385 = vadd.xlane.f32.xlu0 %v2384
      %v2386 = vpop.xlane.xlu0 %2385
      %v2387 = vrcp.pop %v2386
      %v2388 = vmul.f32 %v2383, %v2387
      %v2390 = vsel %vm708, %v2388, 0
      %2392 = vmatprep.subr.mxu0 0.0
      %2393 = vmatpush1.msra.mxu0 %v2295
      %2394 = vmatprep.subr.mxu0 0.0
      %2395 = vmatpush1.msra.mxu0 0.0
      %2396 = vmatprep.subr.mxu0 0.0
      %2397 = vmatpush1.msra.mxu0 0.0
      %2398 = vmatprep.subr.mxu0 0.0
      %2399 = vmatpush1.msra.mxu0 0.0
      %2400 = vmatprep.subr.mxu0 0.0
      %2401 = vmatpush1.msra.mxu0 0.0
      %2402 = vmatprep.subr.mxu0 0.0
      %2403 = vmatpush1.msra.mxu0 0.0
      %2404 = vmatprep.subr.mxu0 0.0
      %2405 = vmatpush1.msra.mxu0 0.0
      %2406 = vmatprep.subr.mxu0 0.0
      %2407 = vmatpush1.msra.mxu0 0.0
      %2408 = vmatprep.subr.mxu0 0.0
      %2409 = vmatpush1.msra.mxu0 0.0
      %2410 = vmatprep.subr.mxu0 0.0
      %2411 = vmatpush1.msra.mxu0 0.0
      %2412 = vmatprep.subr.mxu0 0.0
      %2413 = vmatpush1.msra.mxu0 0.0
      %2414 = vmatprep.subr.mxu0 0.0
      %2415 = vmatpush1.msra.mxu0 0.0
      %2416 = vmatprep.subr.mxu0 0.0
      %2417 = vmatpush1.msra.mxu0 0.0
      %2418 = vmatprep.subr.mxu0 0.0
      %2419 = vmatpush1.msra.mxu0 0.0
      %2420 = vmatprep.subr.mxu0 0.0
      %2421 = vmatpush1.msra.mxu0 0.0
      %2422 = vmatprep.subr.mxu0 0.0
      %2423 = vmatpush1.msra.mxu0 0.0
      %2424 = vmatprep.subr.mxu0 0.0
      %2425 = vmatpush1.msra.mxu0 0.0
      %2426 = vmatprep.subr.mxu0 0.0
      %2427 = vmatpush1.msra.mxu0 0.0
      %2428 = vmatprep.subr.mxu0 0.0
      %2429 = vmatpush1.msra.mxu0 0.0
      %2430 = vmatprep.subr.mxu0 0.0
      %2431 = vmatpush1.msra.mxu0 0.0
      %2432 = vmatprep.subr.mxu0 0.0
      %2433 = vmatpush1.msra.mxu0 0.0
      %2434 = vmatprep.subr.mxu0 0.0
      %2435 = vmatpush1.msra.mxu0 0.0
      %2436 = vmatprep.subr.mxu0 0.0
      %2437 = vmatpush1.msra.mxu0 0.0
      %2438 = vmatprep.subr.mxu0 0.0
      %2439 = vmatpush1.msra.mxu0 0.0
      %2440 = vmatprep.subr.mxu0 0.0
      %2441 = vmatpush1.msra.mxu0 0.0
      %2442 = vmatprep.subr.mxu0 0.0
      %2443 = vmatpush1.msra.mxu0 0.0
      %2444 = vmatprep.subr.mxu0 0.0
      %2445 = vmatpush1.msra.mxu0 0.0
      %2446 = vmatprep.subr.mxu0 0.0
      %2447 = vmatpush1.msra.mxu0 0.0
      %2448 = vmatprep.subr.mxu0 0.0
      %2449 = vmatpush1.msra.mxu0 0.0
      %2450 = vmatprep.subr.mxu0 0.0
      %2451 = vmatpush1.msra.mxu0 0.0
      %2452 = vmatprep.subr.mxu0 0.0
      %2453 = vmatpush1.msra.mxu0 0.0
      %2454 = vmatprep.subr.mxu0 0.0
      %2455 = vmatpush1.msra.mxu0 0.0
      %2456 = vmatprep.mubr.f32.mxu0 0.0
      %2457 = vmatmul.mubr.f32.gmra.mrb[0].mxu0 %v2390
      %v2458 = vpop.f32.mrb[0].mxu0
      %v2459 = vadd.f32 0.0, %v2458
      %v2460 = vpop.f32.mrb[0].mxu0
      %2461 = vdwg.mxu0
      %v2463 = vsel %vm708, %v2198, 0
      %v2466 = vsel %vm708, %v2248, 0
      %2468 = vmatprep.subr.mxu0 0.0
      %2469 = vmatpush1.xpose.msra.mxu0 %v2466
      %2470 = vmatprep.subr.mxu0 0.0
      %2471 = vmatpush1.xpose.msra.mxu0 0.0
      %2472 = vmatprep.subr.mxu0 0.0
      %2473 = vmatpush1.xpose.msra.mxu0 0.0
      %2474 = vmatprep.subr.mxu0 0.0
      %2475 = vmatpush1.xpose.msra.mxu0 0.0
      %2476 = vmatprep.subr.mxu0 0.0
      %2477 = vmatpush1.xpose.msra.mxu0 0.0
      %2478 = vmatprep.subr.mxu0 0.0
      %2479 = vmatpush1.xpose.msra.mxu0 0.0
      %2480 = vmatprep.subr.mxu0 0.0
      %2481 = vmatpush1.xpose.msra.mxu0 0.0
      %2482 = vmatprep.subr.mxu0 0.0
      %2483 = vmatpush1.xpose.msra.mxu0 0.0
      %2484 = vmatprep.subr.mxu0 0.0
      %2485 = vmatpush1.xpose.msra.mxu0 0.0
      %2486 = vmatprep.subr.mxu0 0.0
      %2487 = vmatpush1.xpose.msra.mxu0 0.0
      %2488 = vmatprep.subr.mxu0 0.0
      %2489 = vmatpush1.xpose.msra.mxu0 0.0
      %2490 = vmatprep.subr.mxu0 0.0
      %2491 = vmatpush1.xpose.msra.mxu0 0.0
      %2492 = vmatprep.subr.mxu0 0.0
      %2493 = vmatpush1.xpose.msra.mxu0 0.0
      %2494 = vmatprep.subr.mxu0 0.0
      %2495 = vmatpush1.xpose.msra.mxu0 0.0
      %2496 = vmatprep.subr.mxu0 0.0
      %2497 = vmatpush1.xpose.msra.mxu0 0.0
      %2498 = vmatprep.subr.mxu0 0.0
      %2499 = vmatpush1.xpose.msra.mxu0 0.0
      %2500 = vmatprep.subr.mxu0 0.0
      %2501 = vmatpush1.xpose.msra.mxu0 0.0
      %2502 = vmatprep.subr.mxu0 0.0
      %2503 = vmatpush1.xpose.msra.mxu0 0.0
      %2504 = vmatprep.subr.mxu0 0.0
      %2505 = vmatpush1.xpose.msra.mxu0 0.0
      %2506 = vmatprep.subr.mxu0 0.0
      %2507 = vmatpush1.xpose.msra.mxu0 0.0
      %2508 = vmatprep.subr.mxu0 0.0
      %2509 = vmatpush1.xpose.msra.mxu0 0.0
      %2510 = vmatprep.subr.mxu0 0.0
      %2511 = vmatpush1.xpose.msra.mxu0 0.0
      %2512 = vmatprep.subr.mxu0 0.0
      %2513 = vmatpush1.xpose.msra.mxu0 0.0
      %2514 = vmatprep.subr.mxu0 0.0
      %2515 = vmatpush1.xpose.msra.mxu0 0.0
      %2516 = vmatprep.subr.mxu0 0.0
      %2517 = vmatpush1.xpose.msra.mxu0 0.0
      %2518 = vmatprep.subr.mxu0 0.0
      %2519 = vmatpush1.xpose.msra.mxu0 0.0
      %2520 = vmatprep.subr.mxu0 0.0
      %2521 = vmatpush1.xpose.msra.mxu0 0.0
      %2522 = vmatprep.subr.mxu0 0.0
      %2523 = vmatpush1.xpose.msra.mxu0 0.0
      %2524 = vmatprep.subr.mxu0 0.0
      %2525 = vmatpush1.xpose.msra.mxu0 0.0
      %2526 = vmatprep.subr.mxu0 0.0
      %2527 = vmatpush1.xpose.msra.mxu0 0.0
      %2528 = vmatprep.subr.mxu0 0.0
      %2529 = vmatpush1.xpose.msra.mxu0 0.0
      %2530 = vmatprep.subr.mxu0 0.0
      %2531 = vmatpush1.xpose.msra.mxu0 0.0
      %2532 = vmatprep.mubr.f32.mxu0 0.0
      %2533 = vmatmul.mubr.f32.gmra.mrb[0].mxu0 %v2463
      %v2534 = vpop.f32.mrb[0].mxu0
      %v2535 = vadd.f32 0.0, %v2534
      %v2536 = vpop.f32.mrb[0].mxu0
      %2537 = vdwg.mxu0
      %v2538 = vmul.f32 %v2535, 0.35355338
      %v2539 = vsel %vm708, %v2538, -inf
      %2540 = vmax.xlane.f32.xlu0 %v2539
      %v2541 = vpop.xlane.xlu0 %2540
      %v2542 = vsub.f32 %v2538, %v2541
      %v2543 = vmul.f32 %v2542, 1.442695
      %v2544 = vpow.pop %v2543
      %v2545 = vsel %vm708, %v2544, 0.0
      %2546 = vadd.xlane.f32.xlu0 %v2545
      %v2547 = vpop.xlane.xlu0 %2546
      %v2548 = vrcp.pop %v2547
      %v2549 = vmul.f32 %v2544, %v2548
      %v2551 = vsel %vm708, %v2549, 0
      %2553 = vmatprep.subr.mxu0 0.0
      %2554 = vmatpush1.msra.mxu0 %v2298
      %2555 = vmatprep.subr.mxu0 0.0
      %2556 = vmatpush1.msra.mxu0 0.0
      %2557 = vmatprep.subr.mxu0 0.0
      %2558 = vmatpush1.msra.mxu0 0.0
      %2559 = vmatprep.subr.mxu0 0.0
      %2560 = vmatpush1.msra.mxu0 0.0
      %2561 = vmatprep.subr.mxu0 0.0
      %2562 = vmatpush1.msra.mxu0 0.0
      %2563 = vmatprep.subr.mxu0 0.0
      %2564 = vmatpush1.msra.mxu0 0.0
      %2565 = vmatprep.subr.mxu0 0.0
      %2566 = vmatpush1.msra.mxu0 0.0
      %2567 = vmatprep.subr.mxu0 0.0
      %2568 = vmatpush1.msra.mxu0 0.0
      %2569 = vmatprep.subr.mxu0 0.0
      %2570 = vmatpush1.msra.mxu0 0.0
      %2571 = vmatprep.subr.mxu0 0.0
      %2572 = vmatpush1.msra.mxu0 0.0
      %2573 = vmatprep.subr.mxu0 0.0
      %2574 = vmatpush1.msra.mxu0 0.0
      %2575 = vmatprep.subr.mxu0 0.0
      %2576 = vmatpush1.msra.mxu0 0.0
      %2577 = vmatprep.subr.mxu0 0.0
      %2578 = vmatpush1.msra.mxu0 0.0
      %2579 = vmatprep.subr.mxu0 0.0
      %2580 = vmatpush1.msra.mxu0 0.0
      %2581 = vmatprep.subr.mxu0 0.0
      %2582 = vmatpush1.msra.mxu0 0.0
      %2583 = vmatprep.subr.mxu0 0.0
      %2584 = vmatpush1.msra.mxu0 0.0
      %2585 = vmatprep.subr.mxu0 0.0
      %2586 = vmatpush1.msra.mxu0 0.0
      %2587 = vmatprep.subr.mxu0 0.0
      %2588 = vmatpush1.msra.mxu0 0.0
      %2589 = vmatprep.subr.mxu0 0.0
      %2590 = vmatpush1.msra.mxu0 0.0
      %2591 = vmatprep.subr.mxu0 0.0
      %2592 = vmatpush1.msra.mxu0 0.0
      %2593 = vmatprep.subr.mxu0 0.0
      %2594 = vmatpush1.msra.mxu0 0.0
      %2595 = vmatprep.subr.mxu0 0.0
      %2596 = vmatpush1.msra.mxu0 0.0
      %2597 = vmatprep.subr.mxu0 0.0
      %2598 = vmatpush1.msra.mxu0 0.0
      %2599 = vmatprep.subr.mxu0 0.0
      %2600 = vmatpush1.msra.mxu0 0.0
      %2601 = vmatprep.subr.mxu0 0.0
      %2602 = vmatpush1.msra.mxu0 0.0
      %2603 = vmatprep.subr.mxu0 0.0
      %2604 = vmatpush1.msra.mxu0 0.0
      %2605 = vmatprep.subr.mxu0 0.0
      %2606 = vmatpush1.msra.mxu0 0.0
      %2607 = vmatprep.subr.mxu0 0.0
      %2608 = vmatpush1.msra.mxu0 0.0
      %2609 = vmatprep.subr.mxu0 0.0
      %2610 = vmatpush1.msra.mxu0 0.0
      %2611 = vmatprep.subr.mxu0 0.0
      %2612 = vmatpush1.msra.mxu0 0.0
      %2613 = vmatprep.subr.mxu0 0.0
      %2614 = vmatpush1.msra.mxu0 0.0
      %2615 = vmatprep.subr.mxu0 0.0
      %2616 = vmatpush1.msra.mxu0 0.0
      %2617 = vmatprep.mubr.f32.mxu0 0.0
      %2618 = vmatmul.mubr.f32.gmra.mrb[0].mxu0 %v2551
      %v2619 = vpop.f32.mrb[0].mxu0
      %v2620 = vadd.f32 0.0, %v2619
      %v2621 = vpop.f32.mrb[0].mxu0
      %2622 = vdwg.mxu0
      %v2623 = vpack.c.bf16 %v2620, %v2459
      %s2624 = scalar_lea.vmem %s9, 12
      %v2625 = vld [vmem:[%s2624] sm:$0xf]
      %v2627 = vsel %vm708, %v2623, 0
      %v2630 = vsel %vm1519, %v2625, 0
      %2632 = vmatprep.subr.bf16.mxu0 0
      %2633 = vmatpush1.bf16.msra.mxu0 %v2630
      %2634 = vmatprep.subr.bf16.mxu0 0
      %2635 = vmatpush1.bf16.msra.mxu0 0
      %2636 = vmatprep.subr.bf16.mxu0 0
      %2637 = vmatpush1.bf16.msra.mxu0 0
      %2638 = vmatprep.subr.bf16.mxu0 0
      %2639 = vmatpush1.bf16.msra.mxu0 0
      %2640 = vmatprep.subr.bf16.mxu0 0
      %2641 = vmatpush1.bf16.msra.mxu0 0
      %2642 = vmatprep.subr.bf16.mxu0 0
      %2643 = vmatpush1.bf16.msra.mxu0 0
      %2644 = vmatprep.subr.bf16.mxu0 0
      %2645 = vmatpush1.bf16.msra.mxu0 0
      %2646 = vmatprep.subr.bf16.mxu0 0
      %2647 = vmatpush1.bf16.msra.mxu0 0
      %2648 = vmatprep.subr.bf16.mxu0 0
      %2649 = vmatpush1.bf16.msra.mxu0 0
      %2650 = vmatprep.subr.bf16.mxu0 0
      %2651 = vmatpush1.bf16.msra.mxu0 0
      %2652 = vmatprep.subr.bf16.mxu0 0
      %2653 = vmatpush1.bf16.msra.mxu0 0
      %2654 = vmatprep.subr.bf16.mxu0 0
      %2655 = vmatpush1.bf16.msra.mxu0 0
      %2656 = vmatprep.subr.bf16.mxu0 0
      %2657 = vmatpush1.bf16.msra.mxu0 0
      %2658 = vmatprep.subr.bf16.mxu0 0
      %2659 = vmatpush1.bf16.msra.mxu0 0
      %2660 = vmatprep.subr.bf16.mxu0 0
      %2661 = vmatpush1.bf16.msra.mxu0 0
      %2662 = vmatprep.subr.bf16.mxu0 0
      %2663 = vmatpush1.bf16.msra.mxu0 0
      %2664 = vmatprep.mubr.bf16.mxu0 0
      %2665 = vmatmul.mubr.bf16.gmra.mrb[0].mxu0 %v2627
      %v2666 = vpop.f32.mrb[0].mxu0
      %v2667 = vadd.f32 0.0, %v2666
      %v2668 = vpop.f32.mrb[0].mxu0
      %v2669 = vpop.f32.mrb[0].mxu0
      %v2670 = vadd.f32 0.0, %v2669
      %v2671 = vpop.f32.mrb[0].mxu0
      %2672 = vdwg.mxu0
      %v2673 = vadd.f32 %v2141, %v2667
      %v2674 = vadd.f32 %v2142, %v2670
      %v2675 = vld [vmem:[%s10] sm:$0x1]
      %v2677 = vlaneseq
      %v2678 = vshrl.u32 %v2677, 7
      %v2679 = vsub.s32 0, %v2678
      %v2680 = vrot.slane %v2675, %v2679
      %v2682 = vadd.f32 %v2673, %v2680
      %v2683 = vadd.f32 %v2674, %v2680
      %v2684 = vadd.f32 %v2682, %v451
      %v2685 = vadd.f32 %v2683, %v452
      %2686 = vst.msk [vmem:[%s446] sm:$0xff] %vm501, %v2684
      %2687 = vst.msk [vmem:[%s446 + $0x8] sm:$0xff] %vm501, %v2685
      %s2688 = smul.u32 2, %s27
      %p2689 = scmp.lt.s32.totalorder %s26, 1
      %s2690 = scalar_select %p2689, %s26, 1
      %p2691 = scmp.lt.s32.totalorder %s2688, 1
      %s2692 = scalar_select %p2691, %s2688, 1
      %s2693 = smul.addr %s2690, 2
      %s2694 = sadd.s32 %s2692, %s2693
      %s2695 = smul.addr %s2694, 8
      %s2696 = scalar_lea.vmem %s11, %s2695
      // Predicated region
      $region65: #{hip_block_forward.3} parent=63 // pred_check
        %p2697 = pneg %p297
      $region66: #{hip_block_forward.3} parent=63 // pred_check_branch
        %2699 = sbr.rel (%p2697) target = $region68
      $region67: #{hip_block_forward.3} parent=63 // pred_region
        %s2700 = smul.u32 2, %s27
      $region68: #{hip_block_forward.3} parent=63 // pred_fallthru
        _
    $region64: #{hip_block_forward.3} parent=5 // pred_fallthru
      _
    %p2701 = scmp.le.s32.totalorder 2, %s17
    // Predicated region
    $region69: #{hip_block_forward.3} parent=5 // pred_check
      %p2702 = pneg %p2701
    $region70: #{hip_block_forward.3} parent=5 // pred_check_branch
      %2704 = sbr.rel (%p2702) target = $region72
    $region71: #{hip_block_forward.3} parent=5 // pred_region
      %s2705 = ssub.s32 %s17, 2
      // Predicated region
      $region73: #{hip_block_forward.3} parent=71 // pred_check
        %p2706 = pneg %p303
      $region74: #{hip_block_forward.3} parent=71 // pred_check_branch
        %2708 = sbr.rel (%p2706) target = $region76
      $region75: #{hip_block_forward.3} parent=71 // pred_region
        %s2709 = smul.u32 2, %s29
        %p2710 = scmp.lt.s32.totalorder %s28, 1
        %s2711 = scalar_select %p2710, %s28, 1
        %p2712 = scmp.lt.s32.totalorder %s2709, 1
        %s2713 = scalar_select %p2712, %s2709, 1
        %s2714 = smul.addr %s2711, 2
        %s2715 = sadd.s32 %s2713, %s2714
        %s2716 = smul.addr %s2715, 8
        %s2717 = scalar_lea.vmem %s11, %s2716
      $region76: #{hip_block_forward.3} parent=71 // pred_fallthru
        _
    $region72: #{hip_block_forward.3} parent=5 // pred_fallthru
      _
  $region6: #{hip_block_forward.3} parent=0 // loop_footer
    %s21 = sadd.s32 1, %s17
  $region7: #{hip_block_forward.3} parent=0 // loop_footer_branch
    %16 = sbr.rel target = $region3
  $region8: #{hip_block_forward.3} parent=0 // loop_exit
    _

</llo_original>
